<compile_context>
chip_gen: v7x
topology: tpu7x:2x2x1
jax: 0.10.0
libtpu: 0.0.40
codegen_flags: <defaults>
</compile_context>

<pallas_src>
import functools

import jax
import jax.numpy as jnp
from jax.experimental import pallas as pl
from jax.experimental.pallas import tpu as pltpu

IN_CHANNELS = 4
L_IN = 50                      # fixed by fc1 input size 32*44
L_C1 = L_IN - 2                # 48  (conv1, k=3, s=1)
L_P1 = L_C1 - 1                # 47  (maxpool k=2, s=1)
L_C2 = L_P1 - 2                # 45  (conv2, k=3, s=1)
L_P2 = L_C2 - 1                # 44  (maxpool k=2, s=1)
C1_OUT = 16
C2_OUT = 32
FC1_OUT = 64
FC2_OUT = 50
KSIZE = 3


def cnn1d_kernel(x_ref, w1_ref, b1_ref, w2_ref, b2_ref,
                 wf1_ref, bf1_ref, wf2_ref, bf2_ref, out_ref,
                 *, b_tile, matmul_dtype):
    bt = b_tile
    # x tile: (C_pad, L_IN * bt), column index = l*bt + b  (batch on lanes).
    x = x_ref[0]

    # ---- conv1: one (16, 3*C_pad) x (3*C_pad, 48*bt) 2-D matmul ----
    # Tap shifts are lane-tile-aligned slices (offsets k*bt, multiples of 128);
    # 8-row pieces concatenate along sublanes as aligned copies.
    slab1 = jnp.concatenate(
        [x[:, k * bt:(k + L_C1) * bt] for k in range(KSIZE)], axis=0)
    y1 = jnp.dot(w1_ref[...], slab1, preferred_element_type=jnp.float32)
    y1 = jnp.maximum(y1 + b1_ref[...], 0.0)                  # (16, 48*bt) f32

    # ---- maxpool1 (k=2, s=1): lane-tile-aligned shifted max ----
    p1 = jnp.maximum(y1[:, :L_P1 * bt], y1[:, bt:L_C1 * bt])  # (16, 47*bt)
    p1 = p1.astype(matmul_dtype)

    # ---- conv2: one (32, 48) x (48, 45*bt) 2-D matmul ----
    slab2 = jnp.concatenate(
        [p1[:, k * bt:(k + L_C2) * bt] for k in range(KSIZE)], axis=0)
    y2 = jnp.dot(w2_ref[...], slab2, preferred_element_type=jnp.float32)
    y2 = jnp.maximum(y2 + b2_ref[...], 0.0)                   # (32, 45*bt)

    # ---- maxpool2 ----
    p2 = jnp.maximum(y2[:, :L_P2 * bt], y2[:, bt:L_C2 * bt])  # (32, 44*bt)
    p2 = p2.astype(matmul_dtype)

    # ---- fc1 without any relayout: 44 accumulated (64,32)x(32,bt) matmuls ----
    # wf1_ref[l] is the per-position weight (torch flatten order c*44 + l);
    # p2[:, l*bt:(l+1)*bt] is a lane-tile-aligned slice. f32 accumulation.
    h = jnp.dot(wf1_ref[0], p2[:, :bt], preferred_element_type=jnp.float32)
    for l in range(1, L_P2):
        h = h + jnp.dot(wf1_ref[l], p2[:, l * bt:(l + 1) * bt],
                        preferred_element_type=jnp.float32)
    h = jnp.maximum(h + bf1_ref[...], 0.0)                    # (64, bt) f32

    # ---- fc2: (50, 64) x (64, bt) ----
    out = jnp.dot(wf2_ref[...], h.astype(matmul_dtype),
                  preferred_element_type=jnp.float32) + bf2_ref[...]
    out_ref[...] = out.astype(out_ref.dtype)                  # (50, bt) lane-dense


def cnn1d_forward(x, params, *, b_tile=256, matmul_dtype=jnp.bfloat16):
    """x: (B, C_in, 50) float32 -> (B, 50) float32.

    b_tile: per-grid-step batch tile (lane axis inside the kernel); must be a
      multiple of 128. 256 is the default (fills the 256-wide v6e/v7x MXU on
      the fc matmuls). For large batches use 256-512 on v7x (64 MiB VMEM, and
      keep ceil(B/b_tile) >= 2 so both TensorCores get work) and up to 512 on
      v5e/v6e.
    matmul_dtype: bfloat16 (default) feeds the MXU natively on all three
      generations; accumulation and all elementwise math stay float32.
      Pass jnp.float32 for bit-tight numerics vs an f32 reference.
    """
    B, c_in, l_in = x.shape
    assert l_in == L_IN, f"CNN1D requires L={L_IN} (fc1 = Linear(32*44, 64))"
    assert b_tile % 128 == 0, "b_tile must be a multiple of 128"
    w1, b1, w2, b2, wf1, bf1, wf2, bf2 = params
    md = jnp.dtype(matmul_dtype)
    mdb = md.itemsize
    c_pad = max(8, ((c_in + 7) // 8) * 8)      # 8-align channels for conv1 im2col

    # Tap-stacked conv weights (column order k*C + c), conv1 channel-padded.
    w1p = jnp.pad(w1, ((0, 0), (0, c_pad - c_in), (0, 0)))
    w1s = jnp.transpose(w1p, (0, 2, 1)).reshape(C1_OUT, KSIZE * c_pad)
    w2s = jnp.transpose(w2, (0, 2, 1)).reshape(C2_OUT, KSIZE * C1_OUT)
    # fc1 weight as 44 per-position (64, 32) matrices: wf1_3d[l, o, c] = wf1[o, c*44+l].
    wf1_3d = jnp.transpose(wf1.reshape(FC1_OUT, C2_OUT, L_P2), (2, 0, 1))

    # Per-block lane-dense input: x_p[i, c, l*b_tile + b] = x[i*b_tile + b, c, l].
    n_blocks = pl.cdiv(B, b_tile)
    b_pad = n_blocks * b_tile
    x_p = jnp.pad(x, ((0, b_pad - B), (0, c_pad - c_in), (0, 0)))
    x_p = x_p.reshape(n_blocks, b_tile, c_pad, L_IN)
    x_p = jnp.transpose(x_p, (0, 2, 3, 1)).reshape(n_blocks, c_pad, L_IN * b_tile)
    x_p = x_p.astype(md)
    # TODO(synk): the batch-major -> lane-dense transpose above is a wrapper-side
    # XLA op (one extra HBM pass over x, ~0.1-0.4 MB/step); fuse it into the
    # operand via CompilerParams(allow_input_fusion=...) if it ever shows in a
    # profile — the kernel itself is relayout-free.

    args = (
        x_p,
        w1s.astype(md), b1.reshape(C1_OUT, 1).astype(jnp.float32),
        w2s.astype(md), b2.reshape(C2_OUT, 1).astype(jnp.float32),
        wf1_3d.astype(md), bf1.reshape(FC1_OUT, 1).astype(jnp.float32),
        wf2.astype(md), bf2.reshape(FC2_OUT, 1).astype(jnp.float32),
    )

    const2 = lambda i: (0, 0)
    const3 = lambda i: (0, 0, 0)
    in_specs = [
        pl.BlockSpec((1, c_pad, L_IN * b_tile), lambda i: (i, 0, 0)),  # x (tiled)
        pl.BlockSpec((C1_OUT, KSIZE * c_pad), const2),                 # w1s
        pl.BlockSpec((C1_OUT, 1), const2),                             # b1
        pl.BlockSpec((C2_OUT, KSIZE * C1_OUT), const2),                # w2s
        pl.BlockSpec((C2_OUT, 1), const2),                             # b2
        pl.BlockSpec((L_P2, FC1_OUT, C2_OUT), const3),                 # wf1 (44,64,32)
        pl.BlockSpec((FC1_OUT, 1), const2),                            # bf1
        pl.BlockSpec((FC2_OUT, FC1_OUT), const2),                      # wf2
        pl.BlockSpec((FC2_OUT, 1), const2),                            # bf2
    ]
    out_spec = pl.BlockSpec((FC2_OUT, b_tile), lambda i: (0, i))

    # VMEM limit sized from the actual per-step footprint (I/O windows double-
    # buffered, resident weights, f32/md intermediates), clamped under v7x's
    # 64 MiB physical VMEM.
    w_bytes = sum(int(a.size) * a.dtype.itemsize for a in args[1:])
    per_step = (
        c_pad * L_IN * b_tile * mdb                 # x window
        + FC2_OUT * b_tile * 4                      # out window
        + KSIZE * c_pad * L_C1 * b_tile * mdb       # slab1
        + C1_OUT * L_C1 * b_tile * 4                # y1 (f32)
        + C1_OUT * L_P1 * b_tile * mdb              # p1
        + KSIZE * C1_OUT * L_C2 * b_tile * mdb      # slab2
        + C2_OUT * L_C2 * b_tile * 4                # y2 (f32)
        + C2_OUT * L_P2 * b_tile * (4 + mdb)        # p2 (f32 max + md cast)
        + 2 * FC1_OUT * b_tile * 4                  # fc1 accumulator
    )
    vmem_limit = int(min(max(2 * per_step + 2 * w_bytes + (4 << 20), 32 << 20),
                         56 << 20))

    flops_per_sample = 2 * (C1_OUT * L_C1 * KSIZE * c_pad
                            + C2_OUT * L_C2 * KSIZE * C1_OUT
                            + FC1_OUT * C2_OUT * L_P2
                            + FC2_OUT * FC1_OUT)
    cost = pl.CostEstimate(
        flops=int(flops_per_sample * b_pad),
        transcendentals=0,
        bytes_accessed=int(c_pad * L_IN * mdb * b_pad
                           + FC2_OUT * 4 * b_pad + w_bytes),
    )

    out_t = pl.pallas_call(
        functools.partial(cnn1d_kernel, b_tile=b_tile, matmul_dtype=md),
        out_shape=jax.ShapeDtypeStruct((FC2_OUT, b_pad), jnp.float32),
        grid_spec=pltpu.PrefetchScalarGridSpec(
            num_scalar_prefetch=0,
            grid=(n_blocks,),
            in_specs=in_specs,
            out_specs=out_spec,
        ),
        compiler_params=pltpu.CompilerParams(
            dimension_semantics=("parallel",),
            vmem_limit_bytes=vmem_limit),
        cost_estimate=cost,
    )(*args)

    # Back to PyTorch layout (B, 50); drop the batch padding.
    return jnp.transpose(out_t[:, :B], (1, 0))


def init_params(key, in_channels):
    """Deterministic synthetic init (PyTorch-style uniform fan_in bounds)."""
    def unif(k, shape, fan_in):
        bound = 1.0 / jnp.sqrt(jnp.float32(fan_in))
        return jax.random.uniform(k, shape, jnp.float32, -bound, bound)

    ks = jax.random.split(key, 8)
    w1 = unif(ks[0], (C1_OUT, in_channels, 3), in_channels * 3)
    b1 = unif(ks[1], (C1_OUT,), in_channels * 3)
    w2 = unif(ks[2], (C2_OUT, C1_OUT, 3), C1_OUT * 3)
    b2 = unif(ks[3], (C2_OUT,), C1_OUT * 3)
    wf1 = unif(ks[4], (FC1_OUT, C2_OUT * L_P2), C2_OUT * L_P2)
    bf1 = unif(ks[5], (FC1_OUT,), C2_OUT * L_P2)
    wf2 = unif(ks[6], (FC2_OUT, FC1_OUT), FC1_OUT)
    bf2 = unif(ks[7], (FC2_OUT,), FC1_OUT)
    return (w1, b1, w2, b2, wf1, bf1, wf2, bf2)


def reference_forward(x, params):
    """Pure-JAX reference (same math as the PyTorch module)."""
    w1, b1, w2, b2, wf1, bf1, wf2, bf2 = params
    y1 = jax.lax.conv_general_dilated(x, w1, (1,), 'VALID',
                                      dimension_numbers=('NCH', 'OIH', 'NCH'))
    y1 = jnp.maximum(y1 + b1[None, :, None], 0.0)
    p1 = jnp.maximum(y1[:, :, :-1], y1[:, :, 1:])          # MaxPool1d(2, stride=1)
    y2 = jax.lax.conv_general_dilated(p1, w2, (1,), 'VALID',
                                      dimension_numbers=('NCH', 'OIH', 'NCH'))
    y2 = jnp.maximum(y2 + b2[None, :, None], 0.0)
    p2 = jnp.maximum(y2[:, :, :-1], y2[:, :, 1:])
    flat = p2.reshape(x.shape[0], -1)                       # torch order c*44 + l
    h = jnp.maximum(flat @ wf1.T + bf1, 0.0)
    return h @ wf2.T + bf2


if __name__ == "__main__":
    key = jax.random.PRNGKey(0)
    k_x, k_p = jax.random.split(key)
    B = 2
    x = jax.random.normal(k_x, (B, IN_CHANNELS, L_IN), jnp.float32)
    params = init_params(k_p, IN_CHANNELS)

    ref = jax.block_until_ready(reference_forward(x, params))

    # f32 MXU operands: tight numerical check.
    out_f32 = jax.block_until_ready(
        cnn1d_forward(x, params, b_tile=128, matmul_dtype=jnp.float32))
    assert out_f32.shape == (B, FC2_OUT)
    assert jnp.allclose(out_f32, ref, atol=1e-4, rtol=1e-4), "f32 mismatch vs reference"

    # Default path (bf16 MXU operands, f32 accumulation, b_tile=256): loose check.
    out_bf16 = jax.block_until_ready(cnn1d_forward(x, params))
    assert out_bf16.shape == (B, FC2_OUT)
    assert jnp.allclose(out_bf16, ref, atol=5e-2, rtol=5e-2), "bf16 mismatch vs reference"

    print("KERNEL_OK")
</pallas_src>

<mosaic_0001>
module attributes {stable_mosaic.version = 11 : i64} {
  func.func @cnn1d_kernel(%arg0: i32, %arg1: memref<1x8x6400xf32, #tpu.memory_space<vmem>>, %arg2: memref<16x24xf32, #tpu.memory_space<vmem>>, %arg3: memref<16x1xf32, #tpu.memory_space<vmem>>, %arg4: memref<32x48xf32, #tpu.memory_space<vmem>>, %arg5: memref<32x1xf32, #tpu.memory_space<vmem>>, %arg6: memref<44x64x32xf32, #tpu.memory_space<vmem>>, %arg7: memref<64x1xf32, #tpu.memory_space<vmem>>, %arg8: memref<50x64xf32, #tpu.memory_space<vmem>>, %arg9: memref<50x1xf32, #tpu.memory_space<vmem>>, %arg10: memref<50x128xf32, #tpu.memory_space<vmem>>) attributes {dimension_semantics = [#tpu.dimension_semantics<parallel>], iteration_bounds = array<i64: 1>, scalar_prefetch = 0 : i64, scratch_operands = 0 : i64, tpu.core_type = #tpu.core_type<tc>, window_params = [{transform_indices = @transform_0, window_bounds = array<i64: 1, 8, 6400>}, {pipeline_mode = #tpu.pipeline_mode<synchronous>, transform_indices = @transform_1, window_bounds = array<i64: 16, 24>}, {pipeline_mode = #tpu.pipeline_mode<synchronous>, transform_indices = @transform_2, window_bounds = array<i64: 16, 1>}, {pipeline_mode = #tpu.pipeline_mode<synchronous>, transform_indices = @transform_3, window_bounds = array<i64: 32, 48>}, {pipeline_mode = #tpu.pipeline_mode<synchronous>, transform_indices = @transform_4, window_bounds = array<i64: 32, 1>}, {pipeline_mode = #tpu.pipeline_mode<synchronous>, transform_indices = @transform_5, window_bounds = array<i64: 44, 64, 32>}, {pipeline_mode = #tpu.pipeline_mode<synchronous>, transform_indices = @transform_6, window_bounds = array<i64: 64, 1>}, {pipeline_mode = #tpu.pipeline_mode<synchronous>, transform_indices = @transform_7, window_bounds = array<i64: 50, 64>}, {pipeline_mode = #tpu.pipeline_mode<synchronous>, transform_indices = @transform_8, window_bounds = array<i64: 50, 1>}, {transform_indices = @transform_9, window_bounds = array<i64: 50, 128>}]} {
    %c0 = arith.constant 0 : index
    %c0_0 = arith.constant 0 : index
    %c0_1 = arith.constant 0 : index
    %0 = vector.load %arg1[%c0, %c0_0, %c0_1] : memref<1x8x6400xf32, #tpu.memory_space<vmem>>, vector<1x8x6400xf32>
    %1 = vector.shape_cast %0 : vector<1x8x6400xf32> to vector<8x6400xf32>
    %2 = vector.extract_strided_slice %1 {offsets = [0, 0], sizes = [8, 6144], strides = [1, 1]} : vector<8x6400xf32> to vector<8x6144xf32>
    %3 = vector.extract_strided_slice %1 {offsets = [0, 128], sizes = [8, 6144], strides = [1, 1]} : vector<8x6400xf32> to vector<8x6144xf32>
    %4 = vector.extract_strided_slice %1 {offsets = [0, 256], sizes = [8, 6144], strides = [1, 1]} : vector<8x6400xf32> to vector<8x6144xf32>
    %5 = tpu.concatenate %2, %3, %4 in 0 : vector<8x6144xf32>, vector<8x6144xf32>, vector<8x6144xf32> -> vector<24x6144xf32>
    %c0_2 = arith.constant 0 : index
    %c0_3 = arith.constant 0 : index
    %6 = vector.load %arg2[%c0_2, %c0_3] : memref<16x24xf32, #tpu.memory_space<vmem>>, vector<16x24xf32>
    %cst = arith.constant dense<0.000000e+00> : vector<16x6144xf32>
    %7 = tpu.matmul %6, %5, %cst {dimension_numbers = #tpu.dot_dimension_numbers<[1], [0], [0], [1], [0, 0, 1, 1], [], []>} : vector<16x24xf32>, vector<24x6144xf32>, vector<16x6144xf32> -> vector<16x6144xf32>
    %c0_4 = arith.constant 0 : index
    %c0_5 = arith.constant 0 : index
    %8 = vector.load %arg3[%c0_4, %c0_5] : memref<16x1xf32, #tpu.memory_space<vmem>>, vector<16x1xf32>
    %9 = vector.broadcast %8 : vector<16x1xf32> to vector<16x6144xf32>
    %10 = arith.addf %7, %9 : vector<16x6144xf32>
    %cst_6 = arith.constant 0.000000e+00 : f32
    %11 = vector.broadcast %cst_6 : f32 to vector<16x6144xf32>
    %12 = arith.maximumf %10, %11 : vector<16x6144xf32>
    %13 = vector.extract_strided_slice %12 {offsets = [0, 0], sizes = [16, 6016], strides = [1, 1]} : vector<16x6144xf32> to vector<16x6016xf32>
    %14 = vector.extract_strided_slice %12 {offsets = [0, 128], sizes = [16, 6016], strides = [1, 1]} : vector<16x6144xf32> to vector<16x6016xf32>
    %15 = arith.maximumf %13, %14 : vector<16x6016xf32>
    %16 = vector.extract_strided_slice %15 {offsets = [0, 0], sizes = [16, 5760], strides = [1, 1]} : vector<16x6016xf32> to vector<16x5760xf32>
    %17 = vector.extract_strided_slice %15 {offsets = [0, 128], sizes = [16, 5760], strides = [1, 1]} : vector<16x6016xf32> to vector<16x5760xf32>
    %18 = vector.extract_strided_slice %15 {offsets = [0, 256], sizes = [16, 5760], strides = [1, 1]} : vector<16x6016xf32> to vector<16x5760xf32>
    %19 = tpu.concatenate %16, %17, %18 in 0 : vector<16x5760xf32>, vector<16x5760xf32>, vector<16x5760xf32> -> vector<48x5760xf32>
    %c0_7 = arith.constant 0 : index
    %c0_8 = arith.constant 0 : index
    %20 = vector.load %arg4[%c0_7, %c0_8] : memref<32x48xf32, #tpu.memory_space<vmem>>, vector<32x48xf32>
    %cst_9 = arith.constant dense<0.000000e+00> : vector<32x5760xf32>
    %21 = tpu.matmul %20, %19, %cst_9 {dimension_numbers = #tpu.dot_dimension_numbers<[1], [0], [0], [1], [0, 0, 1, 1], [], []>} : vector<32x48xf32>, vector<48x5760xf32>, vector<32x5760xf32> -> vector<32x5760xf32>
    %c0_10 = arith.constant 0 : index
    %c0_11 = arith.constant 0 : index
    %22 = vector.load %arg5[%c0_10, %c0_11] : memref<32x1xf32, #tpu.memory_space<vmem>>, vector<32x1xf32>
    %23 = vector.broadcast %22 : vector<32x1xf32> to vector<32x5760xf32>
    %24 = arith.addf %21, %23 : vector<32x5760xf32>
    %cst_12 = arith.constant 0.000000e+00 : f32
    %25 = vector.broadcast %cst_12 : f32 to vector<32x5760xf32>
    %26 = arith.maximumf %24, %25 : vector<32x5760xf32>
    %27 = vector.extract_strided_slice %26 {offsets = [0, 0], sizes = [32, 5632], strides = [1, 1]} : vector<32x5760xf32> to vector<32x5632xf32>
    %28 = vector.extract_strided_slice %26 {offsets = [0, 128], sizes = [32, 5632], strides = [1, 1]} : vector<32x5760xf32> to vector<32x5632xf32>
    %29 = arith.maximumf %27, %28 : vector<32x5632xf32>
    %c0_13 = arith.constant 0 : index
    %c0_14 = arith.constant 0 : index
    %c0_15 = arith.constant 0 : index
    %30 = vector.load %arg6[%c0_13, %c0_14, %c0_15] : memref<44x64x32xf32, #tpu.memory_space<vmem>>, vector<1x64x32xf32>
    %31 = vector.shape_cast %30 : vector<1x64x32xf32> to vector<64x32xf32>
    %32 = vector.extract_strided_slice %29 {offsets = [0, 0], sizes = [32, 128], strides = [1, 1]} : vector<32x5632xf32> to vector<32x128xf32>
    %cst_16 = arith.constant dense<0.000000e+00> : vector<64x128xf32>
    %33 = tpu.matmul %31, %32, %cst_16 {dimension_numbers = #tpu.dot_dimension_numbers<[1], [0], [0], [1], [0, 0, 1, 1], [], []>} : vector<64x32xf32>, vector<32x128xf32>, vector<64x128xf32> -> vector<64x128xf32>
    %c1 = arith.constant 1 : index
    %c0_17 = arith.constant 0 : index
    %c0_18 = arith.constant 0 : index
    %34 = vector.load %arg6[%c1, %c0_17, %c0_18] : memref<44x64x32xf32, #tpu.memory_space<vmem>>, vector<1x64x32xf32>
    %35 = vector.shape_cast %34 : vector<1x64x32xf32> to vector<64x32xf32>
    %36 = vector.extract_strided_slice %29 {offsets = [0, 128], sizes = [32, 128], strides = [1, 1]} : vector<32x5632xf32> to vector<32x128xf32>
    %cst_19 = arith.constant dense<0.000000e+00> : vector<64x128xf32>
    %37 = tpu.matmul %35, %36, %cst_19 {dimension_numbers = #tpu.dot_dimension_numbers<[1], [0], [0], [1], [0, 0, 1, 1], [], []>} : vector<64x32xf32>, vector<32x128xf32>, vector<64x128xf32> -> vector<64x128xf32>
    %38 = arith.addf %33, %37 : vector<64x128xf32>
    %c2 = arith.constant 2 : index
    %c0_20 = arith.constant 0 : index
    %c0_21 = arith.constant 0 : index
    %39 = vector.load %arg6[%c2, %c0_20, %c0_21] : memref<44x64x32xf32, #tpu.memory_space<vmem>>, vector<1x64x32xf32>
    %40 = vector.shape_cast %39 : vector<1x64x32xf32> to vector<64x32xf32>
    %41 = vector.extract_strided_slice %29 {offsets = [0, 256], sizes = [32, 128], strides = [1, 1]} : vector<32x5632xf32> to vector<32x128xf32>
    %cst_22 = arith.constant dense<0.000000e+00> : vector<64x128xf32>
    %42 = tpu.matmul %40, %41, %cst_22 {dimension_numbers = #tpu.dot_dimension_numbers<[1], [0], [0], [1], [0, 0, 1, 1], [], []>} : vector<64x32xf32>, vector<32x128xf32>, vector<64x128xf32> -> vector<64x128xf32>
    %43 = arith.addf %38, %42 : vector<64x128xf32>
    %c3 = arith.constant 3 : index
    %c0_23 = arith.constant 0 : index
    %c0_24 = arith.constant 0 : index
    %44 = vector.load %arg6[%c3, %c0_23, %c0_24] : memref<44x64x32xf32, #tpu.memory_space<vmem>>, vector<1x64x32xf32>
    %45 = vector.shape_cast %44 : vector<1x64x32xf32> to vector<64x32xf32>
    %46 = vector.extract_strided_slice %29 {offsets = [0, 384], sizes = [32, 128], strides = [1, 1]} : vector<32x5632xf32> to vector<32x128xf32>
    %cst_25 = arith.constant dense<0.000000e+00> : vector<64x128xf32>
    %47 = tpu.matmul %45, %46, %cst_25 {dimension_numbers = #tpu.dot_dimension_numbers<[1], [0], [0], [1], [0, 0, 1, 1], [], []>} : vector<64x32xf32>, vector<32x128xf32>, vector<64x128xf32> -> vector<64x128xf32>
    %48 = arith.addf %43, %47 : vector<64x128xf32>
    %c4 = arith.constant 4 : index
    %c0_26 = arith.constant 0 : index
    %c0_27 = arith.constant 0 : index
    %49 = vector.load %arg6[%c4, %c0_26, %c0_27] : memref<44x64x32xf32, #tpu.memory_space<vmem>>, vector<1x64x32xf32>
    %50 = vector.shape_cast %49 : vector<1x64x32xf32> to vector<64x32xf32>
    %51 = vector.extract_strided_slice %29 {offsets = [0, 512], sizes = [32, 128], strides = [1, 1]} : vector<32x5632xf32> to vector<32x128xf32>
    %cst_28 = arith.constant dense<0.000000e+00> : vector<64x128xf32>
    %52 = tpu.matmul %50, %51, %cst_28 {dimension_numbers = #tpu.dot_dimension_numbers<[1], [0], [0], [1], [0, 0, 1, 1], [], []>} : vector<64x32xf32>, vector<32x128xf32>, vector<64x128xf32> -> vector<64x128xf32>
    %53 = arith.addf %48, %52 : vector<64x128xf32>
    %c5 = arith.constant 5 : index
    %c0_29 = arith.constant 0 : index
    %c0_30 = arith.constant 0 : index
    %54 = vector.load %arg6[%c5, %c0_29, %c0_30] : memref<44x64x32xf32, #tpu.memory_space<vmem>>, vector<1x64x32xf32>
    %55 = vector.shape_cast %54 : vector<1x64x32xf32> to vector<64x32xf32>
    %56 = vector.extract_strided_slice %29 {offsets = [0, 640], sizes = [32, 128], strides = [1, 1]} : vector<32x5632xf32> to vector<32x128xf32>
    %cst_31 = arith.constant dense<0.000000e+00> : vector<64x128xf32>
    %57 = tpu.matmul %55, %56, %cst_31 {dimension_numbers = #tpu.dot_dimension_numbers<[1], [0], [0], [1], [0, 0, 1, 1], [], []>} : vector<64x32xf32>, vector<32x128xf32>, vector<64x128xf32> -> vector<64x128xf32>
    %58 = arith.addf %53, %57 : vector<64x128xf32>
    %c6 = arith.constant 6 : index
    %c0_32 = arith.constant 0 : index
    %c0_33 = arith.constant 0 : index
    %59 = vector.load %arg6[%c6, %c0_32, %c0_33] : memref<44x64x32xf32, #tpu.memory_space<vmem>>, vector<1x64x32xf32>
    %60 = vector.shape_cast %59 : vector<1x64x32xf32> to vector<64x32xf32>
    %61 = vector.extract_strided_slice %29 {offsets = [0, 768], sizes = [32, 128], strides = [1, 1]} : vector<32x5632xf32> to vector<32x128xf32>
    %cst_34 = arith.constant dense<0.000000e+00> : vector<64x128xf32>
    %62 = tpu.matmul %60, %61, %cst_34 {dimension_numbers = #tpu.dot_dimension_numbers<[1], [0], [0], [1], [0, 0, 1, 1], [], []>} : vector<64x32xf32>, vector<32x128xf32>, vector<64x128xf32> -> vector<64x128xf32>
    %63 = arith.addf %58, %62 : vector<64x128xf32>
    %c7 = arith.constant 7 : index
    %c0_35 = arith.constant 0 : index
    %c0_36 = arith.constant 0 : index
    %64 = vector.load %arg6[%c7, %c0_35, %c0_36] : memref<44x64x32xf32, #tpu.memory_space<vmem>>, vector<1x64x32xf32>
    %65 = vector.shape_cast %64 : vector<1x64x32xf32> to vector<64x32xf32>
    %66 = vector.extract_strided_slice %29 {offsets = [0, 896], sizes = [32, 128], strides = [1, 1]} : vector<32x5632xf32> to vector<32x128xf32>
    %cst_37 = arith.constant dense<0.000000e+00> : vector<64x128xf32>
    %67 = tpu.matmul %65, %66, %cst_37 {dimension_numbers = #tpu.dot_dimension_numbers<[1], [0], [0], [1], [0, 0, 1, 1], [], []>} : vector<64x32xf32>, vector<32x128xf32>, vector<64x128xf32> -> vector<64x128xf32>
    %68 = arith.addf %63, %67 : vector<64x128xf32>
    %c8 = arith.constant 8 : index
    %c0_38 = arith.constant 0 : index
    %c0_39 = arith.constant 0 : index
    %69 = vector.load %arg6[%c8, %c0_38, %c0_39] : memref<44x64x32xf32, #tpu.memory_space<vmem>>, vector<1x64x32xf32>
    %70 = vector.shape_cast %69 : vector<1x64x32xf32> to vector<64x32xf32>
    %71 = vector.extract_strided_slice %29 {offsets = [0, 1024], sizes = [32, 128], strides = [1, 1]} : vector<32x5632xf32> to vector<32x128xf32>
    %cst_40 = arith.constant dense<0.000000e+00> : vector<64x128xf32>
    %72 = tpu.matmul %70, %71, %cst_40 {dimension_numbers = #tpu.dot_dimension_numbers<[1], [0], [0], [1], [0, 0, 1, 1], [], []>} : vector<64x32xf32>, vector<32x128xf32>, vector<64x128xf32> -> vector<64x128xf32>
    %73 = arith.addf %68, %72 : vector<64x128xf32>
    %c9 = arith.constant 9 : index
    %c0_41 = arith.constant 0 : index
    %c0_42 = arith.constant 0 : index
    %74 = vector.load %arg6[%c9, %c0_41, %c0_42] : memref<44x64x32xf32, #tpu.memory_space<vmem>>, vector<1x64x32xf32>
    %75 = vector.shape_cast %74 : vector<1x64x32xf32> to vector<64x32xf32>
    %76 = vector.extract_strided_slice %29 {offsets = [0, 1152], sizes = [32, 128], strides = [1, 1]} : vector<32x5632xf32> to vector<32x128xf32>
    %cst_43 = arith.constant dense<0.000000e+00> : vector<64x128xf32>
    %77 = tpu.matmul %75, %76, %cst_43 {dimension_numbers = #tpu.dot_dimension_numbers<[1], [0], [0], [1], [0, 0, 1, 1], [], []>} : vector<64x32xf32>, vector<32x128xf32>, vector<64x128xf32> -> vector<64x128xf32>
    %78 = arith.addf %73, %77 : vector<64x128xf32>
    %c10 = arith.constant 10 : index
    %c0_44 = arith.constant 0 : index
    %c0_45 = arith.constant 0 : index
    %79 = vector.load %arg6[%c10, %c0_44, %c0_45] : memref<44x64x32xf32, #tpu.memory_space<vmem>>, vector<1x64x32xf32>
    %80 = vector.shape_cast %79 : vector<1x64x32xf32> to vector<64x32xf32>
    %81 = vector.extract_strided_slice %29 {offsets = [0, 1280], sizes = [32, 128], strides = [1, 1]} : vector<32x5632xf32> to vector<32x128xf32>
    %cst_46 = arith.constant dense<0.000000e+00> : vector<64x128xf32>
    %82 = tpu.matmul %80, %81, %cst_46 {dimension_numbers = #tpu.dot_dimension_numbers<[1], [0], [0], [1], [0, 0, 1, 1], [], []>} : vector<64x32xf32>, vector<32x128xf32>, vector<64x128xf32> -> vector<64x128xf32>
    %83 = arith.addf %78, %82 : vector<64x128xf32>
    %c11 = arith.constant 11 : index
    %c0_47 = arith.constant 0 : index
    %c0_48 = arith.constant 0 : index
    %84 = vector.load %arg6[%c11, %c0_47, %c0_48] : memref<44x64x32xf32, #tpu.memory_space<vmem>>, vector<1x64x32xf32>
    %85 = vector.shape_cast %84 : vector<1x64x32xf32> to vector<64x32xf32>
    %86 = vector.extract_strided_slice %29 {offsets = [0, 1408], sizes = [32, 128], strides = [1, 1]} : vector<32x5632xf32> to vector<32x128xf32>
    %cst_49 = arith.constant dense<0.000000e+00> : vector<64x128xf32>
    %87 = tpu.matmul %85, %86, %cst_49 {dimension_numbers = #tpu.dot_dimension_numbers<[1], [0], [0], [1], [0, 0, 1, 1], [], []>} : vector<64x32xf32>, vector<32x128xf32>, vector<64x128xf32> -> vector<64x128xf32>
    %88 = arith.addf %83, %87 : vector<64x128xf32>
    %c12 = arith.constant 12 : index
    %c0_50 = arith.constant 0 : index
    %c0_51 = arith.constant 0 : index
    %89 = vector.load %arg6[%c12, %c0_50, %c0_51] : memref<44x64x32xf32, #tpu.memory_space<vmem>>, vector<1x64x32xf32>
    %90 = vector.shape_cast %89 : vector<1x64x32xf32> to vector<64x32xf32>
    %91 = vector.extract_strided_slice %29 {offsets = [0, 1536], sizes = [32, 128], strides = [1, 1]} : vector<32x5632xf32> to vector<32x128xf32>
    %cst_52 = arith.constant dense<0.000000e+00> : vector<64x128xf32>
    %92 = tpu.matmul %90, %91, %cst_52 {dimension_numbers = #tpu.dot_dimension_numbers<[1], [0], [0], [1], [0, 0, 1, 1], [], []>} : vector<64x32xf32>, vector<32x128xf32>, vector<64x128xf32> -> vector<64x128xf32>
    %93 = arith.addf %88, %92 : vector<64x128xf32>
    %c13 = arith.constant 13 : index
    %c0_53 = arith.constant 0 : index
    %c0_54 = arith.constant 0 : index
    %94 = vector.load %arg6[%c13, %c0_53, %c0_54] : memref<44x64x32xf32, #tpu.memory_space<vmem>>, vector<1x64x32xf32>
    %95 = vector.shape_cast %94 : vector<1x64x32xf32> to vector<64x32xf32>
    %96 = vector.extract_strided_slice %29 {offsets = [0, 1664], sizes = [32, 128], strides = [1, 1]} : vector<32x5632xf32> to vector<32x128xf32>
    %cst_55 = arith.constant dense<0.000000e+00> : vector<64x128xf32>
    %97 = tpu.matmul %95, %96, %cst_55 {dimension_numbers = #tpu.dot_dimension_numbers<[1], [0], [0], [1], [0, 0, 1, 1], [], []>} : vector<64x32xf32>, vector<32x128xf32>, vector<64x128xf32> -> vector<64x128xf32>
    %98 = arith.addf %93, %97 : vector<64x128xf32>
    %c14 = arith.constant 14 : index
    %c0_56 = arith.constant 0 : index
    %c0_57 = arith.constant 0 : index
    %99 = vector.load %arg6[%c14, %c0_56, %c0_57] : memref<44x64x32xf32, #tpu.memory_space<vmem>>, vector<1x64x32xf32>
    %100 = vector.shape_cast %99 : vector<1x64x32xf32> to vector<64x32xf32>
    %101 = vector.extract_strided_slice %29 {offsets = [0, 1792], sizes = [32, 128], strides = [1, 1]} : vector<32x5632xf32> to vector<32x128xf32>
    %cst_58 = arith.constant dense<0.000000e+00> : vector<64x128xf32>
    %102 = tpu.matmul %100, %101, %cst_58 {dimension_numbers = #tpu.dot_dimension_numbers<[1], [0], [0], [1], [0, 0, 1, 1], [], []>} : vector<64x32xf32>, vector<32x128xf32>, vector<64x128xf32> -> vector<64x128xf32>
    %103 = arith.addf %98, %102 : vector<64x128xf32>
    %c15 = arith.constant 15 : index
    %c0_59 = arith.constant 0 : index
    %c0_60 = arith.constant 0 : index
    %104 = vector.load %arg6[%c15, %c0_59, %c0_60] : memref<44x64x32xf32, #tpu.memory_space<vmem>>, vector<1x64x32xf32>
    %105 = vector.shape_cast %104 : vector<1x64x32xf32> to vector<64x32xf32>
    %106 = vector.extract_strided_slice %29 {offsets = [0, 1920], sizes = [32, 128], strides = [1, 1]} : vector<32x5632xf32> to vector<32x128xf32>
    %cst_61 = arith.constant dense<0.000000e+00> : vector<64x128xf32>
    %107 = tpu.matmul %105, %106, %cst_61 {dimension_numbers = #tpu.dot_dimension_numbers<[1], [0], [0], [1], [0, 0, 1, 1], [], []>} : vector<64x32xf32>, vector<32x128xf32>, vector<64x128xf32> -> vector<64x128xf32>
    %108 = arith.addf %103, %107 : vector<64x128xf32>
    %c16 = arith.constant 16 : index
    %c0_62 = arith.constant 0 : index
    %c0_63 = arith.constant 0 : index
    %109 = vector.load %arg6[%c16, %c0_62, %c0_63] : memref<44x64x32xf32, #tpu.memory_space<vmem>>, vector<1x64x32xf32>
    %110 = vector.shape_cast %109 : vector<1x64x32xf32> to vector<64x32xf32>
    %111 = vector.extract_strided_slice %29 {offsets = [0, 2048], sizes = [32, 128], strides = [1, 1]} : vector<32x5632xf32> to vector<32x128xf32>
    %cst_64 = arith.constant dense<0.000000e+00> : vector<64x128xf32>
    %112 = tpu.matmul %110, %111, %cst_64 {dimension_numbers = #tpu.dot_dimension_numbers<[1], [0], [0], [1], [0, 0, 1, 1], [], []>} : vector<64x32xf32>, vector<32x128xf32>, vector<64x128xf32> -> vector<64x128xf32>
    %113 = arith.addf %108, %112 : vector<64x128xf32>
    %c17 = arith.constant 17 : index
    %c0_65 = arith.constant 0 : index
    %c0_66 = arith.constant 0 : index
    %114 = vector.load %arg6[%c17, %c0_65, %c0_66] : memref<44x64x32xf32, #tpu.memory_space<vmem>>, vector<1x64x32xf32>
    %115 = vector.shape_cast %114 : vector<1x64x32xf32> to vector<64x32xf32>
    %116 = vector.extract_strided_slice %29 {offsets = [0, 2176], sizes = [32, 128], strides = [1, 1]} : vector<32x5632xf32> to vector<32x128xf32>
    %cst_67 = arith.constant dense<0.000000e+00> : vector<64x128xf32>
    %117 = tpu.matmul %115, %116, %cst_67 {dimension_numbers = #tpu.dot_dimension_numbers<[1], [0], [0], [1], [0, 0, 1, 1], [], []>} : vector<64x32xf32>, vector<32x128xf32>, vector<64x128xf32> -> vector<64x128xf32>
    %118 = arith.addf %113, %117 : vector<64x128xf32>
    %c18 = arith.constant 18 : index
    %c0_68 = arith.constant 0 : index
    %c0_69 = arith.constant 0 : index
    %119 = vector.load %arg6[%c18, %c0_68, %c0_69] : memref<44x64x32xf32, #tpu.memory_space<vmem>>, vector<1x64x32xf32>
    %120 = vector.shape_cast %119 : vector<1x64x32xf32> to vector<64x32xf32>
    %121 = vector.extract_strided_slice %29 {offsets = [0, 2304], sizes = [32, 128], strides = [1, 1]} : vector<32x5632xf32> to vector<32x128xf32>
    %cst_70 = arith.constant dense<0.000000e+00> : vector<64x128xf32>
    %122 = tpu.matmul %120, %121, %cst_70 {dimension_numbers = #tpu.dot_dimension_numbers<[1], [0], [0], [1], [0, 0, 1, 1], [], []>} : vector<64x32xf32>, vector<32x128xf32>, vector<64x128xf32> -> vector<64x128xf32>
    %123 = arith.addf %118, %122 : vector<64x128xf32>
    %c19 = arith.constant 19 : index
    %c0_71 = arith.constant 0 : index
    %c0_72 = arith.constant 0 : index
    %124 = vector.load %arg6[%c19, %c0_71, %c0_72] : memref<44x64x32xf32, #tpu.memory_space<vmem>>, vector<1x64x32xf32>
    %125 = vector.shape_cast %124 : vector<1x64x32xf32> to vector<64x32xf32>
    %126 = vector.extract_strided_slice %29 {offsets = [0, 2432], sizes = [32, 128], strides = [1, 1]} : vector<32x5632xf32> to vector<32x128xf32>
    %cst_73 = arith.constant dense<0.000000e+00> : vector<64x128xf32>
    %127 = tpu.matmul %125, %126, %cst_73 {dimension_numbers = #tpu.dot_dimension_numbers<[1], [0], [0], [1], [0, 0, 1, 1], [], []>} : vector<64x32xf32>, vector<32x128xf32>, vector<64x128xf32> -> vector<64x128xf32>
    %128 = arith.addf %123, %127 : vector<64x128xf32>
    %c20 = arith.constant 20 : index
    %c0_74 = arith.constant 0 : index
    %c0_75 = arith.constant 0 : index
    %129 = vector.load %arg6[%c20, %c0_74, %c0_75] : memref<44x64x32xf32, #tpu.memory_space<vmem>>, vector<1x64x32xf32>
    %130 = vector.shape_cast %129 : vector<1x64x32xf32> to vector<64x32xf32>
    %131 = vector.extract_strided_slice %29 {offsets = [0, 2560], sizes = [32, 128], strides = [1, 1]} : vector<32x5632xf32> to vector<32x128xf32>
    %cst_76 = arith.constant dense<0.000000e+00> : vector<64x128xf32>
    %132 = tpu.matmul %130, %131, %cst_76 {dimension_numbers = #tpu.dot_dimension_numbers<[1], [0], [0], [1], [0, 0, 1, 1], [], []>} : vector<64x32xf32>, vector<32x128xf32>, vector<64x128xf32> -> vector<64x128xf32>
    %133 = arith.addf %128, %132 : vector<64x128xf32>
    %c21 = arith.constant 21 : index
    %c0_77 = arith.constant 0 : index
    %c0_78 = arith.constant 0 : index
    %134 = vector.load %arg6[%c21, %c0_77, %c0_78] : memref<44x64x32xf32, #tpu.memory_space<vmem>>, vector<1x64x32xf32>
    %135 = vector.shape_cast %134 : vector<1x64x32xf32> to vector<64x32xf32>
    %136 = vector.extract_strided_slice %29 {offsets = [0, 2688], sizes = [32, 128], strides = [1, 1]} : vector<32x5632xf32> to vector<32x128xf32>
    %cst_79 = arith.constant dense<0.000000e+00> : vector<64x128xf32>
    %137 = tpu.matmul %135, %136, %cst_79 {dimension_numbers = #tpu.dot_dimension_numbers<[1], [0], [0], [1], [0, 0, 1, 1], [], []>} : vector<64x32xf32>, vector<32x128xf32>, vector<64x128xf32> -> vector<64x128xf32>
    %138 = arith.addf %133, %137 : vector<64x128xf32>
    %c22 = arith.constant 22 : index
    %c0_80 = arith.constant 0 : index
    %c0_81 = arith.constant 0 : index
    %139 = vector.load %arg6[%c22, %c0_80, %c0_81] : memref<44x64x32xf32, #tpu.memory_space<vmem>>, vector<1x64x32xf32>
    %140 = vector.shape_cast %139 : vector<1x64x32xf32> to vector<64x32xf32>
    %141 = vector.extract_strided_slice %29 {offsets = [0, 2816], sizes = [32, 128], strides = [1, 1]} : vector<32x5632xf32> to vector<32x128xf32>
    %cst_82 = arith.constant dense<0.000000e+00> : vector<64x128xf32>
    %142 = tpu.matmul %140, %141, %cst_82 {dimension_numbers = #tpu.dot_dimension_numbers<[1], [0], [0], [1], [0, 0, 1, 1], [], []>} : vector<64x32xf32>, vector<32x128xf32>, vector<64x128xf32> -> vector<64x128xf32>
    %143 = arith.addf %138, %142 : vector<64x128xf32>
    %c23 = arith.constant 23 : index
    %c0_83 = arith.constant 0 : index
    %c0_84 = arith.constant 0 : index
    %144 = vector.load %arg6[%c23, %c0_83, %c0_84] : memref<44x64x32xf32, #tpu.memory_space<vmem>>, vector<1x64x32xf32>
    %145 = vector.shape_cast %144 : vector<1x64x32xf32> to vector<64x32xf32>
    %146 = vector.extract_strided_slice %29 {offsets = [0, 2944], sizes = [32, 128], strides = [1, 1]} : vector<32x5632xf32> to vector<32x128xf32>
    %cst_85 = arith.constant dense<0.000000e+00> : vector<64x128xf32>
    %147 = tpu.matmul %145, %146, %cst_85 {dimension_numbers = #tpu.dot_dimension_numbers<[1], [0], [0], [1], [0, 0, 1, 1], [], []>} : vector<64x32xf32>, vector<32x128xf32>, vector<64x128xf32> -> vector<64x128xf32>
    %148 = arith.addf %143, %147 : vector<64x128xf32>
    %c24 = arith.constant 24 : index
    %c0_86 = arith.constant 0 : index
    %c0_87 = arith.constant 0 : index
    %149 = vector.load %arg6[%c24, %c0_86, %c0_87] : memref<44x64x32xf32, #tpu.memory_space<vmem>>, vector<1x64x32xf32>
    %150 = vector.shape_cast %149 : vector<1x64x32xf32> to vector<64x32xf32>
    %151 = vector.extract_strided_slice %29 {offsets = [0, 3072], sizes = [32, 128], strides = [1, 1]} : vector<32x5632xf32> to vector<32x128xf32>
    %cst_88 = arith.constant dense<0.000000e+00> : vector<64x128xf32>
    %152 = tpu.matmul %150, %151, %cst_88 {dimension_numbers = #tpu.dot_dimension_numbers<[1], [0], [0], [1], [0, 0, 1, 1], [], []>} : vector<64x32xf32>, vector<32x128xf32>, vector<64x128xf32> -> vector<64x128xf32>
    %153 = arith.addf %148, %152 : vector<64x128xf32>
    %c25 = arith.constant 25 : index
    %c0_89 = arith.constant 0 : index
    %c0_90 = arith.constant 0 : index
    %154 = vector.load %arg6[%c25, %c0_89, %c0_90] : memref<44x64x32xf32, #tpu.memory_space<vmem>>, vector<1x64x32xf32>
    %155 = vector.shape_cast %154 : vector<1x64x32xf32> to vector<64x32xf32>
    %156 = vector.extract_strided_slice %29 {offsets = [0, 3200], sizes = [32, 128], strides = [1, 1]} : vector<32x5632xf32> to vector<32x128xf32>
    %cst_91 = arith.constant dense<0.000000e+00> : vector<64x128xf32>
    %157 = tpu.matmul %155, %156, %cst_91 {dimension_numbers = #tpu.dot_dimension_numbers<[1], [0], [0], [1], [0, 0, 1, 1], [], []>} : vector<64x32xf32>, vector<32x128xf32>, vector<64x128xf32> -> vector<64x128xf32>
    %158 = arith.addf %153, %157 : vector<64x128xf32>
    %c26 = arith.constant 26 : index
    %c0_92 = arith.constant 0 : index
    %c0_93 = arith.constant 0 : index
    %159 = vector.load %arg6[%c26, %c0_92, %c0_93] : memref<44x64x32xf32, #tpu.memory_space<vmem>>, vector<1x64x32xf32>
    %160 = vector.shape_cast %159 : vector<1x64x32xf32> to vector<64x32xf32>
    %161 = vector.extract_strided_slice %29 {offsets = [0, 3328], sizes = [32, 128], strides = [1, 1]} : vector<32x5632xf32> to vector<32x128xf32>
    %cst_94 = arith.constant dense<0.000000e+00> : vector<64x128xf32>
    %162 = tpu.matmul %160, %161, %cst_94 {dimension_numbers = #tpu.dot_dimension_numbers<[1], [0], [0], [1], [0, 0, 1, 1], [], []>} : vector<64x32xf32>, vector<32x128xf32>, vector<64x128xf32> -> vector<64x128xf32>
    %163 = arith.addf %158, %162 : vector<64x128xf32>
    %c27 = arith.constant 27 : index
    %c0_95 = arith.constant 0 : index
    %c0_96 = arith.constant 0 : index
    %164 = vector.load %arg6[%c27, %c0_95, %c0_96] : memref<44x64x32xf32, #tpu.memory_space<vmem>>, vector<1x64x32xf32>
    %165 = vector.shape_cast %164 : vector<1x64x32xf32> to vector<64x32xf32>
    %166 = vector.extract_strided_slice %29 {offsets = [0, 3456], sizes = [32, 128], strides = [1, 1]} : vector<32x5632xf32> to vector<32x128xf32>
    %cst_97 = arith.constant dense<0.000000e+00> : vector<64x128xf32>
    %167 = tpu.matmul %165, %166, %cst_97 {dimension_numbers = #tpu.dot_dimension_numbers<[1], [0], [0], [1], [0, 0, 1, 1], [], []>} : vector<64x32xf32>, vector<32x128xf32>, vector<64x128xf32> -> vector<64x128xf32>
    %168 = arith.addf %163, %167 : vector<64x128xf32>
    %c28 = arith.constant 28 : index
    %c0_98 = arith.constant 0 : index
    %c0_99 = arith.constant 0 : index
    %169 = vector.load %arg6[%c28, %c0_98, %c0_99] : memref<44x64x32xf32, #tpu.memory_space<vmem>>, vector<1x64x32xf32>
    %170 = vector.shape_cast %169 : vector<1x64x32xf32> to vector<64x32xf32>
    %171 = vector.extract_strided_slice %29 {offsets = [0, 3584], sizes = [32, 128], strides = [1, 1]} : vector<32x5632xf32> to vector<32x128xf32>
    %cst_100 = arith.constant dense<0.000000e+00> : vector<64x128xf32>
    %172 = tpu.matmul %170, %171, %cst_100 {dimension_numbers = #tpu.dot_dimension_numbers<[1], [0], [0], [1], [0, 0, 1, 1], [], []>} : vector<64x32xf32>, vector<32x128xf32>, vector<64x128xf32> -> vector<64x128xf32>
    %173 = arith.addf %168, %172 : vector<64x128xf32>
    %c29 = arith.constant 29 : index
    %c0_101 = arith.constant 0 : index
    %c0_102 = arith.constant 0 : index
    %174 = vector.load %arg6[%c29, %c0_101, %c0_102] : memref<44x64x32xf32, #tpu.memory_space<vmem>>, vector<1x64x32xf32>
    %175 = vector.shape_cast %174 : vector<1x64x32xf32> to vector<64x32xf32>
    %176 = vector.extract_strided_slice %29 {offsets = [0, 3712], sizes = [32, 128], strides = [1, 1]} : vector<32x5632xf32> to vector<32x128xf32>
    %cst_103 = arith.constant dense<0.000000e+00> : vector<64x128xf32>
    %177 = tpu.matmul %175, %176, %cst_103 {dimension_numbers = #tpu.dot_dimension_numbers<[1], [0], [0], [1], [0, 0, 1, 1], [], []>} : vector<64x32xf32>, vector<32x128xf32>, vector<64x128xf32> -> vector<64x128xf32>
    %178 = arith.addf %173, %177 : vector<64x128xf32>
    %c30 = arith.constant 30 : index
    %c0_104 = arith.constant 0 : index
    %c0_105 = arith.constant 0 : index
    %179 = vector.load %arg6[%c30, %c0_104, %c0_105] : memref<44x64x32xf32, #tpu.memory_space<vmem>>, vector<1x64x32xf32>
    %180 = vector.shape_cast %179 : vector<1x64x32xf32> to vector<64x32xf32>
    %181 = vector.extract_strided_slice %29 {offsets = [0, 3840], sizes = [32, 128], strides = [1, 1]} : vector<32x5632xf32> to vector<32x128xf32>
    %cst_106 = arith.constant dense<0.000000e+00> : vector<64x128xf32>
    %182 = tpu.matmul %180, %181, %cst_106 {dimension_numbers = #tpu.dot_dimension_numbers<[1], [0], [0], [1], [0, 0, 1, 1], [], []>} : vector<64x32xf32>, vector<32x128xf32>, vector<64x128xf32> -> vector<64x128xf32>
    %183 = arith.addf %178, %182 : vector<64x128xf32>
    %c31 = arith.constant 31 : index
    %c0_107 = arith.constant 0 : index
    %c0_108 = arith.constant 0 : index
    %184 = vector.load %arg6[%c31, %c0_107, %c0_108] : memref<44x64x32xf32, #tpu.memory_space<vmem>>, vector<1x64x32xf32>
    %185 = vector.shape_cast %184 : vector<1x64x32xf32> to vector<64x32xf32>
    %186 = vector.extract_strided_slice %29 {offsets = [0, 3968], sizes = [32, 128], strides = [1, 1]} : vector<32x5632xf32> to vector<32x128xf32>
    %cst_109 = arith.constant dense<0.000000e+00> : vector<64x128xf32>
    %187 = tpu.matmul %185, %186, %cst_109 {dimension_numbers = #tpu.dot_dimension_numbers<[1], [0], [0], [1], [0, 0, 1, 1], [], []>} : vector<64x32xf32>, vector<32x128xf32>, vector<64x128xf32> -> vector<64x128xf32>
    %188 = arith.addf %183, %187 : vector<64x128xf32>
    %c32 = arith.constant 32 : index
    %c0_110 = arith.constant 0 : index
    %c0_111 = arith.constant 0 : index
    %189 = vector.load %arg6[%c32, %c0_110, %c0_111] : memref<44x64x32xf32, #tpu.memory_space<vmem>>, vector<1x64x32xf32>
    %190 = vector.shape_cast %189 : vector<1x64x32xf32> to vector<64x32xf32>
    %191 = vector.extract_strided_slice %29 {offsets = [0, 4096], sizes = [32, 128], strides = [1, 1]} : vector<32x5632xf32> to vector<32x128xf32>
    %cst_112 = arith.constant dense<0.000000e+00> : vector<64x128xf32>
    %192 = tpu.matmul %190, %191, %cst_112 {dimension_numbers = #tpu.dot_dimension_numbers<[1], [0], [0], [1], [0, 0, 1, 1], [], []>} : vector<64x32xf32>, vector<32x128xf32>, vector<64x128xf32> -> vector<64x128xf32>
    %193 = arith.addf %188, %192 : vector<64x128xf32>
    %c33 = arith.constant 33 : index
    %c0_113 = arith.constant 0 : index
    %c0_114 = arith.constant 0 : index
    %194 = vector.load %arg6[%c33, %c0_113, %c0_114] : memref<44x64x32xf32, #tpu.memory_space<vmem>>, vector<1x64x32xf32>
    %195 = vector.shape_cast %194 : vector<1x64x32xf32> to vector<64x32xf32>
    %196 = vector.extract_strided_slice %29 {offsets = [0, 4224], sizes = [32, 128], strides = [1, 1]} : vector<32x5632xf32> to vector<32x128xf32>
    %cst_115 = arith.constant dense<0.000000e+00> : vector<64x128xf32>
    %197 = tpu.matmul %195, %196, %cst_115 {dimension_numbers = #tpu.dot_dimension_numbers<[1], [0], [0], [1], [0, 0, 1, 1], [], []>} : vector<64x32xf32>, vector<32x128xf32>, vector<64x128xf32> -> vector<64x128xf32>
    %198 = arith.addf %193, %197 : vector<64x128xf32>
    %c34 = arith.constant 34 : index
    %c0_116 = arith.constant 0 : index
    %c0_117 = arith.constant 0 : index
    %199 = vector.load %arg6[%c34, %c0_116, %c0_117] : memref<44x64x32xf32, #tpu.memory_space<vmem>>, vector<1x64x32xf32>
    %200 = vector.shape_cast %199 : vector<1x64x32xf32> to vector<64x32xf32>
    %201 = vector.extract_strided_slice %29 {offsets = [0, 4352], sizes = [32, 128], strides = [1, 1]} : vector<32x5632xf32> to vector<32x128xf32>
    %cst_118 = arith.constant dense<0.000000e+00> : vector<64x128xf32>
    %202 = tpu.matmul %200, %201, %cst_118 {dimension_numbers = #tpu.dot_dimension_numbers<[1], [0], [0], [1], [0, 0, 1, 1], [], []>} : vector<64x32xf32>, vector<32x128xf32>, vector<64x128xf32> -> vector<64x128xf32>
    %203 = arith.addf %198, %202 : vector<64x128xf32>
    %c35 = arith.constant 35 : index
    %c0_119 = arith.constant 0 : index
    %c0_120 = arith.constant 0 : index
    %204 = vector.load %arg6[%c35, %c0_119, %c0_120] : memref<44x64x32xf32, #tpu.memory_space<vmem>>, vector<1x64x32xf32>
    %205 = vector.shape_cast %204 : vector<1x64x32xf32> to vector<64x32xf32>
    %206 = vector.extract_strided_slice %29 {offsets = [0, 4480], sizes = [32, 128], strides = [1, 1]} : vector<32x5632xf32> to vector<32x128xf32>
    %cst_121 = arith.constant dense<0.000000e+00> : vector<64x128xf32>
    %207 = tpu.matmul %205, %206, %cst_121 {dimension_numbers = #tpu.dot_dimension_numbers<[1], [0], [0], [1], [0, 0, 1, 1], [], []>} : vector<64x32xf32>, vector<32x128xf32>, vector<64x128xf32> -> vector<64x128xf32>
    %208 = arith.addf %203, %207 : vector<64x128xf32>
    %c36 = arith.constant 36 : index
    %c0_122 = arith.constant 0 : index
    %c0_123 = arith.constant 0 : index
    %209 = vector.load %arg6[%c36, %c0_122, %c0_123] : memref<44x64x32xf32, #tpu.memory_space<vmem>>, vector<1x64x32xf32>
    %210 = vector.shape_cast %209 : vector<1x64x32xf32> to vector<64x32xf32>
    %211 = vector.extract_strided_slice %29 {offsets = [0, 4608], sizes = [32, 128], strides = [1, 1]} : vector<32x5632xf32> to vector<32x128xf32>
    %cst_124 = arith.constant dense<0.000000e+00> : vector<64x128xf32>
    %212 = tpu.matmul %210, %211, %cst_124 {dimension_numbers = #tpu.dot_dimension_numbers<[1], [0], [0], [1], [0, 0, 1, 1], [], []>} : vector<64x32xf32>, vector<32x128xf32>, vector<64x128xf32> -> vector<64x128xf32>
    %213 = arith.addf %208, %212 : vector<64x128xf32>
    %c37 = arith.constant 37 : index
    %c0_125 = arith.constant 0 : index
    %c0_126 = arith.constant 0 : index
    %214 = vector.load %arg6[%c37, %c0_125, %c0_126] : memref<44x64x32xf32, #tpu.memory_space<vmem>>, vector<1x64x32xf32>
    %215 = vector.shape_cast %214 : vector<1x64x32xf32> to vector<64x32xf32>
    %216 = vector.extract_strided_slice %29 {offsets = [0, 4736], sizes = [32, 128], strides = [1, 1]} : vector<32x5632xf32> to vector<32x128xf32>
    %cst_127 = arith.constant dense<0.000000e+00> : vector<64x128xf32>
    %217 = tpu.matmul %215, %216, %cst_127 {dimension_numbers = #tpu.dot_dimension_numbers<[1], [0], [0], [1], [0, 0, 1, 1], [], []>} : vector<64x32xf32>, vector<32x128xf32>, vector<64x128xf32> -> vector<64x128xf32>
    %218 = arith.addf %213, %217 : vector<64x128xf32>
    %c38 = arith.constant 38 : index
    %c0_128 = arith.constant 0 : index
    %c0_129 = arith.constant 0 : index
    %219 = vector.load %arg6[%c38, %c0_128, %c0_129] : memref<44x64x32xf32, #tpu.memory_space<vmem>>, vector<1x64x32xf32>
    %220 = vector.shape_cast %219 : vector<1x64x32xf32> to vector<64x32xf32>
    %221 = vector.extract_strided_slice %29 {offsets = [0, 4864], sizes = [32, 128], strides = [1, 1]} : vector<32x5632xf32> to vector<32x128xf32>
    %cst_130 = arith.constant dense<0.000000e+00> : vector<64x128xf32>
    %222 = tpu.matmul %220, %221, %cst_130 {dimension_numbers = #tpu.dot_dimension_numbers<[1], [0], [0], [1], [0, 0, 1, 1], [], []>} : vector<64x32xf32>, vector<32x128xf32>, vector<64x128xf32> -> vector<64x128xf32>
    %223 = arith.addf %218, %222 : vector<64x128xf32>
    %c39 = arith.constant 39 : index
    %c0_131 = arith.constant 0 : index
    %c0_132 = arith.constant 0 : index
    %224 = vector.load %arg6[%c39, %c0_131, %c0_132] : memref<44x64x32xf32, #tpu.memory_space<vmem>>, vector<1x64x32xf32>
    %225 = vector.shape_cast %224 : vector<1x64x32xf32> to vector<64x32xf32>
    %226 = vector.extract_strided_slice %29 {offsets = [0, 4992], sizes = [32, 128], strides = [1, 1]} : vector<32x5632xf32> to vector<32x128xf32>
    %cst_133 = arith.constant dense<0.000000e+00> : vector<64x128xf32>
    %227 = tpu.matmul %225, %226, %cst_133 {dimension_numbers = #tpu.dot_dimension_numbers<[1], [0], [0], [1], [0, 0, 1, 1], [], []>} : vector<64x32xf32>, vector<32x128xf32>, vector<64x128xf32> -> vector<64x128xf32>
    %228 = arith.addf %223, %227 : vector<64x128xf32>
    %c40 = arith.constant 40 : index
    %c0_134 = arith.constant 0 : index
    %c0_135 = arith.constant 0 : index
    %229 = vector.load %arg6[%c40, %c0_134, %c0_135] : memref<44x64x32xf32, #tpu.memory_space<vmem>>, vector<1x64x32xf32>
    %230 = vector.shape_cast %229 : vector<1x64x32xf32> to vector<64x32xf32>
    %231 = vector.extract_strided_slice %29 {offsets = [0, 5120], sizes = [32, 128], strides = [1, 1]} : vector<32x5632xf32> to vector<32x128xf32>
    %cst_136 = arith.constant dense<0.000000e+00> : vector<64x128xf32>
    %232 = tpu.matmul %230, %231, %cst_136 {dimension_numbers = #tpu.dot_dimension_numbers<[1], [0], [0], [1], [0, 0, 1, 1], [], []>} : vector<64x32xf32>, vector<32x128xf32>, vector<64x128xf32> -> vector<64x128xf32>
    %233 = arith.addf %228, %232 : vector<64x128xf32>
    %c41 = arith.constant 41 : index
    %c0_137 = arith.constant 0 : index
    %c0_138 = arith.constant 0 : index
    %234 = vector.load %arg6[%c41, %c0_137, %c0_138] : memref<44x64x32xf32, #tpu.memory_space<vmem>>, vector<1x64x32xf32>
    %235 = vector.shape_cast %234 : vector<1x64x32xf32> to vector<64x32xf32>
    %236 = vector.extract_strided_slice %29 {offsets = [0, 5248], sizes = [32, 128], strides = [1, 1]} : vector<32x5632xf32> to vector<32x128xf32>
    %cst_139 = arith.constant dense<0.000000e+00> : vector<64x128xf32>
    %237 = tpu.matmul %235, %236, %cst_139 {dimension_numbers = #tpu.dot_dimension_numbers<[1], [0], [0], [1], [0, 0, 1, 1], [], []>} : vector<64x32xf32>, vector<32x128xf32>, vector<64x128xf32> -> vector<64x128xf32>
    %238 = arith.addf %233, %237 : vector<64x128xf32>
    %c42 = arith.constant 42 : index
    %c0_140 = arith.constant 0 : index
    %c0_141 = arith.constant 0 : index
    %239 = vector.load %arg6[%c42, %c0_140, %c0_141] : memref<44x64x32xf32, #tpu.memory_space<vmem>>, vector<1x64x32xf32>
    %240 = vector.shape_cast %239 : vector<1x64x32xf32> to vector<64x32xf32>
    %241 = vector.extract_strided_slice %29 {offsets = [0, 5376], sizes = [32, 128], strides = [1, 1]} : vector<32x5632xf32> to vector<32x128xf32>
    %cst_142 = arith.constant dense<0.000000e+00> : vector<64x128xf32>
    %242 = tpu.matmul %240, %241, %cst_142 {dimension_numbers = #tpu.dot_dimension_numbers<[1], [0], [0], [1], [0, 0, 1, 1], [], []>} : vector<64x32xf32>, vector<32x128xf32>, vector<64x128xf32> -> vector<64x128xf32>
    %243 = arith.addf %238, %242 : vector<64x128xf32>
    %c43 = arith.constant 43 : index
    %c0_143 = arith.constant 0 : index
    %c0_144 = arith.constant 0 : index
    %244 = vector.load %arg6[%c43, %c0_143, %c0_144] : memref<44x64x32xf32, #tpu.memory_space<vmem>>, vector<1x64x32xf32>
    %245 = vector.shape_cast %244 : vector<1x64x32xf32> to vector<64x32xf32>
    %246 = vector.extract_strided_slice %29 {offsets = [0, 5504], sizes = [32, 128], strides = [1, 1]} : vector<32x5632xf32> to vector<32x128xf32>
    %cst_145 = arith.constant dense<0.000000e+00> : vector<64x128xf32>
    %247 = tpu.matmul %245, %246, %cst_145 {dimension_numbers = #tpu.dot_dimension_numbers<[1], [0], [0], [1], [0, 0, 1, 1], [], []>} : vector<64x32xf32>, vector<32x128xf32>, vector<64x128xf32> -> vector<64x128xf32>
    %248 = arith.addf %243, %247 : vector<64x128xf32>
    %c0_146 = arith.constant 0 : index
    %c0_147 = arith.constant 0 : index
    %249 = vector.load %arg7[%c0_146, %c0_147] : memref<64x1xf32, #tpu.memory_space<vmem>>, vector<64x1xf32>
    %250 = vector.broadcast %249 : vector<64x1xf32> to vector<64x128xf32>
    %251 = arith.addf %248, %250 : vector<64x128xf32>
    %cst_148 = arith.constant 0.000000e+00 : f32
    %252 = vector.broadcast %cst_148 : f32 to vector<64x128xf32>
    %253 = arith.maximumf %251, %252 : vector<64x128xf32>
    %c0_149 = arith.constant 0 : index
    %c0_150 = arith.constant 0 : index
    %254 = vector.load %arg8[%c0_149, %c0_150] : memref<50x64xf32, #tpu.memory_space<vmem>>, vector<50x64xf32>
    %cst_151 = arith.constant dense<0.000000e+00> : vector<50x128xf32>
    %255 = tpu.matmul %254, %253, %cst_151 {dimension_numbers = #tpu.dot_dimension_numbers<[1], [0], [0], [1], [0, 0, 1, 1], [], []>} : vector<50x64xf32>, vector<64x128xf32>, vector<50x128xf32> -> vector<50x128xf32>
    %c0_152 = arith.constant 0 : index
    %c0_153 = arith.constant 0 : index
    %256 = vector.load %arg9[%c0_152, %c0_153] : memref<50x1xf32, #tpu.memory_space<vmem>>, vector<50x1xf32>
    %257 = vector.broadcast %256 : vector<50x1xf32> to vector<50x128xf32>
    %258 = arith.addf %255, %257 : vector<50x128xf32>
    %c0_154 = arith.constant 0 : index
    %c0_155 = arith.constant 0 : index
    %259 = vector.load %arg10[%c0_154, %c0_155] : memref<50x128xf32, #tpu.memory_space<vmem>>, vector<50x128xf32>
    tpu.vector_store %arg10[%c0_154, %c0_155], %258 {strides = array<i32>} : memref<50x128xf32, #tpu.memory_space<vmem>>, vector<50x128xf32>,
    return
  }
  func.func @transform_0(%arg0: i32) -> (i32, i32, i32) {
    %c0_i32 = arith.constant 0 : i32
    %c0_i32_0 = arith.constant 0 : i32
    %c0_i32_1 = arith.constant 0 : i32
    return %arg0, %c0_i32, %c0_i32_0 : i32, i32, i32
  }
  func.func @transform_1(%arg0: i32) -> (i32, i32) {
    %c0_i32 = arith.constant 0 : i32
    %c0_i32_0 = arith.constant 0 : i32
    %c0_i32_1 = arith.constant 0 : i32
    return %c0_i32, %c0_i32_0 : i32, i32
  }
  func.func @transform_2(%arg0: i32) -> (i32, i32) {
    %c0_i32 = arith.constant 0 : i32
    %c0_i32_0 = arith.constant 0 : i32
    %c0_i32_1 = arith.constant 0 : i32
    return %c0_i32, %c0_i32_0 : i32, i32
  }
  func.func @transform_3(%arg0: i32) -> (i32, i32) {
    %c0_i32 = arith.constant 0 : i32
    %c0_i32_0 = arith.constant 0 : i32
    %c0_i32_1 = arith.constant 0 : i32
    return %c0_i32, %c0_i32_0 : i32, i32
  }
  func.func @transform_4(%arg0: i32) -> (i32, i32) {
    %c0_i32 = arith.constant 0 : i32
    %c0_i32_0 = arith.constant 0 : i32
    %c0_i32_1 = arith.constant 0 : i32
    return %c0_i32, %c0_i32_0 : i32, i32
  }
  func.func @transform_5(%arg0: i32) -> (i32, i32, i32) {
    %c0_i32 = arith.constant 0 : i32
    %c0_i32_0 = arith.constant 0 : i32
    %c0_i32_1 = arith.constant 0 : i32
    %c0_i32_2 = arith.constant 0 : i32
    return %c0_i32, %c0_i32_0, %c0_i32_1 : i32, i32, i32
  }
  func.func @transform_6(%arg0: i32) -> (i32, i32) {
    %c0_i32 = arith.constant 0 : i32
    %c0_i32_0 = arith.constant 0 : i32
    %c0_i32_1 = arith.constant 0 : i32
    return %c0_i32, %c0_i32_0 : i32, i32
  }
  func.func @transform_7(%arg0: i32) -> (i32, i32) {
    %c0_i32 = arith.constant 0 : i32
    %c0_i32_0 = arith.constant 0 : i32
    %c0_i32_1 = arith.constant 0 : i32
    return %c0_i32, %c0_i32_0 : i32, i32
  }
  func.func @transform_8(%arg0: i32) -> (i32, i32) {
    %c0_i32 = arith.constant 0 : i32
    %c0_i32_0 = arith.constant 0 : i32
    %c0_i32_1 = arith.constant 0 : i32
    return %c0_i32, %c0_i32_0 : i32, i32
  }
  func.func @transform_9(%arg0: i32) -> (i32, i32) {
    %c0_i32 = arith.constant 0 : i32
    %c0_i32_0 = arith.constant 0 : i32
    return %c0_i32, %arg0 : i32, i32
  }
}

</mosaic_0001>

<llo_original>
// kernel: tpu_custom_call.1
$region0: #{tpu_custom_call.1}
  #allocation0 [shape = 'u32[]', space=smem, size = 0x4, offset = 0x4, fixed_abs, tag = 'smem constant byte address 0x4 - core index']
  #allocation1 [shape = 'u32[144,128]{1,0:T(1,128)}', space=vmem, size = 0x12000, scoped, tag = 'internal scratch']
  %s0 = inlined_call_operand.vmem [shape: f32[1,8,6400], index: 0, kind: input, shape index: {}]
  %s1 = inlined_call_operand.vmem [shape: f32[16,24], index: 1, kind: input, shape index: {}]
  %s2 = inlined_call_operand.vmem [shape: f32[16,1], index: 2, kind: input, shape index: {}]
  %s3 = inlined_call_operand.vmem [shape: f32[32,48], index: 3, kind: input, shape index: {}]
  %s4 = inlined_call_operand.vmem [shape: f32[32,1], index: 4, kind: input, shape index: {}]
  %s5 = inlined_call_operand.vmem [shape: f32[44,64,32], index: 5, kind: input, shape index: {}]
  %s6 = inlined_call_operand.vmem [shape: f32[64,1], index: 6, kind: input, shape index: {}]
  %s7 = inlined_call_operand.vmem [shape: f32[50,64], index: 7, kind: input, shape index: {}]
  %s8 = inlined_call_operand.vmem [shape: f32[50,1], index: 8, kind: input, shape index: {}]
  %s9 = inlined_call_operand.hbm [shape: f32[50,128], index: 9, kind: output, shape index: {}]
  %s10 = sld [smem:[#allocation0]]
  $region46: #{tpu_custom_call.1} parent=0
    _
  %s12 = ssub.s32 1, %s10
  %s13 = scalar_select 0, %s12, %s10
  $region1: #{tpu_custom_call.1} parent=0
    #allocation2 [shape = 'u8[28672]{0}', space=vmem, size = 0x7000, scoped, tag = 'output window, operand 0, single buffered']
    #allocation3 [shape = 's32[1]{0}', space=sflag, size = 0x4, scoped, tag = 'scoped memory for tpu_custom_call.1']
    %14 = vsyncpa [#allocation3], 0
    // Predicated region
    $region2: #{tpu_custom_call.1} parent=1 // pred_check
      _
    $region3: #{tpu_custom_call.1} parent=1 // pred_check_branch
      %16 = sbr.rel (0) target = $region5
    $region4: #{tpu_custom_call.1} parent=1 // pred_region
      _
    $region5: #{tpu_custom_call.1} parent=1 // pred_fallthru
      _
    // Predicated region
    $region6: #{tpu_custom_call.1} parent=1 // pred_check
      _
    $region7: #{tpu_custom_call.1} parent=1 // pred_check_branch
      %18 = sbr.rel (0) target = $region9
    $region8: #{tpu_custom_call.1} parent=1 // pred_region
      _
    $region9: #{tpu_custom_call.1} parent=1 // pred_fallthru
      _
    // Predicated region
    $region10: #{tpu_custom_call.1} parent=1 // pred_check
      _
    $region11: #{tpu_custom_call.1} parent=1 // pred_check_branch
      %20 = sbr.rel (0) target = $region13
    $region12: #{tpu_custom_call.1} parent=1 // pred_region
      _
    $region13: #{tpu_custom_call.1} parent=1 // pred_fallthru
      _
    // Predicated region
    $region14: #{tpu_custom_call.1} parent=1 // pred_check
      _
    $region15: #{tpu_custom_call.1} parent=1 // pred_check_branch
      %22 = sbr.rel (0) target = $region17
    $region16: #{tpu_custom_call.1} parent=1 // pred_region
      _
    $region17: #{tpu_custom_call.1} parent=1 // pred_fallthru
      _
    // Predicated region
    $region18: #{tpu_custom_call.1} parent=1 // pred_check
      _
    $region19: #{tpu_custom_call.1} parent=1 // pred_check_branch
      %24 = sbr.rel (0) target = $region21
    $region20: #{tpu_custom_call.1} parent=1 // pred_region
      _
    $region21: #{tpu_custom_call.1} parent=1 // pred_fallthru
      _
    // Predicated region
    $region22: #{tpu_custom_call.1} parent=1 // pred_check
      _
    $region23: #{tpu_custom_call.1} parent=1 // pred_check_branch
      %26 = sbr.rel (0) target = $region25
    $region24: #{tpu_custom_call.1} parent=1 // pred_region
      _
    $region25: #{tpu_custom_call.1} parent=1 // pred_fallthru
      _
    // Predicated region
    $region26: #{tpu_custom_call.1} parent=1 // pred_check
      _
    $region27: #{tpu_custom_call.1} parent=1 // pred_check_branch
      %28 = sbr.rel (0) target = $region29
    $region28: #{tpu_custom_call.1} parent=1 // pred_region
      _
    $region29: #{tpu_custom_call.1} parent=1 // pred_fallthru
      _
    // Predicated region
    $region30: #{tpu_custom_call.1} parent=1 // pred_check
      _
    $region31: #{tpu_custom_call.1} parent=1 // pred_check_branch
      %30 = sbr.rel (0) target = $region33
    $region32: #{tpu_custom_call.1} parent=1 // pred_region
      _
    $region33: #{tpu_custom_call.1} parent=1 // pred_fallthru
      _
    // Predicated region
    $region34: #{tpu_custom_call.1} parent=1 // pred_check
      _
    $region35: #{tpu_custom_call.1} parent=1 // pred_check_branch
      %32 = sbr.rel (0) target = $region37
    $region36: #{tpu_custom_call.1} parent=1 // pred_region
      _
    $region37: #{tpu_custom_call.1} parent=1 // pred_fallthru
      _
    %v33 = vld [vmem:[%s0] sm:$0xff]
    %v34 = vld [vmem:[%s0 + $0x8] sm:$0xff]
    %v35 = vld [vmem:[%s0 + $0x10] sm:$0xff]
    %v36 = vld [vmem:[%s0 + $0x18] sm:$0xff]
    %v37 = vld [vmem:[%s0 + $0x20] sm:$0xff]
    %v38 = vld [vmem:[%s0 + $0x28] sm:$0xff]
    %v39 = vld [vmem:[%s0 + $0x30] sm:$0xff]
    %v40 = vld [vmem:[%s0 + $0x38] sm:$0xff]
    %v41 = vld [vmem:[%s0 + $0x40] sm:$0xff]
    %v42 = vld [vmem:[%s0 + $0x48] sm:$0xff]
    %v43 = vld [vmem:[%s0 + $0x50] sm:$0xff]
    %v44 = vld [vmem:[%s0 + $0x58] sm:$0xff]
    %v45 = vld [vmem:[%s0 + $0x60] sm:$0xff]
    %v46 = vld [vmem:[%s0 + $0x68] sm:$0xff]
    %v47 = vld [vmem:[%s0 + $0x70] sm:$0xff]
    %v48 = vld [vmem:[%s0 + $0x78] sm:$0xff]
    %v49 = vld [vmem:[%s0 + $0x80] sm:$0xff]
    %v50 = vld [vmem:[%s0 + $0x88] sm:$0xff]
    %v51 = vld [vmem:[%s0 + $0x90] sm:$0xff]
    %v52 = vld [vmem:[%s0 + $0x98] sm:$0xff]
    %v53 = vld [vmem:[%s0 + $0xa0] sm:$0xff]
    %v54 = vld [vmem:[%s0 + $0xa8] sm:$0xff]
    %v55 = vld [vmem:[%s0 + $0xb0] sm:$0xff]
    %v56 = vld [vmem:[%s0 + $0xb8] sm:$0xff]
    %v57 = vld [vmem:[%s0 + $0xc0] sm:$0xff]
    %v58 = vld [vmem:[%s0 + $0xc8] sm:$0xff]
    %v59 = vld [vmem:[%s0 + $0xd0] sm:$0xff]
    %v60 = vld [vmem:[%s0 + $0xd8] sm:$0xff]
    %v61 = vld [vmem:[%s0 + $0xe0] sm:$0xff]
    %v62 = vld [vmem:[%s0 + $0xe8] sm:$0xff]
    %v63 = vld [vmem:[%s0 + $0xf0] sm:$0xff]
    %v64 = vld [vmem:[%s0 + $0xf8] sm:$0xff]
    %v65 = vld [vmem:[%s0 + $0x100] sm:$0xff]
    %v66 = vld [vmem:[%s0 + $0x108] sm:$0xff]
    %v67 = vld [vmem:[%s0 + $0x110] sm:$0xff]
    %v68 = vld [vmem:[%s0 + $0x118] sm:$0xff]
    %v69 = vld [vmem:[%s0 + $0x120] sm:$0xff]
    %v70 = vld [vmem:[%s0 + $0x128] sm:$0xff]
    %v71 = vld [vmem:[%s0 + $0x130] sm:$0xff]
    %v72 = vld [vmem:[%s0 + $0x138] sm:$0xff]
    %v73 = vld [vmem:[%s0 + $0x140] sm:$0xff]
    %v74 = vld [vmem:[%s0 + $0x148] sm:$0xff]
    %v75 = vld [vmem:[%s0 + $0x150] sm:$0xff]
    %v76 = vld [vmem:[%s0 + $0x158] sm:$0xff]
    %v77 = vld [vmem:[%s0 + $0x160] sm:$0xff]
    %v78 = vld [vmem:[%s0 + $0x168] sm:$0xff]
    %v79 = vld [vmem:[%s0 + $0x170] sm:$0xff]
    %v80 = vld [vmem:[%s0 + $0x178] sm:$0xff]
    %v81 = vld [vmem:[%s0 + $0x180] sm:$0xff]
    %v82 = vld [vmem:[%s0 + $0x188] sm:$0xff]
    %v83 = vld [vmem:[%s1] sm:$0xff]
    %v84 = vld [vmem:[%s1 + $0x8] sm:$0xff]
    %v85 = vld [vmem:[%s2] sm:$0xff]
    %v86 = vld [vmem:[%s2 + $0x8] sm:$0xff]
    %88 = vset.pattern.permute.xlu0 0
    %89 = vperm.xlu0 %88, %v85
    %v90 = vpop.permute.xlu0 %89
    %93 = vset.pattern.permute.xlu0 0
    %94 = vperm.xlu0 %93, %v86
    %v95 = vpop.permute.xlu0 %94
    %vm97 = vcmask 195584
    %v99 = vsel %vm97, %v83, 0
    %v102 = vsel %vm97, %v84, 0
    %104 = vmatprep.subr.mxu0 %v34
    %105 = vmatpush1.msra.mxu0 %v33
    %106 = vmatprep.subr.mxu0 %v35
    %107 = vmatpush1.msra.mxu0 %v34
    %108 = vmatprep.subr.mxu0 %v36
    %109 = vmatpush1.msra.mxu0 %v35
    %110 = vmatprep.subr.mxu0 0.0
    %111 = vmatpush1.msra.mxu0 0.0
    %112 = vmatprep.subr.mxu0 0.0
    %113 = vmatpush1.msra.mxu0 0.0
    %114 = vmatprep.subr.mxu0 0.0
    %115 = vmatpush1.msra.mxu0 0.0
    %116 = vmatprep.subr.mxu0 0.0
    %117 = vmatpush1.msra.mxu0 0.0
    %118 = vmatprep.subr.mxu0 0.0
    %119 = vmatpush1.msra.mxu0 0.0
    %120 = vmatprep.subr.mxu0 0.0
    %121 = vmatpush1.msra.mxu0 0.0
    %122 = vmatprep.subr.mxu0 0.0
    %123 = vmatpush1.msra.mxu0 0.0
    %124 = vmatprep.subr.mxu0 0.0
    %125 = vmatpush1.msra.mxu0 0.0
    %126 = vmatprep.subr.mxu0 0.0
    %127 = vmatpush1.msra.mxu0 0.0
    %128 = vmatprep.subr.mxu0 0.0
    %129 = vmatpush1.msra.mxu0 0.0
    %130 = vmatprep.subr.mxu0 0.0
    %131 = vmatpush1.msra.mxu0 0.0
    %132 = vmatprep.subr.mxu0 0.0
    %133 = vmatpush1.msra.mxu0 0.0
    %134 = vmatprep.subr.mxu0 0.0
    %135 = vmatpush1.msra.mxu0 0.0
    %136 = vmatprep.subr.mxu0 0.0
    %137 = vmatpush1.msra.mxu0 0.0
    %138 = vmatprep.subr.mxu0 0.0
    %139 = vmatpush1.msra.mxu0 0.0
    %140 = vmatprep.subr.mxu0 0.0
    %141 = vmatpush1.msra.mxu0 0.0
    %142 = vmatprep.subr.mxu0 0.0
    %143 = vmatpush1.msra.mxu0 0.0
    %144 = vmatprep.subr.mxu0 0.0
    %145 = vmatpush1.msra.mxu0 0.0
    %146 = vmatprep.subr.mxu0 0.0
    %147 = vmatpush1.msra.mxu0 0.0
    %148 = vmatprep.subr.mxu0 0.0
    %149 = vmatpush1.msra.mxu0 0.0
    %150 = vmatprep.subr.mxu0 0.0
    %151 = vmatpush1.msra.mxu0 0.0
    %152 = vmatprep.subr.mxu0 0.0
    %153 = vmatpush1.msra.mxu0 0.0
    %154 = vmatprep.subr.mxu0 0.0
    %155 = vmatpush1.msra.mxu0 0.0
    %156 = vmatprep.subr.mxu0 0.0
    %157 = vmatpush1.msra.mxu0 0.0
    %158 = vmatprep.subr.mxu0 0.0
    %159 = vmatpush1.msra.mxu0 0.0
    %160 = vmatprep.subr.mxu0 0.0
    %161 = vmatpush1.msra.mxu0 0.0
    %162 = vmatprep.subr.mxu0 0.0
    %163 = vmatpush1.msra.mxu0 0.0
    %164 = vmatprep.subr.mxu0 0.0
    %165 = vmatpush1.msra.mxu0 0.0
    %166 = vmatprep.subr.mxu0 0.0
    %167 = vmatpush1.msra.mxu0 0.0
    %168 = vmatprep.mubr.f32.mxu0 0.0
    %169 = vmatmul.mubr.f32.gmra.mrb[0].mxu0 %v99
    %v170 = vpop.f32.mrb[0].mxu0
    %v171 = vadd.f32 %v90, %v170
    %v172 = vpop.f32.mrb[0].mxu0
    %v173 = vadd.f32 %v90, %v172
    %174 = vmatprep.mubr.f32.mxu0 0.0
    %175 = vmatmul.mubr.f32.gmra.mrb[0].mxu0 %v102
    %v176 = vpop.f32.mrb[0].mxu0
    %v177 = vadd.f32 %v95, %v176
    %v178 = vpop.f32.mrb[0].mxu0
    %v179 = vadd.f32 %v95, %v178
    %180 = vdwg.mxu0
    %181 = vmatprep.subr.mxu0 %v36
    %182 = vmatpush1.msra.mxu0 %v35
    %183 = vmatprep.subr.mxu0 %v37
    %184 = vmatpush1.msra.mxu0 %v36
    %185 = vmatprep.subr.mxu0 %v38
    %186 = vmatpush1.msra.mxu0 %v37
    %187 = vmatprep.subr.mxu0 0.0
    %188 = vmatpush1.msra.mxu0 0.0
    %189 = vmatprep.subr.mxu0 0.0
    %190 = vmatpush1.msra.mxu0 0.0
    %191 = vmatprep.subr.mxu0 0.0
    %192 = vmatpush1.msra.mxu0 0.0
    %193 = vmatprep.subr.mxu0 0.0
    %194 = vmatpush1.msra.mxu0 0.0
    %195 = vmatprep.subr.mxu0 0.0
    %196 = vmatpush1.msra.mxu0 0.0
    %197 = vmatprep.subr.mxu0 0.0
    %198 = vmatpush1.msra.mxu0 0.0
    %199 = vmatprep.subr.mxu0 0.0
    %200 = vmatpush1.msra.mxu0 0.0
    %201 = vmatprep.subr.mxu0 0.0
    %202 = vmatpush1.msra.mxu0 0.0
    %203 = vmatprep.subr.mxu0 0.0
    %204 = vmatpush1.msra.mxu0 0.0
    %205 = vmatprep.subr.mxu0 0.0
    %206 = vmatpush1.msra.mxu0 0.0
    %207 = vmatprep.subr.mxu0 0.0
    %208 = vmatpush1.msra.mxu0 0.0
    %209 = vmatprep.subr.mxu0 0.0
    %210 = vmatpush1.msra.mxu0 0.0
    %211 = vmatprep.subr.mxu0 0.0
    %212 = vmatpush1.msra.mxu0 0.0
    %213 = vmatprep.subr.mxu0 0.0
    %214 = vmatpush1.msra.mxu0 0.0
    %215 = vmatprep.subr.mxu0 0.0
    %216 = vmatpush1.msra.mxu0 0.0
    %217 = vmatprep.subr.mxu0 0.0
    %218 = vmatpush1.msra.mxu0 0.0
    %219 = vmatprep.subr.mxu0 0.0
    %220 = vmatpush1.msra.mxu0 0.0
    %221 = vmatprep.subr.mxu0 0.0
    %222 = vmatpush1.msra.mxu0 0.0
    %223 = vmatprep.subr.mxu0 0.0
    %224 = vmatpush1.msra.mxu0 0.0
    %225 = vmatprep.subr.mxu0 0.0
    %226 = vmatpush1.msra.mxu0 0.0
    %227 = vmatprep.subr.mxu0 0.0
    %228 = vmatpush1.msra.mxu0 0.0
    %229 = vmatprep.subr.mxu0 0.0
    %230 = vmatpush1.msra.mxu0 0.0
    %231 = vmatprep.subr.mxu0 0.0
    %232 = vmatpush1.msra.mxu0 0.0
    %233 = vmatprep.subr.mxu0 0.0
    %234 = vmatpush1.msra.mxu0 0.0
    %235 = vmatprep.subr.mxu0 0.0
    %236 = vmatpush1.msra.mxu0 0.0
    %237 = vmatprep.subr.mxu0 0.0
    %238 = vmatpush1.msra.mxu0 0.0
    %239 = vmatprep.subr.mxu0 0.0
    %240 = vmatpush1.msra.mxu0 0.0
    %241 = vmatprep.subr.mxu0 0.0
    %242 = vmatpush1.msra.mxu0 0.0
    %243 = vmatprep.subr.mxu0 0.0
    %244 = vmatpush1.msra.mxu0 0.0
    %245 = vmatprep.mubr.f32.mxu0 0.0
    %246 = vmatmul.mubr.f32.gmra.mrb[0].mxu0 %v99
    %v247 = vpop.f32.mrb[0].mxu0
    %v248 = vadd.f32 %v90, %v247
    %v249 = vpop.f32.mrb[0].mxu0
    %v250 = vadd.f32 %v90, %v249
    %251 = vmatprep.mubr.f32.mxu0 0.0
    %252 = vmatmul.mubr.f32.gmra.mrb[0].mxu0 %v102
    %v253 = vpop.f32.mrb[0].mxu0
    %v254 = vadd.f32 %v95, %v253
    %v255 = vpop.f32.mrb[0].mxu0
    %v256 = vadd.f32 %v95, %v255
    %257 = vdwg.mxu0
    %258 = vmatprep.subr.mxu0 %v38
    %259 = vmatpush1.msra.mxu0 %v37
    %260 = vmatprep.subr.mxu0 %v39
    %261 = vmatpush1.msra.mxu0 %v38
    %262 = vmatprep.subr.mxu0 %v40
    %263 = vmatpush1.msra.mxu0 %v39
    %264 = vmatprep.subr.mxu0 0.0
    %265 = vmatpush1.msra.mxu0 0.0
    %266 = vmatprep.subr.mxu0 0.0
    %267 = vmatpush1.msra.mxu0 0.0
    %268 = vmatprep.subr.mxu0 0.0
    %269 = vmatpush1.msra.mxu0 0.0
    %270 = vmatprep.subr.mxu0 0.0
    %271 = vmatpush1.msra.mxu0 0.0
    %272 = vmatprep.subr.mxu0 0.0
    %273 = vmatpush1.msra.mxu0 0.0
    %274 = vmatprep.subr.mxu0 0.0
    %275 = vmatpush1.msra.mxu0 0.0
    %276 = vmatprep.subr.mxu0 0.0
    %277 = vmatpush1.msra.mxu0 0.0
    %278 = vmatprep.subr.mxu0 0.0
    %279 = vmatpush1.msra.mxu0 0.0
    %280 = vmatprep.subr.mxu0 0.0
    %281 = vmatpush1.msra.mxu0 0.0
    %282 = vmatprep.subr.mxu0 0.0
    %283 = vmatpush1.msra.mxu0 0.0
    %284 = vmatprep.subr.mxu0 0.0
    %285 = vmatpush1.msra.mxu0 0.0
    %286 = vmatprep.subr.mxu0 0.0
    %287 = vmatpush1.msra.mxu0 0.0
    %288 = vmatprep.subr.mxu0 0.0
    %289 = vmatpush1.msra.mxu0 0.0
    %290 = vmatprep.subr.mxu0 0.0
    %291 = vmatpush1.msra.mxu0 0.0
    %292 = vmatprep.subr.mxu0 0.0
    %293 = vmatpush1.msra.mxu0 0.0
    %294 = vmatprep.subr.mxu0 0.0
    %295 = vmatpush1.msra.mxu0 0.0
    %296 = vmatprep.subr.mxu0 0.0
    %297 = vmatpush1.msra.mxu0 0.0
    %298 = vmatprep.subr.mxu0 0.0
    %299 = vmatpush1.msra.mxu0 0.0
    %300 = vmatprep.subr.mxu0 0.0
    %301 = vmatpush1.msra.mxu0 0.0
    %302 = vmatprep.subr.mxu0 0.0
    %303 = vmatpush1.msra.mxu0 0.0
    %304 = vmatprep.subr.mxu0 0.0
    %305 = vmatpush1.msra.mxu0 0.0
    %306 = vmatprep.subr.mxu0 0.0
    %307 = vmatpush1.msra.mxu0 0.0
    %308 = vmatprep.subr.mxu0 0.0
    %309 = vmatpush1.msra.mxu0 0.0
    %310 = vmatprep.subr.mxu0 0.0
    %311 = vmatpush1.msra.mxu0 0.0
    %312 = vmatprep.subr.mxu0 0.0
    %313 = vmatpush1.msra.mxu0 0.0
    %314 = vmatprep.subr.mxu0 0.0
    %315 = vmatpush1.msra.mxu0 0.0
    %316 = vmatprep.subr.mxu0 0.0
    %317 = vmatpush1.msra.mxu0 0.0
    %318 = vmatprep.subr.mxu0 0.0
    %319 = vmatpush1.msra.mxu0 0.0
    %320 = vmatprep.subr.mxu0 0.0
    %321 = vmatpush1.msra.mxu0 0.0
    %322 = vmatprep.mubr.f32.mxu0 0.0
    %323 = vmatmul.mubr.f32.gmra.mrb[0].mxu0 %v99
    %v324 = vpop.f32.mrb[0].mxu0
    %v325 = vadd.f32 %v90, %v324
    %v326 = vpop.f32.mrb[0].mxu0
    %v327 = vadd.f32 %v90, %v326
    %328 = vmatprep.mubr.f32.mxu0 0.0
    %329 = vmatmul.mubr.f32.gmra.mrb[0].mxu0 %v102
    %v330 = vpop.f32.mrb[0].mxu0
    %v331 = vadd.f32 %v95, %v330
    %v332 = vpop.f32.mrb[0].mxu0
    %v333 = vadd.f32 %v95, %v332
    %334 = vdwg.mxu0
    %335 = vmatprep.subr.mxu0 %v40
    %336 = vmatpush1.msra.mxu0 %v39
    %337 = vmatprep.subr.mxu0 %v41
    %338 = vmatpush1.msra.mxu0 %v40
    %339 = vmatprep.subr.mxu0 %v42
    %340 = vmatpush1.msra.mxu0 %v41
    %341 = vmatprep.subr.mxu0 0.0
    %342 = vmatpush1.msra.mxu0 0.0
    %343 = vmatprep.subr.mxu0 0.0
    %344 = vmatpush1.msra.mxu0 0.0
    %345 = vmatprep.subr.mxu0 0.0
    %346 = vmatpush1.msra.mxu0 0.0
    %347 = vmatprep.subr.mxu0 0.0
    %348 = vmatpush1.msra.mxu0 0.0
    %349 = vmatprep.subr.mxu0 0.0
    %350 = vmatpush1.msra.mxu0 0.0
    %351 = vmatprep.subr.mxu0 0.0
    %352 = vmatpush1.msra.mxu0 0.0
    %353 = vmatprep.subr.mxu0 0.0
    %354 = vmatpush1.msra.mxu0 0.0
    %355 = vmatprep.subr.mxu0 0.0
    %356 = vmatpush1.msra.mxu0 0.0
    %357 = vmatprep.subr.mxu0 0.0
    %358 = vmatpush1.msra.mxu0 0.0
    %359 = vmatprep.subr.mxu0 0.0
    %360 = vmatpush1.msra.mxu0 0.0
    %361 = vmatprep.subr.mxu0 0.0
    %362 = vmatpush1.msra.mxu0 0.0
    %363 = vmatprep.subr.mxu0 0.0
    %364 = vmatpush1.msra.mxu0 0.0
    %365 = vmatprep.subr.mxu0 0.0
    %366 = vmatpush1.msra.mxu0 0.0
    %367 = vmatprep.subr.mxu0 0.0
    %368 = vmatpush1.msra.mxu0 0.0
    %369 = vmatprep.subr.mxu0 0.0
    %370 = vmatpush1.msra.mxu0 0.0
    %371 = vmatprep.subr.mxu0 0.0
    %372 = vmatpush1.msra.mxu0 0.0
    %373 = vmatprep.subr.mxu0 0.0
    %374 = vmatpush1.msra.mxu0 0.0
    %375 = vmatprep.subr.mxu0 0.0
    %376 = vmatpush1.msra.mxu0 0.0
    %377 = vmatprep.subr.mxu0 0.0
    %378 = vmatpush1.msra.mxu0 0.0
    %379 = vmatprep.subr.mxu0 0.0
    %380 = vmatpush1.msra.mxu0 0.0
    %381 = vmatprep.subr.mxu0 0.0
    %382 = vmatpush1.msra.mxu0 0.0
    %383 = vmatprep.subr.mxu0 0.0
    %384 = vmatpush1.msra.mxu0 0.0
    %385 = vmatprep.subr.mxu0 0.0
    %386 = vmatpush1.msra.mxu0 0.0
    %387 = vmatprep.subr.mxu0 0.0
    %388 = vmatpush1.msra.mxu0 0.0
    %389 = vmatprep.subr.mxu0 0.0
    %390 = vmatpush1.msra.mxu0 0.0
    %391 = vmatprep.subr.mxu0 0.0
    %392 = vmatpush1.msra.mxu0 0.0
    %393 = vmatprep.subr.mxu0 0.0
    %394 = vmatpush1.msra.mxu0 0.0
    %395 = vmatprep.subr.mxu0 0.0
    %396 = vmatpush1.msra.mxu0 0.0
    %397 = vmatprep.subr.mxu0 0.0
    %398 = vmatpush1.msra.mxu0 0.0
    %399 = vmatprep.mubr.f32.mxu0 0.0
    %400 = vmatmul.mubr.f32.gmra.mrb[0].mxu0 %v99
    %v401 = vpop.f32.mrb[0].mxu0
    %v402 = vadd.f32 %v90, %v401
    %v403 = vpop.f32.mrb[0].mxu0
    %v404 = vadd.f32 %v90, %v403
    %405 = vmatprep.mubr.f32.mxu0 0.0
    %406 = vmatmul.mubr.f32.gmra.mrb[0].mxu0 %v102
    %v407 = vpop.f32.mrb[0].mxu0
    %v408 = vadd.f32 %v95, %v407
    %v409 = vpop.f32.mrb[0].mxu0
    %v410 = vadd.f32 %v95, %v409
    %411 = vdwg.mxu0
    %412 = vmatprep.subr.mxu0 %v42
    %413 = vmatpush1.msra.mxu0 %v41
    %414 = vmatprep.subr.mxu0 %v43
    %415 = vmatpush1.msra.mxu0 %v42
    %416 = vmatprep.subr.mxu0 %v44
    %417 = vmatpush1.msra.mxu0 %v43
    %418 = vmatprep.subr.mxu0 0.0
    %419 = vmatpush1.msra.mxu0 0.0
    %420 = vmatprep.subr.mxu0 0.0
    %421 = vmatpush1.msra.mxu0 0.0
    %422 = vmatprep.subr.mxu0 0.0
    %423 = vmatpush1.msra.mxu0 0.0
    %424 = vmatprep.subr.mxu0 0.0
    %425 = vmatpush1.msra.mxu0 0.0
    %426 = vmatprep.subr.mxu0 0.0
    %427 = vmatpush1.msra.mxu0 0.0
    %428 = vmatprep.subr.mxu0 0.0
    %429 = vmatpush1.msra.mxu0 0.0
    %430 = vmatprep.subr.mxu0 0.0
    %431 = vmatpush1.msra.mxu0 0.0
    %432 = vmatprep.subr.mxu0 0.0
    %433 = vmatpush1.msra.mxu0 0.0
    %434 = vmatprep.subr.mxu0 0.0
    %435 = vmatpush1.msra.mxu0 0.0
    %436 = vmatprep.subr.mxu0 0.0
    %437 = vmatpush1.msra.mxu0 0.0
    %438 = vmatprep.subr.mxu0 0.0
    %439 = vmatpush1.msra.mxu0 0.0
    %440 = vmatprep.subr.mxu0 0.0
    %441 = vmatpush1.msra.mxu0 0.0
    %442 = vmatprep.subr.mxu0 0.0
    %443 = vmatpush1.msra.mxu0 0.0
    %444 = vmatprep.subr.mxu0 0.0
    %445 = vmatpush1.msra.mxu0 0.0
    %446 = vmatprep.subr.mxu0 0.0
    %447 = vmatpush1.msra.mxu0 0.0
    %448 = vmatprep.subr.mxu0 0.0
    %449 = vmatpush1.msra.mxu0 0.0
    %450 = vmatprep.subr.mxu0 0.0
    %451 = vmatpush1.msra.mxu0 0.0
    %452 = vmatprep.subr.mxu0 0.0
    %453 = vmatpush1.msra.mxu0 0.0
    %454 = vmatprep.subr.mxu0 0.0
    %455 = vmatpush1.msra.mxu0 0.0
    %456 = vmatprep.subr.mxu0 0.0
    %457 = vmatpush1.msra.mxu0 0.0
    %458 = vmatprep.subr.mxu0 0.0
    %459 = vmatpush1.msra.mxu0 0.0
    %460 = vmatprep.subr.mxu0 0.0
    %461 = vmatpush1.msra.mxu0 0.0
    %462 = vmatprep.subr.mxu0 0.0
    %463 = vmatpush1.msra.mxu0 0.0
    %464 = vmatprep.subr.mxu0 0.0
    %465 = vmatpush1.msra.mxu0 0.0
    %466 = vmatprep.subr.mxu0 0.0
    %467 = vmatpush1.msra.mxu0 0.0
    %468 = vmatprep.subr.mxu0 0.0
    %469 = vmatpush1.msra.mxu0 0.0
    %470 = vmatprep.subr.mxu0 0.0
    %471 = vmatpush1.msra.mxu0 0.0
    %472 = vmatprep.subr.mxu0 0.0
    %473 = vmatpush1.msra.mxu0 0.0
    %474 = vmatprep.subr.mxu0 0.0
    %475 = vmatpush1.msra.mxu0 0.0
    %476 = vmatprep.mubr.f32.mxu0 0.0
    %477 = vmatmul.mubr.f32.gmra.mrb[0].mxu0 %v99
    %v478 = vpop.f32.mrb[0].mxu0
    %v479 = vadd.f32 %v90, %v478
    %v480 = vpop.f32.mrb[0].mxu0
    %v481 = vadd.f32 %v90, %v480
    %482 = vmatprep.mubr.f32.mxu0 0.0
    %483 = vmatmul.mubr.f32.gmra.mrb[0].mxu0 %v102
    %v484 = vpop.f32.mrb[0].mxu0
    %v485 = vadd.f32 %v95, %v484
    %v486 = vpop.f32.mrb[0].mxu0
    %v487 = vadd.f32 %v95, %v486
    %488 = vdwg.mxu0
    %489 = vmatprep.subr.mxu0 %v44
    %490 = vmatpush1.msra.mxu0 %v43
    %491 = vmatprep.subr.mxu0 %v45
    %492 = vmatpush1.msra.mxu0 %v44
    %493 = vmatprep.subr.mxu0 %v46
    %494 = vmatpush1.msra.mxu0 %v45
    %495 = vmatprep.subr.mxu0 0.0
    %496 = vmatpush1.msra.mxu0 0.0
    %497 = vmatprep.subr.mxu0 0.0
    %498 = vmatpush1.msra.mxu0 0.0
    %499 = vmatprep.subr.mxu0 0.0
    %500 = vmatpush1.msra.mxu0 0.0
    %501 = vmatprep.subr.mxu0 0.0
    %502 = vmatpush1.msra.mxu0 0.0
    %503 = vmatprep.subr.mxu0 0.0
    %504 = vmatpush1.msra.mxu0 0.0
    %505 = vmatprep.subr.mxu0 0.0
    %506 = vmatpush1.msra.mxu0 0.0
    %507 = vmatprep.subr.mxu0 0.0
    %508 = vmatpush1.msra.mxu0 0.0
    %509 = vmatprep.subr.mxu0 0.0
    %510 = vmatpush1.msra.mxu0 0.0
    %511 = vmatprep.subr.mxu0 0.0
    %512 = vmatpush1.msra.mxu0 0.0
    %513 = vmatprep.subr.mxu0 0.0
    %514 = vmatpush1.msra.mxu0 0.0
    %515 = vmatprep.subr.mxu0 0.0
    %516 = vmatpush1.msra.mxu0 0.0
    %517 = vmatprep.subr.mxu0 0.0
    %518 = vmatpush1.msra.mxu0 0.0
    %519 = vmatprep.subr.mxu0 0.0
    %520 = vmatpush1.msra.mxu0 0.0
    %521 = vmatprep.subr.mxu0 0.0
    %522 = vmatpush1.msra.mxu0 0.0
    %523 = vmatprep.subr.mxu0 0.0
    %524 = vmatpush1.msra.mxu0 0.0
    %525 = vmatprep.subr.mxu0 0.0
    %526 = vmatpush1.msra.mxu0 0.0
    %527 = vmatprep.subr.mxu0 0.0
    %528 = vmatpush1.msra.mxu0 0.0
    %529 = vmatprep.subr.mxu0 0.0
    %530 = vmatpush1.msra.mxu0 0.0
    %531 = vmatprep.subr.mxu0 0.0
    %532 = vmatpush1.msra.mxu0 0.0
    %533 = vmatprep.subr.mxu0 0.0
    %534 = vmatpush1.msra.mxu0 0.0
    %535 = vmatprep.subr.mxu0 0.0
    %536 = vmatpush1.msra.mxu0 0.0
    %537 = vmatprep.subr.mxu0 0.0
    %538 = vmatpush1.msra.mxu0 0.0
    %539 = vmatprep.subr.mxu0 0.0
    %540 = vmatpush1.msra.mxu0 0.0
    %541 = vmatprep.subr.mxu0 0.0
    %542 = vmatpush1.msra.mxu0 0.0
    %543 = vmatprep.subr.mxu0 0.0
    %544 = vmatpush1.msra.mxu0 0.0
    %545 = vmatprep.subr.mxu0 0.0
    %546 = vmatpush1.msra.mxu0 0.0
    %547 = vmatprep.subr.mxu0 0.0
    %548 = vmatpush1.msra.mxu0 0.0
    %549 = vmatprep.subr.mxu0 0.0
    %550 = vmatpush1.msra.mxu0 0.0
    %551 = vmatprep.subr.mxu0 0.0
    %552 = vmatpush1.msra.mxu0 0.0
    %553 = vmatprep.mubr.f32.mxu0 0.0
    %554 = vmatmul.mubr.f32.gmra.mrb[0].mxu0 %v99
    %v555 = vpop.f32.mrb[0].mxu0
    %v556 = vadd.f32 %v90, %v555
    %v557 = vpop.f32.mrb[0].mxu0
    %v558 = vadd.f32 %v90, %v557
    %559 = vmatprep.mubr.f32.mxu0 0.0
    %560 = vmatmul.mubr.f32.gmra.mrb[0].mxu0 %v102
    %v561 = vpop.f32.mrb[0].mxu0
    %v562 = vadd.f32 %v95, %v561
    %v563 = vpop.f32.mrb[0].mxu0
    %v564 = vadd.f32 %v95, %v563
    %565 = vdwg.mxu0
    %566 = vmatprep.subr.mxu0 %v46
    %567 = vmatpush1.msra.mxu0 %v45
    %568 = vmatprep.subr.mxu0 %v47
    %569 = vmatpush1.msra.mxu0 %v46
    %570 = vmatprep.subr.mxu0 %v48
    %571 = vmatpush1.msra.mxu0 %v47
    %572 = vmatprep.subr.mxu0 0.0
    %573 = vmatpush1.msra.mxu0 0.0
    %574 = vmatprep.subr.mxu0 0.0
    %575 = vmatpush1.msra.mxu0 0.0
    %576 = vmatprep.subr.mxu0 0.0
    %577 = vmatpush1.msra.mxu0 0.0
    %578 = vmatprep.subr.mxu0 0.0
    %579 = vmatpush1.msra.mxu0 0.0
    %580 = vmatprep.subr.mxu0 0.0
    %581 = vmatpush1.msra.mxu0 0.0
    %582 = vmatprep.subr.mxu0 0.0
    %583 = vmatpush1.msra.mxu0 0.0
    %584 = vmatprep.subr.mxu0 0.0
    %585 = vmatpush1.msra.mxu0 0.0
    %586 = vmatprep.subr.mxu0 0.0
    %587 = vmatpush1.msra.mxu0 0.0
    %588 = vmatprep.subr.mxu0 0.0
    %589 = vmatpush1.msra.mxu0 0.0
    %590 = vmatprep.subr.mxu0 0.0
    %591 = vmatpush1.msra.mxu0 0.0
    %592 = vmatprep.subr.mxu0 0.0
    %593 = vmatpush1.msra.mxu0 0.0
    %594 = vmatprep.subr.mxu0 0.0
    %595 = vmatpush1.msra.mxu0 0.0
    %596 = vmatprep.subr.mxu0 0.0
    %597 = vmatpush1.msra.mxu0 0.0
    %598 = vmatprep.subr.mxu0 0.0
    %599 = vmatpush1.msra.mxu0 0.0
    %600 = vmatprep.subr.mxu0 0.0
    %601 = vmatpush1.msra.mxu0 0.0
    %602 = vmatprep.subr.mxu0 0.0
    %603 = vmatpush1.msra.mxu0 0.0
    %604 = vmatprep.subr.mxu0 0.0
    %605 = vmatpush1.msra.mxu0 0.0
    %606 = vmatprep.subr.mxu0 0.0
    %607 = vmatpush1.msra.mxu0 0.0
    %608 = vmatprep.subr.mxu0 0.0
    %609 = vmatpush1.msra.mxu0 0.0
    %610 = vmatprep.subr.mxu0 0.0
    %611 = vmatpush1.msra.mxu0 0.0
    %612 = vmatprep.subr.mxu0 0.0
    %613 = vmatpush1.msra.mxu0 0.0
    %614 = vmatprep.subr.mxu0 0.0
    %615 = vmatpush1.msra.mxu0 0.0
    %616 = vmatprep.subr.mxu0 0.0
    %617 = vmatpush1.msra.mxu0 0.0
    %618 = vmatprep.subr.mxu0 0.0
    %619 = vmatpush1.msra.mxu0 0.0
    %620 = vmatprep.subr.mxu0 0.0
    %621 = vmatpush1.msra.mxu0 0.0
    %622 = vmatprep.subr.mxu0 0.0
    %623 = vmatpush1.msra.mxu0 0.0
    %624 = vmatprep.subr.mxu0 0.0
    %625 = vmatpush1.msra.mxu0 0.0
    %626 = vmatprep.subr.mxu0 0.0
    %627 = vmatpush1.msra.mxu0 0.0
    %628 = vmatprep.subr.mxu0 0.0
    %629 = vmatpush1.msra.mxu0 0.0
    %630 = vmatprep.mubr.f32.mxu0 0.0
    %631 = vmatmul.mubr.f32.gmra.mrb[0].mxu0 %v99
    %v632 = vpop.f32.mrb[0].mxu0
    %v633 = vadd.f32 %v90, %v632
    %v634 = vpop.f32.mrb[0].mxu0
    %v635 = vadd.f32 %v90, %v634
    %636 = vmatprep.mubr.f32.mxu0 0.0
    %637 = vmatmul.mubr.f32.gmra.mrb[0].mxu0 %v102
    %v638 = vpop.f32.mrb[0].mxu0
    %v639 = vadd.f32 %v95, %v638
    %v640 = vpop.f32.mrb[0].mxu0
    %v641 = vadd.f32 %v95, %v640
    %642 = vdwg.mxu0
    %643 = vmatprep.subr.mxu0 %v48
    %644 = vmatpush1.msra.mxu0 %v47
    %645 = vmatprep.subr.mxu0 %v49
    %646 = vmatpush1.msra.mxu0 %v48
    %647 = vmatprep.subr.mxu0 %v50
    %648 = vmatpush1.msra.mxu0 %v49
    %649 = vmatprep.subr.mxu0 0.0
    %650 = vmatpush1.msra.mxu0 0.0
    %651 = vmatprep.subr.mxu0 0.0
    %652 = vmatpush1.msra.mxu0 0.0
    %653 = vmatprep.subr.mxu0 0.0
    %654 = vmatpush1.msra.mxu0 0.0
    %655 = vmatprep.subr.mxu0 0.0
    %656 = vmatpush1.msra.mxu0 0.0
    %657 = vmatprep.subr.mxu0 0.0
    %658 = vmatpush1.msra.mxu0 0.0
    %659 = vmatprep.subr.mxu0 0.0
    %660 = vmatpush1.msra.mxu0 0.0
    %661 = vmatprep.subr.mxu0 0.0
    %662 = vmatpush1.msra.mxu0 0.0
    %663 = vmatprep.subr.mxu0 0.0
    %664 = vmatpush1.msra.mxu0 0.0
    %665 = vmatprep.subr.mxu0 0.0
    %666 = vmatpush1.msra.mxu0 0.0
    %667 = vmatprep.subr.mxu0 0.0
    %668 = vmatpush1.msra.mxu0 0.0
    %669 = vmatprep.subr.mxu0 0.0
    %670 = vmatpush1.msra.mxu0 0.0
    %671 = vmatprep.subr.mxu0 0.0
    %672 = vmatpush1.msra.mxu0 0.0
    %673 = vmatprep.subr.mxu0 0.0
    %674 = vmatpush1.msra.mxu0 0.0
    %675 = vmatprep.subr.mxu0 0.0
    %676 = vmatpush1.msra.mxu0 0.0
    %677 = vmatprep.subr.mxu0 0.0
    %678 = vmatpush1.msra.mxu0 0.0
    %679 = vmatprep.subr.mxu0 0.0
    %680 = vmatpush1.msra.mxu0 0.0
    %681 = vmatprep.subr.mxu0 0.0
    %682 = vmatpush1.msra.mxu0 0.0
    %683 = vmatprep.subr.mxu0 0.0
    %684 = vmatpush1.msra.mxu0 0.0
    %685 = vmatprep.subr.mxu0 0.0
    %686 = vmatpush1.msra.mxu0 0.0
    %687 = vmatprep.subr.mxu0 0.0
    %688 = vmatpush1.msra.mxu0 0.0
    %689 = vmatprep.subr.mxu0 0.0
    %690 = vmatpush1.msra.mxu0 0.0
    %691 = vmatprep.subr.mxu0 0.0
    %692 = vmatpush1.msra.mxu0 0.0
    %693 = vmatprep.subr.mxu0 0.0
    %694 = vmatpush1.msra.mxu0 0.0
    %695 = vmatprep.subr.mxu0 0.0
    %696 = vmatpush1.msra.mxu0 0.0
    %697 = vmatprep.subr.mxu0 0.0
    %698 = vmatpush1.msra.mxu0 0.0
    %699 = vmatprep.subr.mxu0 0.0
    %700 = vmatpush1.msra.mxu0 0.0
    %701 = vmatprep.subr.mxu0 0.0
    %702 = vmatpush1.msra.mxu0 0.0
    %703 = vmatprep.subr.mxu0 0.0
    %704 = vmatpush1.msra.mxu0 0.0
    %705 = vmatprep.subr.mxu0 0.0
    %706 = vmatpush1.msra.mxu0 0.0
    %707 = vmatprep.mubr.f32.mxu0 0.0
    %708 = vmatmul.mubr.f32.gmra.mrb[0].mxu0 %v99
    %v709 = vpop.f32.mrb[0].mxu0
    %v710 = vadd.f32 %v90, %v709
    %v711 = vpop.f32.mrb[0].mxu0
    %v712 = vadd.f32 %v90, %v711
    %713 = vmatprep.mubr.f32.mxu0 0.0
    %714 = vmatmul.mubr.f32.gmra.mrb[0].mxu0 %v102
    %v715 = vpop.f32.mrb[0].mxu0
    %v716 = vadd.f32 %v95, %v715
    %v717 = vpop.f32.mrb[0].mxu0
    %v718 = vadd.f32 %v95, %v717
    %719 = vdwg.mxu0
    %720 = vmatprep.subr.mxu0 %v50
    %721 = vmatpush1.msra.mxu0 %v49
    %722 = vmatprep.subr.mxu0 %v51
    %723 = vmatpush1.msra.mxu0 %v50
    %724 = vmatprep.subr.mxu0 %v52
    %725 = vmatpush1.msra.mxu0 %v51
    %726 = vmatprep.subr.mxu0 0.0
    %727 = vmatpush1.msra.mxu0 0.0
    %728 = vmatprep.subr.mxu0 0.0
    %729 = vmatpush1.msra.mxu0 0.0
    %730 = vmatprep.subr.mxu0 0.0
    %731 = vmatpush1.msra.mxu0 0.0
    %732 = vmatprep.subr.mxu0 0.0
    %733 = vmatpush1.msra.mxu0 0.0
    %734 = vmatprep.subr.mxu0 0.0
    %735 = vmatpush1.msra.mxu0 0.0
    %736 = vmatprep.subr.mxu0 0.0
    %737 = vmatpush1.msra.mxu0 0.0
    %738 = vmatprep.subr.mxu0 0.0
    %739 = vmatpush1.msra.mxu0 0.0
    %740 = vmatprep.subr.mxu0 0.0
    %741 = vmatpush1.msra.mxu0 0.0
    %742 = vmatprep.subr.mxu0 0.0
    %743 = vmatpush1.msra.mxu0 0.0
    %744 = vmatprep.subr.mxu0 0.0
    %745 = vmatpush1.msra.mxu0 0.0
    %746 = vmatprep.subr.mxu0 0.0
    %747 = vmatpush1.msra.mxu0 0.0
    %748 = vmatprep.subr.mxu0 0.0
    %749 = vmatpush1.msra.mxu0 0.0
    %750 = vmatprep.subr.mxu0 0.0
    %751 = vmatpush1.msra.mxu0 0.0
    %752 = vmatprep.subr.mxu0 0.0
    %753 = vmatpush1.msra.mxu0 0.0
    %754 = vmatprep.subr.mxu0 0.0
    %755 = vmatpush1.msra.mxu0 0.0
    %756 = vmatprep.subr.mxu0 0.0
    %757 = vmatpush1.msra.mxu0 0.0
    %758 = vmatprep.subr.mxu0 0.0
    %759 = vmatpush1.msra.mxu0 0.0
    %760 = vmatprep.subr.mxu0 0.0
    %761 = vmatpush1.msra.mxu0 0.0
    %762 = vmatprep.subr.mxu0 0.0
    %763 = vmatpush1.msra.mxu0 0.0
    %764 = vmatprep.subr.mxu0 0.0
    %765 = vmatpush1.msra.mxu0 0.0
    %766 = vmatprep.subr.mxu0 0.0
    %767 = vmatpush1.msra.mxu0 0.0
    %768 = vmatprep.subr.mxu0 0.0
    %769 = vmatpush1.msra.mxu0 0.0
    %770 = vmatprep.subr.mxu0 0.0
    %771 = vmatpush1.msra.mxu0 0.0
    %772 = vmatprep.subr.mxu0 0.0
    %773 = vmatpush1.msra.mxu0 0.0
    %774 = vmatprep.subr.mxu0 0.0
    %775 = vmatpush1.msra.mxu0 0.0
    %776 = vmatprep.subr.mxu0 0.0
    %777 = vmatpush1.msra.mxu0 0.0
    %778 = vmatprep.subr.mxu0 0.0
    %779 = vmatpush1.msra.mxu0 0.0
    %780 = vmatprep.subr.mxu0 0.0
    %781 = vmatpush1.msra.mxu0 0.0
    %782 = vmatprep.subr.mxu0 0.0
    %783 = vmatpush1.msra.mxu0 0.0
    %784 = vmatprep.mubr.f32.mxu0 0.0
    %785 = vmatmul.mubr.f32.gmra.mrb[0].mxu0 %v99
    %v786 = vpop.f32.mrb[0].mxu0
    %v787 = vadd.f32 %v90, %v786
    %v788 = vpop.f32.mrb[0].mxu0
    %v789 = vadd.f32 %v90, %v788
    %790 = vmatprep.mubr.f32.mxu0 0.0
    %791 = vmatmul.mubr.f32.gmra.mrb[0].mxu0 %v102
    %v792 = vpop.f32.mrb[0].mxu0
    %v793 = vadd.f32 %v95, %v792
    %v794 = vpop.f32.mrb[0].mxu0
    %v795 = vadd.f32 %v95, %v794
    %796 = vdwg.mxu0
    %797 = vmatprep.subr.mxu0 %v52
    %798 = vmatpush1.msra.mxu0 %v51
    %799 = vmatprep.subr.mxu0 %v53
    %800 = vmatpush1.msra.mxu0 %v52
    %801 = vmatprep.subr.mxu0 %v54
    %802 = vmatpush1.msra.mxu0 %v53
    %803 = vmatprep.subr.mxu0 0.0
    %804 = vmatpush1.msra.mxu0 0.0
    %805 = vmatprep.subr.mxu0 0.0
    %806 = vmatpush1.msra.mxu0 0.0
    %807 = vmatprep.subr.mxu0 0.0
    %808 = vmatpush1.msra.mxu0 0.0
    %809 = vmatprep.subr.mxu0 0.0
    %810 = vmatpush1.msra.mxu0 0.0
    %811 = vmatprep.subr.mxu0 0.0
    %812 = vmatpush1.msra.mxu0 0.0
    %813 = vmatprep.subr.mxu0 0.0
    %814 = vmatpush1.msra.mxu0 0.0
    %815 = vmatprep.subr.mxu0 0.0
    %816 = vmatpush1.msra.mxu0 0.0
    %817 = vmatprep.subr.mxu0 0.0
    %818 = vmatpush1.msra.mxu0 0.0
    %819 = vmatprep.subr.mxu0 0.0
    %820 = vmatpush1.msra.mxu0 0.0
    %821 = vmatprep.subr.mxu0 0.0
    %822 = vmatpush1.msra.mxu0 0.0
    %823 = vmatprep.subr.mxu0 0.0
    %824 = vmatpush1.msra.mxu0 0.0
    %825 = vmatprep.subr.mxu0 0.0
    %826 = vmatpush1.msra.mxu0 0.0
    %827 = vmatprep.subr.mxu0 0.0
    %828 = vmatpush1.msra.mxu0 0.0
    %829 = vmatprep.subr.mxu0 0.0
    %830 = vmatpush1.msra.mxu0 0.0
    %831 = vmatprep.subr.mxu0 0.0
    %832 = vmatpush1.msra.mxu0 0.0
    %833 = vmatprep.subr.mxu0 0.0
    %834 = vmatpush1.msra.mxu0 0.0
    %835 = vmatprep.subr.mxu0 0.0
    %836 = vmatpush1.msra.mxu0 0.0
    %837 = vmatprep.subr.mxu0 0.0
    %838 = vmatpush1.msra.mxu0 0.0
    %839 = vmatprep.subr.mxu0 0.0
    %840 = vmatpush1.msra.mxu0 0.0
    %841 = vmatprep.subr.mxu0 0.0
    %842 = vmatpush1.msra.mxu0 0.0
    %843 = vmatprep.subr.mxu0 0.0
    %844 = vmatpush1.msra.mxu0 0.0
    %845 = vmatprep.subr.mxu0 0.0
    %846 = vmatpush1.msra.mxu0 0.0
    %847 = vmatprep.subr.mxu0 0.0
    %848 = vmatpush1.msra.mxu0 0.0
    %849 = vmatprep.subr.mxu0 0.0
    %850 = vmatpush1.msra.mxu0 0.0
    %851 = vmatprep.subr.mxu0 0.0
    %852 = vmatpush1.msra.mxu0 0.0
    %853 = vmatprep.subr.mxu0 0.0
    %854 = vmatpush1.msra.mxu0 0.0
    %855 = vmatprep.subr.mxu0 0.0
    %856 = vmatpush1.msra.mxu0 0.0
    %857 = vmatprep.subr.mxu0 0.0
    %858 = vmatpush1.msra.mxu0 0.0
    %859 = vmatprep.subr.mxu0 0.0
    %860 = vmatpush1.msra.mxu0 0.0
    %861 = vmatprep.mubr.f32.mxu0 0.0
    %862 = vmatmul.mubr.f32.gmra.mrb[0].mxu0 %v99
    %v863 = vpop.f32.mrb[0].mxu0
    %v864 = vadd.f32 %v90, %v863
    %v865 = vpop.f32.mrb[0].mxu0
    %v866 = vadd.f32 %v90, %v865
    %867 = vmatprep.mubr.f32.mxu0 0.0
    %868 = vmatmul.mubr.f32.gmra.mrb[0].mxu0 %v102
    %v869 = vpop.f32.mrb[0].mxu0
    %v870 = vadd.f32 %v95, %v869
    %v871 = vpop.f32.mrb[0].mxu0
    %v872 = vadd.f32 %v95, %v871
    %873 = vdwg.mxu0
    %874 = vmatprep.subr.mxu0 %v54
    %875 = vmatpush1.msra.mxu0 %v53
    %876 = vmatprep.subr.mxu0 %v55
    %877 = vmatpush1.msra.mxu0 %v54
    %878 = vmatprep.subr.mxu0 %v56
    %879 = vmatpush1.msra.mxu0 %v55
    %880 = vmatprep.subr.mxu0 0.0
    %881 = vmatpush1.msra.mxu0 0.0
    %882 = vmatprep.subr.mxu0 0.0
    %883 = vmatpush1.msra.mxu0 0.0
    %884 = vmatprep.subr.mxu0 0.0
    %885 = vmatpush1.msra.mxu0 0.0
    %886 = vmatprep.subr.mxu0 0.0
    %887 = vmatpush1.msra.mxu0 0.0
    %888 = vmatprep.subr.mxu0 0.0
    %889 = vmatpush1.msra.mxu0 0.0
    %890 = vmatprep.subr.mxu0 0.0
    %891 = vmatpush1.msra.mxu0 0.0
    %892 = vmatprep.subr.mxu0 0.0
    %893 = vmatpush1.msra.mxu0 0.0
    %894 = vmatprep.subr.mxu0 0.0
    %895 = vmatpush1.msra.mxu0 0.0
    %896 = vmatprep.subr.mxu0 0.0
    %897 = vmatpush1.msra.mxu0 0.0
    %898 = vmatprep.subr.mxu0 0.0
    %899 = vmatpush1.msra.mxu0 0.0
    %900 = vmatprep.subr.mxu0 0.0
    %901 = vmatpush1.msra.mxu0 0.0
    %902 = vmatprep.subr.mxu0 0.0
    %903 = vmatpush1.msra.mxu0 0.0
    %904 = vmatprep.subr.mxu0 0.0
    %905 = vmatpush1.msra.mxu0 0.0
    %906 = vmatprep.subr.mxu0 0.0
    %907 = vmatpush1.msra.mxu0 0.0
    %908 = vmatprep.subr.mxu0 0.0
    %909 = vmatpush1.msra.mxu0 0.0
    %910 = vmatprep.subr.mxu0 0.0
    %911 = vmatpush1.msra.mxu0 0.0
    %912 = vmatprep.subr.mxu0 0.0
    %913 = vmatpush1.msra.mxu0 0.0
    %914 = vmatprep.subr.mxu0 0.0
    %915 = vmatpush1.msra.mxu0 0.0
    %916 = vmatprep.subr.mxu0 0.0
    %917 = vmatpush1.msra.mxu0 0.0
    %918 = vmatprep.subr.mxu0 0.0
    %919 = vmatpush1.msra.mxu0 0.0
    %920 = vmatprep.subr.mxu0 0.0
    %921 = vmatpush1.msra.mxu0 0.0
    %922 = vmatprep.subr.mxu0 0.0
    %923 = vmatpush1.msra.mxu0 0.0
    %924 = vmatprep.subr.mxu0 0.0
    %925 = vmatpush1.msra.mxu0 0.0
    %926 = vmatprep.subr.mxu0 0.0
    %927 = vmatpush1.msra.mxu0 0.0
    %928 = vmatprep.subr.mxu0 0.0
    %929 = vmatpush1.msra.mxu0 0.0
    %930 = vmatprep.subr.mxu0 0.0
    %931 = vmatpush1.msra.mxu0 0.0
    %932 = vmatprep.subr.mxu0 0.0
    %933 = vmatpush1.msra.mxu0 0.0
    %934 = vmatprep.subr.mxu0 0.0
    %935 = vmatpush1.msra.mxu0 0.0
    %936 = vmatprep.subr.mxu0 0.0
    %937 = vmatpush1.msra.mxu0 0.0
    %938 = vmatprep.mubr.f32.mxu0 0.0
    %939 = vmatmul.mubr.f32.gmra.mrb[0].mxu0 %v99
    %v940 = vpop.f32.mrb[0].mxu0
    %v941 = vadd.f32 %v90, %v940
    %v942 = vpop.f32.mrb[0].mxu0
    %v943 = vadd.f32 %v90, %v942
    %944 = vmatprep.mubr.f32.mxu0 0.0
    %945 = vmatmul.mubr.f32.gmra.mrb[0].mxu0 %v102
    %v946 = vpop.f32.mrb[0].mxu0
    %v947 = vadd.f32 %v95, %v946
    %v948 = vpop.f32.mrb[0].mxu0
    %v949 = vadd.f32 %v95, %v948
    %950 = vdwg.mxu0
    %951 = vmatprep.subr.mxu0 %v56
    %952 = vmatpush1.msra.mxu0 %v55
    %953 = vmatprep.subr.mxu0 %v57
    %954 = vmatpush1.msra.mxu0 %v56
    %955 = vmatprep.subr.mxu0 %v58
    %956 = vmatpush1.msra.mxu0 %v57
    %957 = vmatprep.subr.mxu0 0.0
    %958 = vmatpush1.msra.mxu0 0.0
    %959 = vmatprep.subr.mxu0 0.0
    %960 = vmatpush1.msra.mxu0 0.0
    %961 = vmatprep.subr.mxu0 0.0
    %962 = vmatpush1.msra.mxu0 0.0
    %963 = vmatprep.subr.mxu0 0.0
    %964 = vmatpush1.msra.mxu0 0.0
    %965 = vmatprep.subr.mxu0 0.0
    %966 = vmatpush1.msra.mxu0 0.0
    %967 = vmatprep.subr.mxu0 0.0
    %968 = vmatpush1.msra.mxu0 0.0
    %969 = vmatprep.subr.mxu0 0.0
    %970 = vmatpush1.msra.mxu0 0.0
    %971 = vmatprep.subr.mxu0 0.0
    %972 = vmatpush1.msra.mxu0 0.0
    %973 = vmatprep.subr.mxu0 0.0
    %974 = vmatpush1.msra.mxu0 0.0
    %975 = vmatprep.subr.mxu0 0.0
    %976 = vmatpush1.msra.mxu0 0.0
    %977 = vmatprep.subr.mxu0 0.0
    %978 = vmatpush1.msra.mxu0 0.0
    %979 = vmatprep.subr.mxu0 0.0
    %980 = vmatpush1.msra.mxu0 0.0
    %981 = vmatprep.subr.mxu0 0.0
    %982 = vmatpush1.msra.mxu0 0.0
    %983 = vmatprep.subr.mxu0 0.0
    %984 = vmatpush1.msra.mxu0 0.0
    %985 = vmatprep.subr.mxu0 0.0
    %986 = vmatpush1.msra.mxu0 0.0
    %987 = vmatprep.subr.mxu0 0.0
    %988 = vmatpush1.msra.mxu0 0.0
    %989 = vmatprep.subr.mxu0 0.0
    %990 = vmatpush1.msra.mxu0 0.0
    %991 = vmatprep.subr.mxu0 0.0
    %992 = vmatpush1.msra.mxu0 0.0
    %993 = vmatprep.subr.mxu0 0.0
    %994 = vmatpush1.msra.mxu0 0.0
    %995 = vmatprep.subr.mxu0 0.0
    %996 = vmatpush1.msra.mxu0 0.0
    %997 = vmatprep.subr.mxu0 0.0
    %998 = vmatpush1.msra.mxu0 0.0
    %999 = vmatprep.subr.mxu0 0.0
    %1000 = vmatpush1.msra.mxu0 0.0
    %1001 = vmatprep.subr.mxu0 0.0
    %1002 = vmatpush1.msra.mxu0 0.0
    %1003 = vmatprep.subr.mxu0 0.0
    %1004 = vmatpush1.msra.mxu0 0.0
    %1005 = vmatprep.subr.mxu0 0.0
    %1006 = vmatpush1.msra.mxu0 0.0
    %1007 = vmatprep.subr.mxu0 0.0
    %1008 = vmatpush1.msra.mxu0 0.0
    %1009 = vmatprep.subr.mxu0 0.0
    %1010 = vmatpush1.msra.mxu0 0.0
    %1011 = vmatprep.subr.mxu0 0.0
    %1012 = vmatpush1.msra.mxu0 0.0
    %1013 = vmatprep.subr.mxu0 0.0
    %1014 = vmatpush1.msra.mxu0 0.0
    %1015 = vmatprep.mubr.f32.mxu0 0.0
    %1016 = vmatmul.mubr.f32.gmra.mrb[0].mxu0 %v99
    %v1017 = vpop.f32.mrb[0].mxu0
    %v1018 = vadd.f32 %v90, %v1017
    %v1019 = vpop.f32.mrb[0].mxu0
    %v1020 = vadd.f32 %v90, %v1019
    %1021 = vmatprep.mubr.f32.mxu0 0.0
    %1022 = vmatmul.mubr.f32.gmra.mrb[0].mxu0 %v102
    %v1023 = vpop.f32.mrb[0].mxu0
    %v1024 = vadd.f32 %v95, %v1023
    %v1025 = vpop.f32.mrb[0].mxu0
    %v1026 = vadd.f32 %v95, %v1025
    %1027 = vdwg.mxu0
    %1028 = vmatprep.subr.mxu0 %v58
    %1029 = vmatpush1.msra.mxu0 %v57
    %1030 = vmatprep.subr.mxu0 %v59
    %1031 = vmatpush1.msra.mxu0 %v58
    %1032 = vmatprep.subr.mxu0 %v60
    %1033 = vmatpush1.msra.mxu0 %v59
    %1034 = vmatprep.subr.mxu0 0.0
    %1035 = vmatpush1.msra.mxu0 0.0
    %1036 = vmatprep.subr.mxu0 0.0
    %1037 = vmatpush1.msra.mxu0 0.0
    %1038 = vmatprep.subr.mxu0 0.0
    %1039 = vmatpush1.msra.mxu0 0.0
    %1040 = vmatprep.subr.mxu0 0.0
    %1041 = vmatpush1.msra.mxu0 0.0
    %1042 = vmatprep.subr.mxu0 0.0
    %1043 = vmatpush1.msra.mxu0 0.0
    %1044 = vmatprep.subr.mxu0 0.0
    %1045 = vmatpush1.msra.mxu0 0.0
    %1046 = vmatprep.subr.mxu0 0.0
    %1047 = vmatpush1.msra.mxu0 0.0
    %1048 = vmatprep.subr.mxu0 0.0
    %1049 = vmatpush1.msra.mxu0 0.0
    %1050 = vmatprep.subr.mxu0 0.0
    %1051 = vmatpush1.msra.mxu0 0.0
    %1052 = vmatprep.subr.mxu0 0.0
    %1053 = vmatpush1.msra.mxu0 0.0
    %1054 = vmatprep.subr.mxu0 0.0
    %1055 = vmatpush1.msra.mxu0 0.0
    %1056 = vmatprep.subr.mxu0 0.0
    %1057 = vmatpush1.msra.mxu0 0.0
    %1058 = vmatprep.subr.mxu0 0.0
    %1059 = vmatpush1.msra.mxu0 0.0
    %1060 = vmatprep.subr.mxu0 0.0
    %1061 = vmatpush1.msra.mxu0 0.0
    %1062 = vmatprep.subr.mxu0 0.0
    %1063 = vmatpush1.msra.mxu0 0.0
    %1064 = vmatprep.subr.mxu0 0.0
    %1065 = vmatpush1.msra.mxu0 0.0
    %1066 = vmatprep.subr.mxu0 0.0
    %1067 = vmatpush1.msra.mxu0 0.0
    %1068 = vmatprep.subr.mxu0 0.0
    %1069 = vmatpush1.msra.mxu0 0.0
    %1070 = vmatprep.subr.mxu0 0.0
    %1071 = vmatpush1.msra.mxu0 0.0
    %1072 = vmatprep.subr.mxu0 0.0
    %1073 = vmatpush1.msra.mxu0 0.0
    %1074 = vmatprep.subr.mxu0 0.0
    %1075 = vmatpush1.msra.mxu0 0.0
    %1076 = vmatprep.subr.mxu0 0.0
    %1077 = vmatpush1.msra.mxu0 0.0
    %1078 = vmatprep.subr.mxu0 0.0
    %1079 = vmatpush1.msra.mxu0 0.0
    %1080 = vmatprep.subr.mxu0 0.0
    %1081 = vmatpush1.msra.mxu0 0.0
    %1082 = vmatprep.subr.mxu0 0.0
    %1083 = vmatpush1.msra.mxu0 0.0
    %1084 = vmatprep.subr.mxu0 0.0
    %1085 = vmatpush1.msra.mxu0 0.0
    %1086 = vmatprep.subr.mxu0 0.0
    %1087 = vmatpush1.msra.mxu0 0.0
    %1088 = vmatprep.subr.mxu0 0.0
    %1089 = vmatpush1.msra.mxu0 0.0
    %1090 = vmatprep.subr.mxu0 0.0
    %1091 = vmatpush1.msra.mxu0 0.0
    %1092 = vmatprep.mubr.f32.mxu0 0.0
    %1093 = vmatmul.mubr.f32.gmra.mrb[0].mxu0 %v99
    %v1094 = vpop.f32.mrb[0].mxu0
    %v1095 = vadd.f32 %v90, %v1094
    %v1096 = vpop.f32.mrb[0].mxu0
    %v1097 = vadd.f32 %v90, %v1096
    %1098 = vmatprep.mubr.f32.mxu0 0.0
    %1099 = vmatmul.mubr.f32.gmra.mrb[0].mxu0 %v102
    %v1100 = vpop.f32.mrb[0].mxu0
    %v1101 = vadd.f32 %v95, %v1100
    %v1102 = vpop.f32.mrb[0].mxu0
    %v1103 = vadd.f32 %v95, %v1102
    %1104 = vdwg.mxu0
    %1105 = vmatprep.subr.mxu0 %v60
    %1106 = vmatpush1.msra.mxu0 %v59
    %1107 = vmatprep.subr.mxu0 %v61
    %1108 = vmatpush1.msra.mxu0 %v60
    %1109 = vmatprep.subr.mxu0 %v62
    %1110 = vmatpush1.msra.mxu0 %v61
    %1111 = vmatprep.subr.mxu0 0.0
    %1112 = vmatpush1.msra.mxu0 0.0
    %1113 = vmatprep.subr.mxu0 0.0
    %1114 = vmatpush1.msra.mxu0 0.0
    %1115 = vmatprep.subr.mxu0 0.0
    %1116 = vmatpush1.msra.mxu0 0.0
    %1117 = vmatprep.subr.mxu0 0.0
    %1118 = vmatpush1.msra.mxu0 0.0
    %1119 = vmatprep.subr.mxu0 0.0
    %1120 = vmatpush1.msra.mxu0 0.0
    %1121 = vmatprep.subr.mxu0 0.0
    %1122 = vmatpush1.msra.mxu0 0.0
    %1123 = vmatprep.subr.mxu0 0.0
    %1124 = vmatpush1.msra.mxu0 0.0
    %1125 = vmatprep.subr.mxu0 0.0
    %1126 = vmatpush1.msra.mxu0 0.0
    %1127 = vmatprep.subr.mxu0 0.0
    %1128 = vmatpush1.msra.mxu0 0.0
    %1129 = vmatprep.subr.mxu0 0.0
    %1130 = vmatpush1.msra.mxu0 0.0
    %1131 = vmatprep.subr.mxu0 0.0
    %1132 = vmatpush1.msra.mxu0 0.0
    %1133 = vmatprep.subr.mxu0 0.0
    %1134 = vmatpush1.msra.mxu0 0.0
    %1135 = vmatprep.subr.mxu0 0.0
    %1136 = vmatpush1.msra.mxu0 0.0
    %1137 = vmatprep.subr.mxu0 0.0
    %1138 = vmatpush1.msra.mxu0 0.0
    %1139 = vmatprep.subr.mxu0 0.0
    %1140 = vmatpush1.msra.mxu0 0.0
    %1141 = vmatprep.subr.mxu0 0.0
    %1142 = vmatpush1.msra.mxu0 0.0
    %1143 = vmatprep.subr.mxu0 0.0
    %1144 = vmatpush1.msra.mxu0 0.0
    %1145 = vmatprep.subr.mxu0 0.0
    %1146 = vmatpush1.msra.mxu0 0.0
    %1147 = vmatprep.subr.mxu0 0.0
    %1148 = vmatpush1.msra.mxu0 0.0
    %1149 = vmatprep.subr.mxu0 0.0
    %1150 = vmatpush1.msra.mxu0 0.0
    %1151 = vmatprep.subr.mxu0 0.0
    %1152 = vmatpush1.msra.mxu0 0.0
    %1153 = vmatprep.subr.mxu0 0.0
    %1154 = vmatpush1.msra.mxu0 0.0
    %1155 = vmatprep.subr.mxu0 0.0
    %1156 = vmatpush1.msra.mxu0 0.0
    %1157 = vmatprep.subr.mxu0 0.0
    %1158 = vmatpush1.msra.mxu0 0.0
    %1159 = vmatprep.subr.mxu0 0.0
    %1160 = vmatpush1.msra.mxu0 0.0
    %1161 = vmatprep.subr.mxu0 0.0
    %1162 = vmatpush1.msra.mxu0 0.0
    %1163 = vmatprep.subr.mxu0 0.0
    %1164 = vmatpush1.msra.mxu0 0.0
    %1165 = vmatprep.subr.mxu0 0.0
    %1166 = vmatpush1.msra.mxu0 0.0
    %1167 = vmatprep.subr.mxu0 0.0
    %1168 = vmatpush1.msra.mxu0 0.0
    %1169 = vmatprep.mubr.f32.mxu0 0.0
    %1170 = vmatmul.mubr.f32.gmra.mrb[0].mxu0 %v99
    %v1171 = vpop.f32.mrb[0].mxu0
    %v1172 = vadd.f32 %v90, %v1171
    %v1173 = vpop.f32.mrb[0].mxu0
    %v1174 = vadd.f32 %v90, %v1173
    %1175 = vmatprep.mubr.f32.mxu0 0.0
    %1176 = vmatmul.mubr.f32.gmra.mrb[0].mxu0 %v102
    %v1177 = vpop.f32.mrb[0].mxu0
    %v1178 = vadd.f32 %v95, %v1177
    %v1179 = vpop.f32.mrb[0].mxu0
    %v1180 = vadd.f32 %v95, %v1179
    %1181 = vdwg.mxu0
    %1182 = vmatprep.subr.mxu0 %v62
    %1183 = vmatpush1.msra.mxu0 %v61
    %1184 = vmatprep.subr.mxu0 %v63
    %1185 = vmatpush1.msra.mxu0 %v62
    %1186 = vmatprep.subr.mxu0 %v64
    %1187 = vmatpush1.msra.mxu0 %v63
    %1188 = vmatprep.subr.mxu0 0.0
    %1189 = vmatpush1.msra.mxu0 0.0
    %1190 = vmatprep.subr.mxu0 0.0
    %1191 = vmatpush1.msra.mxu0 0.0
    %1192 = vmatprep.subr.mxu0 0.0
    %1193 = vmatpush1.msra.mxu0 0.0
    %1194 = vmatprep.subr.mxu0 0.0
    %1195 = vmatpush1.msra.mxu0 0.0
    %1196 = vmatprep.subr.mxu0 0.0
    %1197 = vmatpush1.msra.mxu0 0.0
    %1198 = vmatprep.subr.mxu0 0.0
    %1199 = vmatpush1.msra.mxu0 0.0
    %1200 = vmatprep.subr.mxu0 0.0
    %1201 = vmatpush1.msra.mxu0 0.0
    %1202 = vmatprep.subr.mxu0 0.0
    %1203 = vmatpush1.msra.mxu0 0.0
    %1204 = vmatprep.subr.mxu0 0.0
    %1205 = vmatpush1.msra.mxu0 0.0
    %1206 = vmatprep.subr.mxu0 0.0
    %1207 = vmatpush1.msra.mxu0 0.0
    %1208 = vmatprep.subr.mxu0 0.0
    %1209 = vmatpush1.msra.mxu0 0.0
    %1210 = vmatprep.subr.mxu0 0.0
    %1211 = vmatpush1.msra.mxu0 0.0
    %1212 = vmatprep.subr.mxu0 0.0
    %1213 = vmatpush1.msra.mxu0 0.0
    %1214 = vmatprep.subr.mxu0 0.0
    %1215 = vmatpush1.msra.mxu0 0.0
    %1216 = vmatprep.subr.mxu0 0.0
    %1217 = vmatpush1.msra.mxu0 0.0
    %1218 = vmatprep.subr.mxu0 0.0
    %1219 = vmatpush1.msra.mxu0 0.0
    %1220 = vmatprep.subr.mxu0 0.0
    %1221 = vmatpush1.msra.mxu0 0.0
    %1222 = vmatprep.subr.mxu0 0.0
    %1223 = vmatpush1.msra.mxu0 0.0
    %1224 = vmatprep.subr.mxu0 0.0
    %1225 = vmatpush1.msra.mxu0 0.0
    %1226 = vmatprep.subr.mxu0 0.0
    %1227 = vmatpush1.msra.mxu0 0.0
    %1228 = vmatprep.subr.mxu0 0.0
    %1229 = vmatpush1.msra.mxu0 0.0
    %1230 = vmatprep.subr.mxu0 0.0
    %1231 = vmatpush1.msra.mxu0 0.0
    %1232 = vmatprep.subr.mxu0 0.0
    %1233 = vmatpush1.msra.mxu0 0.0
    %1234 = vmatprep.subr.mxu0 0.0
    %1235 = vmatpush1.msra.mxu0 0.0
    %1236 = vmatprep.subr.mxu0 0.0
    %1237 = vmatpush1.msra.mxu0 0.0
    %1238 = vmatprep.subr.mxu0 0.0
    %1239 = vmatpush1.msra.mxu0 0.0
    %1240 = vmatprep.subr.mxu0 0.0
    %1241 = vmatpush1.msra.mxu0 0.0
    %1242 = vmatprep.subr.mxu0 0.0
    %1243 = vmatpush1.msra.mxu0 0.0
    %1244 = vmatprep.subr.mxu0 0.0
    %1245 = vmatpush1.msra.mxu0 0.0
    %1246 = vmatprep.mubr.f32.mxu0 0.0
    %1247 = vmatmul.mubr.f32.gmra.mrb[0].mxu0 %v99
    %v1248 = vpop.f32.mrb[0].mxu0
    %v1249 = vadd.f32 %v90, %v1248
    %v1250 = vpop.f32.mrb[0].mxu0
    %v1251 = vadd.f32 %v90, %v1250
    %1252 = vmatprep.mubr.f32.mxu0 0.0
    %1253 = vmatmul.mubr.f32.gmra.mrb[0].mxu0 %v102
    %v1254 = vpop.f32.mrb[0].mxu0
    %v1255 = vadd.f32 %v95, %v1254
    %v1256 = vpop.f32.mrb[0].mxu0
    %v1257 = vadd.f32 %v95, %v1256
    %1258 = vdwg.mxu0
    %1259 = vmatprep.subr.mxu0 %v64
    %1260 = vmatpush1.msra.mxu0 %v63
    %1261 = vmatprep.subr.mxu0 %v65
    %1262 = vmatpush1.msra.mxu0 %v64
    %1263 = vmatprep.subr.mxu0 %v66
    %1264 = vmatpush1.msra.mxu0 %v65
    %1265 = vmatprep.subr.mxu0 0.0
    %1266 = vmatpush1.msra.mxu0 0.0
    %1267 = vmatprep.subr.mxu0 0.0
    %1268 = vmatpush1.msra.mxu0 0.0
    %1269 = vmatprep.subr.mxu0 0.0
    %1270 = vmatpush1.msra.mxu0 0.0
    %1271 = vmatprep.subr.mxu0 0.0
    %1272 = vmatpush1.msra.mxu0 0.0
    %1273 = vmatprep.subr.mxu0 0.0
    %1274 = vmatpush1.msra.mxu0 0.0
    %1275 = vmatprep.subr.mxu0 0.0
    %1276 = vmatpush1.msra.mxu0 0.0
    %1277 = vmatprep.subr.mxu0 0.0
    %1278 = vmatpush1.msra.mxu0 0.0
    %1279 = vmatprep.subr.mxu0 0.0
    %1280 = vmatpush1.msra.mxu0 0.0
    %1281 = vmatprep.subr.mxu0 0.0
    %1282 = vmatpush1.msra.mxu0 0.0
    %1283 = vmatprep.subr.mxu0 0.0
    %1284 = vmatpush1.msra.mxu0 0.0
    %1285 = vmatprep.subr.mxu0 0.0
    %1286 = vmatpush1.msra.mxu0 0.0
    %1287 = vmatprep.subr.mxu0 0.0
    %1288 = vmatpush1.msra.mxu0 0.0
    %1289 = vmatprep.subr.mxu0 0.0
    %1290 = vmatpush1.msra.mxu0 0.0
    %1291 = vmatprep.subr.mxu0 0.0
    %1292 = vmatpush1.msra.mxu0 0.0
    %1293 = vmatprep.subr.mxu0 0.0
    %1294 = vmatpush1.msra.mxu0 0.0
    %1295 = vmatprep.subr.mxu0 0.0
    %1296 = vmatpush1.msra.mxu0 0.0
    %1297 = vmatprep.subr.mxu0 0.0
    %1298 = vmatpush1.msra.mxu0 0.0
    %1299 = vmatprep.subr.mxu0 0.0
    %1300 = vmatpush1.msra.mxu0 0.0
    %1301 = vmatprep.subr.mxu0 0.0
    %1302 = vmatpush1.msra.mxu0 0.0
    %1303 = vmatprep.subr.mxu0 0.0
    %1304 = vmatpush1.msra.mxu0 0.0
    %1305 = vmatprep.subr.mxu0 0.0
    %1306 = vmatpush1.msra.mxu0 0.0
    %1307 = vmatprep.subr.mxu0 0.0
    %1308 = vmatpush1.msra.mxu0 0.0
    %1309 = vmatprep.subr.mxu0 0.0
    %1310 = vmatpush1.msra.mxu0 0.0
    %1311 = vmatprep.subr.mxu0 0.0
    %1312 = vmatpush1.msra.mxu0 0.0
    %1313 = vmatprep.subr.mxu0 0.0
    %1314 = vmatpush1.msra.mxu0 0.0
    %1315 = vmatprep.subr.mxu0 0.0
    %1316 = vmatpush1.msra.mxu0 0.0
    %1317 = vmatprep.subr.mxu0 0.0
    %1318 = vmatpush1.msra.mxu0 0.0
    %1319 = vmatprep.subr.mxu0 0.0
    %1320 = vmatpush1.msra.mxu0 0.0
    %1321 = vmatprep.subr.mxu0 0.0
    %1322 = vmatpush1.msra.mxu0 0.0
    %1323 = vmatprep.mubr.f32.mxu0 0.0
    %1324 = vmatmul.mubr.f32.gmra.mrb[0].mxu0 %v99
    %v1325 = vpop.f32.mrb[0].mxu0
    %v1326 = vadd.f32 %v90, %v1325
    %v1327 = vpop.f32.mrb[0].mxu0
    %v1328 = vadd.f32 %v90, %v1327
    %1329 = vmatprep.mubr.f32.mxu0 0.0
    %1330 = vmatmul.mubr.f32.gmra.mrb[0].mxu0 %v102
    %v1331 = vpop.f32.mrb[0].mxu0
    %v1332 = vadd.f32 %v95, %v1331
    %v1333 = vpop.f32.mrb[0].mxu0
    %v1334 = vadd.f32 %v95, %v1333
    %1335 = vdwg.mxu0
    %1336 = vmatprep.subr.mxu0 %v66
    %1337 = vmatpush1.msra.mxu0 %v65
    %1338 = vmatprep.subr.mxu0 %v67
    %1339 = vmatpush1.msra.mxu0 %v66
    %1340 = vmatprep.subr.mxu0 %v68
    %1341 = vmatpush1.msra.mxu0 %v67
    %1342 = vmatprep.subr.mxu0 0.0
    %1343 = vmatpush1.msra.mxu0 0.0
    %1344 = vmatprep.subr.mxu0 0.0
    %1345 = vmatpush1.msra.mxu0 0.0
    %1346 = vmatprep.subr.mxu0 0.0
    %1347 = vmatpush1.msra.mxu0 0.0
    %1348 = vmatprep.subr.mxu0 0.0
    %1349 = vmatpush1.msra.mxu0 0.0
    %1350 = vmatprep.subr.mxu0 0.0
    %1351 = vmatpush1.msra.mxu0 0.0
    %1352 = vmatprep.subr.mxu0 0.0
    %1353 = vmatpush1.msra.mxu0 0.0
    %1354 = vmatprep.subr.mxu0 0.0
    %1355 = vmatpush1.msra.mxu0 0.0
    %1356 = vmatprep.subr.mxu0 0.0
    %1357 = vmatpush1.msra.mxu0 0.0
    %1358 = vmatprep.subr.mxu0 0.0
    %1359 = vmatpush1.msra.mxu0 0.0
    %1360 = vmatprep.subr.mxu0 0.0
    %1361 = vmatpush1.msra.mxu0 0.0
    %1362 = vmatprep.subr.mxu0 0.0
    %1363 = vmatpush1.msra.mxu0 0.0
    %1364 = vmatprep.subr.mxu0 0.0
    %1365 = vmatpush1.msra.mxu0 0.0
    %1366 = vmatprep.subr.mxu0 0.0
    %1367 = vmatpush1.msra.mxu0 0.0
    %1368 = vmatprep.subr.mxu0 0.0
    %1369 = vmatpush1.msra.mxu0 0.0
    %1370 = vmatprep.subr.mxu0 0.0
    %1371 = vmatpush1.msra.mxu0 0.0
    %1372 = vmatprep.subr.mxu0 0.0
    %1373 = vmatpush1.msra.mxu0 0.0
    %1374 = vmatprep.subr.mxu0 0.0
    %1375 = vmatpush1.msra.mxu0 0.0
    %1376 = vmatprep.subr.mxu0 0.0
    %1377 = vmatpush1.msra.mxu0 0.0
    %1378 = vmatprep.subr.mxu0 0.0
    %1379 = vmatpush1.msra.mxu0 0.0
    %1380 = vmatprep.subr.mxu0 0.0
    %1381 = vmatpush1.msra.mxu0 0.0
    %1382 = vmatprep.subr.mxu0 0.0
    %1383 = vmatpush1.msra.mxu0 0.0
    %1384 = vmatprep.subr.mxu0 0.0
    %1385 = vmatpush1.msra.mxu0 0.0
    %1386 = vmatprep.subr.mxu0 0.0
    %1387 = vmatpush1.msra.mxu0 0.0
    %1388 = vmatprep.subr.mxu0 0.0
    %1389 = vmatpush1.msra.mxu0 0.0
    %1390 = vmatprep.subr.mxu0 0.0
    %1391 = vmatpush1.msra.mxu0 0.0
    %1392 = vmatprep.subr.mxu0 0.0
    %1393 = vmatpush1.msra.mxu0 0.0
    %1394 = vmatprep.subr.mxu0 0.0
    %1395 = vmatpush1.msra.mxu0 0.0
    %1396 = vmatprep.subr.mxu0 0.0
    %1397 = vmatpush1.msra.mxu0 0.0
    %1398 = vmatprep.subr.mxu0 0.0
    %1399 = vmatpush1.msra.mxu0 0.0
    %1400 = vmatprep.mubr.f32.mxu0 0.0
    %1401 = vmatmul.mubr.f32.gmra.mrb[0].mxu0 %v99
    %v1402 = vpop.f32.mrb[0].mxu0
    %v1403 = vadd.f32 %v90, %v1402
    %v1404 = vpop.f32.mrb[0].mxu0
    %v1405 = vadd.f32 %v90, %v1404
    %1406 = vmatprep.mubr.f32.mxu0 0.0
    %1407 = vmatmul.mubr.f32.gmra.mrb[0].mxu0 %v102
    %v1408 = vpop.f32.mrb[0].mxu0
    %v1409 = vadd.f32 %v95, %v1408
    %v1410 = vpop.f32.mrb[0].mxu0
    %v1411 = vadd.f32 %v95, %v1410
    %1412 = vdwg.mxu0
    %1413 = vmatprep.subr.mxu0 %v68
    %1414 = vmatpush1.msra.mxu0 %v67
    %1415 = vmatprep.subr.mxu0 %v69
    %1416 = vmatpush1.msra.mxu0 %v68
    %1417 = vmatprep.subr.mxu0 %v70
    %1418 = vmatpush1.msra.mxu0 %v69
    %1419 = vmatprep.subr.mxu0 0.0
    %1420 = vmatpush1.msra.mxu0 0.0
    %1421 = vmatprep.subr.mxu0 0.0
    %1422 = vmatpush1.msra.mxu0 0.0
    %1423 = vmatprep.subr.mxu0 0.0
    %1424 = vmatpush1.msra.mxu0 0.0
    %1425 = vmatprep.subr.mxu0 0.0
    %1426 = vmatpush1.msra.mxu0 0.0
    %1427 = vmatprep.subr.mxu0 0.0
    %1428 = vmatpush1.msra.mxu0 0.0
    %1429 = vmatprep.subr.mxu0 0.0
    %1430 = vmatpush1.msra.mxu0 0.0
    %1431 = vmatprep.subr.mxu0 0.0
    %1432 = vmatpush1.msra.mxu0 0.0
    %1433 = vmatprep.subr.mxu0 0.0
    %1434 = vmatpush1.msra.mxu0 0.0
    %1435 = vmatprep.subr.mxu0 0.0
    %1436 = vmatpush1.msra.mxu0 0.0
    %1437 = vmatprep.subr.mxu0 0.0
    %1438 = vmatpush1.msra.mxu0 0.0
    %1439 = vmatprep.subr.mxu0 0.0
    %1440 = vmatpush1.msra.mxu0 0.0
    %1441 = vmatprep.subr.mxu0 0.0
    %1442 = vmatpush1.msra.mxu0 0.0
    %1443 = vmatprep.subr.mxu0 0.0
    %1444 = vmatpush1.msra.mxu0 0.0
    %1445 = vmatprep.subr.mxu0 0.0
    %1446 = vmatpush1.msra.mxu0 0.0
    %1447 = vmatprep.subr.mxu0 0.0
    %1448 = vmatpush1.msra.mxu0 0.0
    %1449 = vmatprep.subr.mxu0 0.0
    %1450 = vmatpush1.msra.mxu0 0.0
    %1451 = vmatprep.subr.mxu0 0.0
    %1452 = vmatpush1.msra.mxu0 0.0
    %1453 = vmatprep.subr.mxu0 0.0
    %1454 = vmatpush1.msra.mxu0 0.0
    %1455 = vmatprep.subr.mxu0 0.0
    %1456 = vmatpush1.msra.mxu0 0.0
    %1457 = vmatprep.subr.mxu0 0.0
    %1458 = vmatpush1.msra.mxu0 0.0
    %1459 = vmatprep.subr.mxu0 0.0
    %1460 = vmatpush1.msra.mxu0 0.0
    %1461 = vmatprep.subr.mxu0 0.0
    %1462 = vmatpush1.msra.mxu0 0.0
    %1463 = vmatprep.subr.mxu0 0.0
    %1464 = vmatpush1.msra.mxu0 0.0
    %1465 = vmatprep.subr.mxu0 0.0
    %1466 = vmatpush1.msra.mxu0 0.0
    %1467 = vmatprep.subr.mxu0 0.0
    %1468 = vmatpush1.msra.mxu0 0.0
    %1469 = vmatprep.subr.mxu0 0.0
    %1470 = vmatpush1.msra.mxu0 0.0
    %1471 = vmatprep.subr.mxu0 0.0
    %1472 = vmatpush1.msra.mxu0 0.0
    %1473 = vmatprep.subr.mxu0 0.0
    %1474 = vmatpush1.msra.mxu0 0.0
    %1475 = vmatprep.subr.mxu0 0.0
    %1476 = vmatpush1.msra.mxu0 0.0
    %1477 = vmatprep.mubr.f32.mxu0 0.0
    %1478 = vmatmul.mubr.f32.gmra.mrb[0].mxu0 %v99
    %v1479 = vpop.f32.mrb[0].mxu0
    %v1480 = vadd.f32 %v90, %v1479
    %v1481 = vpop.f32.mrb[0].mxu0
    %v1482 = vadd.f32 %v90, %v1481
    %1483 = vmatprep.mubr.f32.mxu0 0.0
    %1484 = vmatmul.mubr.f32.gmra.mrb[0].mxu0 %v102
    %v1485 = vpop.f32.mrb[0].mxu0
    %v1486 = vadd.f32 %v95, %v1485
    %v1487 = vpop.f32.mrb[0].mxu0
    %v1488 = vadd.f32 %v95, %v1487
    %1489 = vdwg.mxu0
    %1490 = vmatprep.subr.mxu0 %v70
    %1491 = vmatpush1.msra.mxu0 %v69
    %1492 = vmatprep.subr.mxu0 %v71
    %1493 = vmatpush1.msra.mxu0 %v70
    %1494 = vmatprep.subr.mxu0 %v72
    %1495 = vmatpush1.msra.mxu0 %v71
    %1496 = vmatprep.subr.mxu0 0.0
    %1497 = vmatpush1.msra.mxu0 0.0
    %1498 = vmatprep.subr.mxu0 0.0
    %1499 = vmatpush1.msra.mxu0 0.0
    %1500 = vmatprep.subr.mxu0 0.0
    %1501 = vmatpush1.msra.mxu0 0.0
    %1502 = vmatprep.subr.mxu0 0.0
    %1503 = vmatpush1.msra.mxu0 0.0
    %1504 = vmatprep.subr.mxu0 0.0
    %1505 = vmatpush1.msra.mxu0 0.0
    %1506 = vmatprep.subr.mxu0 0.0
    %1507 = vmatpush1.msra.mxu0 0.0
    %1508 = vmatprep.subr.mxu0 0.0
    %1509 = vmatpush1.msra.mxu0 0.0
    %1510 = vmatprep.subr.mxu0 0.0
    %1511 = vmatpush1.msra.mxu0 0.0
    %1512 = vmatprep.subr.mxu0 0.0
    %1513 = vmatpush1.msra.mxu0 0.0
    %1514 = vmatprep.subr.mxu0 0.0
    %1515 = vmatpush1.msra.mxu0 0.0
    %1516 = vmatprep.subr.mxu0 0.0
    %1517 = vmatpush1.msra.mxu0 0.0
    %1518 = vmatprep.subr.mxu0 0.0
    %1519 = vmatpush1.msra.mxu0 0.0
    %1520 = vmatprep.subr.mxu0 0.0
    %1521 = vmatpush1.msra.mxu0 0.0
    %1522 = vmatprep.subr.mxu0 0.0
    %1523 = vmatpush1.msra.mxu0 0.0
    %1524 = vmatprep.subr.mxu0 0.0
    %1525 = vmatpush1.msra.mxu0 0.0
    %1526 = vmatprep.subr.mxu0 0.0
    %1527 = vmatpush1.msra.mxu0 0.0
    %1528 = vmatprep.subr.mxu0 0.0
    %1529 = vmatpush1.msra.mxu0 0.0
    %1530 = vmatprep.subr.mxu0 0.0
    %1531 = vmatpush1.msra.mxu0 0.0
    %1532 = vmatprep.subr.mxu0 0.0
    %1533 = vmatpush1.msra.mxu0 0.0
    %1534 = vmatprep.subr.mxu0 0.0
    %1535 = vmatpush1.msra.mxu0 0.0
    %1536 = vmatprep.subr.mxu0 0.0
    %1537 = vmatpush1.msra.mxu0 0.0
    %1538 = vmatprep.subr.mxu0 0.0
    %1539 = vmatpush1.msra.mxu0 0.0
    %1540 = vmatprep.subr.mxu0 0.0
    %1541 = vmatpush1.msra.mxu0 0.0
    %1542 = vmatprep.subr.mxu0 0.0
    %1543 = vmatpush1.msra.mxu0 0.0
    %1544 = vmatprep.subr.mxu0 0.0
    %1545 = vmatpush1.msra.mxu0 0.0
    %1546 = vmatprep.subr.mxu0 0.0
    %1547 = vmatpush1.msra.mxu0 0.0
    %1548 = vmatprep.subr.mxu0 0.0
    %1549 = vmatpush1.msra.mxu0 0.0
    %1550 = vmatprep.subr.mxu0 0.0
    %1551 = vmatpush1.msra.mxu0 0.0
    %1552 = vmatprep.subr.mxu0 0.0
    %1553 = vmatpush1.msra.mxu0 0.0
    %1554 = vmatprep.mubr.f32.mxu0 0.0
    %1555 = vmatmul.mubr.f32.gmra.mrb[0].mxu0 %v99
    %v1556 = vpop.f32.mrb[0].mxu0
    %v1557 = vadd.f32 %v90, %v1556
    %v1558 = vpop.f32.mrb[0].mxu0
    %v1559 = vadd.f32 %v90, %v1558
    %1560 = vmatprep.mubr.f32.mxu0 0.0
    %1561 = vmatmul.mubr.f32.gmra.mrb[0].mxu0 %v102
    %v1562 = vpop.f32.mrb[0].mxu0
    %v1563 = vadd.f32 %v95, %v1562
    %v1564 = vpop.f32.mrb[0].mxu0
    %v1565 = vadd.f32 %v95, %v1564
    %1566 = vdwg.mxu0
    %1567 = vmatprep.subr.mxu0 %v72
    %1568 = vmatpush1.msra.mxu0 %v71
    %1569 = vmatprep.subr.mxu0 %v73
    %1570 = vmatpush1.msra.mxu0 %v72
    %1571 = vmatprep.subr.mxu0 %v74
    %1572 = vmatpush1.msra.mxu0 %v73
    %1573 = vmatprep.subr.mxu0 0.0
    %1574 = vmatpush1.msra.mxu0 0.0
    %1575 = vmatprep.subr.mxu0 0.0
    %1576 = vmatpush1.msra.mxu0 0.0
    %1577 = vmatprep.subr.mxu0 0.0
    %1578 = vmatpush1.msra.mxu0 0.0
    %1579 = vmatprep.subr.mxu0 0.0
    %1580 = vmatpush1.msra.mxu0 0.0
    %1581 = vmatprep.subr.mxu0 0.0
    %1582 = vmatpush1.msra.mxu0 0.0
    %1583 = vmatprep.subr.mxu0 0.0
    %1584 = vmatpush1.msra.mxu0 0.0
    %1585 = vmatprep.subr.mxu0 0.0
    %1586 = vmatpush1.msra.mxu0 0.0
    %1587 = vmatprep.subr.mxu0 0.0
    %1588 = vmatpush1.msra.mxu0 0.0
    %1589 = vmatprep.subr.mxu0 0.0
    %1590 = vmatpush1.msra.mxu0 0.0
    %1591 = vmatprep.subr.mxu0 0.0
    %1592 = vmatpush1.msra.mxu0 0.0
    %1593 = vmatprep.subr.mxu0 0.0
    %1594 = vmatpush1.msra.mxu0 0.0
    %1595 = vmatprep.subr.mxu0 0.0
    %1596 = vmatpush1.msra.mxu0 0.0
    %1597 = vmatprep.subr.mxu0 0.0
    %1598 = vmatpush1.msra.mxu0 0.0
    %1599 = vmatprep.subr.mxu0 0.0
    %1600 = vmatpush1.msra.mxu0 0.0
    %1601 = vmatprep.subr.mxu0 0.0
    %1602 = vmatpush1.msra.mxu0 0.0
    %1603 = vmatprep.subr.mxu0 0.0
    %1604 = vmatpush1.msra.mxu0 0.0
    %1605 = vmatprep.subr.mxu0 0.0
    %1606 = vmatpush1.msra.mxu0 0.0
    %1607 = vmatprep.subr.mxu0 0.0
    %1608 = vmatpush1.msra.mxu0 0.0
    %1609 = vmatprep.subr.mxu0 0.0
    %1610 = vmatpush1.msra.mxu0 0.0
    %1611 = vmatprep.subr.mxu0 0.0
    %1612 = vmatpush1.msra.mxu0 0.0
    %1613 = vmatprep.subr.mxu0 0.0
    %1614 = vmatpush1.msra.mxu0 0.0
    %1615 = vmatprep.subr.mxu0 0.0
    %1616 = vmatpush1.msra.mxu0 0.0
    %1617 = vmatprep.subr.mxu0 0.0
    %1618 = vmatpush1.msra.mxu0 0.0
    %1619 = vmatprep.subr.mxu0 0.0
    %1620 = vmatpush1.msra.mxu0 0.0
    %1621 = vmatprep.subr.mxu0 0.0
    %1622 = vmatpush1.msra.mxu0 0.0
    %1623 = vmatprep.subr.mxu0 0.0
    %1624 = vmatpush1.msra.mxu0 0.0
    %1625 = vmatprep.subr.mxu0 0.0
    %1626 = vmatpush1.msra.mxu0 0.0
    %1627 = vmatprep.subr.mxu0 0.0
    %1628 = vmatpush1.msra.mxu0 0.0
    %1629 = vmatprep.subr.mxu0 0.0
    %1630 = vmatpush1.msra.mxu0 0.0
    %1631 = vmatprep.mubr.f32.mxu0 0.0
    %1632 = vmatmul.mubr.f32.gmra.mrb[0].mxu0 %v99
    %v1633 = vpop.f32.mrb[0].mxu0
    %v1634 = vadd.f32 %v90, %v1633
    %v1635 = vpop.f32.mrb[0].mxu0
    %v1636 = vadd.f32 %v90, %v1635
    %1637 = vmatprep.mubr.f32.mxu0 0.0
    %1638 = vmatmul.mubr.f32.gmra.mrb[0].mxu0 %v102
    %v1639 = vpop.f32.mrb[0].mxu0
    %v1640 = vadd.f32 %v95, %v1639
    %v1641 = vpop.f32.mrb[0].mxu0
    %v1642 = vadd.f32 %v95, %v1641
    %1643 = vdwg.mxu0
    %1644 = vmatprep.subr.mxu0 %v74
    %1645 = vmatpush1.msra.mxu0 %v73
    %1646 = vmatprep.subr.mxu0 %v75
    %1647 = vmatpush1.msra.mxu0 %v74
    %1648 = vmatprep.subr.mxu0 %v76
    %1649 = vmatpush1.msra.mxu0 %v75
    %1650 = vmatprep.subr.mxu0 0.0
    %1651 = vmatpush1.msra.mxu0 0.0
    %1652 = vmatprep.subr.mxu0 0.0
    %1653 = vmatpush1.msra.mxu0 0.0
    %1654 = vmatprep.subr.mxu0 0.0
    %1655 = vmatpush1.msra.mxu0 0.0
    %1656 = vmatprep.subr.mxu0 0.0
    %1657 = vmatpush1.msra.mxu0 0.0
    %1658 = vmatprep.subr.mxu0 0.0
    %1659 = vmatpush1.msra.mxu0 0.0
    %1660 = vmatprep.subr.mxu0 0.0
    %1661 = vmatpush1.msra.mxu0 0.0
    %1662 = vmatprep.subr.mxu0 0.0
    %1663 = vmatpush1.msra.mxu0 0.0
    %1664 = vmatprep.subr.mxu0 0.0
    %1665 = vmatpush1.msra.mxu0 0.0
    %1666 = vmatprep.subr.mxu0 0.0
    %1667 = vmatpush1.msra.mxu0 0.0
    %1668 = vmatprep.subr.mxu0 0.0
    %1669 = vmatpush1.msra.mxu0 0.0
    %1670 = vmatprep.subr.mxu0 0.0
    %1671 = vmatpush1.msra.mxu0 0.0
    %1672 = vmatprep.subr.mxu0 0.0
    %1673 = vmatpush1.msra.mxu0 0.0
    %1674 = vmatprep.subr.mxu0 0.0
    %1675 = vmatpush1.msra.mxu0 0.0
    %1676 = vmatprep.subr.mxu0 0.0
    %1677 = vmatpush1.msra.mxu0 0.0
    %1678 = vmatprep.subr.mxu0 0.0
    %1679 = vmatpush1.msra.mxu0 0.0
    %1680 = vmatprep.subr.mxu0 0.0
    %1681 = vmatpush1.msra.mxu0 0.0
    %1682 = vmatprep.subr.mxu0 0.0
    %1683 = vmatpush1.msra.mxu0 0.0
    %1684 = vmatprep.subr.mxu0 0.0
    %1685 = vmatpush1.msra.mxu0 0.0
    %1686 = vmatprep.subr.mxu0 0.0
    %1687 = vmatpush1.msra.mxu0 0.0
    %1688 = vmatprep.subr.mxu0 0.0
    %1689 = vmatpush1.msra.mxu0 0.0
    %1690 = vmatprep.subr.mxu0 0.0
    %1691 = vmatpush1.msra.mxu0 0.0
    %1692 = vmatprep.subr.mxu0 0.0
    %1693 = vmatpush1.msra.mxu0 0.0
    %1694 = vmatprep.subr.mxu0 0.0
    %1695 = vmatpush1.msra.mxu0 0.0
    %1696 = vmatprep.subr.mxu0 0.0
    %1697 = vmatpush1.msra.mxu0 0.0
    %1698 = vmatprep.subr.mxu0 0.0
    %1699 = vmatpush1.msra.mxu0 0.0
    %1700 = vmatprep.subr.mxu0 0.0
    %1701 = vmatpush1.msra.mxu0 0.0
    %1702 = vmatprep.subr.mxu0 0.0
    %1703 = vmatpush1.msra.mxu0 0.0
    %1704 = vmatprep.subr.mxu0 0.0
    %1705 = vmatpush1.msra.mxu0 0.0
    %1706 = vmatprep.subr.mxu0 0.0
    %1707 = vmatpush1.msra.mxu0 0.0
    %1708 = vmatprep.mubr.f32.mxu0 0.0
    %1709 = vmatmul.mubr.f32.gmra.mrb[0].mxu0 %v99
    %v1710 = vpop.f32.mrb[0].mxu0
    %v1711 = vadd.f32 %v90, %v1710
    %v1712 = vpop.f32.mrb[0].mxu0
    %v1713 = vadd.f32 %v90, %v1712
    %1714 = vmatprep.mubr.f32.mxu0 0.0
    %1715 = vmatmul.mubr.f32.gmra.mrb[0].mxu0 %v102
    %v1716 = vpop.f32.mrb[0].mxu0
    %v1717 = vadd.f32 %v95, %v1716
    %v1718 = vpop.f32.mrb[0].mxu0
    %v1719 = vadd.f32 %v95, %v1718
    %1720 = vdwg.mxu0
    %1721 = vmatprep.subr.mxu0 %v76
    %1722 = vmatpush1.msra.mxu0 %v75
    %1723 = vmatprep.subr.mxu0 %v77
    %1724 = vmatpush1.msra.mxu0 %v76
    %1725 = vmatprep.subr.mxu0 %v78
    %1726 = vmatpush1.msra.mxu0 %v77
    %1727 = vmatprep.subr.mxu0 0.0
    %1728 = vmatpush1.msra.mxu0 0.0
    %1729 = vmatprep.subr.mxu0 0.0
    %1730 = vmatpush1.msra.mxu0 0.0
    %1731 = vmatprep.subr.mxu0 0.0
    %1732 = vmatpush1.msra.mxu0 0.0
    %1733 = vmatprep.subr.mxu0 0.0
    %1734 = vmatpush1.msra.mxu0 0.0
    %1735 = vmatprep.subr.mxu0 0.0
    %1736 = vmatpush1.msra.mxu0 0.0
    %1737 = vmatprep.subr.mxu0 0.0
    %1738 = vmatpush1.msra.mxu0 0.0
    %1739 = vmatprep.subr.mxu0 0.0
    %1740 = vmatpush1.msra.mxu0 0.0
    %1741 = vmatprep.subr.mxu0 0.0
    %1742 = vmatpush1.msra.mxu0 0.0
    %1743 = vmatprep.subr.mxu0 0.0
    %1744 = vmatpush1.msra.mxu0 0.0
    %1745 = vmatprep.subr.mxu0 0.0
    %1746 = vmatpush1.msra.mxu0 0.0
    %1747 = vmatprep.subr.mxu0 0.0
    %1748 = vmatpush1.msra.mxu0 0.0
    %1749 = vmatprep.subr.mxu0 0.0
    %1750 = vmatpush1.msra.mxu0 0.0
    %1751 = vmatprep.subr.mxu0 0.0
    %1752 = vmatpush1.msra.mxu0 0.0
    %1753 = vmatprep.subr.mxu0 0.0
    %1754 = vmatpush1.msra.mxu0 0.0
    %1755 = vmatprep.subr.mxu0 0.0
    %1756 = vmatpush1.msra.mxu0 0.0
    %1757 = vmatprep.subr.mxu0 0.0
    %1758 = vmatpush1.msra.mxu0 0.0
    %1759 = vmatprep.subr.mxu0 0.0
    %1760 = vmatpush1.msra.mxu0 0.0
    %1761 = vmatprep.subr.mxu0 0.0
    %1762 = vmatpush1.msra.mxu0 0.0
    %1763 = vmatprep.subr.mxu0 0.0
    %1764 = vmatpush1.msra.mxu0 0.0
    %1765 = vmatprep.subr.mxu0 0.0
    %1766 = vmatpush1.msra.mxu0 0.0
    %1767 = vmatprep.subr.mxu0 0.0
    %1768 = vmatpush1.msra.mxu0 0.0
    %1769 = vmatprep.subr.mxu0 0.0
    %1770 = vmatpush1.msra.mxu0 0.0
    %1771 = vmatprep.subr.mxu0 0.0
    %1772 = vmatpush1.msra.mxu0 0.0
    %1773 = vmatprep.subr.mxu0 0.0
    %1774 = vmatpush1.msra.mxu0 0.0
    %1775 = vmatprep.subr.mxu0 0.0
    %1776 = vmatpush1.msra.mxu0 0.0
    %1777 = vmatprep.subr.mxu0 0.0
    %1778 = vmatpush1.msra.mxu0 0.0
    %1779 = vmatprep.subr.mxu0 0.0
    %1780 = vmatpush1.msra.mxu0 0.0
    %1781 = vmatprep.subr.mxu0 0.0
    %1782 = vmatpush1.msra.mxu0 0.0
    %1783 = vmatprep.subr.mxu0 0.0
    %1784 = vmatpush1.msra.mxu0 0.0
    %1785 = vmatprep.mubr.f32.mxu0 0.0
    %1786 = vmatmul.mubr.f32.gmra.mrb[0].mxu0 %v99
    %v1787 = vpop.f32.mrb[0].mxu0
    %v1788 = vadd.f32 %v90, %v1787
    %v1789 = vpop.f32.mrb[0].mxu0
    %v1790 = vadd.f32 %v90, %v1789
    %1791 = vmatprep.mubr.f32.mxu0 0.0
    %1792 = vmatmul.mubr.f32.gmra.mrb[0].mxu0 %v102
    %v1793 = vpop.f32.mrb[0].mxu0
    %v1794 = vadd.f32 %v95, %v1793
    %v1795 = vpop.f32.mrb[0].mxu0
    %v1796 = vadd.f32 %v95, %v1795
    %1797 = vdwg.mxu0
    %1798 = vmatprep.subr.mxu0 %v78
    %1799 = vmatpush1.msra.mxu0 %v77
    %1800 = vmatprep.subr.mxu0 %v79
    %1801 = vmatpush1.msra.mxu0 %v78
    %1802 = vmatprep.subr.mxu0 %v80
    %1803 = vmatpush1.msra.mxu0 %v79
    %1804 = vmatprep.subr.mxu0 0.0
    %1805 = vmatpush1.msra.mxu0 0.0
    %1806 = vmatprep.subr.mxu0 0.0
    %1807 = vmatpush1.msra.mxu0 0.0
    %1808 = vmatprep.subr.mxu0 0.0
    %1809 = vmatpush1.msra.mxu0 0.0
    %1810 = vmatprep.subr.mxu0 0.0
    %1811 = vmatpush1.msra.mxu0 0.0
    %1812 = vmatprep.subr.mxu0 0.0
    %1813 = vmatpush1.msra.mxu0 0.0
    %1814 = vmatprep.subr.mxu0 0.0
    %1815 = vmatpush1.msra.mxu0 0.0
    %1816 = vmatprep.subr.mxu0 0.0
    %1817 = vmatpush1.msra.mxu0 0.0
    %1818 = vmatprep.subr.mxu0 0.0
    %1819 = vmatpush1.msra.mxu0 0.0
    %1820 = vmatprep.subr.mxu0 0.0
    %1821 = vmatpush1.msra.mxu0 0.0
    %1822 = vmatprep.subr.mxu0 0.0
    %1823 = vmatpush1.msra.mxu0 0.0
    %1824 = vmatprep.subr.mxu0 0.0
    %1825 = vmatpush1.msra.mxu0 0.0
    %1826 = vmatprep.subr.mxu0 0.0
    %1827 = vmatpush1.msra.mxu0 0.0
    %1828 = vmatprep.subr.mxu0 0.0
    %1829 = vmatpush1.msra.mxu0 0.0
    %1830 = vmatprep.subr.mxu0 0.0
    %1831 = vmatpush1.msra.mxu0 0.0
    %1832 = vmatprep.subr.mxu0 0.0
    %1833 = vmatpush1.msra.mxu0 0.0
    %1834 = vmatprep.subr.mxu0 0.0
    %1835 = vmatpush1.msra.mxu0 0.0
    %1836 = vmatprep.subr.mxu0 0.0
    %1837 = vmatpush1.msra.mxu0 0.0
    %1838 = vmatprep.subr.mxu0 0.0
    %1839 = vmatpush1.msra.mxu0 0.0
    %1840 = vmatprep.subr.mxu0 0.0
    %1841 = vmatpush1.msra.mxu0 0.0
    %1842 = vmatprep.subr.mxu0 0.0
    %1843 = vmatpush1.msra.mxu0 0.0
    %1844 = vmatprep.subr.mxu0 0.0
    %1845 = vmatpush1.msra.mxu0 0.0
    %1846 = vmatprep.subr.mxu0 0.0
    %1847 = vmatpush1.msra.mxu0 0.0
    %1848 = vmatprep.subr.mxu0 0.0
    %1849 = vmatpush1.msra.mxu0 0.0
    %1850 = vmatprep.subr.mxu0 0.0
    %1851 = vmatpush1.msra.mxu0 0.0
    %1852 = vmatprep.subr.mxu0 0.0
    %1853 = vmatpush1.msra.mxu0 0.0
    %1854 = vmatprep.subr.mxu0 0.0
    %1855 = vmatpush1.msra.mxu0 0.0
    %1856 = vmatprep.subr.mxu0 0.0
    %1857 = vmatpush1.msra.mxu0 0.0
    %1858 = vmatprep.subr.mxu0 0.0
    %1859 = vmatpush1.msra.mxu0 0.0
    %1860 = vmatprep.subr.mxu0 0.0
    %1861 = vmatpush1.msra.mxu0 0.0
    %1862 = vmatprep.mubr.f32.mxu0 0.0
    %1863 = vmatmul.mubr.f32.gmra.mrb[0].mxu0 %v99
    %v1864 = vpop.f32.mrb[0].mxu0
    %v1865 = vadd.f32 %v90, %v1864
    %v1866 = vpop.f32.mrb[0].mxu0
    %v1867 = vadd.f32 %v90, %v1866
    %1868 = vmatprep.mubr.f32.mxu0 0.0
    %1869 = vmatmul.mubr.f32.gmra.mrb[0].mxu0 %v102
    %v1870 = vpop.f32.mrb[0].mxu0
    %v1871 = vadd.f32 %v95, %v1870
    %v1872 = vpop.f32.mrb[0].mxu0
    %v1873 = vadd.f32 %v95, %v1872
    %1874 = vdwg.mxu0
    %1875 = vmatprep.subr.mxu0 %v80
    %1876 = vmatpush1.msra.mxu0 %v79
    %1877 = vmatprep.subr.mxu0 %v81
    %1878 = vmatpush1.msra.mxu0 %v80
    %1879 = vmatprep.subr.mxu0 %v82
    %1880 = vmatpush1.msra.mxu0 %v81
    %1881 = vmatprep.subr.mxu0 0.0
    %1882 = vmatpush1.msra.mxu0 0.0
    %1883 = vmatprep.subr.mxu0 0.0
    %1884 = vmatpush1.msra.mxu0 0.0
    %1885 = vmatprep.subr.mxu0 0.0
    %1886 = vmatpush1.msra.mxu0 0.0
    %1887 = vmatprep.subr.mxu0 0.0
    %1888 = vmatpush1.msra.mxu0 0.0
    %1889 = vmatprep.subr.mxu0 0.0
    %1890 = vmatpush1.msra.mxu0 0.0
    %1891 = vmatprep.subr.mxu0 0.0
    %1892 = vmatpush1.msra.mxu0 0.0
    %1893 = vmatprep.subr.mxu0 0.0
    %1894 = vmatpush1.msra.mxu0 0.0
    %1895 = vmatprep.subr.mxu0 0.0
    %1896 = vmatpush1.msra.mxu0 0.0
    %1897 = vmatprep.subr.mxu0 0.0
    %1898 = vmatpush1.msra.mxu0 0.0
    %1899 = vmatprep.subr.mxu0 0.0
    %1900 = vmatpush1.msra.mxu0 0.0
    %1901 = vmatprep.subr.mxu0 0.0
    %1902 = vmatpush1.msra.mxu0 0.0
    %1903 = vmatprep.subr.mxu0 0.0
    %1904 = vmatpush1.msra.mxu0 0.0
    %1905 = vmatprep.subr.mxu0 0.0
    %1906 = vmatpush1.msra.mxu0 0.0
    %1907 = vmatprep.subr.mxu0 0.0
    %1908 = vmatpush1.msra.mxu0 0.0
    %1909 = vmatprep.subr.mxu0 0.0
    %1910 = vmatpush1.msra.mxu0 0.0
    %1911 = vmatprep.subr.mxu0 0.0
    %1912 = vmatpush1.msra.mxu0 0.0
    %1913 = vmatprep.subr.mxu0 0.0
    %1914 = vmatpush1.msra.mxu0 0.0
    %1915 = vmatprep.subr.mxu0 0.0
    %1916 = vmatpush1.msra.mxu0 0.0
    %1917 = vmatprep.subr.mxu0 0.0
    %1918 = vmatpush1.msra.mxu0 0.0
    %1919 = vmatprep.subr.mxu0 0.0
    %1920 = vmatpush1.msra.mxu0 0.0
    %1921 = vmatprep.subr.mxu0 0.0
    %1922 = vmatpush1.msra.mxu0 0.0
    %1923 = vmatprep.subr.mxu0 0.0
    %1924 = vmatpush1.msra.mxu0 0.0
    %1925 = vmatprep.subr.mxu0 0.0
    %1926 = vmatpush1.msra.mxu0 0.0
    %1927 = vmatprep.subr.mxu0 0.0
    %1928 = vmatpush1.msra.mxu0 0.0
    %1929 = vmatprep.subr.mxu0 0.0
    %1930 = vmatpush1.msra.mxu0 0.0
    %1931 = vmatprep.subr.mxu0 0.0
    %1932 = vmatpush1.msra.mxu0 0.0
    %1933 = vmatprep.subr.mxu0 0.0
    %1934 = vmatpush1.msra.mxu0 0.0
    %1935 = vmatprep.subr.mxu0 0.0
    %1936 = vmatpush1.msra.mxu0 0.0
    %1937 = vmatprep.subr.mxu0 0.0
    %1938 = vmatpush1.msra.mxu0 0.0
    %1939 = vmatprep.mubr.f32.mxu0 0.0
    %1940 = vmatmul.mubr.f32.gmra.mrb[0].mxu0 %v99
    %v1941 = vpop.f32.mrb[0].mxu0
    %v1942 = vadd.f32 %v90, %v1941
    %v1943 = vpop.f32.mrb[0].mxu0
    %v1944 = vadd.f32 %v90, %v1943
    %1945 = vmatprep.mubr.f32.mxu0 0.0
    %1946 = vmatmul.mubr.f32.gmra.mrb[0].mxu0 %v102
    %v1947 = vpop.f32.mrb[0].mxu0
    %v1948 = vadd.f32 %v95, %v1947
    %v1949 = vpop.f32.mrb[0].mxu0
    %v1950 = vadd.f32 %v95, %v1949
    %1951 = vdwg.mxu0
    %v1952 = vmax.f32 %v171, 0.0
    %v1953 = vmax.f32 %v173, 0.0
    %v1954 = vmax.f32 %v248, 0.0
    %v1955 = vmax.f32 %v250, 0.0
    %v1956 = vmax.f32 %v325, 0.0
    %v1957 = vmax.f32 %v327, 0.0
    %v1958 = vmax.f32 %v402, 0.0
    %v1959 = vmax.f32 %v404, 0.0
    %v1960 = vmax.f32 %v479, 0.0
    %v1961 = vmax.f32 %v481, 0.0
    %v1962 = vmax.f32 %v556, 0.0
    %v1963 = vmax.f32 %v558, 0.0
    %v1964 = vmax.f32 %v633, 0.0
    %v1965 = vmax.f32 %v635, 0.0
    %v1966 = vmax.f32 %v710, 0.0
    %v1967 = vmax.f32 %v712, 0.0
    %v1968 = vmax.f32 %v787, 0.0
    %v1969 = vmax.f32 %v789, 0.0
    %v1970 = vmax.f32 %v864, 0.0
    %v1971 = vmax.f32 %v866, 0.0
    %v1972 = vmax.f32 %v941, 0.0
    %v1973 = vmax.f32 %v943, 0.0
    %v1974 = vmax.f32 %v1018, 0.0
    %v1975 = vmax.f32 %v1020, 0.0
    %v1976 = vmax.f32 %v1095, 0.0
    %v1977 = vmax.f32 %v1097, 0.0
    %v1978 = vmax.f32 %v1172, 0.0
    %v1979 = vmax.f32 %v1174, 0.0
    %v1980 = vmax.f32 %v1249, 0.0
    %v1981 = vmax.f32 %v1251, 0.0
    %v1982 = vmax.f32 %v1326, 0.0
    %v1983 = vmax.f32 %v1328, 0.0
    %v1984 = vmax.f32 %v1403, 0.0
    %v1985 = vmax.f32 %v1405, 0.0
    %v1986 = vmax.f32 %v1480, 0.0
    %v1987 = vmax.f32 %v1482, 0.0
    %v1988 = vmax.f32 %v1557, 0.0
    %v1989 = vmax.f32 %v1559, 0.0
    %v1990 = vmax.f32 %v1634, 0.0
    %v1991 = vmax.f32 %v1636, 0.0
    %v1992 = vmax.f32 %v1711, 0.0
    %v1993 = vmax.f32 %v1713, 0.0
    %v1994 = vmax.f32 %v1788, 0.0
    %v1995 = vmax.f32 %v1790, 0.0
    %v1996 = vmax.f32 %v1865, 0.0
    %v1997 = vmax.f32 %v1867, 0.0
    %v1998 = vmax.f32 %v1942, 0.0
    %v1999 = vmax.f32 %v1944, 0.0
    %v2000 = vmax.f32 %v177, 0.0
    %v2001 = vmax.f32 %v179, 0.0
    %v2002 = vmax.f32 %v254, 0.0
    %v2003 = vmax.f32 %v256, 0.0
    %v2004 = vmax.f32 %v331, 0.0
    %v2005 = vmax.f32 %v333, 0.0
    %v2006 = vmax.f32 %v408, 0.0
    %v2007 = vmax.f32 %v410, 0.0
    %v2008 = vmax.f32 %v485, 0.0
    %v2009 = vmax.f32 %v487, 0.0
    %v2010 = vmax.f32 %v562, 0.0
    %v2011 = vmax.f32 %v564, 0.0
    %v2012 = vmax.f32 %v639, 0.0
    %v2013 = vmax.f32 %v641, 0.0
    %v2014 = vmax.f32 %v716, 0.0
    %v2015 = vmax.f32 %v718, 0.0
    %v2016 = vmax.f32 %v793, 0.0
    %v2017 = vmax.f32 %v795, 0.0
    %v2018 = vmax.f32 %v870, 0.0
    %v2019 = vmax.f32 %v872, 0.0
    %v2020 = vmax.f32 %v947, 0.0
    %v2021 = vmax.f32 %v949, 0.0
    %v2022 = vmax.f32 %v1024, 0.0
    %v2023 = vmax.f32 %v1026, 0.0
    %v2024 = vmax.f32 %v1101, 0.0
    %v2025 = vmax.f32 %v1103, 0.0
    %v2026 = vmax.f32 %v1178, 0.0
    %v2027 = vmax.f32 %v1180, 0.0
    %v2028 = vmax.f32 %v1255, 0.0
    %v2029 = vmax.f32 %v1257, 0.0
    %v2030 = vmax.f32 %v1332, 0.0
    %v2031 = vmax.f32 %v1334, 0.0
    %v2032 = vmax.f32 %v1409, 0.0
    %v2033 = vmax.f32 %v1411, 0.0
    %v2034 = vmax.f32 %v1486, 0.0
    %v2035 = vmax.f32 %v1488, 0.0
    %v2036 = vmax.f32 %v1563, 0.0
    %v2037 = vmax.f32 %v1565, 0.0
    %v2038 = vmax.f32 %v1640, 0.0
    %v2039 = vmax.f32 %v1642, 0.0
    %v2040 = vmax.f32 %v1717, 0.0
    %v2041 = vmax.f32 %v1719, 0.0
    %v2042 = vmax.f32 %v1794, 0.0
    %v2043 = vmax.f32 %v1796, 0.0
    %v2044 = vmax.f32 %v1871, 0.0
    %v2045 = vmax.f32 %v1873, 0.0
    %v2046 = vmax.f32 %v1948, 0.0
    %v2047 = vmax.f32 %v1950, 0.0
    %v2048 = vmax.f32 %v1952, %v1953
    %v2049 = vmax.f32 %v1953, %v1954
    %v2050 = vmax.f32 %v1954, %v1955
    %v2051 = vmax.f32 %v1955, %v1956
    %v2052 = vmax.f32 %v1956, %v1957
    %v2053 = vmax.f32 %v1957, %v1958
    %v2054 = vmax.f32 %v1958, %v1959
    %v2055 = vmax.f32 %v1959, %v1960
    %v2056 = vmax.f32 %v1960, %v1961
    %v2057 = vmax.f32 %v1961, %v1962
    %v2058 = vmax.f32 %v1962, %v1963
    %v2059 = vmax.f32 %v1963, %v1964
    %v2060 = vmax.f32 %v1964, %v1965
    %v2061 = vmax.f32 %v1965, %v1966
    %v2062 = vmax.f32 %v1966, %v1967
    %v2063 = vmax.f32 %v1967, %v1968
    %v2064 = vmax.f32 %v1968, %v1969
    %v2065 = vmax.f32 %v1969, %v1970
    %v2066 = vmax.f32 %v1970, %v1971
    %v2067 = vmax.f32 %v1971, %v1972
    %v2068 = vmax.f32 %v1972, %v1973
    %v2069 = vmax.f32 %v1973, %v1974
    %v2070 = vmax.f32 %v1974, %v1975
    %v2071 = vmax.f32 %v1975, %v1976
    %v2072 = vmax.f32 %v1976, %v1977
    %v2073 = vmax.f32 %v1977, %v1978
    %v2074 = vmax.f32 %v1978, %v1979
    %v2075 = vmax.f32 %v1979, %v1980
    %v2076 = vmax.f32 %v1980, %v1981
    %v2077 = vmax.f32 %v1981, %v1982
    %v2078 = vmax.f32 %v1982, %v1983
    %v2079 = vmax.f32 %v1983, %v1984
    %v2080 = vmax.f32 %v1984, %v1985
    %v2081 = vmax.f32 %v1985, %v1986
    %v2082 = vmax.f32 %v1986, %v1987
    %v2083 = vmax.f32 %v1987, %v1988
    %v2084 = vmax.f32 %v1988, %v1989
    %v2085 = vmax.f32 %v1989, %v1990
    %v2086 = vmax.f32 %v1990, %v1991
    %v2087 = vmax.f32 %v1991, %v1992
    %v2088 = vmax.f32 %v1992, %v1993
    %v2089 = vmax.f32 %v1993, %v1994
    %v2090 = vmax.f32 %v1994, %v1995
    %v2091 = vmax.f32 %v1995, %v1996
    %v2092 = vmax.f32 %v1996, %v1997
    %v2093 = vmax.f32 %v1997, %v1998
    %v2094 = vmax.f32 %v1998, %v1999
    %v2095 = vmax.f32 %v2000, %v2001
    %v2096 = vmax.f32 %v2001, %v2002
    %v2097 = vmax.f32 %v2002, %v2003
    %v2098 = vmax.f32 %v2003, %v2004
    %v2099 = vmax.f32 %v2004, %v2005
    %v2100 = vmax.f32 %v2005, %v2006
    %v2101 = vmax.f32 %v2006, %v2007
    %v2102 = vmax.f32 %v2007, %v2008
    %v2103 = vmax.f32 %v2008, %v2009
    %v2104 = vmax.f32 %v2009, %v2010
    %v2105 = vmax.f32 %v2010, %v2011
    %v2106 = vmax.f32 %v2011, %v2012
    %v2107 = vmax.f32 %v2012, %v2013
    %v2108 = vmax.f32 %v2013, %v2014
    %v2109 = vmax.f32 %v2014, %v2015
    %v2110 = vmax.f32 %v2015, %v2016
    %v2111 = vmax.f32 %v2016, %v2017
    %v2112 = vmax.f32 %v2017, %v2018
    %v2113 = vmax.f32 %v2018, %v2019
    %v2114 = vmax.f32 %v2019, %v2020
    %v2115 = vmax.f32 %v2020, %v2021
    %v2116 = vmax.f32 %v2021, %v2022
    %v2117 = vmax.f32 %v2022, %v2023
    %v2118 = vmax.f32 %v2023, %v2024
    %v2119 = vmax.f32 %v2024, %v2025
    %v2120 = vmax.f32 %v2025, %v2026
    %v2121 = vmax.f32 %v2026, %v2027
    %v2122 = vmax.f32 %v2027, %v2028
    %v2123 = vmax.f32 %v2028, %v2029
    %v2124 = vmax.f32 %v2029, %v2030
    %v2125 = vmax.f32 %v2030, %v2031
    %v2126 = vmax.f32 %v2031, %v2032
    %v2127 = vmax.f32 %v2032, %v2033
    %v2128 = vmax.f32 %v2033, %v2034
    %v2129 = vmax.f32 %v2034, %v2035
    %v2130 = vmax.f32 %v2035, %v2036
    %v2131 = vmax.f32 %v2036, %v2037
    %v2132 = vmax.f32 %v2037, %v2038
    %v2133 = vmax.f32 %v2038, %v2039
    %v2134 = vmax.f32 %v2039, %v2040
    %v2135 = vmax.f32 %v2040, %v2041
    %v2136 = vmax.f32 %v2041, %v2042
    %v2137 = vmax.f32 %v2042, %v2043
    %v2138 = vmax.f32 %v2043, %v2044
    %v2139 = vmax.f32 %v2044, %v2045
    %v2140 = vmax.f32 %v2045, %v2046
    %v2141 = vmax.f32 %v2046, %v2047
    %v2142 = vld [vmem:[%s3] sm:$0xff]
    %v2143 = vld [vmem:[%s3 + $0x8] sm:$0xff]
    %v2144 = vld [vmem:[%s3 + $0x10] sm:$0xff]
    %v2145 = vld [vmem:[%s3 + $0x18] sm:$0xff]
    %v2146 = vld [vmem:[%s4] sm:$0xff]
    %v2147 = vld [vmem:[%s4 + $0x8] sm:$0xff]
    %v2148 = vld [vmem:[%s4 + $0x10] sm:$0xff]
    %v2149 = vld [vmem:[%s4 + $0x18] sm:$0xff]
    %2151 = vset.pattern.permute.xlu0 0
    %2152 = vperm.xlu0 %2151, %v2146
    %v2153 = vpop.permute.xlu0 %2152
    %2156 = vset.pattern.permute.xlu0 0
    %2157 = vperm.xlu0 %2156, %v2147
    %v2158 = vpop.permute.xlu0 %2157
    %2161 = vset.pattern.permute.xlu0 0
    %2162 = vperm.xlu0 %2161, %v2148
    %v2163 = vpop.permute.xlu0 %2162
    %2166 = vset.pattern.permute.xlu0 0
    %2167 = vperm.xlu0 %2166, %v2149
    %v2168 = vpop.permute.xlu0 %2167
    %vm2170 = vcmask 392192
    %v2172 = vsel %vm2170, %v2142, 0
    %v2175 = vsel %vm2170, %v2143, 0
    %v2178 = vsel %vm2170, %v2144, 0
    %v2181 = vsel %vm2170, %v2145, 0
    %2183 = vmatprep.subr.mxu0 %v2049
    %2184 = vmatpush1.msra.mxu0 %v2048
    %2185 = vmatprep.subr.mxu0 %v2096
    %2186 = vmatpush1.msra.mxu0 %v2095
    %2187 = vmatprep.subr.mxu0 %v2050
    %2188 = vmatpush1.msra.mxu0 %v2049
    %2189 = vmatprep.subr.mxu0 %v2097
    %2190 = vmatpush1.msra.mxu0 %v2096
    %2191 = vmatprep.subr.mxu0 %v2051
    %2192 = vmatpush1.msra.mxu0 %v2050
    %2193 = vmatprep.subr.mxu0 %v2098
    %2194 = vmatpush1.msra.mxu0 %v2097
    %2195 = vmatprep.subr.mxu0 0.0
    %2196 = vmatpush1.msra.mxu0 0.0
    %2197 = vmatprep.subr.mxu0 0.0
    %2198 = vmatpush1.msra.mxu0 0.0
    %2199 = vmatprep.subr.mxu0 0.0
    %2200 = vmatpush1.msra.mxu0 0.0
    %2201 = vmatprep.subr.mxu0 0.0
    %2202 = vmatpush1.msra.mxu0 0.0
    %2203 = vmatprep.subr.mxu0 0.0
    %2204 = vmatpush1.msra.mxu0 0.0
    %2205 = vmatprep.subr.mxu0 0.0
    %2206 = vmatpush1.msra.mxu0 0.0
    %2207 = vmatprep.subr.mxu0 0.0
    %2208 = vmatpush1.msra.mxu0 0.0
    %2209 = vmatprep.subr.mxu0 0.0
    %2210 = vmatpush1.msra.mxu0 0.0
    %2211 = vmatprep.subr.mxu0 0.0
    %2212 = vmatpush1.msra.mxu0 0.0
    %2213 = vmatprep.subr.mxu0 0.0
    %2214 = vmatpush1.msra.mxu0 0.0
    %2215 = vmatprep.subr.mxu0 0.0
    %2216 = vmatpush1.msra.mxu0 0.0
    %2217 = vmatprep.subr.mxu0 0.0
    %2218 = vmatpush1.msra.mxu0 0.0
    %2219 = vmatprep.subr.mxu0 0.0
    %2220 = vmatpush1.msra.mxu0 0.0
    %2221 = vmatprep.subr.mxu0 0.0
    %2222 = vmatpush1.msra.mxu0 0.0
    %2223 = vmatprep.subr.mxu0 0.0
    %2224 = vmatpush1.msra.mxu0 0.0
    %2225 = vmatprep.subr.mxu0 0.0
    %2226 = vmatpush1.msra.mxu0 0.0
    %2227 = vmatprep.subr.mxu0 0.0
    %2228 = vmatpush1.msra.mxu0 0.0
    %2229 = vmatprep.subr.mxu0 0.0
    %2230 = vmatpush1.msra.mxu0 0.0
    %2231 = vmatprep.subr.mxu0 0.0
    %2232 = vmatpush1.msra.mxu0 0.0
    %2233 = vmatprep.subr.mxu0 0.0
    %2234 = vmatpush1.msra.mxu0 0.0
    %2235 = vmatprep.subr.mxu0 0.0
    %2236 = vmatpush1.msra.mxu0 0.0
    %2237 = vmatprep.subr.mxu0 0.0
    %2238 = vmatpush1.msra.mxu0 0.0
    %2239 = vmatprep.subr.mxu0 0.0
    %2240 = vmatpush1.msra.mxu0 0.0
    %2241 = vmatprep.subr.mxu0 0.0
    %2242 = vmatpush1.msra.mxu0 0.0
    %2243 = vmatprep.subr.mxu0 0.0
    %2244 = vmatpush1.msra.mxu0 0.0
    %2245 = vmatprep.subr.mxu0 0.0
    %2246 = vmatpush1.msra.mxu0 0.0
    %2247 = vmatprep.mubr.f32.mxu0 0.0
    %2248 = vmatmul.mubr.f32.gmra.mrb[0].mxu0 %v2172
    %v2249 = vpop.f32.mrb[0].mxu0
    %v2250 = vadd.f32 %v2153, %v2249
    %v2251 = vpop.f32.mrb[0].mxu0
    %v2252 = vadd.f32 %v2153, %v2251
    %2253 = vmatprep.mubr.f32.mxu0 0.0
    %2254 = vmatmul.mubr.f32.gmra.mrb[0].mxu0 %v2175
    %v2255 = vpop.f32.mrb[0].mxu0
    %v2256 = vadd.f32 %v2158, %v2255
    %v2257 = vpop.f32.mrb[0].mxu0
    %v2258 = vadd.f32 %v2158, %v2257
    %2259 = vmatprep.mubr.f32.mxu0 0.0
    %2260 = vmatmul.mubr.f32.gmra.mrb[0].mxu0 %v2178
    %v2261 = vpop.f32.mrb[0].mxu0
    %v2262 = vadd.f32 %v2163, %v2261
    %v2263 = vpop.f32.mrb[0].mxu0
    %v2264 = vadd.f32 %v2163, %v2263
    %2265 = vmatprep.mubr.f32.mxu0 0.0
    %2266 = vmatmul.mubr.f32.gmra.mrb[0].mxu0 %v2181
    %v2267 = vpop.f32.mrb[0].mxu0
    %v2268 = vadd.f32 %v2168, %v2267
    %v2269 = vpop.f32.mrb[0].mxu0
    %v2270 = vadd.f32 %v2168, %v2269
    %2271 = vdwg.mxu0
    %2272 = vmatprep.subr.mxu0 %v2051
    %2273 = vmatpush1.msra.mxu0 %v2050
    %2274 = vmatprep.subr.mxu0 %v2098
    %2275 = vmatpush1.msra.mxu0 %v2097
    %2276 = vmatprep.subr.mxu0 %v2052
    %2277 = vmatpush1.msra.mxu0 %v2051
    %2278 = vmatprep.subr.mxu0 %v2099
    %2279 = vmatpush1.msra.mxu0 %v2098
    %2280 = vmatprep.subr.mxu0 %v2053
    %2281 = vmatpush1.msra.mxu0 %v2052
    %2282 = vmatprep.subr.mxu0 %v2100
    %2283 = vmatpush1.msra.mxu0 %v2099
    %2284 = vmatprep.subr.mxu0 0.0
    %2285 = vmatpush1.msra.mxu0 0.0
    %2286 = vmatprep.subr.mxu0 0.0
    %2287 = vmatpush1.msra.mxu0 0.0
    %2288 = vmatprep.subr.mxu0 0.0
    %2289 = vmatpush1.msra.mxu0 0.0
    %2290 = vmatprep.subr.mxu0 0.0
    %2291 = vmatpush1.msra.mxu0 0.0
    %2292 = vmatprep.subr.mxu0 0.0
    %2293 = vmatpush1.msra.mxu0 0.0
    %2294 = vmatprep.subr.mxu0 0.0
    %2295 = vmatpush1.msra.mxu0 0.0
    %2296 = vmatprep.subr.mxu0 0.0
    %2297 = vmatpush1.msra.mxu0 0.0
    %2298 = vmatprep.subr.mxu0 0.0
    %2299 = vmatpush1.msra.mxu0 0.0
    %2300 = vmatprep.subr.mxu0 0.0
    %2301 = vmatpush1.msra.mxu0 0.0
    %2302 = vmatprep.subr.mxu0 0.0
    %2303 = vmatpush1.msra.mxu0 0.0
    %2304 = vmatprep.subr.mxu0 0.0
    %2305 = vmatpush1.msra.mxu0 0.0
    %2306 = vmatprep.subr.mxu0 0.0
    %2307 = vmatpush1.msra.mxu0 0.0
    %2308 = vmatprep.subr.mxu0 0.0
    %2309 = vmatpush1.msra.mxu0 0.0
    %2310 = vmatprep.subr.mxu0 0.0
    %2311 = vmatpush1.msra.mxu0 0.0
    %2312 = vmatprep.subr.mxu0 0.0
    %2313 = vmatpush1.msra.mxu0 0.0
    %2314 = vmatprep.subr.mxu0 0.0
    %2315 = vmatpush1.msra.mxu0 0.0
    %2316 = vmatprep.subr.mxu0 0.0
    %2317 = vmatpush1.msra.mxu0 0.0
    %2318 = vmatprep.subr.mxu0 0.0
    %2319 = vmatpush1.msra.mxu0 0.0
    %2320 = vmatprep.subr.mxu0 0.0
    %2321 = vmatpush1.msra.mxu0 0.0
    %2322 = vmatprep.subr.mxu0 0.0
    %2323 = vmatpush1.msra.mxu0 0.0
    %2324 = vmatprep.subr.mxu0 0.0
    %2325 = vmatpush1.msra.mxu0 0.0
    %2326 = vmatprep.subr.mxu0 0.0
    %2327 = vmatpush1.msra.mxu0 0.0
    %2328 = vmatprep.subr.mxu0 0.0
    %2329 = vmatpush1.msra.mxu0 0.0
    %2330 = vmatprep.subr.mxu0 0.0
    %2331 = vmatpush1.msra.mxu0 0.0
    %2332 = vmatprep.subr.mxu0 0.0
    %2333 = vmatpush1.msra.mxu0 0.0
    %2334 = vmatprep.subr.mxu0 0.0
    %2335 = vmatpush1.msra.mxu0 0.0
    %2336 = vmatprep.mubr.f32.mxu0 0.0
    %2337 = vmatmul.mubr.f32.gmra.mrb[0].mxu0 %v2172
    %v2338 = vpop.f32.mrb[0].mxu0
    %v2339 = vadd.f32 %v2153, %v2338
    %v2340 = vpop.f32.mrb[0].mxu0
    %v2341 = vadd.f32 %v2153, %v2340
    %2342 = vmatprep.mubr.f32.mxu0 0.0
    %2343 = vmatmul.mubr.f32.gmra.mrb[0].mxu0 %v2175
    %v2344 = vpop.f32.mrb[0].mxu0
    %v2345 = vadd.f32 %v2158, %v2344
    %v2346 = vpop.f32.mrb[0].mxu0
    %v2347 = vadd.f32 %v2158, %v2346
    %2348 = vmatprep.mubr.f32.mxu0 0.0
    %2349 = vmatmul.mubr.f32.gmra.mrb[0].mxu0 %v2178
    %v2350 = vpop.f32.mrb[0].mxu0
    %v2351 = vadd.f32 %v2163, %v2350
    %v2352 = vpop.f32.mrb[0].mxu0
    %v2353 = vadd.f32 %v2163, %v2352
    %2354 = vmatprep.mubr.f32.mxu0 0.0
    %2355 = vmatmul.mubr.f32.gmra.mrb[0].mxu0 %v2181
    %v2356 = vpop.f32.mrb[0].mxu0
    %v2357 = vadd.f32 %v2168, %v2356
    %v2358 = vpop.f32.mrb[0].mxu0
    %v2359 = vadd.f32 %v2168, %v2358
    %2360 = vdwg.mxu0
    %2361 = vmatprep.subr.mxu0 %v2053
    %2362 = vmatpush1.msra.mxu0 %v2052
    %2363 = vmatprep.subr.mxu0 %v2100
    %2364 = vmatpush1.msra.mxu0 %v2099
    %2365 = vmatprep.subr.mxu0 %v2054
    %2366 = vmatpush1.msra.mxu0 %v2053
    %2367 = vmatprep.subr.mxu0 %v2101
    %2368 = vmatpush1.msra.mxu0 %v2100
    %2369 = vmatprep.subr.mxu0 %v2055
    %2370 = vmatpush1.msra.mxu0 %v2054
    %2371 = vmatprep.subr.mxu0 %v2102
    %2372 = vmatpush1.msra.mxu0 %v2101
    %2373 = vmatprep.subr.mxu0 0.0
    %2374 = vmatpush1.msra.mxu0 0.0
    %2375 = vmatprep.subr.mxu0 0.0
    %2376 = vmatpush1.msra.mxu0 0.0
    %2377 = vmatprep.subr.mxu0 0.0
    %2378 = vmatpush1.msra.mxu0 0.0
    %2379 = vmatprep.subr.mxu0 0.0
    %2380 = vmatpush1.msra.mxu0 0.0
    %2381 = vmatprep.subr.mxu0 0.0
    %2382 = vmatpush1.msra.mxu0 0.0
    %2383 = vmatprep.subr.mxu0 0.0
    %2384 = vmatpush1.msra.mxu0 0.0
    %2385 = vmatprep.subr.mxu0 0.0
    %2386 = vmatpush1.msra.mxu0 0.0
    %2387 = vmatprep.subr.mxu0 0.0
    %2388 = vmatpush1.msra.mxu0 0.0
    %2389 = vmatprep.subr.mxu0 0.0
    %2390 = vmatpush1.msra.mxu0 0.0
    %2391 = vmatprep.subr.mxu0 0.0
    %2392 = vmatpush1.msra.mxu0 0.0
    %2393 = vmatprep.subr.mxu0 0.0
    %2394 = vmatpush1.msra.mxu0 0.0
    %2395 = vmatprep.subr.mxu0 0.0
    %2396 = vmatpush1.msra.mxu0 0.0
    %2397 = vmatprep.subr.mxu0 0.0
    %2398 = vmatpush1.msra.mxu0 0.0
    %2399 = vmatprep.subr.mxu0 0.0
    %2400 = vmatpush1.msra.mxu0 0.0
    %2401 = vmatprep.subr.mxu0 0.0
    %2402 = vmatpush1.msra.mxu0 0.0
    %2403 = vmatprep.subr.mxu0 0.0
    %2404 = vmatpush1.msra.mxu0 0.0
    %2405 = vmatprep.subr.mxu0 0.0
    %2406 = vmatpush1.msra.mxu0 0.0
    %2407 = vmatprep.subr.mxu0 0.0
    %2408 = vmatpush1.msra.mxu0 0.0
    %2409 = vmatprep.subr.mxu0 0.0
    %2410 = vmatpush1.msra.mxu0 0.0
    %2411 = vmatprep.subr.mxu0 0.0
    %2412 = vmatpush1.msra.mxu0 0.0
    %2413 = vmatprep.subr.mxu0 0.0
    %2414 = vmatpush1.msra.mxu0 0.0
    %2415 = vmatprep.subr.mxu0 0.0
    %2416 = vmatpush1.msra.mxu0 0.0
    %2417 = vmatprep.subr.mxu0 0.0
    %2418 = vmatpush1.msra.mxu0 0.0
    %2419 = vmatprep.subr.mxu0 0.0
    %2420 = vmatpush1.msra.mxu0 0.0
    %2421 = vmatprep.subr.mxu0 0.0
    %2422 = vmatpush1.msra.mxu0 0.0
    %2423 = vmatprep.subr.mxu0 0.0
    %2424 = vmatpush1.msra.mxu0 0.0
    %2425 = vmatprep.mubr.f32.mxu0 0.0
    %2426 = vmatmul.mubr.f32.gmra.mrb[0].mxu0 %v2172
    %v2427 = vpop.f32.mrb[0].mxu0
    %v2428 = vadd.f32 %v2153, %v2427
    %v2429 = vpop.f32.mrb[0].mxu0
    %v2430 = vadd.f32 %v2153, %v2429
    %2431 = vmatprep.mubr.f32.mxu0 0.0
    %2432 = vmatmul.mubr.f32.gmra.mrb[0].mxu0 %v2175
    %v2433 = vpop.f32.mrb[0].mxu0
    %v2434 = vadd.f32 %v2158, %v2433
    %v2435 = vpop.f32.mrb[0].mxu0
    %v2436 = vadd.f32 %v2158, %v2435
    %2437 = vmatprep.mubr.f32.mxu0 0.0
    %2438 = vmatmul.mubr.f32.gmra.mrb[0].mxu0 %v2178
    %v2439 = vpop.f32.mrb[0].mxu0
    %v2440 = vadd.f32 %v2163, %v2439
    %v2441 = vpop.f32.mrb[0].mxu0
    %v2442 = vadd.f32 %v2163, %v2441
    %2443 = vmatprep.mubr.f32.mxu0 0.0
    %2444 = vmatmul.mubr.f32.gmra.mrb[0].mxu0 %v2181
    %v2445 = vpop.f32.mrb[0].mxu0
    %v2446 = vadd.f32 %v2168, %v2445
    %v2447 = vpop.f32.mrb[0].mxu0
    %v2448 = vadd.f32 %v2168, %v2447
    %2449 = vdwg.mxu0
    %2450 = vmatprep.subr.mxu0 %v2055
    %2451 = vmatpush1.msra.mxu0 %v2054
    %2452 = vmatprep.subr.mxu0 %v2102
    %2453 = vmatpush1.msra.mxu0 %v2101
    %2454 = vmatprep.subr.mxu0 %v2056
    %2455 = vmatpush1.msra.mxu0 %v2055
    %2456 = vmatprep.subr.mxu0 %v2103
    %2457 = vmatpush1.msra.mxu0 %v2102
    %2458 = vmatprep.subr.mxu0 %v2057
    %2459 = vmatpush1.msra.mxu0 %v2056
    %2460 = vmatprep.subr.mxu0 %v2104
    %2461 = vmatpush1.msra.mxu0 %v2103
    %2462 = vmatprep.subr.mxu0 0.0
    %2463 = vmatpush1.msra.mxu0 0.0
    %2464 = vmatprep.subr.mxu0 0.0
    %2465 = vmatpush1.msra.mxu0 0.0
    %2466 = vmatprep.subr.mxu0 0.0
    %2467 = vmatpush1.msra.mxu0 0.0
    %2468 = vmatprep.subr.mxu0 0.0
    %2469 = vmatpush1.msra.mxu0 0.0
    %2470 = vmatprep.subr.mxu0 0.0
    %2471 = vmatpush1.msra.mxu0 0.0
    %2472 = vmatprep.subr.mxu0 0.0
    %2473 = vmatpush1.msra.mxu0 0.0
    %2474 = vmatprep.subr.mxu0 0.0
    %2475 = vmatpush1.msra.mxu0 0.0
    %2476 = vmatprep.subr.mxu0 0.0
    %2477 = vmatpush1.msra.mxu0 0.0
    %2478 = vmatprep.subr.mxu0 0.0
    %2479 = vmatpush1.msra.mxu0 0.0
    %2480 = vmatprep.subr.mxu0 0.0
    %2481 = vmatpush1.msra.mxu0 0.0
    %2482 = vmatprep.subr.mxu0 0.0
    %2483 = vmatpush1.msra.mxu0 0.0
    %2484 = vmatprep.subr.mxu0 0.0
    %2485 = vmatpush1.msra.mxu0 0.0
    %2486 = vmatprep.subr.mxu0 0.0
    %2487 = vmatpush1.msra.mxu0 0.0
    %2488 = vmatprep.subr.mxu0 0.0
    %2489 = vmatpush1.msra.mxu0 0.0
    %2490 = vmatprep.subr.mxu0 0.0
    %2491 = vmatpush1.msra.mxu0 0.0
    %2492 = vmatprep.subr.mxu0 0.0
    %2493 = vmatpush1.msra.mxu0 0.0
    %2494 = vmatprep.subr.mxu0 0.0
    %2495 = vmatpush1.msra.mxu0 0.0
    %2496 = vmatprep.subr.mxu0 0.0
    %2497 = vmatpush1.msra.mxu0 0.0
    %2498 = vmatprep.subr.mxu0 0.0
    %2499 = vmatpush1.msra.mxu0 0.0
    %2500 = vmatprep.subr.mxu0 0.0
    %2501 = vmatpush1.msra.mxu0 0.0
    %2502 = vmatprep.subr.mxu0 0.0
    %2503 = vmatpush1.msra.mxu0 0.0
    %2504 = vmatprep.subr.mxu0 0.0
    %2505 = vmatpush1.msra.mxu0 0.0
    %2506 = vmatprep.subr.mxu0 0.0
    %2507 = vmatpush1.msra.mxu0 0.0
    %2508 = vmatprep.subr.mxu0 0.0
    %2509 = vmatpush1.msra.mxu0 0.0
    %2510 = vmatprep.subr.mxu0 0.0
    %2511 = vmatpush1.msra.mxu0 0.0
    %2512 = vmatprep.subr.mxu0 0.0
    %2513 = vmatpush1.msra.mxu0 0.0
    %2514 = vmatprep.mubr.f32.mxu0 0.0
    %2515 = vmatmul.mubr.f32.gmra.mrb[0].mxu0 %v2172
    %v2516 = vpop.f32.mrb[0].mxu0
    %v2517 = vadd.f32 %v2153, %v2516
    %v2518 = vpop.f32.mrb[0].mxu0
    %v2519 = vadd.f32 %v2153, %v2518
    %2520 = vmatprep.mubr.f32.mxu0 0.0
    %2521 = vmatmul.mubr.f32.gmra.mrb[0].mxu0 %v2175
    %v2522 = vpop.f32.mrb[0].mxu0
    %v2523 = vadd.f32 %v2158, %v2522
    %v2524 = vpop.f32.mrb[0].mxu0
    %v2525 = vadd.f32 %v2158, %v2524
    %2526 = vmatprep.mubr.f32.mxu0 0.0
    %2527 = vmatmul.mubr.f32.gmra.mrb[0].mxu0 %v2178
    %v2528 = vpop.f32.mrb[0].mxu0
    %v2529 = vadd.f32 %v2163, %v2528
    %v2530 = vpop.f32.mrb[0].mxu0
    %v2531 = vadd.f32 %v2163, %v2530
    %2532 = vmatprep.mubr.f32.mxu0 0.0
    %2533 = vmatmul.mubr.f32.gmra.mrb[0].mxu0 %v2181
    %v2534 = vpop.f32.mrb[0].mxu0
    %v2535 = vadd.f32 %v2168, %v2534
    %v2536 = vpop.f32.mrb[0].mxu0
    %v2537 = vadd.f32 %v2168, %v2536
    %2538 = vdwg.mxu0
    %2539 = vmatprep.subr.mxu0 %v2057
    %2540 = vmatpush1.msra.mxu0 %v2056
    %2541 = vmatprep.subr.mxu0 %v2104
    %2542 = vmatpush1.msra.mxu0 %v2103
    %2543 = vmatprep.subr.mxu0 %v2058
    %2544 = vmatpush1.msra.mxu0 %v2057
    %2545 = vmatprep.subr.mxu0 %v2105
    %2546 = vmatpush1.msra.mxu0 %v2104
    %2547 = vmatprep.subr.mxu0 %v2059
    %2548 = vmatpush1.msra.mxu0 %v2058
    %2549 = vmatprep.subr.mxu0 %v2106
    %2550 = vmatpush1.msra.mxu0 %v2105
    %2551 = vmatprep.subr.mxu0 0.0
    %2552 = vmatpush1.msra.mxu0 0.0
    %2553 = vmatprep.subr.mxu0 0.0
    %2554 = vmatpush1.msra.mxu0 0.0
    %2555 = vmatprep.subr.mxu0 0.0
    %2556 = vmatpush1.msra.mxu0 0.0
    %2557 = vmatprep.subr.mxu0 0.0
    %2558 = vmatpush1.msra.mxu0 0.0
    %2559 = vmatprep.subr.mxu0 0.0
    %2560 = vmatpush1.msra.mxu0 0.0
    %2561 = vmatprep.subr.mxu0 0.0
    %2562 = vmatpush1.msra.mxu0 0.0
    %2563 = vmatprep.subr.mxu0 0.0
    %2564 = vmatpush1.msra.mxu0 0.0
    %2565 = vmatprep.subr.mxu0 0.0
    %2566 = vmatpush1.msra.mxu0 0.0
    %2567 = vmatprep.subr.mxu0 0.0
    %2568 = vmatpush1.msra.mxu0 0.0
    %2569 = vmatprep.subr.mxu0 0.0
    %2570 = vmatpush1.msra.mxu0 0.0
    %2571 = vmatprep.subr.mxu0 0.0
    %2572 = vmatpush1.msra.mxu0 0.0
    %2573 = vmatprep.subr.mxu0 0.0
    %2574 = vmatpush1.msra.mxu0 0.0
    %2575 = vmatprep.subr.mxu0 0.0
    %2576 = vmatpush1.msra.mxu0 0.0
    %2577 = vmatprep.subr.mxu0 0.0
    %2578 = vmatpush1.msra.mxu0 0.0
    %2579 = vmatprep.subr.mxu0 0.0
    %2580 = vmatpush1.msra.mxu0 0.0
    %2581 = vmatprep.subr.mxu0 0.0
    %2582 = vmatpush1.msra.mxu0 0.0
    %2583 = vmatprep.subr.mxu0 0.0
    %2584 = vmatpush1.msra.mxu0 0.0
    %2585 = vmatprep.subr.mxu0 0.0
    %2586 = vmatpush1.msra.mxu0 0.0
    %2587 = vmatprep.subr.mxu0 0.0
    %2588 = vmatpush1.msra.mxu0 0.0
    %2589 = vmatprep.subr.mxu0 0.0
    %2590 = vmatpush1.msra.mxu0 0.0
    %2591 = vmatprep.subr.mxu0 0.0
    %2592 = vmatpush1.msra.mxu0 0.0
    %2593 = vmatprep.subr.mxu0 0.0
    %2594 = vmatpush1.msra.mxu0 0.0
    %2595 = vmatprep.subr.mxu0 0.0
    %2596 = vmatpush1.msra.mxu0 0.0
    %2597 = vmatprep.subr.mxu0 0.0
    %2598 = vmatpush1.msra.mxu0 0.0
    %2599 = vmatprep.subr.mxu0 0.0
    %2600 = vmatpush1.msra.mxu0 0.0
    %2601 = vmatprep.subr.mxu0 0.0
    %2602 = vmatpush1.msra.mxu0 0.0
    %2603 = vmatprep.mubr.f32.mxu0 0.0
    %2604 = vmatmul.mubr.f32.gmra.mrb[0].mxu0 %v2172
    %v2605 = vpop.f32.mrb[0].mxu0
    %v2606 = vadd.f32 %v2153, %v2605
    %v2607 = vpop.f32.mrb[0].mxu0
    %v2608 = vadd.f32 %v2153, %v2607
    %2609 = vmatprep.mubr.f32.mxu0 0.0
    %2610 = vmatmul.mubr.f32.gmra.mrb[0].mxu0 %v2175
    %v2611 = vpop.f32.mrb[0].mxu0
    %v2612 = vadd.f32 %v2158, %v2611
    %v2613 = vpop.f32.mrb[0].mxu0
    %v2614 = vadd.f32 %v2158, %v2613
    %2615 = vmatprep.mubr.f32.mxu0 0.0
    %2616 = vmatmul.mubr.f32.gmra.mrb[0].mxu0 %v2178
    %v2617 = vpop.f32.mrb[0].mxu0
    %v2618 = vadd.f32 %v2163, %v2617
    %v2619 = vpop.f32.mrb[0].mxu0
    %v2620 = vadd.f32 %v2163, %v2619
    %2621 = vmatprep.mubr.f32.mxu0 0.0
    %2622 = vmatmul.mubr.f32.gmra.mrb[0].mxu0 %v2181
    %v2623 = vpop.f32.mrb[0].mxu0
    %v2624 = vadd.f32 %v2168, %v2623
    %v2625 = vpop.f32.mrb[0].mxu0
    %v2626 = vadd.f32 %v2168, %v2625
    %2627 = vdwg.mxu0
    %2628 = vmatprep.subr.mxu0 %v2059
    %2629 = vmatpush1.msra.mxu0 %v2058
    %2630 = vmatprep.subr.mxu0 %v2106
    %2631 = vmatpush1.msra.mxu0 %v2105
    %2632 = vmatprep.subr.mxu0 %v2060
    %2633 = vmatpush1.msra.mxu0 %v2059
    %2634 = vmatprep.subr.mxu0 %v2107
    %2635 = vmatpush1.msra.mxu0 %v2106
    %2636 = vmatprep.subr.mxu0 %v2061
    %2637 = vmatpush1.msra.mxu0 %v2060
    %2638 = vmatprep.subr.mxu0 %v2108
    %2639 = vmatpush1.msra.mxu0 %v2107
    %2640 = vmatprep.subr.mxu0 0.0
    %2641 = vmatpush1.msra.mxu0 0.0
    %2642 = vmatprep.subr.mxu0 0.0
    %2643 = vmatpush1.msra.mxu0 0.0
    %2644 = vmatprep.subr.mxu0 0.0
    %2645 = vmatpush1.msra.mxu0 0.0
    %2646 = vmatprep.subr.mxu0 0.0
    %2647 = vmatpush1.msra.mxu0 0.0
    %2648 = vmatprep.subr.mxu0 0.0
    %2649 = vmatpush1.msra.mxu0 0.0
    %2650 = vmatprep.subr.mxu0 0.0
    %2651 = vmatpush1.msra.mxu0 0.0
    %2652 = vmatprep.subr.mxu0 0.0
    %2653 = vmatpush1.msra.mxu0 0.0
    %2654 = vmatprep.subr.mxu0 0.0
    %2655 = vmatpush1.msra.mxu0 0.0
    %2656 = vmatprep.subr.mxu0 0.0
    %2657 = vmatpush1.msra.mxu0 0.0
    %2658 = vmatprep.subr.mxu0 0.0
    %2659 = vmatpush1.msra.mxu0 0.0
    %2660 = vmatprep.subr.mxu0 0.0
    %2661 = vmatpush1.msra.mxu0 0.0
    %2662 = vmatprep.subr.mxu0 0.0
    %2663 = vmatpush1.msra.mxu0 0.0
    %2664 = vmatprep.subr.mxu0 0.0
    %2665 = vmatpush1.msra.mxu0 0.0
    %2666 = vmatprep.subr.mxu0 0.0
    %2667 = vmatpush1.msra.mxu0 0.0
    %2668 = vmatprep.subr.mxu0 0.0
    %2669 = vmatpush1.msra.mxu0 0.0
    %2670 = vmatprep.subr.mxu0 0.0
    %2671 = vmatpush1.msra.mxu0 0.0
    %2672 = vmatprep.subr.mxu0 0.0
    %2673 = vmatpush1.msra.mxu0 0.0
    %2674 = vmatprep.subr.mxu0 0.0
    %2675 = vmatpush1.msra.mxu0 0.0
    %2676 = vmatprep.subr.mxu0 0.0
    %2677 = vmatpush1.msra.mxu0 0.0
    %2678 = vmatprep.subr.mxu0 0.0
    %2679 = vmatpush1.msra.mxu0 0.0
    %2680 = vmatprep.subr.mxu0 0.0
    %2681 = vmatpush1.msra.mxu0 0.0
    %2682 = vmatprep.subr.mxu0 0.0
    %2683 = vmatpush1.msra.mxu0 0.0
    %2684 = vmatprep.subr.mxu0 0.0
    %2685 = vmatpush1.msra.mxu0 0.0
    %2686 = vmatprep.subr.mxu0 0.0
    %2687 = vmatpush1.msra.mxu0 0.0
    %2688 = vmatprep.subr.mxu0 0.0
    %2689 = vmatpush1.msra.mxu0 0.0
    %2690 = vmatprep.subr.mxu0 0.0
    %2691 = vmatpush1.msra.mxu0 0.0
    %2692 = vmatprep.mubr.f32.mxu0 0.0
    %2693 = vmatmul.mubr.f32.gmra.mrb[0].mxu0 %v2172
    %v2694 = vpop.f32.mrb[0].mxu0
    %v2695 = vadd.f32 %v2153, %v2694
    %v2696 = vpop.f32.mrb[0].mxu0
    %v2697 = vadd.f32 %v2153, %v2696
    %2698 = vmatprep.mubr.f32.mxu0 0.0
    %2699 = vmatmul.mubr.f32.gmra.mrb[0].mxu0 %v2175
    %v2700 = vpop.f32.mrb[0].mxu0
    %v2701 = vadd.f32 %v2158, %v2700
    %v2702 = vpop.f32.mrb[0].mxu0
    %v2703 = vadd.f32 %v2158, %v2702
    %2704 = vmatprep.mubr.f32.mxu0 0.0
    %2705 = vmatmul.mubr.f32.gmra.mrb[0].mxu0 %v2178
    %v2706 = vpop.f32.mrb[0].mxu0
    %v2707 = vadd.f32 %v2163, %v2706
    %v2708 = vpop.f32.mrb[0].mxu0
    %v2709 = vadd.f32 %v2163, %v2708
    %2710 = vmatprep.mubr.f32.mxu0 0.0
    %2711 = vmatmul.mubr.f32.gmra.mrb[0].mxu0 %v2181
    %v2712 = vpop.f32.mrb[0].mxu0
    %v2713 = vadd.f32 %v2168, %v2712
    %v2714 = vpop.f32.mrb[0].mxu0
    %v2715 = vadd.f32 %v2168, %v2714
    %2716 = vdwg.mxu0
    %2717 = vmatprep.subr.mxu0 %v2061
    %2718 = vmatpush1.msra.mxu0 %v2060
    %2719 = vmatprep.subr.mxu0 %v2108
    %2720 = vmatpush1.msra.mxu0 %v2107
    %2721 = vmatprep.subr.mxu0 %v2062
    %2722 = vmatpush1.msra.mxu0 %v2061
    %2723 = vmatprep.subr.mxu0 %v2109
    %2724 = vmatpush1.msra.mxu0 %v2108
    %2725 = vmatprep.subr.mxu0 %v2063
    %2726 = vmatpush1.msra.mxu0 %v2062
    %2727 = vmatprep.subr.mxu0 %v2110
    %2728 = vmatpush1.msra.mxu0 %v2109
    %2729 = vmatprep.subr.mxu0 0.0
    %2730 = vmatpush1.msra.mxu0 0.0
    %2731 = vmatprep.subr.mxu0 0.0
    %2732 = vmatpush1.msra.mxu0 0.0
    %2733 = vmatprep.subr.mxu0 0.0
    %2734 = vmatpush1.msra.mxu0 0.0
    %2735 = vmatprep.subr.mxu0 0.0
    %2736 = vmatpush1.msra.mxu0 0.0
    %2737 = vmatprep.subr.mxu0 0.0
    %2738 = vmatpush1.msra.mxu0 0.0
    %2739 = vmatprep.subr.mxu0 0.0
    %2740 = vmatpush1.msra.mxu0 0.0
    %2741 = vmatprep.subr.mxu0 0.0
    %2742 = vmatpush1.msra.mxu0 0.0
    %2743 = vmatprep.subr.mxu0 0.0
    %2744 = vmatpush1.msra.mxu0 0.0
    %2745 = vmatprep.subr.mxu0 0.0
    %2746 = vmatpush1.msra.mxu0 0.0
    %2747 = vmatprep.subr.mxu0 0.0
    %2748 = vmatpush1.msra.mxu0 0.0
    %2749 = vmatprep.subr.mxu0 0.0
    %2750 = vmatpush1.msra.mxu0 0.0
    %2751 = vmatprep.subr.mxu0 0.0
    %2752 = vmatpush1.msra.mxu0 0.0
    %2753 = vmatprep.subr.mxu0 0.0
    %2754 = vmatpush1.msra.mxu0 0.0
    %2755 = vmatprep.subr.mxu0 0.0
    %2756 = vmatpush1.msra.mxu0 0.0
    %2757 = vmatprep.subr.mxu0 0.0
    %2758 = vmatpush1.msra.mxu0 0.0
    %2759 = vmatprep.subr.mxu0 0.0
    %2760 = vmatpush1.msra.mxu0 0.0
    %2761 = vmatprep.subr.mxu0 0.0
    %2762 = vmatpush1.msra.mxu0 0.0
    %2763 = vmatprep.subr.mxu0 0.0
    %2764 = vmatpush1.msra.mxu0 0.0
    %2765 = vmatprep.subr.mxu0 0.0
    %2766 = vmatpush1.msra.mxu0 0.0
    %2767 = vmatprep.subr.mxu0 0.0
    %2768 = vmatpush1.msra.mxu0 0.0
    %2769 = vmatprep.subr.mxu0 0.0
    %2770 = vmatpush1.msra.mxu0 0.0
    %2771 = vmatprep.subr.mxu0 0.0
    %2772 = vmatpush1.msra.mxu0 0.0
    %2773 = vmatprep.subr.mxu0 0.0
    %2774 = vmatpush1.msra.mxu0 0.0
    %2775 = vmatprep.subr.mxu0 0.0
    %2776 = vmatpush1.msra.mxu0 0.0
    %2777 = vmatprep.subr.mxu0 0.0
    %2778 = vmatpush1.msra.mxu0 0.0
    %2779 = vmatprep.subr.mxu0 0.0
    %2780 = vmatpush1.msra.mxu0 0.0
    %2781 = vmatprep.mubr.f32.mxu0 0.0
    %2782 = vmatmul.mubr.f32.gmra.mrb[0].mxu0 %v2172
    %v2783 = vpop.f32.mrb[0].mxu0
    %v2784 = vadd.f32 %v2153, %v2783
    %v2785 = vpop.f32.mrb[0].mxu0
    %v2786 = vadd.f32 %v2153, %v2785
    %2787 = vmatprep.mubr.f32.mxu0 0.0
    %2788 = vmatmul.mubr.f32.gmra.mrb[0].mxu0 %v2175
    %v2789 = vpop.f32.mrb[0].mxu0
    %v2790 = vadd.f32 %v2158, %v2789
    %v2791 = vpop.f32.mrb[0].mxu0
    %v2792 = vadd.f32 %v2158, %v2791
    %2793 = vmatprep.mubr.f32.mxu0 0.0
    %2794 = vmatmul.mubr.f32.gmra.mrb[0].mxu0 %v2178
    %v2795 = vpop.f32.mrb[0].mxu0
    %v2796 = vadd.f32 %v2163, %v2795
    %v2797 = vpop.f32.mrb[0].mxu0
    %v2798 = vadd.f32 %v2163, %v2797
    %2799 = vmatprep.mubr.f32.mxu0 0.0
    %2800 = vmatmul.mubr.f32.gmra.mrb[0].mxu0 %v2181
    %v2801 = vpop.f32.mrb[0].mxu0
    %v2802 = vadd.f32 %v2168, %v2801
    %v2803 = vpop.f32.mrb[0].mxu0
    %v2804 = vadd.f32 %v2168, %v2803
    %2805 = vdwg.mxu0
    %2806 = vmatprep.subr.mxu0 %v2063
    %2807 = vmatpush1.msra.mxu0 %v2062
    %2808 = vmatprep.subr.mxu0 %v2110
    %2809 = vmatpush1.msra.mxu0 %v2109
    %2810 = vmatprep.subr.mxu0 %v2064
    %2811 = vmatpush1.msra.mxu0 %v2063
    %2812 = vmatprep.subr.mxu0 %v2111
    %2813 = vmatpush1.msra.mxu0 %v2110
    %2814 = vmatprep.subr.mxu0 %v2065
    %2815 = vmatpush1.msra.mxu0 %v2064
    %2816 = vmatprep.subr.mxu0 %v2112
    %2817 = vmatpush1.msra.mxu0 %v2111
    %2818 = vmatprep.subr.mxu0 0.0
    %2819 = vmatpush1.msra.mxu0 0.0
    %2820 = vmatprep.subr.mxu0 0.0
    %2821 = vmatpush1.msra.mxu0 0.0
    %2822 = vmatprep.subr.mxu0 0.0
    %2823 = vmatpush1.msra.mxu0 0.0
    %2824 = vmatprep.subr.mxu0 0.0
    %2825 = vmatpush1.msra.mxu0 0.0
    %2826 = vmatprep.subr.mxu0 0.0
    %2827 = vmatpush1.msra.mxu0 0.0
    %2828 = vmatprep.subr.mxu0 0.0
    %2829 = vmatpush1.msra.mxu0 0.0
    %2830 = vmatprep.subr.mxu0 0.0
    %2831 = vmatpush1.msra.mxu0 0.0
    %2832 = vmatprep.subr.mxu0 0.0
    %2833 = vmatpush1.msra.mxu0 0.0
    %2834 = vmatprep.subr.mxu0 0.0
    %2835 = vmatpush1.msra.mxu0 0.0
    %2836 = vmatprep.subr.mxu0 0.0
    %2837 = vmatpush1.msra.mxu0 0.0
    %2838 = vmatprep.subr.mxu0 0.0
    %2839 = vmatpush1.msra.mxu0 0.0
    %2840 = vmatprep.subr.mxu0 0.0
    %2841 = vmatpush1.msra.mxu0 0.0
    %2842 = vmatprep.subr.mxu0 0.0
    %2843 = vmatpush1.msra.mxu0 0.0
    %2844 = vmatprep.subr.mxu0 0.0
    %2845 = vmatpush1.msra.mxu0 0.0
    %2846 = vmatprep.subr.mxu0 0.0
    %2847 = vmatpush1.msra.mxu0 0.0
    %2848 = vmatprep.subr.mxu0 0.0
    %2849 = vmatpush1.msra.mxu0 0.0
    %2850 = vmatprep.subr.mxu0 0.0
    %2851 = vmatpush1.msra.mxu0 0.0
    %2852 = vmatprep.subr.mxu0 0.0
    %2853 = vmatpush1.msra.mxu0 0.0
    %2854 = vmatprep.subr.mxu0 0.0
    %2855 = vmatpush1.msra.mxu0 0.0
    %2856 = vmatprep.subr.mxu0 0.0
    %2857 = vmatpush1.msra.mxu0 0.0
    %2858 = vmatprep.subr.mxu0 0.0
    %2859 = vmatpush1.msra.mxu0 0.0
    %2860 = vmatprep.subr.mxu0 0.0
    %2861 = vmatpush1.msra.mxu0 0.0
    %2862 = vmatprep.subr.mxu0 0.0
    %2863 = vmatpush1.msra.mxu0 0.0
    %2864 = vmatprep.subr.mxu0 0.0
    %2865 = vmatpush1.msra.mxu0 0.0
    %2866 = vmatprep.subr.mxu0 0.0
    %2867 = vmatpush1.msra.mxu0 0.0
    %2868 = vmatprep.subr.mxu0 0.0
    %2869 = vmatpush1.msra.mxu0 0.0
    %2870 = vmatprep.mubr.f32.mxu0 0.0
    %2871 = vmatmul.mubr.f32.gmra.mrb[0].mxu0 %v2172
    %v2872 = vpop.f32.mrb[0].mxu0
    %v2873 = vadd.f32 %v2153, %v2872
    %v2874 = vpop.f32.mrb[0].mxu0
    %v2875 = vadd.f32 %v2153, %v2874
    %2876 = vmatprep.mubr.f32.mxu0 0.0
    %2877 = vmatmul.mubr.f32.gmra.mrb[0].mxu0 %v2175
    %v2878 = vpop.f32.mrb[0].mxu0
    %v2879 = vadd.f32 %v2158, %v2878
    %v2880 = vpop.f32.mrb[0].mxu0
    %v2881 = vadd.f32 %v2158, %v2880
    %2882 = vmatprep.mubr.f32.mxu0 0.0
    %2883 = vmatmul.mubr.f32.gmra.mrb[0].mxu0 %v2178
    %v2884 = vpop.f32.mrb[0].mxu0
    %v2885 = vadd.f32 %v2163, %v2884
    %v2886 = vpop.f32.mrb[0].mxu0
    %v2887 = vadd.f32 %v2163, %v2886
    %2888 = vmatprep.mubr.f32.mxu0 0.0
    %2889 = vmatmul.mubr.f32.gmra.mrb[0].mxu0 %v2181
    %v2890 = vpop.f32.mrb[0].mxu0
    %v2891 = vadd.f32 %v2168, %v2890
    %v2892 = vpop.f32.mrb[0].mxu0
    %v2893 = vadd.f32 %v2168, %v2892
    %2894 = vdwg.mxu0
    %2895 = vmatprep.subr.mxu0 %v2065
    %2896 = vmatpush1.msra.mxu0 %v2064
    %2897 = vmatprep.subr.mxu0 %v2112
    %2898 = vmatpush1.msra.mxu0 %v2111
    %2899 = vmatprep.subr.mxu0 %v2066
    %2900 = vmatpush1.msra.mxu0 %v2065
    %2901 = vmatprep.subr.mxu0 %v2113
    %2902 = vmatpush1.msra.mxu0 %v2112
    %2903 = vmatprep.subr.mxu0 %v2067
    %2904 = vmatpush1.msra.mxu0 %v2066
    %2905 = vmatprep.subr.mxu0 %v2114
    %2906 = vmatpush1.msra.mxu0 %v2113
    %2907 = vmatprep.subr.mxu0 0.0
    %2908 = vmatpush1.msra.mxu0 0.0
    %2909 = vmatprep.subr.mxu0 0.0
    %2910 = vmatpush1.msra.mxu0 0.0
    %2911 = vmatprep.subr.mxu0 0.0
    %2912 = vmatpush1.msra.mxu0 0.0
    %2913 = vmatprep.subr.mxu0 0.0
    %2914 = vmatpush1.msra.mxu0 0.0
    %2915 = vmatprep.subr.mxu0 0.0
    %2916 = vmatpush1.msra.mxu0 0.0
    %2917 = vmatprep.subr.mxu0 0.0
    %2918 = vmatpush1.msra.mxu0 0.0
    %2919 = vmatprep.subr.mxu0 0.0
    %2920 = vmatpush1.msra.mxu0 0.0
    %2921 = vmatprep.subr.mxu0 0.0
    %2922 = vmatpush1.msra.mxu0 0.0
    %2923 = vmatprep.subr.mxu0 0.0
    %2924 = vmatpush1.msra.mxu0 0.0
    %2925 = vmatprep.subr.mxu0 0.0
    %2926 = vmatpush1.msra.mxu0 0.0
    %2927 = vmatprep.subr.mxu0 0.0
    %2928 = vmatpush1.msra.mxu0 0.0
    %2929 = vmatprep.subr.mxu0 0.0
    %2930 = vmatpush1.msra.mxu0 0.0
    %2931 = vmatprep.subr.mxu0 0.0
    %2932 = vmatpush1.msra.mxu0 0.0
    %2933 = vmatprep.subr.mxu0 0.0
    %2934 = vmatpush1.msra.mxu0 0.0
    %2935 = vmatprep.subr.mxu0 0.0
    %2936 = vmatpush1.msra.mxu0 0.0
    %2937 = vmatprep.subr.mxu0 0.0
    %2938 = vmatpush1.msra.mxu0 0.0
    %2939 = vmatprep.subr.mxu0 0.0
    %2940 = vmatpush1.msra.mxu0 0.0
    %2941 = vmatprep.subr.mxu0 0.0
    %2942 = vmatpush1.msra.mxu0 0.0
    %2943 = vmatprep.subr.mxu0 0.0
    %2944 = vmatpush1.msra.mxu0 0.0
    %2945 = vmatprep.subr.mxu0 0.0
    %2946 = vmatpush1.msra.mxu0 0.0
    %2947 = vmatprep.subr.mxu0 0.0
    %2948 = vmatpush1.msra.mxu0 0.0
    %2949 = vmatprep.subr.mxu0 0.0
    %2950 = vmatpush1.msra.mxu0 0.0
    %2951 = vmatprep.subr.mxu0 0.0
    %2952 = vmatpush1.msra.mxu0 0.0
    %2953 = vmatprep.subr.mxu0 0.0
    %2954 = vmatpush1.msra.mxu0 0.0
    %2955 = vmatprep.subr.mxu0 0.0
    %2956 = vmatpush1.msra.mxu0 0.0
    %2957 = vmatprep.subr.mxu0 0.0
    %2958 = vmatpush1.msra.mxu0 0.0
    %2959 = vmatprep.mubr.f32.mxu0 0.0
    %2960 = vmatmul.mubr.f32.gmra.mrb[0].mxu0 %v2172
    %v2961 = vpop.f32.mrb[0].mxu0
    %v2962 = vadd.f32 %v2153, %v2961
    %v2963 = vpop.f32.mrb[0].mxu0
    %v2964 = vadd.f32 %v2153, %v2963
    %2965 = vmatprep.mubr.f32.mxu0 0.0
    %2966 = vmatmul.mubr.f32.gmra.mrb[0].mxu0 %v2175
    %v2967 = vpop.f32.mrb[0].mxu0
    %v2968 = vadd.f32 %v2158, %v2967
    %v2969 = vpop.f32.mrb[0].mxu0
    %v2970 = vadd.f32 %v2158, %v2969
    %2971 = vmatprep.mubr.f32.mxu0 0.0
    %2972 = vmatmul.mubr.f32.gmra.mrb[0].mxu0 %v2178
    %v2973 = vpop.f32.mrb[0].mxu0
    %v2974 = vadd.f32 %v2163, %v2973
    %v2975 = vpop.f32.mrb[0].mxu0
    %v2976 = vadd.f32 %v2163, %v2975
    %2977 = vmatprep.mubr.f32.mxu0 0.0
    %2978 = vmatmul.mubr.f32.gmra.mrb[0].mxu0 %v2181
    %v2979 = vpop.f32.mrb[0].mxu0
    %v2980 = vadd.f32 %v2168, %v2979
    %v2981 = vpop.f32.mrb[0].mxu0
    %v2982 = vadd.f32 %v2168, %v2981
    %2983 = vdwg.mxu0
    %2984 = vmatprep.subr.mxu0 %v2067
    %2985 = vmatpush1.msra.mxu0 %v2066
    %2986 = vmatprep.subr.mxu0 %v2114
    %2987 = vmatpush1.msra.mxu0 %v2113
    %2988 = vmatprep.subr.mxu0 %v2068
    %2989 = vmatpush1.msra.mxu0 %v2067
    %2990 = vmatprep.subr.mxu0 %v2115
    %2991 = vmatpush1.msra.mxu0 %v2114
    %2992 = vmatprep.subr.mxu0 %v2069
    %2993 = vmatpush1.msra.mxu0 %v2068
    %2994 = vmatprep.subr.mxu0 %v2116
    %2995 = vmatpush1.msra.mxu0 %v2115
    %2996 = vmatprep.subr.mxu0 0.0
    %2997 = vmatpush1.msra.mxu0 0.0
    %2998 = vmatprep.subr.mxu0 0.0
    %2999 = vmatpush1.msra.mxu0 0.0
    %3000 = vmatprep.subr.mxu0 0.0
    %3001 = vmatpush1.msra.mxu0 0.0
    %3002 = vmatprep.subr.mxu0 0.0
    %3003 = vmatpush1.msra.mxu0 0.0
    %3004 = vmatprep.subr.mxu0 0.0
    %3005 = vmatpush1.msra.mxu0 0.0
    %3006 = vmatprep.subr.mxu0 0.0
    %3007 = vmatpush1.msra.mxu0 0.0
    %3008 = vmatprep.subr.mxu0 0.0
    %3009 = vmatpush1.msra.mxu0 0.0
    %3010 = vmatprep.subr.mxu0 0.0
    %3011 = vmatpush1.msra.mxu0 0.0
    %3012 = vmatprep.subr.mxu0 0.0
    %3013 = vmatpush1.msra.mxu0 0.0
    %3014 = vmatprep.subr.mxu0 0.0
    %3015 = vmatpush1.msra.mxu0 0.0
    %3016 = vmatprep.subr.mxu0 0.0
    %3017 = vmatpush1.msra.mxu0 0.0
    %3018 = vmatprep.subr.mxu0 0.0
    %3019 = vmatpush1.msra.mxu0 0.0
    %3020 = vmatprep.subr.mxu0 0.0
    %3021 = vmatpush1.msra.mxu0 0.0
    %3022 = vmatprep.subr.mxu0 0.0
    %3023 = vmatpush1.msra.mxu0 0.0
    %3024 = vmatprep.subr.mxu0 0.0
    %3025 = vmatpush1.msra.mxu0 0.0
    %3026 = vmatprep.subr.mxu0 0.0
    %3027 = vmatpush1.msra.mxu0 0.0
    %3028 = vmatprep.subr.mxu0 0.0
    %3029 = vmatpush1.msra.mxu0 0.0
    %3030 = vmatprep.subr.mxu0 0.0
    %3031 = vmatpush1.msra.mxu0 0.0
    %3032 = vmatprep.subr.mxu0 0.0
    %3033 = vmatpush1.msra.mxu0 0.0
    %3034 = vmatprep.subr.mxu0 0.0
    %3035 = vmatpush1.msra.mxu0 0.0
    %3036 = vmatprep.subr.mxu0 0.0
    %3037 = vmatpush1.msra.mxu0 0.0
    %3038 = vmatprep.subr.mxu0 0.0
    %3039 = vmatpush1.msra.mxu0 0.0
    %3040 = vmatprep.subr.mxu0 0.0
    %3041 = vmatpush1.msra.mxu0 0.0
    %3042 = vmatprep.subr.mxu0 0.0
    %3043 = vmatpush1.msra.mxu0 0.0
    %3044 = vmatprep.subr.mxu0 0.0
    %3045 = vmatpush1.msra.mxu0 0.0
    %3046 = vmatprep.subr.mxu0 0.0
    %3047 = vmatpush1.msra.mxu0 0.0
    %3048 = vmatprep.mubr.f32.mxu0 0.0
    %3049 = vmatmul.mubr.f32.gmra.mrb[0].mxu0 %v2172
    %v3050 = vpop.f32.mrb[0].mxu0
    %v3051 = vadd.f32 %v2153, %v3050
    %v3052 = vpop.f32.mrb[0].mxu0
    %v3053 = vadd.f32 %v2153, %v3052
    %3054 = vmatprep.mubr.f32.mxu0 0.0
    %3055 = vmatmul.mubr.f32.gmra.mrb[0].mxu0 %v2175
    %v3056 = vpop.f32.mrb[0].mxu0
    %v3057 = vadd.f32 %v2158, %v3056
    %v3058 = vpop.f32.mrb[0].mxu0
    %v3059 = vadd.f32 %v2158, %v3058
    %3060 = vmatprep.mubr.f32.mxu0 0.0
    %3061 = vmatmul.mubr.f32.gmra.mrb[0].mxu0 %v2178
    %v3062 = vpop.f32.mrb[0].mxu0
    %v3063 = vadd.f32 %v2163, %v3062
    %v3064 = vpop.f32.mrb[0].mxu0
    %v3065 = vadd.f32 %v2163, %v3064
    %3066 = vmatprep.mubr.f32.mxu0 0.0
    %3067 = vmatmul.mubr.f32.gmra.mrb[0].mxu0 %v2181
    %v3068 = vpop.f32.mrb[0].mxu0
    %v3069 = vadd.f32 %v2168, %v3068
    %v3070 = vpop.f32.mrb[0].mxu0
    %v3071 = vadd.f32 %v2168, %v3070
    %3072 = vdwg.mxu0
    %3073 = vmatprep.subr.mxu0 %v2069
    %3074 = vmatpush1.msra.mxu0 %v2068
    %3075 = vmatprep.subr.mxu0 %v2116
    %3076 = vmatpush1.msra.mxu0 %v2115
    %3077 = vmatprep.subr.mxu0 %v2070
    %3078 = vmatpush1.msra.mxu0 %v2069
    %3079 = vmatprep.subr.mxu0 %v2117
    %3080 = vmatpush1.msra.mxu0 %v2116
    %3081 = vmatprep.subr.mxu0 %v2071
    %3082 = vmatpush1.msra.mxu0 %v2070
    %3083 = vmatprep.subr.mxu0 %v2118
    %3084 = vmatpush1.msra.mxu0 %v2117
    %3085 = vmatprep.subr.mxu0 0.0
    %3086 = vmatpush1.msra.mxu0 0.0
    %3087 = vmatprep.subr.mxu0 0.0
    %3088 = vmatpush1.msra.mxu0 0.0
    %3089 = vmatprep.subr.mxu0 0.0
    %3090 = vmatpush1.msra.mxu0 0.0
    %3091 = vmatprep.subr.mxu0 0.0
    %3092 = vmatpush1.msra.mxu0 0.0
    %3093 = vmatprep.subr.mxu0 0.0
    %3094 = vmatpush1.msra.mxu0 0.0
    %3095 = vmatprep.subr.mxu0 0.0
    %3096 = vmatpush1.msra.mxu0 0.0
    %3097 = vmatprep.subr.mxu0 0.0
    %3098 = vmatpush1.msra.mxu0 0.0
    %3099 = vmatprep.subr.mxu0 0.0
    %3100 = vmatpush1.msra.mxu0 0.0
    %3101 = vmatprep.subr.mxu0 0.0
    %3102 = vmatpush1.msra.mxu0 0.0
    %3103 = vmatprep.subr.mxu0 0.0
    %3104 = vmatpush1.msra.mxu0 0.0
    %3105 = vmatprep.subr.mxu0 0.0
    %3106 = vmatpush1.msra.mxu0 0.0
    %3107 = vmatprep.subr.mxu0 0.0
    %3108 = vmatpush1.msra.mxu0 0.0
    %3109 = vmatprep.subr.mxu0 0.0
    %3110 = vmatpush1.msra.mxu0 0.0
    %3111 = vmatprep.subr.mxu0 0.0
    %3112 = vmatpush1.msra.mxu0 0.0
    %3113 = vmatprep.subr.mxu0 0.0
    %3114 = vmatpush1.msra.mxu0 0.0
    %3115 = vmatprep.subr.mxu0 0.0
    %3116 = vmatpush1.msra.mxu0 0.0
    %3117 = vmatprep.subr.mxu0 0.0
    %3118 = vmatpush1.msra.mxu0 0.0
    %3119 = vmatprep.subr.mxu0 0.0
    %3120 = vmatpush1.msra.mxu0 0.0
    %3121 = vmatprep.subr.mxu0 0.0
    %3122 = vmatpush1.msra.mxu0 0.0
    %3123 = vmatprep.subr.mxu0 0.0
    %3124 = vmatpush1.msra.mxu0 0.0
    %3125 = vmatprep.subr.mxu0 0.0
    %3126 = vmatpush1.msra.mxu0 0.0
    %3127 = vmatprep.subr.mxu0 0.0
    %3128 = vmatpush1.msra.mxu0 0.0
    %3129 = vmatprep.subr.mxu0 0.0
    %3130 = vmatpush1.msra.mxu0 0.0
    %3131 = vmatprep.subr.mxu0 0.0
    %3132 = vmatpush1.msra.mxu0 0.0
    %3133 = vmatprep.subr.mxu0 0.0
    %3134 = vmatpush1.msra.mxu0 0.0
    %3135 = vmatprep.subr.mxu0 0.0
    %3136 = vmatpush1.msra.mxu0 0.0
    %3137 = vmatprep.mubr.f32.mxu0 0.0
    %3138 = vmatmul.mubr.f32.gmra.mrb[0].mxu0 %v2172
    %v3139 = vpop.f32.mrb[0].mxu0
    %v3140 = vadd.f32 %v2153, %v3139
    %v3141 = vpop.f32.mrb[0].mxu0
    %v3142 = vadd.f32 %v2153, %v3141
    %3143 = vmatprep.mubr.f32.mxu0 0.0
    %3144 = vmatmul.mubr.f32.gmra.mrb[0].mxu0 %v2175
    %v3145 = vpop.f32.mrb[0].mxu0
    %v3146 = vadd.f32 %v2158, %v3145
    %v3147 = vpop.f32.mrb[0].mxu0
    %v3148 = vadd.f32 %v2158, %v3147
    %3149 = vmatprep.mubr.f32.mxu0 0.0
    %3150 = vmatmul.mubr.f32.gmra.mrb[0].mxu0 %v2178
    %v3151 = vpop.f32.mrb[0].mxu0
    %v3152 = vadd.f32 %v2163, %v3151
    %v3153 = vpop.f32.mrb[0].mxu0
    %v3154 = vadd.f32 %v2163, %v3153
    %3155 = vmatprep.mubr.f32.mxu0 0.0
    %3156 = vmatmul.mubr.f32.gmra.mrb[0].mxu0 %v2181
    %v3157 = vpop.f32.mrb[0].mxu0
    %v3158 = vadd.f32 %v2168, %v3157
    %v3159 = vpop.f32.mrb[0].mxu0
    %v3160 = vadd.f32 %v2168, %v3159
    %3161 = vdwg.mxu0
    %3162 = vmatprep.subr.mxu0 %v2071
    %3163 = vmatpush1.msra.mxu0 %v2070
    %3164 = vmatprep.subr.mxu0 %v2118
    %3165 = vmatpush1.msra.mxu0 %v2117
    %3166 = vmatprep.subr.mxu0 %v2072
    %3167 = vmatpush1.msra.mxu0 %v2071
    %3168 = vmatprep.subr.mxu0 %v2119
    %3169 = vmatpush1.msra.mxu0 %v2118
    %3170 = vmatprep.subr.mxu0 %v2073
    %3171 = vmatpush1.msra.mxu0 %v2072
    %3172 = vmatprep.subr.mxu0 %v2120
    %3173 = vmatpush1.msra.mxu0 %v2119
    %3174 = vmatprep.subr.mxu0 0.0
    %3175 = vmatpush1.msra.mxu0 0.0
    %3176 = vmatprep.subr.mxu0 0.0
    %3177 = vmatpush1.msra.mxu0 0.0
    %3178 = vmatprep.subr.mxu0 0.0
    %3179 = vmatpush1.msra.mxu0 0.0
    %3180 = vmatprep.subr.mxu0 0.0
    %3181 = vmatpush1.msra.mxu0 0.0
    %3182 = vmatprep.subr.mxu0 0.0
    %3183 = vmatpush1.msra.mxu0 0.0
    %3184 = vmatprep.subr.mxu0 0.0
    %3185 = vmatpush1.msra.mxu0 0.0
    %3186 = vmatprep.subr.mxu0 0.0
    %3187 = vmatpush1.msra.mxu0 0.0
    %3188 = vmatprep.subr.mxu0 0.0
    %3189 = vmatpush1.msra.mxu0 0.0
    %3190 = vmatprep.subr.mxu0 0.0
    %3191 = vmatpush1.msra.mxu0 0.0
    %3192 = vmatprep.subr.mxu0 0.0
    %3193 = vmatpush1.msra.mxu0 0.0
    %3194 = vmatprep.subr.mxu0 0.0
    %3195 = vmatpush1.msra.mxu0 0.0
    %3196 = vmatprep.subr.mxu0 0.0
    %3197 = vmatpush1.msra.mxu0 0.0
    %3198 = vmatprep.subr.mxu0 0.0
    %3199 = vmatpush1.msra.mxu0 0.0
    %3200 = vmatprep.subr.mxu0 0.0
    %3201 = vmatpush1.msra.mxu0 0.0
    %3202 = vmatprep.subr.mxu0 0.0
    %3203 = vmatpush1.msra.mxu0 0.0
    %3204 = vmatprep.subr.mxu0 0.0
    %3205 = vmatpush1.msra.mxu0 0.0
    %3206 = vmatprep.subr.mxu0 0.0
    %3207 = vmatpush1.msra.mxu0 0.0
    %3208 = vmatprep.subr.mxu0 0.0
    %3209 = vmatpush1.msra.mxu0 0.0
    %3210 = vmatprep.subr.mxu0 0.0
    %3211 = vmatpush1.msra.mxu0 0.0
    %3212 = vmatprep.subr.mxu0 0.0
    %3213 = vmatpush1.msra.mxu0 0.0
    %3214 = vmatprep.subr.mxu0 0.0
    %3215 = vmatpush1.msra.mxu0 0.0
    %3216 = vmatprep.subr.mxu0 0.0
    %3217 = vmatpush1.msra.mxu0 0.0
    %3218 = vmatprep.subr.mxu0 0.0
    %3219 = vmatpush1.msra.mxu0 0.0
    %3220 = vmatprep.subr.mxu0 0.0
    %3221 = vmatpush1.msra.mxu0 0.0
    %3222 = vmatprep.subr.mxu0 0.0
    %3223 = vmatpush1.msra.mxu0 0.0
    %3224 = vmatprep.subr.mxu0 0.0
    %3225 = vmatpush1.msra.mxu0 0.0
    %3226 = vmatprep.mubr.f32.mxu0 0.0
    %3227 = vmatmul.mubr.f32.gmra.mrb[0].mxu0 %v2172
    %v3228 = vpop.f32.mrb[0].mxu0
    %v3229 = vadd.f32 %v2153, %v3228
    %v3230 = vpop.f32.mrb[0].mxu0
    %v3231 = vadd.f32 %v2153, %v3230
    %3232 = vmatprep.mubr.f32.mxu0 0.0
    %3233 = vmatmul.mubr.f32.gmra.mrb[0].mxu0 %v2175
    %v3234 = vpop.f32.mrb[0].mxu0
    %v3235 = vadd.f32 %v2158, %v3234
    %v3236 = vpop.f32.mrb[0].mxu0
    %v3237 = vadd.f32 %v2158, %v3236
    %3238 = vmatprep.mubr.f32.mxu0 0.0
    %3239 = vmatmul.mubr.f32.gmra.mrb[0].mxu0 %v2178
    %v3240 = vpop.f32.mrb[0].mxu0
    %v3241 = vadd.f32 %v2163, %v3240
    %v3242 = vpop.f32.mrb[0].mxu0
    %v3243 = vadd.f32 %v2163, %v3242
    %3244 = vmatprep.mubr.f32.mxu0 0.0
    %3245 = vmatmul.mubr.f32.gmra.mrb[0].mxu0 %v2181
    %v3246 = vpop.f32.mrb[0].mxu0
    %v3247 = vadd.f32 %v2168, %v3246
    %v3248 = vpop.f32.mrb[0].mxu0
    %v3249 = vadd.f32 %v2168, %v3248
    %3250 = vdwg.mxu0
    %3251 = vmatprep.subr.mxu0 %v2073
    %3252 = vmatpush1.msra.mxu0 %v2072
    %3253 = vmatprep.subr.mxu0 %v2120
    %3254 = vmatpush1.msra.mxu0 %v2119
    %3255 = vmatprep.subr.mxu0 %v2074
    %3256 = vmatpush1.msra.mxu0 %v2073
    %3257 = vmatprep.subr.mxu0 %v2121
    %3258 = vmatpush1.msra.mxu0 %v2120
    %3259 = vmatprep.subr.mxu0 %v2075
    %3260 = vmatpush1.msra.mxu0 %v2074
    %3261 = vmatprep.subr.mxu0 %v2122
    %3262 = vmatpush1.msra.mxu0 %v2121
    %3263 = vmatprep.subr.mxu0 0.0
    %3264 = vmatpush1.msra.mxu0 0.0
    %3265 = vmatprep.subr.mxu0 0.0
    %3266 = vmatpush1.msra.mxu0 0.0
    %3267 = vmatprep.subr.mxu0 0.0
    %3268 = vmatpush1.msra.mxu0 0.0
    %3269 = vmatprep.subr.mxu0 0.0
    %3270 = vmatpush1.msra.mxu0 0.0
    %3271 = vmatprep.subr.mxu0 0.0
    %3272 = vmatpush1.msra.mxu0 0.0
    %3273 = vmatprep.subr.mxu0 0.0
    %3274 = vmatpush1.msra.mxu0 0.0
    %3275 = vmatprep.subr.mxu0 0.0
    %3276 = vmatpush1.msra.mxu0 0.0
    %3277 = vmatprep.subr.mxu0 0.0
    %3278 = vmatpush1.msra.mxu0 0.0
    %3279 = vmatprep.subr.mxu0 0.0
    %3280 = vmatpush1.msra.mxu0 0.0
    %3281 = vmatprep.subr.mxu0 0.0
    %3282 = vmatpush1.msra.mxu0 0.0
    %3283 = vmatprep.subr.mxu0 0.0
    %3284 = vmatpush1.msra.mxu0 0.0
    %3285 = vmatprep.subr.mxu0 0.0
    %3286 = vmatpush1.msra.mxu0 0.0
    %3287 = vmatprep.subr.mxu0 0.0
    %3288 = vmatpush1.msra.mxu0 0.0
    %3289 = vmatprep.subr.mxu0 0.0
    %3290 = vmatpush1.msra.mxu0 0.0
    %3291 = vmatprep.subr.mxu0 0.0
    %3292 = vmatpush1.msra.mxu0 0.0
    %3293 = vmatprep.subr.mxu0 0.0
    %3294 = vmatpush1.msra.mxu0 0.0
    %3295 = vmatprep.subr.mxu0 0.0
    %3296 = vmatpush1.msra.mxu0 0.0
    %3297 = vmatprep.subr.mxu0 0.0
    %3298 = vmatpush1.msra.mxu0 0.0
    %3299 = vmatprep.subr.mxu0 0.0
    %3300 = vmatpush1.msra.mxu0 0.0
    %3301 = vmatprep.subr.mxu0 0.0
    %3302 = vmatpush1.msra.mxu0 0.0
    %3303 = vmatprep.subr.mxu0 0.0
    %3304 = vmatpush1.msra.mxu0 0.0
    %3305 = vmatprep.subr.mxu0 0.0
    %3306 = vmatpush1.msra.mxu0 0.0
    %3307 = vmatprep.subr.mxu0 0.0
    %3308 = vmatpush1.msra.mxu0 0.0
    %3309 = vmatprep.subr.mxu0 0.0
    %3310 = vmatpush1.msra.mxu0 0.0
    %3311 = vmatprep.subr.mxu0 0.0
    %3312 = vmatpush1.msra.mxu0 0.0
    %3313 = vmatprep.subr.mxu0 0.0
    %3314 = vmatpush1.msra.mxu0 0.0
    %3315 = vmatprep.mubr.f32.mxu0 0.0
    %3316 = vmatmul.mubr.f32.gmra.mrb[0].mxu0 %v2172
    %v3317 = vpop.f32.mrb[0].mxu0
    %v3318 = vadd.f32 %v2153, %v3317
    %v3319 = vpop.f32.mrb[0].mxu0
    %v3320 = vadd.f32 %v2153, %v3319
    %3321 = vmatprep.mubr.f32.mxu0 0.0
    %3322 = vmatmul.mubr.f32.gmra.mrb[0].mxu0 %v2175
    %v3323 = vpop.f32.mrb[0].mxu0
    %v3324 = vadd.f32 %v2158, %v3323
    %v3325 = vpop.f32.mrb[0].mxu0
    %v3326 = vadd.f32 %v2158, %v3325
    %3327 = vmatprep.mubr.f32.mxu0 0.0
    %3328 = vmatmul.mubr.f32.gmra.mrb[0].mxu0 %v2178
    %v3329 = vpop.f32.mrb[0].mxu0
    %v3330 = vadd.f32 %v2163, %v3329
    %v3331 = vpop.f32.mrb[0].mxu0
    %v3332 = vadd.f32 %v2163, %v3331
    %3333 = vmatprep.mubr.f32.mxu0 0.0
    %3334 = vmatmul.mubr.f32.gmra.mrb[0].mxu0 %v2181
    %v3335 = vpop.f32.mrb[0].mxu0
    %v3336 = vadd.f32 %v2168, %v3335
    %v3337 = vpop.f32.mrb[0].mxu0
    %v3338 = vadd.f32 %v2168, %v3337
    %3339 = vdwg.mxu0
    %3340 = vmatprep.subr.mxu0 %v2075
    %3341 = vmatpush1.msra.mxu0 %v2074
    %3342 = vmatprep.subr.mxu0 %v2122
    %3343 = vmatpush1.msra.mxu0 %v2121
    %3344 = vmatprep.subr.mxu0 %v2076
    %3345 = vmatpush1.msra.mxu0 %v2075
    %3346 = vmatprep.subr.mxu0 %v2123
    %3347 = vmatpush1.msra.mxu0 %v2122
    %3348 = vmatprep.subr.mxu0 %v2077
    %3349 = vmatpush1.msra.mxu0 %v2076
    %3350 = vmatprep.subr.mxu0 %v2124
    %3351 = vmatpush1.msra.mxu0 %v2123
    %3352 = vmatprep.subr.mxu0 0.0
    %3353 = vmatpush1.msra.mxu0 0.0
    %3354 = vmatprep.subr.mxu0 0.0
    %3355 = vmatpush1.msra.mxu0 0.0
    %3356 = vmatprep.subr.mxu0 0.0
    %3357 = vmatpush1.msra.mxu0 0.0
    %3358 = vmatprep.subr.mxu0 0.0
    %3359 = vmatpush1.msra.mxu0 0.0
    %3360 = vmatprep.subr.mxu0 0.0
    %3361 = vmatpush1.msra.mxu0 0.0
    %3362 = vmatprep.subr.mxu0 0.0
    %3363 = vmatpush1.msra.mxu0 0.0
    %3364 = vmatprep.subr.mxu0 0.0
    %3365 = vmatpush1.msra.mxu0 0.0
    %3366 = vmatprep.subr.mxu0 0.0
    %3367 = vmatpush1.msra.mxu0 0.0
    %3368 = vmatprep.subr.mxu0 0.0
    %3369 = vmatpush1.msra.mxu0 0.0
    %3370 = vmatprep.subr.mxu0 0.0
    %3371 = vmatpush1.msra.mxu0 0.0
    %3372 = vmatprep.subr.mxu0 0.0
    %3373 = vmatpush1.msra.mxu0 0.0
    %3374 = vmatprep.subr.mxu0 0.0
    %3375 = vmatpush1.msra.mxu0 0.0
    %3376 = vmatprep.subr.mxu0 0.0
    %3377 = vmatpush1.msra.mxu0 0.0
    %3378 = vmatprep.subr.mxu0 0.0
    %3379 = vmatpush1.msra.mxu0 0.0
    %3380 = vmatprep.subr.mxu0 0.0
    %3381 = vmatpush1.msra.mxu0 0.0
    %3382 = vmatprep.subr.mxu0 0.0
    %3383 = vmatpush1.msra.mxu0 0.0
    %3384 = vmatprep.subr.mxu0 0.0
    %3385 = vmatpush1.msra.mxu0 0.0
    %3386 = vmatprep.subr.mxu0 0.0
    %3387 = vmatpush1.msra.mxu0 0.0
    %3388 = vmatprep.subr.mxu0 0.0
    %3389 = vmatpush1.msra.mxu0 0.0
    %3390 = vmatprep.subr.mxu0 0.0
    %3391 = vmatpush1.msra.mxu0 0.0
    %3392 = vmatprep.subr.mxu0 0.0
    %3393 = vmatpush1.msra.mxu0 0.0
    %3394 = vmatprep.subr.mxu0 0.0
    %3395 = vmatpush1.msra.mxu0 0.0
    %3396 = vmatprep.subr.mxu0 0.0
    %3397 = vmatpush1.msra.mxu0 0.0
    %3398 = vmatprep.subr.mxu0 0.0
    %3399 = vmatpush1.msra.mxu0 0.0
    %3400 = vmatprep.subr.mxu0 0.0
    %3401 = vmatpush1.msra.mxu0 0.0
    %3402 = vmatprep.subr.mxu0 0.0
    %3403 = vmatpush1.msra.mxu0 0.0
    %3404 = vmatprep.mubr.f32.mxu0 0.0
    %3405 = vmatmul.mubr.f32.gmra.mrb[0].mxu0 %v2172
    %v3406 = vpop.f32.mrb[0].mxu0
    %v3407 = vadd.f32 %v2153, %v3406
    %v3408 = vpop.f32.mrb[0].mxu0
    %v3409 = vadd.f32 %v2153, %v3408
    %3410 = vmatprep.mubr.f32.mxu0 0.0
    %3411 = vmatmul.mubr.f32.gmra.mrb[0].mxu0 %v2175
    %v3412 = vpop.f32.mrb[0].mxu0
    %v3413 = vadd.f32 %v2158, %v3412
    %v3414 = vpop.f32.mrb[0].mxu0
    %v3415 = vadd.f32 %v2158, %v3414
    %3416 = vmatprep.mubr.f32.mxu0 0.0
    %3417 = vmatmul.mubr.f32.gmra.mrb[0].mxu0 %v2178
    %v3418 = vpop.f32.mrb[0].mxu0
    %v3419 = vadd.f32 %v2163, %v3418
    %v3420 = vpop.f32.mrb[0].mxu0
    %v3421 = vadd.f32 %v2163, %v3420
    %3422 = vmatprep.mubr.f32.mxu0 0.0
    %3423 = vmatmul.mubr.f32.gmra.mrb[0].mxu0 %v2181
    %v3424 = vpop.f32.mrb[0].mxu0
    %v3425 = vadd.f32 %v2168, %v3424
    %v3426 = vpop.f32.mrb[0].mxu0
    %v3427 = vadd.f32 %v2168, %v3426
    %3428 = vdwg.mxu0
    %3429 = vmatprep.subr.mxu0 %v2077
    %3430 = vmatpush1.msra.mxu0 %v2076
    %3431 = vmatprep.subr.mxu0 %v2124
    %3432 = vmatpush1.msra.mxu0 %v2123
    %3433 = vmatprep.subr.mxu0 %v2078
    %3434 = vmatpush1.msra.mxu0 %v2077
    %3435 = vmatprep.subr.mxu0 %v2125
    %3436 = vmatpush1.msra.mxu0 %v2124
    %3437 = vmatprep.subr.mxu0 %v2079
    %3438 = vmatpush1.msra.mxu0 %v2078
    %3439 = vmatprep.subr.mxu0 %v2126
    %3440 = vmatpush1.msra.mxu0 %v2125
    %3441 = vmatprep.subr.mxu0 0.0
    %3442 = vmatpush1.msra.mxu0 0.0
    %3443 = vmatprep.subr.mxu0 0.0
    %3444 = vmatpush1.msra.mxu0 0.0
    %3445 = vmatprep.subr.mxu0 0.0
    %3446 = vmatpush1.msra.mxu0 0.0
    %3447 = vmatprep.subr.mxu0 0.0
    %3448 = vmatpush1.msra.mxu0 0.0
    %3449 = vmatprep.subr.mxu0 0.0
    %3450 = vmatpush1.msra.mxu0 0.0
    %3451 = vmatprep.subr.mxu0 0.0
    %3452 = vmatpush1.msra.mxu0 0.0
    %3453 = vmatprep.subr.mxu0 0.0
    %3454 = vmatpush1.msra.mxu0 0.0
    %3455 = vmatprep.subr.mxu0 0.0
    %3456 = vmatpush1.msra.mxu0 0.0
    %3457 = vmatprep.subr.mxu0 0.0
    %3458 = vmatpush1.msra.mxu0 0.0
    %3459 = vmatprep.subr.mxu0 0.0
    %3460 = vmatpush1.msra.mxu0 0.0
    %3461 = vmatprep.subr.mxu0 0.0
    %3462 = vmatpush1.msra.mxu0 0.0
    %3463 = vmatprep.subr.mxu0 0.0
    %3464 = vmatpush1.msra.mxu0 0.0
    %3465 = vmatprep.subr.mxu0 0.0
    %3466 = vmatpush1.msra.mxu0 0.0
    %3467 = vmatprep.subr.mxu0 0.0
    %3468 = vmatpush1.msra.mxu0 0.0
    %3469 = vmatprep.subr.mxu0 0.0
    %3470 = vmatpush1.msra.mxu0 0.0
    %3471 = vmatprep.subr.mxu0 0.0
    %3472 = vmatpush1.msra.mxu0 0.0
    %3473 = vmatprep.subr.mxu0 0.0
    %3474 = vmatpush1.msra.mxu0 0.0
    %3475 = vmatprep.subr.mxu0 0.0
    %3476 = vmatpush1.msra.mxu0 0.0
    %3477 = vmatprep.subr.mxu0 0.0
    %3478 = vmatpush1.msra.mxu0 0.0
    %3479 = vmatprep.subr.mxu0 0.0
    %3480 = vmatpush1.msra.mxu0 0.0
    %3481 = vmatprep.subr.mxu0 0.0
    %3482 = vmatpush1.msra.mxu0 0.0
    %3483 = vmatprep.subr.mxu0 0.0
    %3484 = vmatpush1.msra.mxu0 0.0
    %3485 = vmatprep.subr.mxu0 0.0
    %3486 = vmatpush1.msra.mxu0 0.0
    %3487 = vmatprep.subr.mxu0 0.0
    %3488 = vmatpush1.msra.mxu0 0.0
    %3489 = vmatprep.subr.mxu0 0.0
    %3490 = vmatpush1.msra.mxu0 0.0
    %3491 = vmatprep.subr.mxu0 0.0
    %3492 = vmatpush1.msra.mxu0 0.0
    %3493 = vmatprep.mubr.f32.mxu0 0.0
    %3494 = vmatmul.mubr.f32.gmra.mrb[0].mxu0 %v2172
    %v3495 = vpop.f32.mrb[0].mxu0
    %v3496 = vadd.f32 %v2153, %v3495
    %v3497 = vpop.f32.mrb[0].mxu0
    %v3498 = vadd.f32 %v2153, %v3497
    %3499 = vmatprep.mubr.f32.mxu0 0.0
    %3500 = vmatmul.mubr.f32.gmra.mrb[0].mxu0 %v2175
    %v3501 = vpop.f32.mrb[0].mxu0
    %v3502 = vadd.f32 %v2158, %v3501
    %v3503 = vpop.f32.mrb[0].mxu0
    %v3504 = vadd.f32 %v2158, %v3503
    %3505 = vmatprep.mubr.f32.mxu0 0.0
    %3506 = vmatmul.mubr.f32.gmra.mrb[0].mxu0 %v2178
    %v3507 = vpop.f32.mrb[0].mxu0
    %v3508 = vadd.f32 %v2163, %v3507
    %v3509 = vpop.f32.mrb[0].mxu0
    %v3510 = vadd.f32 %v2163, %v3509
    %3511 = vmatprep.mubr.f32.mxu0 0.0
    %3512 = vmatmul.mubr.f32.gmra.mrb[0].mxu0 %v2181
    %v3513 = vpop.f32.mrb[0].mxu0
    %v3514 = vadd.f32 %v2168, %v3513
    %v3515 = vpop.f32.mrb[0].mxu0
    %v3516 = vadd.f32 %v2168, %v3515
    %3517 = vdwg.mxu0
    %3518 = vmatprep.subr.mxu0 %v2079
    %3519 = vmatpush1.msra.mxu0 %v2078
    %3520 = vmatprep.subr.mxu0 %v2126
    %3521 = vmatpush1.msra.mxu0 %v2125
    %3522 = vmatprep.subr.mxu0 %v2080
    %3523 = vmatpush1.msra.mxu0 %v2079
    %3524 = vmatprep.subr.mxu0 %v2127
    %3525 = vmatpush1.msra.mxu0 %v2126
    %3526 = vmatprep.subr.mxu0 %v2081
    %3527 = vmatpush1.msra.mxu0 %v2080
    %3528 = vmatprep.subr.mxu0 %v2128
    %3529 = vmatpush1.msra.mxu0 %v2127
    %3530 = vmatprep.subr.mxu0 0.0
    %3531 = vmatpush1.msra.mxu0 0.0
    %3532 = vmatprep.subr.mxu0 0.0
    %3533 = vmatpush1.msra.mxu0 0.0
    %3534 = vmatprep.subr.mxu0 0.0
    %3535 = vmatpush1.msra.mxu0 0.0
    %3536 = vmatprep.subr.mxu0 0.0
    %3537 = vmatpush1.msra.mxu0 0.0
    %3538 = vmatprep.subr.mxu0 0.0
    %3539 = vmatpush1.msra.mxu0 0.0
    %3540 = vmatprep.subr.mxu0 0.0
    %3541 = vmatpush1.msra.mxu0 0.0
    %3542 = vmatprep.subr.mxu0 0.0
    %3543 = vmatpush1.msra.mxu0 0.0
    %3544 = vmatprep.subr.mxu0 0.0
    %3545 = vmatpush1.msra.mxu0 0.0
    %3546 = vmatprep.subr.mxu0 0.0
    %3547 = vmatpush1.msra.mxu0 0.0
    %3548 = vmatprep.subr.mxu0 0.0
    %3549 = vmatpush1.msra.mxu0 0.0
    %3550 = vmatprep.subr.mxu0 0.0
    %3551 = vmatpush1.msra.mxu0 0.0
    %3552 = vmatprep.subr.mxu0 0.0
    %3553 = vmatpush1.msra.mxu0 0.0
    %3554 = vmatprep.subr.mxu0 0.0
    %3555 = vmatpush1.msra.mxu0 0.0
    %3556 = vmatprep.subr.mxu0 0.0
    %3557 = vmatpush1.msra.mxu0 0.0
    %3558 = vmatprep.subr.mxu0 0.0
    %3559 = vmatpush1.msra.mxu0 0.0
    %3560 = vmatprep.subr.mxu0 0.0
    %3561 = vmatpush1.msra.mxu0 0.0
    %3562 = vmatprep.subr.mxu0 0.0
    %3563 = vmatpush1.msra.mxu0 0.0
    %3564 = vmatprep.subr.mxu0 0.0
    %3565 = vmatpush1.msra.mxu0 0.0
    %3566 = vmatprep.subr.mxu0 0.0
    %3567 = vmatpush1.msra.mxu0 0.0
    %3568 = vmatprep.subr.mxu0 0.0
    %3569 = vmatpush1.msra.mxu0 0.0
    %3570 = vmatprep.subr.mxu0 0.0
    %3571 = vmatpush1.msra.mxu0 0.0
    %3572 = vmatprep.subr.mxu0 0.0
    %3573 = vmatpush1.msra.mxu0 0.0
    %3574 = vmatprep.subr.mxu0 0.0
    %3575 = vmatpush1.msra.mxu0 0.0
    %3576 = vmatprep.subr.mxu0 0.0
    %3577 = vmatpush1.msra.mxu0 0.0
    %3578 = vmatprep.subr.mxu0 0.0
    %3579 = vmatpush1.msra.mxu0 0.0
    %3580 = vmatprep.subr.mxu0 0.0
    %3581 = vmatpush1.msra.mxu0 0.0
    %3582 = vmatprep.mubr.f32.mxu0 0.0
    %3583 = vmatmul.mubr.f32.gmra.mrb[0].mxu0 %v2172
    %v3584 = vpop.f32.mrb[0].mxu0
    %v3585 = vadd.f32 %v2153, %v3584
    %v3586 = vpop.f32.mrb[0].mxu0
    %v3587 = vadd.f32 %v2153, %v3586
    %3588 = vmatprep.mubr.f32.mxu0 0.0
    %3589 = vmatmul.mubr.f32.gmra.mrb[0].mxu0 %v2175
    %v3590 = vpop.f32.mrb[0].mxu0
    %v3591 = vadd.f32 %v2158, %v3590
    %v3592 = vpop.f32.mrb[0].mxu0
    %v3593 = vadd.f32 %v2158, %v3592
    %3594 = vmatprep.mubr.f32.mxu0 0.0
    %3595 = vmatmul.mubr.f32.gmra.mrb[0].mxu0 %v2178
    %v3596 = vpop.f32.mrb[0].mxu0
    %v3597 = vadd.f32 %v2163, %v3596
    %v3598 = vpop.f32.mrb[0].mxu0
    %v3599 = vadd.f32 %v2163, %v3598
    %3600 = vmatprep.mubr.f32.mxu0 0.0
    %3601 = vmatmul.mubr.f32.gmra.mrb[0].mxu0 %v2181
    %v3602 = vpop.f32.mrb[0].mxu0
    %v3603 = vadd.f32 %v2168, %v3602
    %v3604 = vpop.f32.mrb[0].mxu0
    %v3605 = vadd.f32 %v2168, %v3604
    %3606 = vdwg.mxu0
    %3607 = vmatprep.subr.mxu0 %v2081
    %3608 = vmatpush1.msra.mxu0 %v2080
    %3609 = vmatprep.subr.mxu0 %v2128
    %3610 = vmatpush1.msra.mxu0 %v2127
    %3611 = vmatprep.subr.mxu0 %v2082
    %3612 = vmatpush1.msra.mxu0 %v2081
    %3613 = vmatprep.subr.mxu0 %v2129
    %3614 = vmatpush1.msra.mxu0 %v2128
    %3615 = vmatprep.subr.mxu0 %v2083
    %3616 = vmatpush1.msra.mxu0 %v2082
    %3617 = vmatprep.subr.mxu0 %v2130
    %3618 = vmatpush1.msra.mxu0 %v2129
    %3619 = vmatprep.subr.mxu0 0.0
    %3620 = vmatpush1.msra.mxu0 0.0
    %3621 = vmatprep.subr.mxu0 0.0
    %3622 = vmatpush1.msra.mxu0 0.0
    %3623 = vmatprep.subr.mxu0 0.0
    %3624 = vmatpush1.msra.mxu0 0.0
    %3625 = vmatprep.subr.mxu0 0.0
    %3626 = vmatpush1.msra.mxu0 0.0
    %3627 = vmatprep.subr.mxu0 0.0
    %3628 = vmatpush1.msra.mxu0 0.0
    %3629 = vmatprep.subr.mxu0 0.0
    %3630 = vmatpush1.msra.mxu0 0.0
    %3631 = vmatprep.subr.mxu0 0.0
    %3632 = vmatpush1.msra.mxu0 0.0
    %3633 = vmatprep.subr.mxu0 0.0
    %3634 = vmatpush1.msra.mxu0 0.0
    %3635 = vmatprep.subr.mxu0 0.0
    %3636 = vmatpush1.msra.mxu0 0.0
    %3637 = vmatprep.subr.mxu0 0.0
    %3638 = vmatpush1.msra.mxu0 0.0
    %3639 = vmatprep.subr.mxu0 0.0
    %3640 = vmatpush1.msra.mxu0 0.0
    %3641 = vmatprep.subr.mxu0 0.0
    %3642 = vmatpush1.msra.mxu0 0.0
    %3643 = vmatprep.subr.mxu0 0.0
    %3644 = vmatpush1.msra.mxu0 0.0
    %3645 = vmatprep.subr.mxu0 0.0
    %3646 = vmatpush1.msra.mxu0 0.0
    %3647 = vmatprep.subr.mxu0 0.0
    %3648 = vmatpush1.msra.mxu0 0.0
    %3649 = vmatprep.subr.mxu0 0.0
    %3650 = vmatpush1.msra.mxu0 0.0
    %3651 = vmatprep.subr.mxu0 0.0
    %3652 = vmatpush1.msra.mxu0 0.0
    %3653 = vmatprep.subr.mxu0 0.0
    %3654 = vmatpush1.msra.mxu0 0.0
    %3655 = vmatprep.subr.mxu0 0.0
    %3656 = vmatpush1.msra.mxu0 0.0
    %3657 = vmatprep.subr.mxu0 0.0
    %3658 = vmatpush1.msra.mxu0 0.0
    %3659 = vmatprep.subr.mxu0 0.0
    %3660 = vmatpush1.msra.mxu0 0.0
    %3661 = vmatprep.subr.mxu0 0.0
    %3662 = vmatpush1.msra.mxu0 0.0
    %3663 = vmatprep.subr.mxu0 0.0
    %3664 = vmatpush1.msra.mxu0 0.0
    %3665 = vmatprep.subr.mxu0 0.0
    %3666 = vmatpush1.msra.mxu0 0.0
    %3667 = vmatprep.subr.mxu0 0.0
    %3668 = vmatpush1.msra.mxu0 0.0
    %3669 = vmatprep.subr.mxu0 0.0
    %3670 = vmatpush1.msra.mxu0 0.0
    %3671 = vmatprep.mubr.f32.mxu0 0.0
    %3672 = vmatmul.mubr.f32.gmra.mrb[0].mxu0 %v2172
    %v3673 = vpop.f32.mrb[0].mxu0
    %v3674 = vadd.f32 %v2153, %v3673
    %v3675 = vpop.f32.mrb[0].mxu0
    %v3676 = vadd.f32 %v2153, %v3675
    %3677 = vmatprep.mubr.f32.mxu0 0.0
    %3678 = vmatmul.mubr.f32.gmra.mrb[0].mxu0 %v2175
    %v3679 = vpop.f32.mrb[0].mxu0
    %v3680 = vadd.f32 %v2158, %v3679
    %v3681 = vpop.f32.mrb[0].mxu0
    %v3682 = vadd.f32 %v2158, %v3681
    %3683 = vmatprep.mubr.f32.mxu0 0.0
    %3684 = vmatmul.mubr.f32.gmra.mrb[0].mxu0 %v2178
    %v3685 = vpop.f32.mrb[0].mxu0
    %v3686 = vadd.f32 %v2163, %v3685
    %v3687 = vpop.f32.mrb[0].mxu0
    %v3688 = vadd.f32 %v2163, %v3687
    %3689 = vmatprep.mubr.f32.mxu0 0.0
    %3690 = vmatmul.mubr.f32.gmra.mrb[0].mxu0 %v2181
    %v3691 = vpop.f32.mrb[0].mxu0
    %v3692 = vadd.f32 %v2168, %v3691
    %v3693 = vpop.f32.mrb[0].mxu0
    %v3694 = vadd.f32 %v2168, %v3693
    %3695 = vdwg.mxu0
    %3696 = vmatprep.subr.mxu0 %v2083
    %3697 = vmatpush1.msra.mxu0 %v2082
    %3698 = vmatprep.subr.mxu0 %v2130
    %3699 = vmatpush1.msra.mxu0 %v2129
    %3700 = vmatprep.subr.mxu0 %v2084
    %3701 = vmatpush1.msra.mxu0 %v2083
    %3702 = vmatprep.subr.mxu0 %v2131
    %3703 = vmatpush1.msra.mxu0 %v2130
    %3704 = vmatprep.subr.mxu0 %v2085
    %3705 = vmatpush1.msra.mxu0 %v2084
    %3706 = vmatprep.subr.mxu0 %v2132
    %3707 = vmatpush1.msra.mxu0 %v2131
    %3708 = vmatprep.subr.mxu0 0.0
    %3709 = vmatpush1.msra.mxu0 0.0
    %3710 = vmatprep.subr.mxu0 0.0
    %3711 = vmatpush1.msra.mxu0 0.0
    %3712 = vmatprep.subr.mxu0 0.0
    %3713 = vmatpush1.msra.mxu0 0.0
    %3714 = vmatprep.subr.mxu0 0.0
    %3715 = vmatpush1.msra.mxu0 0.0
    %3716 = vmatprep.subr.mxu0 0.0
    %3717 = vmatpush1.msra.mxu0 0.0
    %3718 = vmatprep.subr.mxu0 0.0
    %3719 = vmatpush1.msra.mxu0 0.0
    %3720 = vmatprep.subr.mxu0 0.0
    %3721 = vmatpush1.msra.mxu0 0.0
    %3722 = vmatprep.subr.mxu0 0.0
    %3723 = vmatpush1.msra.mxu0 0.0
    %3724 = vmatprep.subr.mxu0 0.0
    %3725 = vmatpush1.msra.mxu0 0.0
    %3726 = vmatprep.subr.mxu0 0.0
    %3727 = vmatpush1.msra.mxu0 0.0
    %3728 = vmatprep.subr.mxu0 0.0
    %3729 = vmatpush1.msra.mxu0 0.0
    %3730 = vmatprep.subr.mxu0 0.0
    %3731 = vmatpush1.msra.mxu0 0.0
    %3732 = vmatprep.subr.mxu0 0.0
    %3733 = vmatpush1.msra.mxu0 0.0
    %3734 = vmatprep.subr.mxu0 0.0
    %3735 = vmatpush1.msra.mxu0 0.0
    %3736 = vmatprep.subr.mxu0 0.0
    %3737 = vmatpush1.msra.mxu0 0.0
    %3738 = vmatprep.subr.mxu0 0.0
    %3739 = vmatpush1.msra.mxu0 0.0
    %3740 = vmatprep.subr.mxu0 0.0
    %3741 = vmatpush1.msra.mxu0 0.0
    %3742 = vmatprep.subr.mxu0 0.0
    %3743 = vmatpush1.msra.mxu0 0.0
    %3744 = vmatprep.subr.mxu0 0.0
    %3745 = vmatpush1.msra.mxu0 0.0
    %3746 = vmatprep.subr.mxu0 0.0
    %3747 = vmatpush1.msra.mxu0 0.0
    %3748 = vmatprep.subr.mxu0 0.0
    %3749 = vmatpush1.msra.mxu0 0.0
    %3750 = vmatprep.subr.mxu0 0.0
    %3751 = vmatpush1.msra.mxu0 0.0
    %3752 = vmatprep.subr.mxu0 0.0
    %3753 = vmatpush1.msra.mxu0 0.0
    %3754 = vmatprep.subr.mxu0 0.0
    %3755 = vmatpush1.msra.mxu0 0.0
    %3756 = vmatprep.subr.mxu0 0.0
    %3757 = vmatpush1.msra.mxu0 0.0
    %3758 = vmatprep.subr.mxu0 0.0
    %3759 = vmatpush1.msra.mxu0 0.0
    %3760 = vmatprep.mubr.f32.mxu0 0.0
    %3761 = vmatmul.mubr.f32.gmra.mrb[0].mxu0 %v2172
    %v3762 = vpop.f32.mrb[0].mxu0
    %v3763 = vadd.f32 %v2153, %v3762
    %v3764 = vpop.f32.mrb[0].mxu0
    %v3765 = vadd.f32 %v2153, %v3764
    %3766 = vmatprep.mubr.f32.mxu0 0.0
    %3767 = vmatmul.mubr.f32.gmra.mrb[0].mxu0 %v2175
    %v3768 = vpop.f32.mrb[0].mxu0
    %v3769 = vadd.f32 %v2158, %v3768
    %v3770 = vpop.f32.mrb[0].mxu0
    %v3771 = vadd.f32 %v2158, %v3770
    %3772 = vmatprep.mubr.f32.mxu0 0.0
    %3773 = vmatmul.mubr.f32.gmra.mrb[0].mxu0 %v2178
    %v3774 = vpop.f32.mrb[0].mxu0
    %v3775 = vadd.f32 %v2163, %v3774
    %v3776 = vpop.f32.mrb[0].mxu0
    %v3777 = vadd.f32 %v2163, %v3776
    %3778 = vmatprep.mubr.f32.mxu0 0.0
    %3779 = vmatmul.mubr.f32.gmra.mrb[0].mxu0 %v2181
    %v3780 = vpop.f32.mrb[0].mxu0
    %v3781 = vadd.f32 %v2168, %v3780
    %v3782 = vpop.f32.mrb[0].mxu0
    %v3783 = vadd.f32 %v2168, %v3782
    %3784 = vdwg.mxu0
    %3785 = vmatprep.subr.mxu0 %v2085
    %3786 = vmatpush1.msra.mxu0 %v2084
    %3787 = vmatprep.subr.mxu0 %v2132
    %3788 = vmatpush1.msra.mxu0 %v2131
    %3789 = vmatprep.subr.mxu0 %v2086
    %3790 = vmatpush1.msra.mxu0 %v2085
    %3791 = vmatprep.subr.mxu0 %v2133
    %3792 = vmatpush1.msra.mxu0 %v2132
    %3793 = vmatprep.subr.mxu0 %v2087
    %3794 = vmatpush1.msra.mxu0 %v2086
    %3795 = vmatprep.subr.mxu0 %v2134
    %3796 = vmatpush1.msra.mxu0 %v2133
    %3797 = vmatprep.subr.mxu0 0.0
    %3798 = vmatpush1.msra.mxu0 0.0
    %3799 = vmatprep.subr.mxu0 0.0
    %3800 = vmatpush1.msra.mxu0 0.0
    %3801 = vmatprep.subr.mxu0 0.0
    %3802 = vmatpush1.msra.mxu0 0.0
    %3803 = vmatprep.subr.mxu0 0.0
    %3804 = vmatpush1.msra.mxu0 0.0
    %3805 = vmatprep.subr.mxu0 0.0
    %3806 = vmatpush1.msra.mxu0 0.0
    %3807 = vmatprep.subr.mxu0 0.0
    %3808 = vmatpush1.msra.mxu0 0.0
    %3809 = vmatprep.subr.mxu0 0.0
    %3810 = vmatpush1.msra.mxu0 0.0
    %3811 = vmatprep.subr.mxu0 0.0
    %3812 = vmatpush1.msra.mxu0 0.0
    %3813 = vmatprep.subr.mxu0 0.0
    %3814 = vmatpush1.msra.mxu0 0.0
    %3815 = vmatprep.subr.mxu0 0.0
    %3816 = vmatpush1.msra.mxu0 0.0
    %3817 = vmatprep.subr.mxu0 0.0
    %3818 = vmatpush1.msra.mxu0 0.0
    %3819 = vmatprep.subr.mxu0 0.0
    %3820 = vmatpush1.msra.mxu0 0.0
    %3821 = vmatprep.subr.mxu0 0.0
    %3822 = vmatpush1.msra.mxu0 0.0
    %3823 = vmatprep.subr.mxu0 0.0
    %3824 = vmatpush1.msra.mxu0 0.0
    %3825 = vmatprep.subr.mxu0 0.0
    %3826 = vmatpush1.msra.mxu0 0.0
    %3827 = vmatprep.subr.mxu0 0.0
    %3828 = vmatpush1.msra.mxu0 0.0
    %3829 = vmatprep.subr.mxu0 0.0
    %3830 = vmatpush1.msra.mxu0 0.0
    %3831 = vmatprep.subr.mxu0 0.0
    %3832 = vmatpush1.msra.mxu0 0.0
    %3833 = vmatprep.subr.mxu0 0.0
    %3834 = vmatpush1.msra.mxu0 0.0
    %3835 = vmatprep.subr.mxu0 0.0
    %3836 = vmatpush1.msra.mxu0 0.0
    %3837 = vmatprep.subr.mxu0 0.0
    %3838 = vmatpush1.msra.mxu0 0.0
    %3839 = vmatprep.subr.mxu0 0.0
    %3840 = vmatpush1.msra.mxu0 0.0
    %3841 = vmatprep.subr.mxu0 0.0
    %3842 = vmatpush1.msra.mxu0 0.0
    %3843 = vmatprep.subr.mxu0 0.0
    %3844 = vmatpush1.msra.mxu0 0.0
    %3845 = vmatprep.subr.mxu0 0.0
    %3846 = vmatpush1.msra.mxu0 0.0
    %3847 = vmatprep.subr.mxu0 0.0
    %3848 = vmatpush1.msra.mxu0 0.0
    %3849 = vmatprep.mubr.f32.mxu0 0.0
    %3850 = vmatmul.mubr.f32.gmra.mrb[0].mxu0 %v2172
    %v3851 = vpop.f32.mrb[0].mxu0
    %v3852 = vadd.f32 %v2153, %v3851
    %v3853 = vpop.f32.mrb[0].mxu0
    %v3854 = vadd.f32 %v2153, %v3853
    %3855 = vmatprep.mubr.f32.mxu0 0.0
    %3856 = vmatmul.mubr.f32.gmra.mrb[0].mxu0 %v2175
    %v3857 = vpop.f32.mrb[0].mxu0
    %v3858 = vadd.f32 %v2158, %v3857
    %v3859 = vpop.f32.mrb[0].mxu0
    %v3860 = vadd.f32 %v2158, %v3859
    %3861 = vmatprep.mubr.f32.mxu0 0.0
    %3862 = vmatmul.mubr.f32.gmra.mrb[0].mxu0 %v2178
    %v3863 = vpop.f32.mrb[0].mxu0
    %v3864 = vadd.f32 %v2163, %v3863
    %v3865 = vpop.f32.mrb[0].mxu0
    %v3866 = vadd.f32 %v2163, %v3865
    %3867 = vmatprep.mubr.f32.mxu0 0.0
    %3868 = vmatmul.mubr.f32.gmra.mrb[0].mxu0 %v2181
    %v3869 = vpop.f32.mrb[0].mxu0
    %v3870 = vadd.f32 %v2168, %v3869
    %v3871 = vpop.f32.mrb[0].mxu0
    %v3872 = vadd.f32 %v2168, %v3871
    %3873 = vdwg.mxu0
    %3874 = vmatprep.subr.mxu0 %v2087
    %3875 = vmatpush1.msra.mxu0 %v2086
    %3876 = vmatprep.subr.mxu0 %v2134
    %3877 = vmatpush1.msra.mxu0 %v2133
    %3878 = vmatprep.subr.mxu0 %v2088
    %3879 = vmatpush1.msra.mxu0 %v2087
    %3880 = vmatprep.subr.mxu0 %v2135
    %3881 = vmatpush1.msra.mxu0 %v2134
    %3882 = vmatprep.subr.mxu0 %v2089
    %3883 = vmatpush1.msra.mxu0 %v2088
    %3884 = vmatprep.subr.mxu0 %v2136
    %3885 = vmatpush1.msra.mxu0 %v2135
    %3886 = vmatprep.subr.mxu0 0.0
    %3887 = vmatpush1.msra.mxu0 0.0
    %3888 = vmatprep.subr.mxu0 0.0
    %3889 = vmatpush1.msra.mxu0 0.0
    %3890 = vmatprep.subr.mxu0 0.0
    %3891 = vmatpush1.msra.mxu0 0.0
    %3892 = vmatprep.subr.mxu0 0.0
    %3893 = vmatpush1.msra.mxu0 0.0
    %3894 = vmatprep.subr.mxu0 0.0
    %3895 = vmatpush1.msra.mxu0 0.0
    %3896 = vmatprep.subr.mxu0 0.0
    %3897 = vmatpush1.msra.mxu0 0.0
    %3898 = vmatprep.subr.mxu0 0.0
    %3899 = vmatpush1.msra.mxu0 0.0
    %3900 = vmatprep.subr.mxu0 0.0
    %3901 = vmatpush1.msra.mxu0 0.0
    %3902 = vmatprep.subr.mxu0 0.0
    %3903 = vmatpush1.msra.mxu0 0.0
    %3904 = vmatprep.subr.mxu0 0.0
    %3905 = vmatpush1.msra.mxu0 0.0
    %3906 = vmatprep.subr.mxu0 0.0
    %3907 = vmatpush1.msra.mxu0 0.0
    %3908 = vmatprep.subr.mxu0 0.0
    %3909 = vmatpush1.msra.mxu0 0.0
    %3910 = vmatprep.subr.mxu0 0.0
    %3911 = vmatpush1.msra.mxu0 0.0
    %3912 = vmatprep.subr.mxu0 0.0
    %3913 = vmatpush1.msra.mxu0 0.0
    %3914 = vmatprep.subr.mxu0 0.0
    %3915 = vmatpush1.msra.mxu0 0.0
    %3916 = vmatprep.subr.mxu0 0.0
    %3917 = vmatpush1.msra.mxu0 0.0
    %3918 = vmatprep.subr.mxu0 0.0
    %3919 = vmatpush1.msra.mxu0 0.0
    %3920 = vmatprep.subr.mxu0 0.0
    %3921 = vmatpush1.msra.mxu0 0.0
    %3922 = vmatprep.subr.mxu0 0.0
    %3923 = vmatpush1.msra.mxu0 0.0
    %3924 = vmatprep.subr.mxu0 0.0
    %3925 = vmatpush1.msra.mxu0 0.0
    %3926 = vmatprep.subr.mxu0 0.0
    %3927 = vmatpush1.msra.mxu0 0.0
    %3928 = vmatprep.subr.mxu0 0.0
    %3929 = vmatpush1.msra.mxu0 0.0
    %3930 = vmatprep.subr.mxu0 0.0
    %3931 = vmatpush1.msra.mxu0 0.0
    %3932 = vmatprep.subr.mxu0 0.0
    %3933 = vmatpush1.msra.mxu0 0.0
    %3934 = vmatprep.subr.mxu0 0.0
    %3935 = vmatpush1.msra.mxu0 0.0
    %3936 = vmatprep.subr.mxu0 0.0
    %3937 = vmatpush1.msra.mxu0 0.0
    %3938 = vmatprep.mubr.f32.mxu0 0.0
    %3939 = vmatmul.mubr.f32.gmra.mrb[0].mxu0 %v2172
    %v3940 = vpop.f32.mrb[0].mxu0
    %v3941 = vadd.f32 %v2153, %v3940
    %v3942 = vpop.f32.mrb[0].mxu0
    %v3943 = vadd.f32 %v2153, %v3942
    %3944 = vmatprep.mubr.f32.mxu0 0.0
    %3945 = vmatmul.mubr.f32.gmra.mrb[0].mxu0 %v2175
    %v3946 = vpop.f32.mrb[0].mxu0
    %v3947 = vadd.f32 %v2158, %v3946
    %v3948 = vpop.f32.mrb[0].mxu0
    %v3949 = vadd.f32 %v2158, %v3948
    %3950 = vmatprep.mubr.f32.mxu0 0.0
    %3951 = vmatmul.mubr.f32.gmra.mrb[0].mxu0 %v2178
    %v3952 = vpop.f32.mrb[0].mxu0
    %v3953 = vadd.f32 %v2163, %v3952
    %v3954 = vpop.f32.mrb[0].mxu0
    %v3955 = vadd.f32 %v2163, %v3954
    %3956 = vmatprep.mubr.f32.mxu0 0.0
    %3957 = vmatmul.mubr.f32.gmra.mrb[0].mxu0 %v2181
    %v3958 = vpop.f32.mrb[0].mxu0
    %v3959 = vadd.f32 %v2168, %v3958
    %v3960 = vpop.f32.mrb[0].mxu0
    %v3961 = vadd.f32 %v2168, %v3960
    %3962 = vdwg.mxu0
    %3963 = vmatprep.subr.mxu0 %v2089
    %3964 = vmatpush1.msra.mxu0 %v2088
    %3965 = vmatprep.subr.mxu0 %v2136
    %3966 = vmatpush1.msra.mxu0 %v2135
    %3967 = vmatprep.subr.mxu0 %v2090
    %3968 = vmatpush1.msra.mxu0 %v2089
    %3969 = vmatprep.subr.mxu0 %v2137
    %3970 = vmatpush1.msra.mxu0 %v2136
    %3971 = vmatprep.subr.mxu0 %v2091
    %3972 = vmatpush1.msra.mxu0 %v2090
    %3973 = vmatprep.subr.mxu0 %v2138
    %3974 = vmatpush1.msra.mxu0 %v2137
    %3975 = vmatprep.subr.mxu0 0.0
    %3976 = vmatpush1.msra.mxu0 0.0
    %3977 = vmatprep.subr.mxu0 0.0
    %3978 = vmatpush1.msra.mxu0 0.0
    %3979 = vmatprep.subr.mxu0 0.0
    %3980 = vmatpush1.msra.mxu0 0.0
    %3981 = vmatprep.subr.mxu0 0.0
    %3982 = vmatpush1.msra.mxu0 0.0
    %3983 = vmatprep.subr.mxu0 0.0
    %3984 = vmatpush1.msra.mxu0 0.0
    %3985 = vmatprep.subr.mxu0 0.0
    %3986 = vmatpush1.msra.mxu0 0.0
    %3987 = vmatprep.subr.mxu0 0.0
    %3988 = vmatpush1.msra.mxu0 0.0
    %3989 = vmatprep.subr.mxu0 0.0
    %3990 = vmatpush1.msra.mxu0 0.0
    %3991 = vmatprep.subr.mxu0 0.0
    %3992 = vmatpush1.msra.mxu0 0.0
    %3993 = vmatprep.subr.mxu0 0.0
    %3994 = vmatpush1.msra.mxu0 0.0
    %3995 = vmatprep.subr.mxu0 0.0
    %3996 = vmatpush1.msra.mxu0 0.0
    %3997 = vmatprep.subr.mxu0 0.0
    %3998 = vmatpush1.msra.mxu0 0.0
    %3999 = vmatprep.subr.mxu0 0.0
    %4000 = vmatpush1.msra.mxu0 0.0
    %4001 = vmatprep.subr.mxu0 0.0
    %4002 = vmatpush1.msra.mxu0 0.0
    %4003 = vmatprep.subr.mxu0 0.0
    %4004 = vmatpush1.msra.mxu0 0.0
    %4005 = vmatprep.subr.mxu0 0.0
    %4006 = vmatpush1.msra.mxu0 0.0
    %4007 = vmatprep.subr.mxu0 0.0
    %4008 = vmatpush1.msra.mxu0 0.0
    %4009 = vmatprep.subr.mxu0 0.0
    %4010 = vmatpush1.msra.mxu0 0.0
    %4011 = vmatprep.subr.mxu0 0.0
    %4012 = vmatpush1.msra.mxu0 0.0
    %4013 = vmatprep.subr.mxu0 0.0
    %4014 = vmatpush1.msra.mxu0 0.0
    %4015 = vmatprep.subr.mxu0 0.0
    %4016 = vmatpush1.msra.mxu0 0.0
    %4017 = vmatprep.subr.mxu0 0.0
    %4018 = vmatpush1.msra.mxu0 0.0
    %4019 = vmatprep.subr.mxu0 0.0
    %4020 = vmatpush1.msra.mxu0 0.0
    %4021 = vmatprep.subr.mxu0 0.0
    %4022 = vmatpush1.msra.mxu0 0.0
    %4023 = vmatprep.subr.mxu0 0.0
    %4024 = vmatpush1.msra.mxu0 0.0
    %4025 = vmatprep.subr.mxu0 0.0
    %4026 = vmatpush1.msra.mxu0 0.0
    %4027 = vmatprep.mubr.f32.mxu0 0.0
    %4028 = vmatmul.mubr.f32.gmra.mrb[0].mxu0 %v2172
    %v4029 = vpop.f32.mrb[0].mxu0
    %v4030 = vadd.f32 %v2153, %v4029
    %v4031 = vpop.f32.mrb[0].mxu0
    %v4032 = vadd.f32 %v2153, %v4031
    %4033 = vmatprep.mubr.f32.mxu0 0.0
    %4034 = vmatmul.mubr.f32.gmra.mrb[0].mxu0 %v2175
    %v4035 = vpop.f32.mrb[0].mxu0
    %v4036 = vadd.f32 %v2158, %v4035
    %v4037 = vpop.f32.mrb[0].mxu0
    %v4038 = vadd.f32 %v2158, %v4037
    %4039 = vmatprep.mubr.f32.mxu0 0.0
    %4040 = vmatmul.mubr.f32.gmra.mrb[0].mxu0 %v2178
    %v4041 = vpop.f32.mrb[0].mxu0
    %v4042 = vadd.f32 %v2163, %v4041
    %v4043 = vpop.f32.mrb[0].mxu0
    %v4044 = vadd.f32 %v2163, %v4043
    %4045 = vmatprep.mubr.f32.mxu0 0.0
    %4046 = vmatmul.mubr.f32.gmra.mrb[0].mxu0 %v2181
    %v4047 = vpop.f32.mrb[0].mxu0
    %v4048 = vadd.f32 %v2168, %v4047
    %v4049 = vpop.f32.mrb[0].mxu0
    %v4050 = vadd.f32 %v2168, %v4049
    %4051 = vdwg.mxu0
    %4052 = vmatprep.subr.mxu0 %v2091
    %4053 = vmatpush1.msra.mxu0 %v2090
    %4054 = vmatprep.subr.mxu0 %v2138
    %4055 = vmatpush1.msra.mxu0 %v2137
    %4056 = vmatprep.subr.mxu0 %v2092
    %4057 = vmatpush1.msra.mxu0 %v2091
    %4058 = vmatprep.subr.mxu0 %v2139
    %4059 = vmatpush1.msra.mxu0 %v2138
    %4060 = vmatprep.subr.mxu0 %v2093
    %4061 = vmatpush1.msra.mxu0 %v2092
    %4062 = vmatprep.subr.mxu0 %v2140
    %4063 = vmatpush1.msra.mxu0 %v2139
    %4064 = vmatprep.subr.mxu0 0.0
    %4065 = vmatpush1.msra.mxu0 0.0
    %4066 = vmatprep.subr.mxu0 0.0
    %4067 = vmatpush1.msra.mxu0 0.0
    %4068 = vmatprep.subr.mxu0 0.0
    %4069 = vmatpush1.msra.mxu0 0.0
    %4070 = vmatprep.subr.mxu0 0.0
    %4071 = vmatpush1.msra.mxu0 0.0
    %4072 = vmatprep.subr.mxu0 0.0
    %4073 = vmatpush1.msra.mxu0 0.0
    %4074 = vmatprep.subr.mxu0 0.0
    %4075 = vmatpush1.msra.mxu0 0.0
    %4076 = vmatprep.subr.mxu0 0.0
    %4077 = vmatpush1.msra.mxu0 0.0
    %4078 = vmatprep.subr.mxu0 0.0
    %4079 = vmatpush1.msra.mxu0 0.0
    %4080 = vmatprep.subr.mxu0 0.0
    %4081 = vmatpush1.msra.mxu0 0.0
    %4082 = vmatprep.subr.mxu0 0.0
    %4083 = vmatpush1.msra.mxu0 0.0
    %4084 = vmatprep.subr.mxu0 0.0
    %4085 = vmatpush1.msra.mxu0 0.0
    %4086 = vmatprep.subr.mxu0 0.0
    %4087 = vmatpush1.msra.mxu0 0.0
    %4088 = vmatprep.subr.mxu0 0.0
    %4089 = vmatpush1.msra.mxu0 0.0
    %4090 = vmatprep.subr.mxu0 0.0
    %4091 = vmatpush1.msra.mxu0 0.0
    %4092 = vmatprep.subr.mxu0 0.0
    %4093 = vmatpush1.msra.mxu0 0.0
    %4094 = vmatprep.subr.mxu0 0.0
    %4095 = vmatpush1.msra.mxu0 0.0
    %4096 = vmatprep.subr.mxu0 0.0
    %4097 = vmatpush1.msra.mxu0 0.0
    %4098 = vmatprep.subr.mxu0 0.0
    %4099 = vmatpush1.msra.mxu0 0.0
    %4100 = vmatprep.subr.mxu0 0.0
    %4101 = vmatpush1.msra.mxu0 0.0
    %4102 = vmatprep.subr.mxu0 0.0
    %4103 = vmatpush1.msra.mxu0 0.0
    %4104 = vmatprep.subr.mxu0 0.0
    %4105 = vmatpush1.msra.mxu0 0.0
    %4106 = vmatprep.subr.mxu0 0.0
    %4107 = vmatpush1.msra.mxu0 0.0
    %4108 = vmatprep.subr.mxu0 0.0
    %4109 = vmatpush1.msra.mxu0 0.0
    %4110 = vmatprep.subr.mxu0 0.0
    %4111 = vmatpush1.msra.mxu0 0.0
    %4112 = vmatprep.subr.mxu0 0.0
    %4113 = vmatpush1.msra.mxu0 0.0
    %4114 = vmatprep.subr.mxu0 0.0
    %4115 = vmatpush1.msra.mxu0 0.0
    %4116 = vmatprep.mubr.f32.mxu0 0.0
    %4117 = vmatmul.mubr.f32.gmra.mrb[0].mxu0 %v2172
    %v4118 = vpop.f32.mrb[0].mxu0
    %v4119 = vadd.f32 %v2153, %v4118
    %v4120 = vpop.f32.mrb[0].mxu0
    %v4121 = vadd.f32 %v2153, %v4120
    %4122 = vmatprep.mubr.f32.mxu0 0.0
    %4123 = vmatmul.mubr.f32.gmra.mrb[0].mxu0 %v2175
    %v4124 = vpop.f32.mrb[0].mxu0
    %v4125 = vadd.f32 %v2158, %v4124
    %v4126 = vpop.f32.mrb[0].mxu0
    %v4127 = vadd.f32 %v2158, %v4126
    %4128 = vmatprep.mubr.f32.mxu0 0.0
    %4129 = vmatmul.mubr.f32.gmra.mrb[0].mxu0 %v2178
    %v4130 = vpop.f32.mrb[0].mxu0
    %v4131 = vadd.f32 %v2163, %v4130
    %v4132 = vpop.f32.mrb[0].mxu0
    %v4133 = vadd.f32 %v2163, %v4132
    %4134 = vmatprep.mubr.f32.mxu0 0.0
    %4135 = vmatmul.mubr.f32.gmra.mrb[0].mxu0 %v2181
    %v4136 = vpop.f32.mrb[0].mxu0
    %v4137 = vadd.f32 %v2168, %v4136
    %v4138 = vpop.f32.mrb[0].mxu0
    %v4139 = vadd.f32 %v2168, %v4138
    %4140 = vdwg.mxu0
    %4141 = vmatprep.subr.mxu0 0.0
    %4142 = vmatpush1.msra.mxu0 %v2092
    %4143 = vmatprep.subr.mxu0 0.0
    %4144 = vmatpush1.msra.mxu0 %v2139
    %4145 = vmatprep.subr.mxu0 0.0
    %4146 = vmatpush1.msra.mxu0 %v2093
    %4147 = vmatprep.subr.mxu0 0.0
    %4148 = vmatpush1.msra.mxu0 %v2140
    %4149 = vmatprep.subr.mxu0 0.0
    %4150 = vmatpush1.msra.mxu0 %v2094
    %4151 = vmatprep.subr.mxu0 0.0
    %4152 = vmatpush1.msra.mxu0 %v2141
    %4153 = vmatprep.subr.mxu0 0.0
    %4154 = vmatpush1.msra.mxu0 0.0
    %4155 = vmatprep.subr.mxu0 0.0
    %4156 = vmatpush1.msra.mxu0 0.0
    %4157 = vmatprep.subr.mxu0 0.0
    %4158 = vmatpush1.msra.mxu0 0.0
    %4159 = vmatprep.subr.mxu0 0.0
    %4160 = vmatpush1.msra.mxu0 0.0
    %4161 = vmatprep.subr.mxu0 0.0
    %4162 = vmatpush1.msra.mxu0 0.0
    %4163 = vmatprep.subr.mxu0 0.0
    %4164 = vmatpush1.msra.mxu0 0.0
    %4165 = vmatprep.subr.mxu0 0.0
    %4166 = vmatpush1.msra.mxu0 0.0
    %4167 = vmatprep.subr.mxu0 0.0
    %4168 = vmatpush1.msra.mxu0 0.0
    %4169 = vmatprep.subr.mxu0 0.0
    %4170 = vmatpush1.msra.mxu0 0.0
    %4171 = vmatprep.subr.mxu0 0.0
    %4172 = vmatpush1.msra.mxu0 0.0
    %4173 = vmatprep.subr.mxu0 0.0
    %4174 = vmatpush1.msra.mxu0 0.0
    %4175 = vmatprep.subr.mxu0 0.0
    %4176 = vmatpush1.msra.mxu0 0.0
    %4177 = vmatprep.subr.mxu0 0.0
    %4178 = vmatpush1.msra.mxu0 0.0
    %4179 = vmatprep.subr.mxu0 0.0
    %4180 = vmatpush1.msra.mxu0 0.0
    %4181 = vmatprep.subr.mxu0 0.0
    %4182 = vmatpush1.msra.mxu0 0.0
    %4183 = vmatprep.subr.mxu0 0.0
    %4184 = vmatpush1.msra.mxu0 0.0
    %4185 = vmatprep.subr.mxu0 0.0
    %4186 = vmatpush1.msra.mxu0 0.0
    %4187 = vmatprep.subr.mxu0 0.0
    %4188 = vmatpush1.msra.mxu0 0.0
    %4189 = vmatprep.subr.mxu0 0.0
    %4190 = vmatpush1.msra.mxu0 0.0
    %4191 = vmatprep.subr.mxu0 0.0
    %4192 = vmatpush1.msra.mxu0 0.0
    %4193 = vmatprep.subr.mxu0 0.0
    %4194 = vmatpush1.msra.mxu0 0.0
    %4195 = vmatprep.subr.mxu0 0.0
    %4196 = vmatpush1.msra.mxu0 0.0
    %4197 = vmatprep.subr.mxu0 0.0
    %4198 = vmatpush1.msra.mxu0 0.0
    %4199 = vmatprep.subr.mxu0 0.0
    %4200 = vmatpush1.msra.mxu0 0.0
    %4201 = vmatprep.subr.mxu0 0.0
    %4202 = vmatpush1.msra.mxu0 0.0
    %4203 = vmatprep.subr.mxu0 0.0
    %4204 = vmatpush1.msra.mxu0 0.0
    %4205 = vmatprep.mubr.f32.mxu0 0.0
    %4206 = vmatmul.mubr.f32.gmra.mrb[0].mxu0 %v2172
    %v4207 = vpop.f32.mrb[0].mxu0
    %v4208 = vadd.f32 %v2153, %v4207
    %v4209 = vpop.f32.mrb[0].mxu0
    %4210 = vmatprep.mubr.f32.mxu0 0.0
    %4211 = vmatmul.mubr.f32.gmra.mrb[0].mxu0 %v2175
    %v4212 = vpop.f32.mrb[0].mxu0
    %v4213 = vadd.f32 %v2158, %v4212
    %v4214 = vpop.f32.mrb[0].mxu0
    %4215 = vmatprep.mubr.f32.mxu0 0.0
    %4216 = vmatmul.mubr.f32.gmra.mrb[0].mxu0 %v2178
    %v4217 = vpop.f32.mrb[0].mxu0
    %v4218 = vadd.f32 %v2163, %v4217
    %v4219 = vpop.f32.mrb[0].mxu0
    %4220 = vmatprep.mubr.f32.mxu0 0.0
    %4221 = vmatmul.mubr.f32.gmra.mrb[0].mxu0 %v2181
    %v4222 = vpop.f32.mrb[0].mxu0
    %v4223 = vadd.f32 %v2168, %v4222
    %v4224 = vpop.f32.mrb[0].mxu0
    %4225 = vdwg.mxu0
    %v4226 = vmax.f32 %v2250, 0.0
    %v4227 = vmax.f32 %v2252, 0.0
    %v4228 = vmax.f32 %v2339, 0.0
    %v4229 = vmax.f32 %v2341, 0.0
    %v4230 = vmax.f32 %v2428, 0.0
    %v4231 = vmax.f32 %v2430, 0.0
    %v4232 = vmax.f32 %v2517, 0.0
    %v4233 = vmax.f32 %v2519, 0.0
    %v4234 = vmax.f32 %v2606, 0.0
    %v4235 = vmax.f32 %v2608, 0.0
    %v4236 = vmax.f32 %v2695, 0.0
    %v4237 = vmax.f32 %v2697, 0.0
    %v4238 = vmax.f32 %v2784, 0.0
    %v4239 = vmax.f32 %v2786, 0.0
    %v4240 = vmax.f32 %v2873, 0.0
    %v4241 = vmax.f32 %v2875, 0.0
    %v4242 = vmax.f32 %v2962, 0.0
    %v4243 = vmax.f32 %v2964, 0.0
    %v4244 = vmax.f32 %v3051, 0.0
    %v4245 = vmax.f32 %v3053, 0.0
    %v4246 = vmax.f32 %v3140, 0.0
    %v4247 = vmax.f32 %v3142, 0.0
    %v4248 = vmax.f32 %v3229, 0.0
    %v4249 = vmax.f32 %v3231, 0.0
    %v4250 = vmax.f32 %v3318, 0.0
    %v4251 = vmax.f32 %v3320, 0.0
    %v4252 = vmax.f32 %v3407, 0.0
    %v4253 = vmax.f32 %v3409, 0.0
    %v4254 = vmax.f32 %v3496, 0.0
    %v4255 = vmax.f32 %v3498, 0.0
    %v4256 = vmax.f32 %v3585, 0.0
    %v4257 = vmax.f32 %v3587, 0.0
    %v4258 = vmax.f32 %v3674, 0.0
    %v4259 = vmax.f32 %v3676, 0.0
    %v4260 = vmax.f32 %v3763, 0.0
    %v4261 = vmax.f32 %v3765, 0.0
    %v4262 = vmax.f32 %v3852, 0.0
    %v4263 = vmax.f32 %v3854, 0.0
    %v4264 = vmax.f32 %v3941, 0.0
    %v4265 = vmax.f32 %v3943, 0.0
    %v4266 = vmax.f32 %v4030, 0.0
    %v4267 = vmax.f32 %v4032, 0.0
    %v4268 = vmax.f32 %v4119, 0.0
    %v4269 = vmax.f32 %v4121, 0.0
    %v4270 = vmax.f32 %v4208, 0.0
    %v4271 = vmax.f32 %v2256, 0.0
    %v4272 = vmax.f32 %v2258, 0.0
    %v4273 = vmax.f32 %v2345, 0.0
    %v4274 = vmax.f32 %v2347, 0.0
    %v4275 = vmax.f32 %v2434, 0.0
    %v4276 = vmax.f32 %v2436, 0.0
    %v4277 = vmax.f32 %v2523, 0.0
    %v4278 = vmax.f32 %v2525, 0.0
    %v4279 = vmax.f32 %v2612, 0.0
    %v4280 = vmax.f32 %v2614, 0.0
    %v4281 = vmax.f32 %v2701, 0.0
    %v4282 = vmax.f32 %v2703, 0.0
    %v4283 = vmax.f32 %v2790, 0.0
    %v4284 = vmax.f32 %v2792, 0.0
    %v4285 = vmax.f32 %v2879, 0.0
    %v4286 = vmax.f32 %v2881, 0.0
    %v4287 = vmax.f32 %v2968, 0.0
    %v4288 = vmax.f32 %v2970, 0.0
    %v4289 = vmax.f32 %v3057, 0.0
    %v4290 = vmax.f32 %v3059, 0.0
    %v4291 = vmax.f32 %v3146, 0.0
    %v4292 = vmax.f32 %v3148, 0.0
    %v4293 = vmax.f32 %v3235, 0.0
    %v4294 = vmax.f32 %v3237, 0.0
    %v4295 = vmax.f32 %v3324, 0.0
    %v4296 = vmax.f32 %v3326, 0.0
    %v4297 = vmax.f32 %v3413, 0.0
    %v4298 = vmax.f32 %v3415, 0.0
    %v4299 = vmax.f32 %v3502, 0.0
    %v4300 = vmax.f32 %v3504, 0.0
    %v4301 = vmax.f32 %v3591, 0.0
    %v4302 = vmax.f32 %v3593, 0.0
    %v4303 = vmax.f32 %v3680, 0.0
    %v4304 = vmax.f32 %v3682, 0.0
    %v4305 = vmax.f32 %v3769, 0.0
    %v4306 = vmax.f32 %v3771, 0.0
    %v4307 = vmax.f32 %v3858, 0.0
    %v4308 = vmax.f32 %v3860, 0.0
    %v4309 = vmax.f32 %v3947, 0.0
    %v4310 = vmax.f32 %v3949, 0.0
    %v4311 = vmax.f32 %v4036, 0.0
    %v4312 = vmax.f32 %v4038, 0.0
    %v4313 = vmax.f32 %v4125, 0.0
    %v4314 = vmax.f32 %v4127, 0.0
    %v4315 = vmax.f32 %v4213, 0.0
    %v4316 = vmax.f32 %v2262, 0.0
    %v4317 = vmax.f32 %v2264, 0.0
    %v4318 = vmax.f32 %v2351, 0.0
    %v4319 = vmax.f32 %v2353, 0.0
    %v4320 = vmax.f32 %v2440, 0.0
    %v4321 = vmax.f32 %v2442, 0.0
    %v4322 = vmax.f32 %v2529, 0.0
    %v4323 = vmax.f32 %v2531, 0.0
    %v4324 = vmax.f32 %v2618, 0.0
    %v4325 = vmax.f32 %v2620, 0.0
    %v4326 = vmax.f32 %v2707, 0.0
    %v4327 = vmax.f32 %v2709, 0.0
    %v4328 = vmax.f32 %v2796, 0.0
    %v4329 = vmax.f32 %v2798, 0.0
    %v4330 = vmax.f32 %v2885, 0.0
    %v4331 = vmax.f32 %v2887, 0.0
    %v4332 = vmax.f32 %v2974, 0.0
    %v4333 = vmax.f32 %v2976, 0.0
    %v4334 = vmax.f32 %v3063, 0.0
    %v4335 = vmax.f32 %v3065, 0.0
    %v4336 = vmax.f32 %v3152, 0.0
    %v4337 = vmax.f32 %v3154, 0.0
    %v4338 = vmax.f32 %v3241, 0.0
    %v4339 = vmax.f32 %v3243, 0.0
    %v4340 = vmax.f32 %v3330, 0.0
    %v4341 = vmax.f32 %v3332, 0.0
    %v4342 = vmax.f32 %v3419, 0.0
    %v4343 = vmax.f32 %v3421, 0.0
    %v4344 = vmax.f32 %v3508, 0.0
    %v4345 = vmax.f32 %v3510, 0.0
    %v4346 = vmax.f32 %v3597, 0.0
    %v4347 = vmax.f32 %v3599, 0.0
    %v4348 = vmax.f32 %v3686, 0.0
    %v4349 = vmax.f32 %v3688, 0.0
    %v4350 = vmax.f32 %v3775, 0.0
    %v4351 = vmax.f32 %v3777, 0.0
    %v4352 = vmax.f32 %v3864, 0.0
    %v4353 = vmax.f32 %v3866, 0.0
    %v4354 = vmax.f32 %v3953, 0.0
    %v4355 = vmax.f32 %v3955, 0.0
    %v4356 = vmax.f32 %v4042, 0.0
    %v4357 = vmax.f32 %v4044, 0.0
    %v4358 = vmax.f32 %v4131, 0.0
    %v4359 = vmax.f32 %v4133, 0.0
    %v4360 = vmax.f32 %v4218, 0.0
    %v4361 = vmax.f32 %v2268, 0.0
    %v4362 = vmax.f32 %v2270, 0.0
    %v4363 = vmax.f32 %v2357, 0.0
    %v4364 = vmax.f32 %v2359, 0.0
    %v4365 = vmax.f32 %v2446, 0.0
    %v4366 = vmax.f32 %v2448, 0.0
    %v4367 = vmax.f32 %v2535, 0.0
    %v4368 = vmax.f32 %v2537, 0.0
    %v4369 = vmax.f32 %v2624, 0.0
    %v4370 = vmax.f32 %v2626, 0.0
    %v4371 = vmax.f32 %v2713, 0.0
    %v4372 = vmax.f32 %v2715, 0.0
    %v4373 = vmax.f32 %v2802, 0.0
    %v4374 = vmax.f32 %v2804, 0.0
    %v4375 = vmax.f32 %v2891, 0.0
    %v4376 = vmax.f32 %v2893, 0.0
    %v4377 = vmax.f32 %v2980, 0.0
    %v4378 = vmax.f32 %v2982, 0.0
    %v4379 = vmax.f32 %v3069, 0.0
    %v4380 = vmax.f32 %v3071, 0.0
    %v4381 = vmax.f32 %v3158, 0.0
    %v4382 = vmax.f32 %v3160, 0.0
    %v4383 = vmax.f32 %v3247, 0.0
    %v4384 = vmax.f32 %v3249, 0.0
    %v4385 = vmax.f32 %v3336, 0.0
    %v4386 = vmax.f32 %v3338, 0.0
    %v4387 = vmax.f32 %v3425, 0.0
    %v4388 = vmax.f32 %v3427, 0.0
    %v4389 = vmax.f32 %v3514, 0.0
    %v4390 = vmax.f32 %v3516, 0.0
    %v4391 = vmax.f32 %v3603, 0.0
    %v4392 = vmax.f32 %v3605, 0.0
    %v4393 = vmax.f32 %v3692, 0.0
    %v4394 = vmax.f32 %v3694, 0.0
    %v4395 = vmax.f32 %v3781, 0.0
    %v4396 = vmax.f32 %v3783, 0.0
    %v4397 = vmax.f32 %v3870, 0.0
    %v4398 = vmax.f32 %v3872, 0.0
    %v4399 = vmax.f32 %v3959, 0.0
    %v4400 = vmax.f32 %v3961, 0.0
    %v4401 = vmax.f32 %v4048, 0.0
    %v4402 = vmax.f32 %v4050, 0.0
    %v4403 = vmax.f32 %v4137, 0.0
    %v4404 = vmax.f32 %v4139, 0.0
    %v4405 = vmax.f32 %v4223, 0.0
    %v4406 = vmax.f32 %v4226, %v4227
    %v4407 = vmax.f32 %v4227, %v4228
    %v4408 = vmax.f32 %v4228, %v4229
    %v4409 = vmax.f32 %v4229, %v4230
    %v4410 = vmax.f32 %v4230, %v4231
    %v4411 = vmax.f32 %v4231, %v4232
    %v4412 = vmax.f32 %v4232, %v4233
    %v4413 = vmax.f32 %v4233, %v4234
    %v4414 = vmax.f32 %v4234, %v4235
    %v4415 = vmax.f32 %v4235, %v4236
    %v4416 = vmax.f32 %v4236, %v4237
    %v4417 = vmax.f32 %v4237, %v4238
    %v4418 = vmax.f32 %v4238, %v4239
    %v4419 = vmax.f32 %v4239, %v4240
    %v4420 = vmax.f32 %v4240, %v4241
    %v4421 = vmax.f32 %v4241, %v4242
    %v4422 = vmax.f32 %v4242, %v4243
    %v4423 = vmax.f32 %v4243, %v4244
    %v4424 = vmax.f32 %v4244, %v4245
    %v4425 = vmax.f32 %v4245, %v4246
    %v4426 = vmax.f32 %v4246, %v4247
    %v4427 = vmax.f32 %v4247, %v4248
    %v4428 = vmax.f32 %v4248, %v4249
    %v4429 = vmax.f32 %v4249, %v4250
    %v4430 = vmax.f32 %v4250, %v4251
    %v4431 = vmax.f32 %v4251, %v4252
    %v4432 = vmax.f32 %v4252, %v4253
    %v4433 = vmax.f32 %v4253, %v4254
    %v4434 = vmax.f32 %v4254, %v4255
    %v4435 = vmax.f32 %v4255, %v4256
    %v4436 = vmax.f32 %v4256, %v4257
    %v4437 = vmax.f32 %v4257, %v4258
    %v4438 = vmax.f32 %v4258, %v4259
    %v4439 = vmax.f32 %v4259, %v4260
    %v4440 = vmax.f32 %v4260, %v4261
    %v4441 = vmax.f32 %v4261, %v4262
    %v4442 = vmax.f32 %v4262, %v4263
    %v4443 = vmax.f32 %v4263, %v4264
    %v4444 = vmax.f32 %v4264, %v4265
    %v4445 = vmax.f32 %v4265, %v4266
    %v4446 = vmax.f32 %v4266, %v4267
    %v4447 = vmax.f32 %v4267, %v4268
    %v4448 = vmax.f32 %v4268, %v4269
    %v4449 = vmax.f32 %v4269, %v4270
    %v4450 = vmax.f32 %v4271, %v4272
    %v4451 = vmax.f32 %v4272, %v4273
    %v4452 = vmax.f32 %v4273, %v4274
    %v4453 = vmax.f32 %v4274, %v4275
    %v4454 = vmax.f32 %v4275, %v4276
    %v4455 = vmax.f32 %v4276, %v4277
    %v4456 = vmax.f32 %v4277, %v4278
    %v4457 = vmax.f32 %v4278, %v4279
    %v4458 = vmax.f32 %v4279, %v4280
    %v4459 = vmax.f32 %v4280, %v4281
    %v4460 = vmax.f32 %v4281, %v4282
    %v4461 = vmax.f32 %v4282, %v4283
    %v4462 = vmax.f32 %v4283, %v4284
    %v4463 = vmax.f32 %v4284, %v4285
    %v4464 = vmax.f32 %v4285, %v4286
    %v4465 = vmax.f32 %v4286, %v4287
    %v4466 = vmax.f32 %v4287, %v4288
    %v4467 = vmax.f32 %v4288, %v4289
    %v4468 = vmax.f32 %v4289, %v4290
    %v4469 = vmax.f32 %v4290, %v4291
    %v4470 = vmax.f32 %v4291, %v4292
    %v4471 = vmax.f32 %v4292, %v4293
    %v4472 = vmax.f32 %v4293, %v4294
    %v4473 = vmax.f32 %v4294, %v4295
    %v4474 = vmax.f32 %v4295, %v4296
    %v4475 = vmax.f32 %v4296, %v4297
    %v4476 = vmax.f32 %v4297, %v4298
    %v4477 = vmax.f32 %v4298, %v4299
    %v4478 = vmax.f32 %v4299, %v4300
    %v4479 = vmax.f32 %v4300, %v4301
    %v4480 = vmax.f32 %v4301, %v4302
    %v4481 = vmax.f32 %v4302, %v4303
    %v4482 = vmax.f32 %v4303, %v4304
    %v4483 = vmax.f32 %v4304, %v4305
    %v4484 = vmax.f32 %v4305, %v4306
    %v4485 = vmax.f32 %v4306, %v4307
    %v4486 = vmax.f32 %v4307, %v4308
    %v4487 = vmax.f32 %v4308, %v4309
    %v4488 = vmax.f32 %v4309, %v4310
    %v4489 = vmax.f32 %v4310, %v4311
    %v4490 = vmax.f32 %v4311, %v4312
    %v4491 = vmax.f32 %v4312, %v4313
    %v4492 = vmax.f32 %v4313, %v4314
    %v4493 = vmax.f32 %v4314, %v4315
    %v4494 = vmax.f32 %v4316, %v4317
    %v4495 = vmax.f32 %v4317, %v4318
    %v4496 = vmax.f32 %v4318, %v4319
    %v4497 = vmax.f32 %v4319, %v4320
    %v4498 = vmax.f32 %v4320, %v4321
    %v4499 = vmax.f32 %v4321, %v4322
    %v4500 = vmax.f32 %v4322, %v4323
    %v4501 = vmax.f32 %v4323, %v4324
    %v4502 = vmax.f32 %v4324, %v4325
    %v4503 = vmax.f32 %v4325, %v4326
    %v4504 = vmax.f32 %v4326, %v4327
    %v4505 = vmax.f32 %v4327, %v4328
    %v4506 = vmax.f32 %v4328, %v4329
    %v4507 = vmax.f32 %v4329, %v4330
    %v4508 = vmax.f32 %v4330, %v4331
    %v4509 = vmax.f32 %v4331, %v4332
    %v4510 = vmax.f32 %v4332, %v4333
    %v4511 = vmax.f32 %v4333, %v4334
    %v4512 = vmax.f32 %v4334, %v4335
    %v4513 = vmax.f32 %v4335, %v4336
    %v4514 = vmax.f32 %v4336, %v4337
    %v4515 = vmax.f32 %v4337, %v4338
    %v4516 = vmax.f32 %v4338, %v4339
    %v4517 = vmax.f32 %v4339, %v4340
    %v4518 = vmax.f32 %v4340, %v4341
    %v4519 = vmax.f32 %v4341, %v4342
    %v4520 = vmax.f32 %v4342, %v4343
    %v4521 = vmax.f32 %v4343, %v4344
    %v4522 = vmax.f32 %v4344, %v4345
    %v4523 = vmax.f32 %v4345, %v4346
    %v4524 = vmax.f32 %v4346, %v4347
    %v4525 = vmax.f32 %v4347, %v4348
    %v4526 = vmax.f32 %v4348, %v4349
    %v4527 = vmax.f32 %v4349, %v4350
    %v4528 = vmax.f32 %v4350, %v4351
    %v4529 = vmax.f32 %v4351, %v4352
    %v4530 = vmax.f32 %v4352, %v4353
    %v4531 = vmax.f32 %v4353, %v4354
    %v4532 = vmax.f32 %v4354, %v4355
    %v4533 = vmax.f32 %v4355, %v4356
    %v4534 = vmax.f32 %v4356, %v4357
    %v4535 = vmax.f32 %v4357, %v4358
    %v4536 = vmax.f32 %v4358, %v4359
    %v4537 = vmax.f32 %v4359, %v4360
    %v4538 = vmax.f32 %v4361, %v4362
    %v4539 = vmax.f32 %v4362, %v4363
    %v4540 = vmax.f32 %v4363, %v4364
    %v4541 = vmax.f32 %v4364, %v4365
    %v4542 = vmax.f32 %v4365, %v4366
    %v4543 = vmax.f32 %v4366, %v4367
    %v4544 = vmax.f32 %v4367, %v4368
    %v4545 = vmax.f32 %v4368, %v4369
    %v4546 = vmax.f32 %v4369, %v4370
    %v4547 = vmax.f32 %v4370, %v4371
    %v4548 = vmax.f32 %v4371, %v4372
    %v4549 = vmax.f32 %v4372, %v4373
    %v4550 = vmax.f32 %v4373, %v4374
    %v4551 = vmax.f32 %v4374, %v4375
    %v4552 = vmax.f32 %v4375, %v4376
    %v4553 = vmax.f32 %v4376, %v4377
    %v4554 = vmax.f32 %v4377, %v4378
    %v4555 = vmax.f32 %v4378, %v4379
    %v4556 = vmax.f32 %v4379, %v4380
    %v4557 = vmax.f32 %v4380, %v4381
    %v4558 = vmax.f32 %v4381, %v4382
    %v4559 = vmax.f32 %v4382, %v4383
    %v4560 = vmax.f32 %v4383, %v4384
    %v4561 = vmax.f32 %v4384, %v4385
    %v4562 = vmax.f32 %v4385, %v4386
    %v4563 = vmax.f32 %v4386, %v4387
    %v4564 = vmax.f32 %v4387, %v4388
    %v4565 = vmax.f32 %v4388, %v4389
    %v4566 = vmax.f32 %v4389, %v4390
    %v4567 = vmax.f32 %v4390, %v4391
    %v4568 = vmax.f32 %v4391, %v4392
    %v4569 = vmax.f32 %v4392, %v4393
    %v4570 = vmax.f32 %v4393, %v4394
    %v4571 = vmax.f32 %v4394, %v4395
    %v4572 = vmax.f32 %v4395, %v4396
    %v4573 = vmax.f32 %v4396, %v4397
    %v4574 = vmax.f32 %v4397, %v4398
    %v4575 = vmax.f32 %v4398, %v4399
    %v4576 = vmax.f32 %v4399, %v4400
    %v4577 = vmax.f32 %v4400, %v4401
    %v4578 = vmax.f32 %v4401, %v4402
    %v4579 = vmax.f32 %v4402, %v4403
    %v4580 = vmax.f32 %v4403, %v4404
    %v4581 = vmax.f32 %v4404, %v4405
    %v4582 = vld [vmem:[%s5] sm:$0xff]
    %v4583 = vld [vmem:[%s5 + $0x8] sm:$0xff]
    %v4584 = vld [vmem:[%s5 + $0x10] sm:$0xff]
    %v4585 = vld [vmem:[%s5 + $0x18] sm:$0xff]
    %v4586 = vld [vmem:[%s5 + $0x20] sm:$0xff]
    %v4587 = vld [vmem:[%s5 + $0x28] sm:$0xff]
    %v4588 = vld [vmem:[%s5 + $0x30] sm:$0xff]
    %v4589 = vld [vmem:[%s5 + $0x38] sm:$0xff]
    %s4590 = scalar_lea.vmem %s5, 64
    %v4591 = vld [vmem:[%s4590] sm:$0xff]
    %v4592 = vld [vmem:[%s4590 + $0x8] sm:$0xff]
    %v4593 = vld [vmem:[%s4590 + $0x10] sm:$0xff]
    %v4594 = vld [vmem:[%s4590 + $0x18] sm:$0xff]
    %v4595 = vld [vmem:[%s4590 + $0x20] sm:$0xff]
    %v4596 = vld [vmem:[%s4590 + $0x28] sm:$0xff]
    %v4597 = vld [vmem:[%s4590 + $0x30] sm:$0xff]
    %v4598 = vld [vmem:[%s4590 + $0x38] sm:$0xff]
    %vm4599 = vcmask 261120
    %v4601 = vsel %vm4599, %v4591, 0
    %v4604 = vsel %vm4599, %v4592, 0
    %v4607 = vsel %vm4599, %v4593, 0
    %v4610 = vsel %vm4599, %v4594, 0
    %v4613 = vsel %vm4599, %v4595, 0
    %v4616 = vsel %vm4599, %v4596, 0
    %v4619 = vsel %vm4599, %v4597, 0
    %v4622 = vsel %vm4599, %v4598, 0
    %4624 = vmatprep.subr.mxu0 0.0
    %4625 = vmatpush1.msra.mxu0 %v4407
    %4626 = vmatprep.subr.mxu0 0.0
    %4627 = vmatpush1.msra.mxu0 %v4451
    %4628 = vmatprep.subr.mxu0 0.0
    %4629 = vmatpush1.msra.mxu0 %v4495
    %4630 = vmatprep.subr.mxu0 0.0
    %4631 = vmatpush1.msra.mxu0 %v4539
    %4632 = vmatprep.subr.mxu0 0.0
    %4633 = vmatpush1.msra.mxu0 0.0
    %4634 = vmatprep.subr.mxu0 0.0
    %4635 = vmatpush1.msra.mxu0 0.0
    %4636 = vmatprep.subr.mxu0 0.0
    %4637 = vmatpush1.msra.mxu0 0.0
    %4638 = vmatprep.subr.mxu0 0.0
    %4639 = vmatpush1.msra.mxu0 0.0
    %4640 = vmatprep.subr.mxu0 0.0
    %4641 = vmatpush1.msra.mxu0 0.0
    %4642 = vmatprep.subr.mxu0 0.0
    %4643 = vmatpush1.msra.mxu0 0.0
    %4644 = vmatprep.subr.mxu0 0.0
    %4645 = vmatpush1.msra.mxu0 0.0
    %4646 = vmatprep.subr.mxu0 0.0
    %4647 = vmatpush1.msra.mxu0 0.0
    %4648 = vmatprep.subr.mxu0 0.0
    %4649 = vmatpush1.msra.mxu0 0.0
    %4650 = vmatprep.subr.mxu0 0.0
    %4651 = vmatpush1.msra.mxu0 0.0
    %4652 = vmatprep.subr.mxu0 0.0
    %4653 = vmatpush1.msra.mxu0 0.0
    %4654 = vmatprep.subr.mxu0 0.0
    %4655 = vmatpush1.msra.mxu0 0.0
    %4656 = vmatprep.subr.mxu0 0.0
    %4657 = vmatpush1.msra.mxu0 0.0
    %4658 = vmatprep.subr.mxu0 0.0
    %4659 = vmatpush1.msra.mxu0 0.0
    %4660 = vmatprep.subr.mxu0 0.0
    %4661 = vmatpush1.msra.mxu0 0.0
    %4662 = vmatprep.subr.mxu0 0.0
    %4663 = vmatpush1.msra.mxu0 0.0
    %4664 = vmatprep.subr.mxu0 0.0
    %4665 = vmatpush1.msra.mxu0 0.0
    %4666 = vmatprep.subr.mxu0 0.0
    %4667 = vmatpush1.msra.mxu0 0.0
    %4668 = vmatprep.subr.mxu0 0.0
    %4669 = vmatpush1.msra.mxu0 0.0
    %4670 = vmatprep.subr.mxu0 0.0
    %4671 = vmatpush1.msra.mxu0 0.0
    %4672 = vmatprep.subr.mxu0 0.0
    %4673 = vmatpush1.msra.mxu0 0.0
    %4674 = vmatprep.subr.mxu0 0.0
    %4675 = vmatpush1.msra.mxu0 0.0
    %4676 = vmatprep.subr.mxu0 0.0
    %4677 = vmatpush1.msra.mxu0 0.0
    %4678 = vmatprep.subr.mxu0 0.0
    %4679 = vmatpush1.msra.mxu0 0.0
    %4680 = vmatprep.subr.mxu0 0.0
    %4681 = vmatpush1.msra.mxu0 0.0
    %4682 = vmatprep.subr.mxu0 0.0
    %4683 = vmatpush1.msra.mxu0 0.0
    %4684 = vmatprep.subr.mxu0 0.0
    %4685 = vmatpush1.msra.mxu0 0.0
    %4686 = vmatprep.subr.mxu0 0.0
    %4687 = vmatpush1.msra.mxu0 0.0
    %4688 = vmatprep.mubr.f32.mxu0 0.0
    %4689 = vmatmul.mubr.f32.gmra.mrb[0].mxu0 %v4601
    %v4690 = vpop.f32.mrb[0].mxu0
    %v4691 = vadd.f32 0.0, %v4690
    %v4692 = vpop.f32.mrb[0].mxu0
    %4693 = vmatprep.mubr.f32.mxu0 0.0
    %4694 = vmatmul.mubr.f32.gmra.mrb[0].mxu0 %v4604
    %v4695 = vpop.f32.mrb[0].mxu0
    %v4696 = vadd.f32 0.0, %v4695
    %v4697 = vpop.f32.mrb[0].mxu0
    %4698 = vmatprep.mubr.f32.mxu0 0.0
    %4699 = vmatmul.mubr.f32.gmra.mrb[0].mxu0 %v4607
    %v4700 = vpop.f32.mrb[0].mxu0
    %v4701 = vadd.f32 0.0, %v4700
    %v4702 = vpop.f32.mrb[0].mxu0
    %4703 = vmatprep.mubr.f32.mxu0 0.0
    %4704 = vmatmul.mubr.f32.gmra.mrb[0].mxu0 %v4610
    %v4705 = vpop.f32.mrb[0].mxu0
    %v4706 = vadd.f32 0.0, %v4705
    %v4707 = vpop.f32.mrb[0].mxu0
    %4708 = vmatprep.mubr.f32.mxu0 0.0
    %4709 = vmatmul.mubr.f32.gmra.mrb[0].mxu0 %v4613
    %v4710 = vpop.f32.mrb[0].mxu0
    %v4711 = vadd.f32 0.0, %v4710
    %v4712 = vpop.f32.mrb[0].mxu0
    %4713 = vmatprep.mubr.f32.mxu0 0.0
    %4714 = vmatmul.mubr.f32.gmra.mrb[0].mxu0 %v4616
    %v4715 = vpop.f32.mrb[0].mxu0
    %v4716 = vadd.f32 0.0, %v4715
    %v4717 = vpop.f32.mrb[0].mxu0
    %4718 = vmatprep.mubr.f32.mxu0 0.0
    %4719 = vmatmul.mubr.f32.gmra.mrb[0].mxu0 %v4619
    %v4720 = vpop.f32.mrb[0].mxu0
    %v4721 = vadd.f32 0.0, %v4720
    %v4722 = vpop.f32.mrb[0].mxu0
    %4723 = vmatprep.mubr.f32.mxu0 0.0
    %4724 = vmatmul.mubr.f32.gmra.mrb[0].mxu0 %v4622
    %v4725 = vpop.f32.mrb[0].mxu0
    %v4726 = vadd.f32 0.0, %v4725
    %v4727 = vpop.f32.mrb[0].mxu0
    %4728 = vdwg.mxu0
    %v4730 = vsel %vm4599, %v4582, 0
    %v4733 = vsel %vm4599, %v4583, 0
    %v4736 = vsel %vm4599, %v4584, 0
    %v4739 = vsel %vm4599, %v4585, 0
    %v4742 = vsel %vm4599, %v4586, 0
    %v4745 = vsel %vm4599, %v4587, 0
    %v4748 = vsel %vm4599, %v4588, 0
    %v4751 = vsel %vm4599, %v4589, 0
    %4753 = vmatprep.subr.mxu0 0.0
    %4754 = vmatpush1.msra.mxu0 %v4406
    %4755 = vmatprep.subr.mxu0 0.0
    %4756 = vmatpush1.msra.mxu0 %v4450
    %4757 = vmatprep.subr.mxu0 0.0
    %4758 = vmatpush1.msra.mxu0 %v4494
    %4759 = vmatprep.subr.mxu0 0.0
    %4760 = vmatpush1.msra.mxu0 %v4538
    %4761 = vmatprep.subr.mxu0 0.0
    %4762 = vmatpush1.msra.mxu0 0.0
    %4763 = vmatprep.subr.mxu0 0.0
    %4764 = vmatpush1.msra.mxu0 0.0
    %4765 = vmatprep.subr.mxu0 0.0
    %4766 = vmatpush1.msra.mxu0 0.0
    %4767 = vmatprep.subr.mxu0 0.0
    %4768 = vmatpush1.msra.mxu0 0.0
    %4769 = vmatprep.subr.mxu0 0.0
    %4770 = vmatpush1.msra.mxu0 0.0
    %4771 = vmatprep.subr.mxu0 0.0
    %4772 = vmatpush1.msra.mxu0 0.0
    %4773 = vmatprep.subr.mxu0 0.0
    %4774 = vmatpush1.msra.mxu0 0.0
    %4775 = vmatprep.subr.mxu0 0.0
    %4776 = vmatpush1.msra.mxu0 0.0
    %4777 = vmatprep.subr.mxu0 0.0
    %4778 = vmatpush1.msra.mxu0 0.0
    %4779 = vmatprep.subr.mxu0 0.0
    %4780 = vmatpush1.msra.mxu0 0.0
    %4781 = vmatprep.subr.mxu0 0.0
    %4782 = vmatpush1.msra.mxu0 0.0
    %4783 = vmatprep.subr.mxu0 0.0
    %4784 = vmatpush1.msra.mxu0 0.0
    %4785 = vmatprep.subr.mxu0 0.0
    %4786 = vmatpush1.msra.mxu0 0.0
    %4787 = vmatprep.subr.mxu0 0.0
    %4788 = vmatpush1.msra.mxu0 0.0
    %4789 = vmatprep.subr.mxu0 0.0
    %4790 = vmatpush1.msra.mxu0 0.0
    %4791 = vmatprep.subr.mxu0 0.0
    %4792 = vmatpush1.msra.mxu0 0.0
    %4793 = vmatprep.subr.mxu0 0.0
    %4794 = vmatpush1.msra.mxu0 0.0
    %4795 = vmatprep.subr.mxu0 0.0
    %4796 = vmatpush1.msra.mxu0 0.0
    %4797 = vmatprep.subr.mxu0 0.0
    %4798 = vmatpush1.msra.mxu0 0.0
    %4799 = vmatprep.subr.mxu0 0.0
    %4800 = vmatpush1.msra.mxu0 0.0
    %4801 = vmatprep.subr.mxu0 0.0
    %4802 = vmatpush1.msra.mxu0 0.0
    %4803 = vmatprep.subr.mxu0 0.0
    %4804 = vmatpush1.msra.mxu0 0.0
    %4805 = vmatprep.subr.mxu0 0.0
    %4806 = vmatpush1.msra.mxu0 0.0
    %4807 = vmatprep.subr.mxu0 0.0
    %4808 = vmatpush1.msra.mxu0 0.0
    %4809 = vmatprep.subr.mxu0 0.0
    %4810 = vmatpush1.msra.mxu0 0.0
    %4811 = vmatprep.subr.mxu0 0.0
    %4812 = vmatpush1.msra.mxu0 0.0
    %4813 = vmatprep.subr.mxu0 0.0
    %4814 = vmatpush1.msra.mxu0 0.0
    %4815 = vmatprep.subr.mxu0 0.0
    %4816 = vmatpush1.msra.mxu0 0.0
    %4817 = vmatprep.mubr.f32.mxu0 0.0
    %4818 = vmatmul.mubr.f32.gmra.mrb[0].mxu0 %v4730
    %v4819 = vpop.f32.mrb[0].mxu0
    %v4820 = vadd.f32 %v4691, %v4819
    %v4821 = vpop.f32.mrb[0].mxu0
    %4822 = vmatprep.mubr.f32.mxu0 0.0
    %4823 = vmatmul.mubr.f32.gmra.mrb[0].mxu0 %v4733
    %v4824 = vpop.f32.mrb[0].mxu0
    %v4825 = vadd.f32 %v4696, %v4824
    %v4826 = vpop.f32.mrb[0].mxu0
    %4827 = vmatprep.mubr.f32.mxu0 0.0
    %4828 = vmatmul.mubr.f32.gmra.mrb[0].mxu0 %v4736
    %v4829 = vpop.f32.mrb[0].mxu0
    %v4830 = vadd.f32 %v4701, %v4829
    %v4831 = vpop.f32.mrb[0].mxu0
    %4832 = vmatprep.mubr.f32.mxu0 0.0
    %4833 = vmatmul.mubr.f32.gmra.mrb[0].mxu0 %v4739
    %v4834 = vpop.f32.mrb[0].mxu0
    %v4835 = vadd.f32 %v4706, %v4834
    %v4836 = vpop.f32.mrb[0].mxu0
    %4837 = vmatprep.mubr.f32.mxu0 0.0
    %4838 = vmatmul.mubr.f32.gmra.mrb[0].mxu0 %v4742
    %v4839 = vpop.f32.mrb[0].mxu0
    %v4840 = vadd.f32 %v4711, %v4839
    %v4841 = vpop.f32.mrb[0].mxu0
    %4842 = vmatprep.mubr.f32.mxu0 0.0
    %4843 = vmatmul.mubr.f32.gmra.mrb[0].mxu0 %v4745
    %v4844 = vpop.f32.mrb[0].mxu0
    %v4845 = vadd.f32 %v4716, %v4844
    %v4846 = vpop.f32.mrb[0].mxu0
    %4847 = vmatprep.mubr.f32.mxu0 0.0
    %4848 = vmatmul.mubr.f32.gmra.mrb[0].mxu0 %v4748
    %v4849 = vpop.f32.mrb[0].mxu0
    %v4850 = vadd.f32 %v4721, %v4849
    %v4851 = vpop.f32.mrb[0].mxu0
    %4852 = vmatprep.mubr.f32.mxu0 0.0
    %4853 = vmatmul.mubr.f32.gmra.mrb[0].mxu0 %v4751
    %v4854 = vpop.f32.mrb[0].mxu0
    %v4855 = vadd.f32 %v4726, %v4854
    %v4856 = vpop.f32.mrb[0].mxu0
    %4857 = vdwg.mxu0
    %s4858 = scalar_lea.vmem %s5, 128
    %v4859 = vld [vmem:[%s4858] sm:$0xff]
    %v4860 = vld [vmem:[%s4858 + $0x8] sm:$0xff]
    %v4861 = vld [vmem:[%s4858 + $0x10] sm:$0xff]
    %v4862 = vld [vmem:[%s4858 + $0x18] sm:$0xff]
    %v4863 = vld [vmem:[%s4858 + $0x20] sm:$0xff]
    %v4864 = vld [vmem:[%s4858 + $0x28] sm:$0xff]
    %v4865 = vld [vmem:[%s4858 + $0x30] sm:$0xff]
    %v4866 = vld [vmem:[%s4858 + $0x38] sm:$0xff]
    %v4868 = vsel %vm4599, %v4859, 0
    %v4871 = vsel %vm4599, %v4860, 0
    %v4874 = vsel %vm4599, %v4861, 0
    %v4877 = vsel %vm4599, %v4862, 0
    %v4880 = vsel %vm4599, %v4863, 0
    %v4883 = vsel %vm4599, %v4864, 0
    %v4886 = vsel %vm4599, %v4865, 0
    %v4889 = vsel %vm4599, %v4866, 0
    %4891 = vmatprep.subr.mxu0 0.0
    %4892 = vmatpush1.msra.mxu0 %v4408
    %4893 = vmatprep.subr.mxu0 0.0
    %4894 = vmatpush1.msra.mxu0 %v4452
    %4895 = vmatprep.subr.mxu0 0.0
    %4896 = vmatpush1.msra.mxu0 %v4496
    %4897 = vmatprep.subr.mxu0 0.0
    %4898 = vmatpush1.msra.mxu0 %v4540
    %4899 = vmatprep.subr.mxu0 0.0
    %4900 = vmatpush1.msra.mxu0 0.0
    %4901 = vmatprep.subr.mxu0 0.0
    %4902 = vmatpush1.msra.mxu0 0.0
    %4903 = vmatprep.subr.mxu0 0.0
    %4904 = vmatpush1.msra.mxu0 0.0
    %4905 = vmatprep.subr.mxu0 0.0
    %4906 = vmatpush1.msra.mxu0 0.0
    %4907 = vmatprep.subr.mxu0 0.0
    %4908 = vmatpush1.msra.mxu0 0.0
    %4909 = vmatprep.subr.mxu0 0.0
    %4910 = vmatpush1.msra.mxu0 0.0
    %4911 = vmatprep.subr.mxu0 0.0
    %4912 = vmatpush1.msra.mxu0 0.0
    %4913 = vmatprep.subr.mxu0 0.0
    %4914 = vmatpush1.msra.mxu0 0.0
    %4915 = vmatprep.subr.mxu0 0.0
    %4916 = vmatpush1.msra.mxu0 0.0
    %4917 = vmatprep.subr.mxu0 0.0
    %4918 = vmatpush1.msra.mxu0 0.0
    %4919 = vmatprep.subr.mxu0 0.0
    %4920 = vmatpush1.msra.mxu0 0.0
    %4921 = vmatprep.subr.mxu0 0.0
    %4922 = vmatpush1.msra.mxu0 0.0
    %4923 = vmatprep.subr.mxu0 0.0
    %4924 = vmatpush1.msra.mxu0 0.0
    %4925 = vmatprep.subr.mxu0 0.0
    %4926 = vmatpush1.msra.mxu0 0.0
    %4927 = vmatprep.subr.mxu0 0.0
    %4928 = vmatpush1.msra.mxu0 0.0
    %4929 = vmatprep.subr.mxu0 0.0
    %4930 = vmatpush1.msra.mxu0 0.0
    %4931 = vmatprep.subr.mxu0 0.0
    %4932 = vmatpush1.msra.mxu0 0.0
    %4933 = vmatprep.subr.mxu0 0.0
    %4934 = vmatpush1.msra.mxu0 0.0
    %4935 = vmatprep.subr.mxu0 0.0
    %4936 = vmatpush1.msra.mxu0 0.0
    %4937 = vmatprep.subr.mxu0 0.0
    %4938 = vmatpush1.msra.mxu0 0.0
    %4939 = vmatprep.subr.mxu0 0.0
    %4940 = vmatpush1.msra.mxu0 0.0
    %4941 = vmatprep.subr.mxu0 0.0
    %4942 = vmatpush1.msra.mxu0 0.0
    %4943 = vmatprep.subr.mxu0 0.0
    %4944 = vmatpush1.msra.mxu0 0.0
    %4945 = vmatprep.subr.mxu0 0.0
    %4946 = vmatpush1.msra.mxu0 0.0
    %4947 = vmatprep.subr.mxu0 0.0
    %4948 = vmatpush1.msra.mxu0 0.0
    %4949 = vmatprep.subr.mxu0 0.0
    %4950 = vmatpush1.msra.mxu0 0.0
    %4951 = vmatprep.subr.mxu0 0.0
    %4952 = vmatpush1.msra.mxu0 0.0
    %4953 = vmatprep.subr.mxu0 0.0
    %4954 = vmatpush1.msra.mxu0 0.0
    %4955 = vmatprep.mubr.f32.mxu0 0.0
    %4956 = vmatmul.mubr.f32.gmra.mrb[0].mxu0 %v4868
    %v4957 = vpop.f32.mrb[0].mxu0
    %v4958 = vadd.f32 0.0, %v4957
    %v4959 = vpop.f32.mrb[0].mxu0
    %4960 = vmatprep.mubr.f32.mxu0 0.0
    %4961 = vmatmul.mubr.f32.gmra.mrb[0].mxu0 %v4871
    %v4962 = vpop.f32.mrb[0].mxu0
    %v4963 = vadd.f32 0.0, %v4962
    %v4964 = vpop.f32.mrb[0].mxu0
    %4965 = vmatprep.mubr.f32.mxu0 0.0
    %4966 = vmatmul.mubr.f32.gmra.mrb[0].mxu0 %v4874
    %v4967 = vpop.f32.mrb[0].mxu0
    %v4968 = vadd.f32 0.0, %v4967
    %v4969 = vpop.f32.mrb[0].mxu0
    %4970 = vmatprep.mubr.f32.mxu0 0.0
    %4971 = vmatmul.mubr.f32.gmra.mrb[0].mxu0 %v4877
    %v4972 = vpop.f32.mrb[0].mxu0
    %v4973 = vadd.f32 0.0, %v4972
    %v4974 = vpop.f32.mrb[0].mxu0
    %4975 = vmatprep.mubr.f32.mxu0 0.0
    %4976 = vmatmul.mubr.f32.gmra.mrb[0].mxu0 %v4880
    %v4977 = vpop.f32.mrb[0].mxu0
    %v4978 = vadd.f32 0.0, %v4977
    %v4979 = vpop.f32.mrb[0].mxu0
    %4980 = vmatprep.mubr.f32.mxu0 0.0
    %4981 = vmatmul.mubr.f32.gmra.mrb[0].mxu0 %v4883
    %v4982 = vpop.f32.mrb[0].mxu0
    %v4983 = vadd.f32 0.0, %v4982
    %v4984 = vpop.f32.mrb[0].mxu0
    %4985 = vmatprep.mubr.f32.mxu0 0.0
    %4986 = vmatmul.mubr.f32.gmra.mrb[0].mxu0 %v4886
    %v4987 = vpop.f32.mrb[0].mxu0
    %v4988 = vadd.f32 0.0, %v4987
    %v4989 = vpop.f32.mrb[0].mxu0
    %4990 = vmatprep.mubr.f32.mxu0 0.0
    %4991 = vmatmul.mubr.f32.gmra.mrb[0].mxu0 %v4889
    %v4992 = vpop.f32.mrb[0].mxu0
    %v4993 = vadd.f32 0.0, %v4992
    %v4994 = vpop.f32.mrb[0].mxu0
    %4995 = vdwg.mxu0
    %v4996 = vadd.f32 %v4820, %v4958
    %v4997 = vadd.f32 %v4825, %v4963
    %v4998 = vadd.f32 %v4830, %v4968
    %v4999 = vadd.f32 %v4835, %v4973
    %v5000 = vadd.f32 %v4840, %v4978
    %v5001 = vadd.f32 %v4845, %v4983
    %v5002 = vadd.f32 %v4850, %v4988
    %v5003 = vadd.f32 %v4855, %v4993
    %s5004 = scalar_lea.vmem %s5, 192
    %v5005 = vld [vmem:[%s5004] sm:$0xff]
    %v5006 = vld [vmem:[%s5004 + $0x8] sm:$0xff]
    %v5007 = vld [vmem:[%s5004 + $0x10] sm:$0xff]
    %v5008 = vld [vmem:[%s5004 + $0x18] sm:$0xff]
    %v5009 = vld [vmem:[%s5004 + $0x20] sm:$0xff]
    %v5010 = vld [vmem:[%s5004 + $0x28] sm:$0xff]
    %v5011 = vld [vmem:[%s5004 + $0x30] sm:$0xff]
    %v5012 = vld [vmem:[%s5004 + $0x38] sm:$0xff]
    %v5014 = vsel %vm4599, %v5005, 0
    %v5017 = vsel %vm4599, %v5006, 0
    %v5020 = vsel %vm4599, %v5007, 0
    %v5023 = vsel %vm4599, %v5008, 0
    %v5026 = vsel %vm4599, %v5009, 0
    %v5029 = vsel %vm4599, %v5010, 0
    %v5032 = vsel %vm4599, %v5011, 0
    %v5035 = vsel %vm4599, %v5012, 0
    %5037 = vmatprep.subr.mxu0 0.0
    %5038 = vmatpush1.msra.mxu0 %v4409
    %5039 = vmatprep.subr.mxu0 0.0
    %5040 = vmatpush1.msra.mxu0 %v4453
    %5041 = vmatprep.subr.mxu0 0.0
    %5042 = vmatpush1.msra.mxu0 %v4497
    %5043 = vmatprep.subr.mxu0 0.0
    %5044 = vmatpush1.msra.mxu0 %v4541
    %5045 = vmatprep.subr.mxu0 0.0
    %5046 = vmatpush1.msra.mxu0 0.0
    %5047 = vmatprep.subr.mxu0 0.0
    %5048 = vmatpush1.msra.mxu0 0.0
    %5049 = vmatprep.subr.mxu0 0.0
    %5050 = vmatpush1.msra.mxu0 0.0
    %5051 = vmatprep.subr.mxu0 0.0
    %5052 = vmatpush1.msra.mxu0 0.0
    %5053 = vmatprep.subr.mxu0 0.0
    %5054 = vmatpush1.msra.mxu0 0.0
    %5055 = vmatprep.subr.mxu0 0.0
    %5056 = vmatpush1.msra.mxu0 0.0
    %5057 = vmatprep.subr.mxu0 0.0
    %5058 = vmatpush1.msra.mxu0 0.0
    %5059 = vmatprep.subr.mxu0 0.0
    %5060 = vmatpush1.msra.mxu0 0.0
    %5061 = vmatprep.subr.mxu0 0.0
    %5062 = vmatpush1.msra.mxu0 0.0
    %5063 = vmatprep.subr.mxu0 0.0
    %5064 = vmatpush1.msra.mxu0 0.0
    %5065 = vmatprep.subr.mxu0 0.0
    %5066 = vmatpush1.msra.mxu0 0.0
    %5067 = vmatprep.subr.mxu0 0.0
    %5068 = vmatpush1.msra.mxu0 0.0
    %5069 = vmatprep.subr.mxu0 0.0
    %5070 = vmatpush1.msra.mxu0 0.0
    %5071 = vmatprep.subr.mxu0 0.0
    %5072 = vmatpush1.msra.mxu0 0.0
    %5073 = vmatprep.subr.mxu0 0.0
    %5074 = vmatpush1.msra.mxu0 0.0
    %5075 = vmatprep.subr.mxu0 0.0
    %5076 = vmatpush1.msra.mxu0 0.0
    %5077 = vmatprep.subr.mxu0 0.0
    %5078 = vmatpush1.msra.mxu0 0.0
    %5079 = vmatprep.subr.mxu0 0.0
    %5080 = vmatpush1.msra.mxu0 0.0
    %5081 = vmatprep.subr.mxu0 0.0
    %5082 = vmatpush1.msra.mxu0 0.0
    %5083 = vmatprep.subr.mxu0 0.0
    %5084 = vmatpush1.msra.mxu0 0.0
    %5085 = vmatprep.subr.mxu0 0.0
    %5086 = vmatpush1.msra.mxu0 0.0
    %5087 = vmatprep.subr.mxu0 0.0
    %5088 = vmatpush1.msra.mxu0 0.0
    %5089 = vmatprep.subr.mxu0 0.0
    %5090 = vmatpush1.msra.mxu0 0.0
    %5091 = vmatprep.subr.mxu0 0.0
    %5092 = vmatpush1.msra.mxu0 0.0
    %5093 = vmatprep.subr.mxu0 0.0
    %5094 = vmatpush1.msra.mxu0 0.0
    %5095 = vmatprep.subr.mxu0 0.0
    %5096 = vmatpush1.msra.mxu0 0.0
    %5097 = vmatprep.subr.mxu0 0.0
    %5098 = vmatpush1.msra.mxu0 0.0
    %5099 = vmatprep.subr.mxu0 0.0
    %5100 = vmatpush1.msra.mxu0 0.0
    %5101 = vmatprep.mubr.f32.mxu0 0.0
    %5102 = vmatmul.mubr.f32.gmra.mrb[0].mxu0 %v5014
    %v5103 = vpop.f32.mrb[0].mxu0
    %v5104 = vadd.f32 0.0, %v5103
    %v5105 = vpop.f32.mrb[0].mxu0
    %5106 = vmatprep.mubr.f32.mxu0 0.0
    %5107 = vmatmul.mubr.f32.gmra.mrb[0].mxu0 %v5017
    %v5108 = vpop.f32.mrb[0].mxu0
    %v5109 = vadd.f32 0.0, %v5108
    %v5110 = vpop.f32.mrb[0].mxu0
    %5111 = vmatprep.mubr.f32.mxu0 0.0
    %5112 = vmatmul.mubr.f32.gmra.mrb[0].mxu0 %v5020
    %v5113 = vpop.f32.mrb[0].mxu0
    %v5114 = vadd.f32 0.0, %v5113
    %v5115 = vpop.f32.mrb[0].mxu0
    %5116 = vmatprep.mubr.f32.mxu0 0.0
    %5117 = vmatmul.mubr.f32.gmra.mrb[0].mxu0 %v5023
    %v5118 = vpop.f32.mrb[0].mxu0
    %v5119 = vadd.f32 0.0, %v5118
    %v5120 = vpop.f32.mrb[0].mxu0
    %5121 = vmatprep.mubr.f32.mxu0 0.0
    %5122 = vmatmul.mubr.f32.gmra.mrb[0].mxu0 %v5026
    %v5123 = vpop.f32.mrb[0].mxu0
    %v5124 = vadd.f32 0.0, %v5123
    %v5125 = vpop.f32.mrb[0].mxu0
    %5126 = vmatprep.mubr.f32.mxu0 0.0
    %5127 = vmatmul.mubr.f32.gmra.mrb[0].mxu0 %v5029
    %v5128 = vpop.f32.mrb[0].mxu0
    %v5129 = vadd.f32 0.0, %v5128
    %v5130 = vpop.f32.mrb[0].mxu0
    %5131 = vmatprep.mubr.f32.mxu0 0.0
    %5132 = vmatmul.mubr.f32.gmra.mrb[0].mxu0 %v5032
    %v5133 = vpop.f32.mrb[0].mxu0
    %v5134 = vadd.f32 0.0, %v5133
    %v5135 = vpop.f32.mrb[0].mxu0
    %5136 = vmatprep.mubr.f32.mxu0 0.0
    %5137 = vmatmul.mubr.f32.gmra.mrb[0].mxu0 %v5035
    %v5138 = vpop.f32.mrb[0].mxu0
    %v5139 = vadd.f32 0.0, %v5138
    %v5140 = vpop.f32.mrb[0].mxu0
    %5141 = vdwg.mxu0
    %v5142 = vadd.f32 %v4996, %v5104
    %v5143 = vadd.f32 %v4997, %v5109
    %v5144 = vadd.f32 %v4998, %v5114
    %v5145 = vadd.f32 %v4999, %v5119
    %v5146 = vadd.f32 %v5000, %v5124
    %v5147 = vadd.f32 %v5001, %v5129
    %v5148 = vadd.f32 %v5002, %v5134
    %v5149 = vadd.f32 %v5003, %v5139
    %s5150 = scalar_lea.vmem %s5, 256
    %v5151 = vld [vmem:[%s5150] sm:$0xff]
    %v5152 = vld [vmem:[%s5150 + $0x8] sm:$0xff]
    %v5153 = vld [vmem:[%s5150 + $0x10] sm:$0xff]
    %v5154 = vld [vmem:[%s5150 + $0x18] sm:$0xff]
    %v5155 = vld [vmem:[%s5150 + $0x20] sm:$0xff]
    %v5156 = vld [vmem:[%s5150 + $0x28] sm:$0xff]
    %v5157 = vld [vmem:[%s5150 + $0x30] sm:$0xff]
    %v5158 = vld [vmem:[%s5150 + $0x38] sm:$0xff]
    %v5160 = vsel %vm4599, %v5151, 0
    %v5163 = vsel %vm4599, %v5152, 0
    %v5166 = vsel %vm4599, %v5153, 0
    %v5169 = vsel %vm4599, %v5154, 0
    %v5172 = vsel %vm4599, %v5155, 0
    %v5175 = vsel %vm4599, %v5156, 0
    %v5178 = vsel %vm4599, %v5157, 0
    %v5181 = vsel %vm4599, %v5158, 0
    %5183 = vmatprep.subr.mxu0 0.0
    %5184 = vmatpush1.msra.mxu0 %v4410
    %5185 = vmatprep.subr.mxu0 0.0
    %5186 = vmatpush1.msra.mxu0 %v4454
    %5187 = vmatprep.subr.mxu0 0.0
    %5188 = vmatpush1.msra.mxu0 %v4498
    %5189 = vmatprep.subr.mxu0 0.0
    %5190 = vmatpush1.msra.mxu0 %v4542
    %5191 = vmatprep.subr.mxu0 0.0
    %5192 = vmatpush1.msra.mxu0 0.0
    %5193 = vmatprep.subr.mxu0 0.0
    %5194 = vmatpush1.msra.mxu0 0.0
    %5195 = vmatprep.subr.mxu0 0.0
    %5196 = vmatpush1.msra.mxu0 0.0
    %5197 = vmatprep.subr.mxu0 0.0
    %5198 = vmatpush1.msra.mxu0 0.0
    %5199 = vmatprep.subr.mxu0 0.0
    %5200 = vmatpush1.msra.mxu0 0.0
    %5201 = vmatprep.subr.mxu0 0.0
    %5202 = vmatpush1.msra.mxu0 0.0
    %5203 = vmatprep.subr.mxu0 0.0
    %5204 = vmatpush1.msra.mxu0 0.0
    %5205 = vmatprep.subr.mxu0 0.0
    %5206 = vmatpush1.msra.mxu0 0.0
    %5207 = vmatprep.subr.mxu0 0.0
    %5208 = vmatpush1.msra.mxu0 0.0
    %5209 = vmatprep.subr.mxu0 0.0
    %5210 = vmatpush1.msra.mxu0 0.0
    %5211 = vmatprep.subr.mxu0 0.0
    %5212 = vmatpush1.msra.mxu0 0.0
    %5213 = vmatprep.subr.mxu0 0.0
    %5214 = vmatpush1.msra.mxu0 0.0
    %5215 = vmatprep.subr.mxu0 0.0
    %5216 = vmatpush1.msra.mxu0 0.0
    %5217 = vmatprep.subr.mxu0 0.0
    %5218 = vmatpush1.msra.mxu0 0.0
    %5219 = vmatprep.subr.mxu0 0.0
    %5220 = vmatpush1.msra.mxu0 0.0
    %5221 = vmatprep.subr.mxu0 0.0
    %5222 = vmatpush1.msra.mxu0 0.0
    %5223 = vmatprep.subr.mxu0 0.0
    %5224 = vmatpush1.msra.mxu0 0.0
    %5225 = vmatprep.subr.mxu0 0.0
    %5226 = vmatpush1.msra.mxu0 0.0
    %5227 = vmatprep.subr.mxu0 0.0
    %5228 = vmatpush1.msra.mxu0 0.0
    %5229 = vmatprep.subr.mxu0 0.0
    %5230 = vmatpush1.msra.mxu0 0.0
    %5231 = vmatprep.subr.mxu0 0.0
    %5232 = vmatpush1.msra.mxu0 0.0
    %5233 = vmatprep.subr.mxu0 0.0
    %5234 = vmatpush1.msra.mxu0 0.0
    %5235 = vmatprep.subr.mxu0 0.0
    %5236 = vmatpush1.msra.mxu0 0.0
    %5237 = vmatprep.subr.mxu0 0.0
    %5238 = vmatpush1.msra.mxu0 0.0
    %5239 = vmatprep.subr.mxu0 0.0
    %5240 = vmatpush1.msra.mxu0 0.0
    %5241 = vmatprep.subr.mxu0 0.0
    %5242 = vmatpush1.msra.mxu0 0.0
    %5243 = vmatprep.subr.mxu0 0.0
    %5244 = vmatpush1.msra.mxu0 0.0
    %5245 = vmatprep.subr.mxu0 0.0
    %5246 = vmatpush1.msra.mxu0 0.0
    %5247 = vmatprep.mubr.f32.mxu0 0.0
    %5248 = vmatmul.mubr.f32.gmra.mrb[0].mxu0 %v5160
    %v5249 = vpop.f32.mrb[0].mxu0
    %v5250 = vadd.f32 0.0, %v5249
    %v5251 = vpop.f32.mrb[0].mxu0
    %5252 = vmatprep.mubr.f32.mxu0 0.0
    %5253 = vmatmul.mubr.f32.gmra.mrb[0].mxu0 %v5163
    %v5254 = vpop.f32.mrb[0].mxu0
    %v5255 = vadd.f32 0.0, %v5254
    %v5256 = vpop.f32.mrb[0].mxu0
    %5257 = vmatprep.mubr.f32.mxu0 0.0
    %5258 = vmatmul.mubr.f32.gmra.mrb[0].mxu0 %v5166
    %v5259 = vpop.f32.mrb[0].mxu0
    %v5260 = vadd.f32 0.0, %v5259
    %v5261 = vpop.f32.mrb[0].mxu0
    %5262 = vmatprep.mubr.f32.mxu0 0.0
    %5263 = vmatmul.mubr.f32.gmra.mrb[0].mxu0 %v5169
    %v5264 = vpop.f32.mrb[0].mxu0
    %v5265 = vadd.f32 0.0, %v5264
    %v5266 = vpop.f32.mrb[0].mxu0
    %5267 = vmatprep.mubr.f32.mxu0 0.0
    %5268 = vmatmul.mubr.f32.gmra.mrb[0].mxu0 %v5172
    %v5269 = vpop.f32.mrb[0].mxu0
    %v5270 = vadd.f32 0.0, %v5269
    %v5271 = vpop.f32.mrb[0].mxu0
    %5272 = vmatprep.mubr.f32.mxu0 0.0
    %5273 = vmatmul.mubr.f32.gmra.mrb[0].mxu0 %v5175
    %v5274 = vpop.f32.mrb[0].mxu0
    %v5275 = vadd.f32 0.0, %v5274
    %v5276 = vpop.f32.mrb[0].mxu0
    %5277 = vmatprep.mubr.f32.mxu0 0.0
    %5278 = vmatmul.mubr.f32.gmra.mrb[0].mxu0 %v5178
    %v5279 = vpop.f32.mrb[0].mxu0
    %v5280 = vadd.f32 0.0, %v5279
    %v5281 = vpop.f32.mrb[0].mxu0
    %5282 = vmatprep.mubr.f32.mxu0 0.0
    %5283 = vmatmul.mubr.f32.gmra.mrb[0].mxu0 %v5181
    %v5284 = vpop.f32.mrb[0].mxu0
    %v5285 = vadd.f32 0.0, %v5284
    %v5286 = vpop.f32.mrb[0].mxu0
    %5287 = vdwg.mxu0
    %v5288 = vadd.f32 %v5142, %v5250
    %v5289 = vadd.f32 %v5143, %v5255
    %v5290 = vadd.f32 %v5144, %v5260
    %v5291 = vadd.f32 %v5145, %v5265
    %v5292 = vadd.f32 %v5146, %v5270
    %v5293 = vadd.f32 %v5147, %v5275
    %v5294 = vadd.f32 %v5148, %v5280
    %v5295 = vadd.f32 %v5149, %v5285
    %s5296 = scalar_lea.vmem %s5, 320
    %v5297 = vld [vmem:[%s5296] sm:$0xff]
    %v5298 = vld [vmem:[%s5296 + $0x8] sm:$0xff]
    %v5299 = vld [vmem:[%s5296 + $0x10] sm:$0xff]
    %v5300 = vld [vmem:[%s5296 + $0x18] sm:$0xff]
    %v5301 = vld [vmem:[%s5296 + $0x20] sm:$0xff]
    %v5302 = vld [vmem:[%s5296 + $0x28] sm:$0xff]
    %v5303 = vld [vmem:[%s5296 + $0x30] sm:$0xff]
    %v5304 = vld [vmem:[%s5296 + $0x38] sm:$0xff]
    %v5306 = vsel %vm4599, %v5297, 0
    %v5309 = vsel %vm4599, %v5298, 0
    %v5312 = vsel %vm4599, %v5299, 0
    %v5315 = vsel %vm4599, %v5300, 0
    %v5318 = vsel %vm4599, %v5301, 0
    %v5321 = vsel %vm4599, %v5302, 0
    %v5324 = vsel %vm4599, %v5303, 0
    %v5327 = vsel %vm4599, %v5304, 0
    %5329 = vmatprep.subr.mxu0 0.0
    %5330 = vmatpush1.msra.mxu0 %v4411
    %5331 = vmatprep.subr.mxu0 0.0
    %5332 = vmatpush1.msra.mxu0 %v4455
    %5333 = vmatprep.subr.mxu0 0.0
    %5334 = vmatpush1.msra.mxu0 %v4499
    %5335 = vmatprep.subr.mxu0 0.0
    %5336 = vmatpush1.msra.mxu0 %v4543
    %5337 = vmatprep.subr.mxu0 0.0
    %5338 = vmatpush1.msra.mxu0 0.0
    %5339 = vmatprep.subr.mxu0 0.0
    %5340 = vmatpush1.msra.mxu0 0.0
    %5341 = vmatprep.subr.mxu0 0.0
    %5342 = vmatpush1.msra.mxu0 0.0
    %5343 = vmatprep.subr.mxu0 0.0
    %5344 = vmatpush1.msra.mxu0 0.0
    %5345 = vmatprep.subr.mxu0 0.0
    %5346 = vmatpush1.msra.mxu0 0.0
    %5347 = vmatprep.subr.mxu0 0.0
    %5348 = vmatpush1.msra.mxu0 0.0
    %5349 = vmatprep.subr.mxu0 0.0
    %5350 = vmatpush1.msra.mxu0 0.0
    %5351 = vmatprep.subr.mxu0 0.0
    %5352 = vmatpush1.msra.mxu0 0.0
    %5353 = vmatprep.subr.mxu0 0.0
    %5354 = vmatpush1.msra.mxu0 0.0
    %5355 = vmatprep.subr.mxu0 0.0
    %5356 = vmatpush1.msra.mxu0 0.0
    %5357 = vmatprep.subr.mxu0 0.0
    %5358 = vmatpush1.msra.mxu0 0.0
    %5359 = vmatprep.subr.mxu0 0.0
    %5360 = vmatpush1.msra.mxu0 0.0
    %5361 = vmatprep.subr.mxu0 0.0
    %5362 = vmatpush1.msra.mxu0 0.0
    %5363 = vmatprep.subr.mxu0 0.0
    %5364 = vmatpush1.msra.mxu0 0.0
    %5365 = vmatprep.subr.mxu0 0.0
    %5366 = vmatpush1.msra.mxu0 0.0
    %5367 = vmatprep.subr.mxu0 0.0
    %5368 = vmatpush1.msra.mxu0 0.0
    %5369 = vmatprep.subr.mxu0 0.0
    %5370 = vmatpush1.msra.mxu0 0.0
    %5371 = vmatprep.subr.mxu0 0.0
    %5372 = vmatpush1.msra.mxu0 0.0
    %5373 = vmatprep.subr.mxu0 0.0
    %5374 = vmatpush1.msra.mxu0 0.0
    %5375 = vmatprep.subr.mxu0 0.0
    %5376 = vmatpush1.msra.mxu0 0.0
    %5377 = vmatprep.subr.mxu0 0.0
    %5378 = vmatpush1.msra.mxu0 0.0
    %5379 = vmatprep.subr.mxu0 0.0
    %5380 = vmatpush1.msra.mxu0 0.0
    %5381 = vmatprep.subr.mxu0 0.0
    %5382 = vmatpush1.msra.mxu0 0.0
    %5383 = vmatprep.subr.mxu0 0.0
    %5384 = vmatpush1.msra.mxu0 0.0
    %5385 = vmatprep.subr.mxu0 0.0
    %5386 = vmatpush1.msra.mxu0 0.0
    %5387 = vmatprep.subr.mxu0 0.0
    %5388 = vmatpush1.msra.mxu0 0.0
    %5389 = vmatprep.subr.mxu0 0.0
    %5390 = vmatpush1.msra.mxu0 0.0
    %5391 = vmatprep.subr.mxu0 0.0
    %5392 = vmatpush1.msra.mxu0 0.0
    %5393 = vmatprep.mubr.f32.mxu0 0.0
    %5394 = vmatmul.mubr.f32.gmra.mrb[0].mxu0 %v5306
    %v5395 = vpop.f32.mrb[0].mxu0
    %v5396 = vadd.f32 0.0, %v5395
    %v5397 = vpop.f32.mrb[0].mxu0
    %5398 = vmatprep.mubr.f32.mxu0 0.0
    %5399 = vmatmul.mubr.f32.gmra.mrb[0].mxu0 %v5309
    %v5400 = vpop.f32.mrb[0].mxu0
    %v5401 = vadd.f32 0.0, %v5400
    %v5402 = vpop.f32.mrb[0].mxu0
    %5403 = vmatprep.mubr.f32.mxu0 0.0
    %5404 = vmatmul.mubr.f32.gmra.mrb[0].mxu0 %v5312
    %v5405 = vpop.f32.mrb[0].mxu0
    %v5406 = vadd.f32 0.0, %v5405
    %v5407 = vpop.f32.mrb[0].mxu0
    %5408 = vmatprep.mubr.f32.mxu0 0.0
    %5409 = vmatmul.mubr.f32.gmra.mrb[0].mxu0 %v5315
    %v5410 = vpop.f32.mrb[0].mxu0
    %v5411 = vadd.f32 0.0, %v5410
    %v5412 = vpop.f32.mrb[0].mxu0
    %5413 = vmatprep.mubr.f32.mxu0 0.0
    %5414 = vmatmul.mubr.f32.gmra.mrb[0].mxu0 %v5318
    %v5415 = vpop.f32.mrb[0].mxu0
    %v5416 = vadd.f32 0.0, %v5415
    %v5417 = vpop.f32.mrb[0].mxu0
    %5418 = vmatprep.mubr.f32.mxu0 0.0
    %5419 = vmatmul.mubr.f32.gmra.mrb[0].mxu0 %v5321
    %v5420 = vpop.f32.mrb[0].mxu0
    %v5421 = vadd.f32 0.0, %v5420
    %v5422 = vpop.f32.mrb[0].mxu0
    %5423 = vmatprep.mubr.f32.mxu0 0.0
    %5424 = vmatmul.mubr.f32.gmra.mrb[0].mxu0 %v5324
    %v5425 = vpop.f32.mrb[0].mxu0
    %v5426 = vadd.f32 0.0, %v5425
    %v5427 = vpop.f32.mrb[0].mxu0
    %5428 = vmatprep.mubr.f32.mxu0 0.0
    %5429 = vmatmul.mubr.f32.gmra.mrb[0].mxu0 %v5327
    %v5430 = vpop.f32.mrb[0].mxu0
    %v5431 = vadd.f32 0.0, %v5430
    %v5432 = vpop.f32.mrb[0].mxu0
    %5433 = vdwg.mxu0
    %v5434 = vadd.f32 %v5288, %v5396
    %v5435 = vadd.f32 %v5289, %v5401
    %v5436 = vadd.f32 %v5290, %v5406
    %v5437 = vadd.f32 %v5291, %v5411
    %v5438 = vadd.f32 %v5292, %v5416
    %v5439 = vadd.f32 %v5293, %v5421
    %v5440 = vadd.f32 %v5294, %v5426
    %v5441 = vadd.f32 %v5295, %v5431
    %s5442 = scalar_lea.vmem %s5, 384
    %v5443 = vld [vmem:[%s5442] sm:$0xff]
    %v5444 = vld [vmem:[%s5442 + $0x8] sm:$0xff]
    %v5445 = vld [vmem:[%s5442 + $0x10] sm:$0xff]
    %v5446 = vld [vmem:[%s5442 + $0x18] sm:$0xff]
    %v5447 = vld [vmem:[%s5442 + $0x20] sm:$0xff]
    %v5448 = vld [vmem:[%s5442 + $0x28] sm:$0xff]
    %v5449 = vld [vmem:[%s5442 + $0x30] sm:$0xff]
    %v5450 = vld [vmem:[%s5442 + $0x38] sm:$0xff]
    %v5452 = vsel %vm4599, %v5443, 0
    %v5455 = vsel %vm4599, %v5444, 0
    %v5458 = vsel %vm4599, %v5445, 0
    %v5461 = vsel %vm4599, %v5446, 0
    %v5464 = vsel %vm4599, %v5447, 0
    %v5467 = vsel %vm4599, %v5448, 0
    %v5470 = vsel %vm4599, %v5449, 0
    %v5473 = vsel %vm4599, %v5450, 0
    %5475 = vmatprep.subr.mxu0 0.0
    %5476 = vmatpush1.msra.mxu0 %v4412
    %5477 = vmatprep.subr.mxu0 0.0
    %5478 = vmatpush1.msra.mxu0 %v4456
    %5479 = vmatprep.subr.mxu0 0.0
    %5480 = vmatpush1.msra.mxu0 %v4500
    %5481 = vmatprep.subr.mxu0 0.0
    %5482 = vmatpush1.msra.mxu0 %v4544
    %5483 = vmatprep.subr.mxu0 0.0
    %5484 = vmatpush1.msra.mxu0 0.0
    %5485 = vmatprep.subr.mxu0 0.0
    %5486 = vmatpush1.msra.mxu0 0.0
    %5487 = vmatprep.subr.mxu0 0.0
    %5488 = vmatpush1.msra.mxu0 0.0
    %5489 = vmatprep.subr.mxu0 0.0
    %5490 = vmatpush1.msra.mxu0 0.0
    %5491 = vmatprep.subr.mxu0 0.0
    %5492 = vmatpush1.msra.mxu0 0.0
    %5493 = vmatprep.subr.mxu0 0.0
    %5494 = vmatpush1.msra.mxu0 0.0
    %5495 = vmatprep.subr.mxu0 0.0
    %5496 = vmatpush1.msra.mxu0 0.0
    %5497 = vmatprep.subr.mxu0 0.0
    %5498 = vmatpush1.msra.mxu0 0.0
    %5499 = vmatprep.subr.mxu0 0.0
    %5500 = vmatpush1.msra.mxu0 0.0
    %5501 = vmatprep.subr.mxu0 0.0
    %5502 = vmatpush1.msra.mxu0 0.0
    %5503 = vmatprep.subr.mxu0 0.0
    %5504 = vmatpush1.msra.mxu0 0.0
    %5505 = vmatprep.subr.mxu0 0.0
    %5506 = vmatpush1.msra.mxu0 0.0
    %5507 = vmatprep.subr.mxu0 0.0
    %5508 = vmatpush1.msra.mxu0 0.0
    %5509 = vmatprep.subr.mxu0 0.0
    %5510 = vmatpush1.msra.mxu0 0.0
    %5511 = vmatprep.subr.mxu0 0.0
    %5512 = vmatpush1.msra.mxu0 0.0
    %5513 = vmatprep.subr.mxu0 0.0
    %5514 = vmatpush1.msra.mxu0 0.0
    %5515 = vmatprep.subr.mxu0 0.0
    %5516 = vmatpush1.msra.mxu0 0.0
    %5517 = vmatprep.subr.mxu0 0.0
    %5518 = vmatpush1.msra.mxu0 0.0
    %5519 = vmatprep.subr.mxu0 0.0
    %5520 = vmatpush1.msra.mxu0 0.0
    %5521 = vmatprep.subr.mxu0 0.0
    %5522 = vmatpush1.msra.mxu0 0.0
    %5523 = vmatprep.subr.mxu0 0.0
    %5524 = vmatpush1.msra.mxu0 0.0
    %5525 = vmatprep.subr.mxu0 0.0
    %5526 = vmatpush1.msra.mxu0 0.0
    %5527 = vmatprep.subr.mxu0 0.0
    %5528 = vmatpush1.msra.mxu0 0.0
    %5529 = vmatprep.subr.mxu0 0.0
    %5530 = vmatpush1.msra.mxu0 0.0
    %5531 = vmatprep.subr.mxu0 0.0
    %5532 = vmatpush1.msra.mxu0 0.0
    %5533 = vmatprep.subr.mxu0 0.0
    %5534 = vmatpush1.msra.mxu0 0.0
    %5535 = vmatprep.subr.mxu0 0.0
    %5536 = vmatpush1.msra.mxu0 0.0
    %5537 = vmatprep.subr.mxu0 0.0
    %5538 = vmatpush1.msra.mxu0 0.0
    %5539 = vmatprep.mubr.f32.mxu0 0.0
    %5540 = vmatmul.mubr.f32.gmra.mrb[0].mxu0 %v5452
    %v5541 = vpop.f32.mrb[0].mxu0
    %v5542 = vadd.f32 0.0, %v5541
    %v5543 = vpop.f32.mrb[0].mxu0
    %5544 = vmatprep.mubr.f32.mxu0 0.0
    %5545 = vmatmul.mubr.f32.gmra.mrb[0].mxu0 %v5455
    %v5546 = vpop.f32.mrb[0].mxu0
    %v5547 = vadd.f32 0.0, %v5546
    %v5548 = vpop.f32.mrb[0].mxu0
    %5549 = vmatprep.mubr.f32.mxu0 0.0
    %5550 = vmatmul.mubr.f32.gmra.mrb[0].mxu0 %v5458
    %v5551 = vpop.f32.mrb[0].mxu0
    %v5552 = vadd.f32 0.0, %v5551
    %v5553 = vpop.f32.mrb[0].mxu0
    %5554 = vmatprep.mubr.f32.mxu0 0.0
    %5555 = vmatmul.mubr.f32.gmra.mrb[0].mxu0 %v5461
    %v5556 = vpop.f32.mrb[0].mxu0
    %v5557 = vadd.f32 0.0, %v5556
    %v5558 = vpop.f32.mrb[0].mxu0
    %5559 = vmatprep.mubr.f32.mxu0 0.0
    %5560 = vmatmul.mubr.f32.gmra.mrb[0].mxu0 %v5464
    %v5561 = vpop.f32.mrb[0].mxu0
    %v5562 = vadd.f32 0.0, %v5561
    %v5563 = vpop.f32.mrb[0].mxu0
    %5564 = vmatprep.mubr.f32.mxu0 0.0
    %5565 = vmatmul.mubr.f32.gmra.mrb[0].mxu0 %v5467
    %v5566 = vpop.f32.mrb[0].mxu0
    %v5567 = vadd.f32 0.0, %v5566
    %v5568 = vpop.f32.mrb[0].mxu0
    %5569 = vmatprep.mubr.f32.mxu0 0.0
    %5570 = vmatmul.mubr.f32.gmra.mrb[0].mxu0 %v5470
    %v5571 = vpop.f32.mrb[0].mxu0
    %v5572 = vadd.f32 0.0, %v5571
    %v5573 = vpop.f32.mrb[0].mxu0
    %5574 = vmatprep.mubr.f32.mxu0 0.0
    %5575 = vmatmul.mubr.f32.gmra.mrb[0].mxu0 %v5473
    %v5576 = vpop.f32.mrb[0].mxu0
    %v5577 = vadd.f32 0.0, %v5576
    %v5578 = vpop.f32.mrb[0].mxu0
    %5579 = vdwg.mxu0
    %v5580 = vadd.f32 %v5434, %v5542
    %v5581 = vadd.f32 %v5435, %v5547
    %v5582 = vadd.f32 %v5436, %v5552
    %v5583 = vadd.f32 %v5437, %v5557
    %v5584 = vadd.f32 %v5438, %v5562
    %v5585 = vadd.f32 %v5439, %v5567
    %v5586 = vadd.f32 %v5440, %v5572
    %v5587 = vadd.f32 %v5441, %v5577
    %s5588 = scalar_lea.vmem %s5, 448
    %v5589 = vld [vmem:[%s5588] sm:$0xff]
    %v5590 = vld [vmem:[%s5588 + $0x8] sm:$0xff]
    %v5591 = vld [vmem:[%s5588 + $0x10] sm:$0xff]
    %v5592 = vld [vmem:[%s5588 + $0x18] sm:$0xff]
    %v5593 = vld [vmem:[%s5588 + $0x20] sm:$0xff]
    %v5594 = vld [vmem:[%s5588 + $0x28] sm:$0xff]
    %v5595 = vld [vmem:[%s5588 + $0x30] sm:$0xff]
    %v5596 = vld [vmem:[%s5588 + $0x38] sm:$0xff]
    %v5598 = vsel %vm4599, %v5589, 0
    %v5601 = vsel %vm4599, %v5590, 0
    %v5604 = vsel %vm4599, %v5591, 0
    %v5607 = vsel %vm4599, %v5592, 0
    %v5610 = vsel %vm4599, %v5593, 0
    %v5613 = vsel %vm4599, %v5594, 0
    %v5616 = vsel %vm4599, %v5595, 0
    %v5619 = vsel %vm4599, %v5596, 0
    %5621 = vmatprep.subr.mxu0 0.0
    %5622 = vmatpush1.msra.mxu0 %v4413
    %5623 = vmatprep.subr.mxu0 0.0
    %5624 = vmatpush1.msra.mxu0 %v4457
    %5625 = vmatprep.subr.mxu0 0.0
    %5626 = vmatpush1.msra.mxu0 %v4501
    %5627 = vmatprep.subr.mxu0 0.0
    %5628 = vmatpush1.msra.mxu0 %v4545
    %5629 = vmatprep.subr.mxu0 0.0
    %5630 = vmatpush1.msra.mxu0 0.0
    %5631 = vmatprep.subr.mxu0 0.0
    %5632 = vmatpush1.msra.mxu0 0.0
    %5633 = vmatprep.subr.mxu0 0.0
    %5634 = vmatpush1.msra.mxu0 0.0
    %5635 = vmatprep.subr.mxu0 0.0
    %5636 = vmatpush1.msra.mxu0 0.0
    %5637 = vmatprep.subr.mxu0 0.0
    %5638 = vmatpush1.msra.mxu0 0.0
    %5639 = vmatprep.subr.mxu0 0.0
    %5640 = vmatpush1.msra.mxu0 0.0
    %5641 = vmatprep.subr.mxu0 0.0
    %5642 = vmatpush1.msra.mxu0 0.0
    %5643 = vmatprep.subr.mxu0 0.0
    %5644 = vmatpush1.msra.mxu0 0.0
    %5645 = vmatprep.subr.mxu0 0.0
    %5646 = vmatpush1.msra.mxu0 0.0
    %5647 = vmatprep.subr.mxu0 0.0
    %5648 = vmatpush1.msra.mxu0 0.0
    %5649 = vmatprep.subr.mxu0 0.0
    %5650 = vmatpush1.msra.mxu0 0.0
    %5651 = vmatprep.subr.mxu0 0.0
    %5652 = vmatpush1.msra.mxu0 0.0
    %5653 = vmatprep.subr.mxu0 0.0
    %5654 = vmatpush1.msra.mxu0 0.0
    %5655 = vmatprep.subr.mxu0 0.0
    %5656 = vmatpush1.msra.mxu0 0.0
    %5657 = vmatprep.subr.mxu0 0.0
    %5658 = vmatpush1.msra.mxu0 0.0
    %5659 = vmatprep.subr.mxu0 0.0
    %5660 = vmatpush1.msra.mxu0 0.0
    %5661 = vmatprep.subr.mxu0 0.0
    %5662 = vmatpush1.msra.mxu0 0.0
    %5663 = vmatprep.subr.mxu0 0.0
    %5664 = vmatpush1.msra.mxu0 0.0
    %5665 = vmatprep.subr.mxu0 0.0
    %5666 = vmatpush1.msra.mxu0 0.0
    %5667 = vmatprep.subr.mxu0 0.0
    %5668 = vmatpush1.msra.mxu0 0.0
    %5669 = vmatprep.subr.mxu0 0.0
    %5670 = vmatpush1.msra.mxu0 0.0
    %5671 = vmatprep.subr.mxu0 0.0
    %5672 = vmatpush1.msra.mxu0 0.0
    %5673 = vmatprep.subr.mxu0 0.0
    %5674 = vmatpush1.msra.mxu0 0.0
    %5675 = vmatprep.subr.mxu0 0.0
    %5676 = vmatpush1.msra.mxu0 0.0
    %5677 = vmatprep.subr.mxu0 0.0
    %5678 = vmatpush1.msra.mxu0 0.0
    %5679 = vmatprep.subr.mxu0 0.0
    %5680 = vmatpush1.msra.mxu0 0.0
    %5681 = vmatprep.subr.mxu0 0.0
    %5682 = vmatpush1.msra.mxu0 0.0
    %5683 = vmatprep.subr.mxu0 0.0
    %5684 = vmatpush1.msra.mxu0 0.0
    %5685 = vmatprep.mubr.f32.mxu0 0.0
    %5686 = vmatmul.mubr.f32.gmra.mrb[0].mxu0 %v5598
    %v5687 = vpop.f32.mrb[0].mxu0
    %v5688 = vadd.f32 0.0, %v5687
    %v5689 = vpop.f32.mrb[0].mxu0
    %5690 = vmatprep.mubr.f32.mxu0 0.0
    %5691 = vmatmul.mubr.f32.gmra.mrb[0].mxu0 %v5601
    %v5692 = vpop.f32.mrb[0].mxu0
    %v5693 = vadd.f32 0.0, %v5692
    %v5694 = vpop.f32.mrb[0].mxu0
    %5695 = vmatprep.mubr.f32.mxu0 0.0
    %5696 = vmatmul.mubr.f32.gmra.mrb[0].mxu0 %v5604
    %v5697 = vpop.f32.mrb[0].mxu0
    %v5698 = vadd.f32 0.0, %v5697
    %v5699 = vpop.f32.mrb[0].mxu0
    %5700 = vmatprep.mubr.f32.mxu0 0.0
    %5701 = vmatmul.mubr.f32.gmra.mrb[0].mxu0 %v5607
    %v5702 = vpop.f32.mrb[0].mxu0
    %v5703 = vadd.f32 0.0, %v5702
    %v5704 = vpop.f32.mrb[0].mxu0
    %5705 = vmatprep.mubr.f32.mxu0 0.0
    %5706 = vmatmul.mubr.f32.gmra.mrb[0].mxu0 %v5610
    %v5707 = vpop.f32.mrb[0].mxu0
    %v5708 = vadd.f32 0.0, %v5707
    %v5709 = vpop.f32.mrb[0].mxu0
    %5710 = vmatprep.mubr.f32.mxu0 0.0
    %5711 = vmatmul.mubr.f32.gmra.mrb[0].mxu0 %v5613
    %v5712 = vpop.f32.mrb[0].mxu0
    %v5713 = vadd.f32 0.0, %v5712
    %v5714 = vpop.f32.mrb[0].mxu0
    %5715 = vmatprep.mubr.f32.mxu0 0.0
    %5716 = vmatmul.mubr.f32.gmra.mrb[0].mxu0 %v5616
    %v5717 = vpop.f32.mrb[0].mxu0
    %v5718 = vadd.f32 0.0, %v5717
    %v5719 = vpop.f32.mrb[0].mxu0
    %5720 = vmatprep.mubr.f32.mxu0 0.0
    %5721 = vmatmul.mubr.f32.gmra.mrb[0].mxu0 %v5619
    %v5722 = vpop.f32.mrb[0].mxu0
    %v5723 = vadd.f32 0.0, %v5722
    %v5724 = vpop.f32.mrb[0].mxu0
    %5725 = vdwg.mxu0
    %v5726 = vadd.f32 %v5580, %v5688
    %v5727 = vadd.f32 %v5581, %v5693
    %v5728 = vadd.f32 %v5582, %v5698
    %v5729 = vadd.f32 %v5583, %v5703
    %v5730 = vadd.f32 %v5584, %v5708
    %v5731 = vadd.f32 %v5585, %v5713
    %v5732 = vadd.f32 %v5586, %v5718
    %v5733 = vadd.f32 %v5587, %v5723
    %s5734 = scalar_lea.vmem %s5, 512
    %v5735 = vld [vmem:[%s5734] sm:$0xff]
    %v5736 = vld [vmem:[%s5734 + $0x8] sm:$0xff]
    %v5737 = vld [vmem:[%s5734 + $0x10] sm:$0xff]
    %v5738 = vld [vmem:[%s5734 + $0x18] sm:$0xff]
    %v5739 = vld [vmem:[%s5734 + $0x20] sm:$0xff]
    %v5740 = vld [vmem:[%s5734 + $0x28] sm:$0xff]
    %v5741 = vld [vmem:[%s5734 + $0x30] sm:$0xff]
    %v5742 = vld [vmem:[%s5734 + $0x38] sm:$0xff]
    %v5744 = vsel %vm4599, %v5735, 0
    %v5747 = vsel %vm4599, %v5736, 0
    %v5750 = vsel %vm4599, %v5737, 0
    %v5753 = vsel %vm4599, %v5738, 0
    %v5756 = vsel %vm4599, %v5739, 0
    %v5759 = vsel %vm4599, %v5740, 0
    %v5762 = vsel %vm4599, %v5741, 0
    %v5765 = vsel %vm4599, %v5742, 0
    %5767 = vmatprep.subr.mxu0 0.0
    %5768 = vmatpush1.msra.mxu0 %v4414
    %5769 = vmatprep.subr.mxu0 0.0
    %5770 = vmatpush1.msra.mxu0 %v4458
    %5771 = vmatprep.subr.mxu0 0.0
    %5772 = vmatpush1.msra.mxu0 %v4502
    %5773 = vmatprep.subr.mxu0 0.0
    %5774 = vmatpush1.msra.mxu0 %v4546
    %5775 = vmatprep.subr.mxu0 0.0
    %5776 = vmatpush1.msra.mxu0 0.0
    %5777 = vmatprep.subr.mxu0 0.0
    %5778 = vmatpush1.msra.mxu0 0.0
    %5779 = vmatprep.subr.mxu0 0.0
    %5780 = vmatpush1.msra.mxu0 0.0
    %5781 = vmatprep.subr.mxu0 0.0
    %5782 = vmatpush1.msra.mxu0 0.0
    %5783 = vmatprep.subr.mxu0 0.0
    %5784 = vmatpush1.msra.mxu0 0.0
    %5785 = vmatprep.subr.mxu0 0.0
    %5786 = vmatpush1.msra.mxu0 0.0
    %5787 = vmatprep.subr.mxu0 0.0
    %5788 = vmatpush1.msra.mxu0 0.0
    %5789 = vmatprep.subr.mxu0 0.0
    %5790 = vmatpush1.msra.mxu0 0.0
    %5791 = vmatprep.subr.mxu0 0.0
    %5792 = vmatpush1.msra.mxu0 0.0
    %5793 = vmatprep.subr.mxu0 0.0
    %5794 = vmatpush1.msra.mxu0 0.0
    %5795 = vmatprep.subr.mxu0 0.0
    %5796 = vmatpush1.msra.mxu0 0.0
    %5797 = vmatprep.subr.mxu0 0.0
    %5798 = vmatpush1.msra.mxu0 0.0
    %5799 = vmatprep.subr.mxu0 0.0
    %5800 = vmatpush1.msra.mxu0 0.0
    %5801 = vmatprep.subr.mxu0 0.0
    %5802 = vmatpush1.msra.mxu0 0.0
    %5803 = vmatprep.subr.mxu0 0.0
    %5804 = vmatpush1.msra.mxu0 0.0
    %5805 = vmatprep.subr.mxu0 0.0
    %5806 = vmatpush1.msra.mxu0 0.0
    %5807 = vmatprep.subr.mxu0 0.0
    %5808 = vmatpush1.msra.mxu0 0.0
    %5809 = vmatprep.subr.mxu0 0.0
    %5810 = vmatpush1.msra.mxu0 0.0
    %5811 = vmatprep.subr.mxu0 0.0
    %5812 = vmatpush1.msra.mxu0 0.0
    %5813 = vmatprep.subr.mxu0 0.0
    %5814 = vmatpush1.msra.mxu0 0.0
    %5815 = vmatprep.subr.mxu0 0.0
    %5816 = vmatpush1.msra.mxu0 0.0
    %5817 = vmatprep.subr.mxu0 0.0
    %5818 = vmatpush1.msra.mxu0 0.0
    %5819 = vmatprep.subr.mxu0 0.0
    %5820 = vmatpush1.msra.mxu0 0.0
    %5821 = vmatprep.subr.mxu0 0.0
    %5822 = vmatpush1.msra.mxu0 0.0
    %5823 = vmatprep.subr.mxu0 0.0
    %5824 = vmatpush1.msra.mxu0 0.0
    %5825 = vmatprep.subr.mxu0 0.0
    %5826 = vmatpush1.msra.mxu0 0.0
    %5827 = vmatprep.subr.mxu0 0.0
    %5828 = vmatpush1.msra.mxu0 0.0
    %5829 = vmatprep.subr.mxu0 0.0
    %5830 = vmatpush1.msra.mxu0 0.0
    %5831 = vmatprep.mubr.f32.mxu0 0.0
    %5832 = vmatmul.mubr.f32.gmra.mrb[0].mxu0 %v5744
    %v5833 = vpop.f32.mrb[0].mxu0
    %v5834 = vadd.f32 0.0, %v5833
    %v5835 = vpop.f32.mrb[0].mxu0
    %5836 = vmatprep.mubr.f32.mxu0 0.0
    %5837 = vmatmul.mubr.f32.gmra.mrb[0].mxu0 %v5747
    %v5838 = vpop.f32.mrb[0].mxu0
    %v5839 = vadd.f32 0.0, %v5838
    %v5840 = vpop.f32.mrb[0].mxu0
    %5841 = vmatprep.mubr.f32.mxu0 0.0
    %5842 = vmatmul.mubr.f32.gmra.mrb[0].mxu0 %v5750
    %v5843 = vpop.f32.mrb[0].mxu0
    %v5844 = vadd.f32 0.0, %v5843
    %v5845 = vpop.f32.mrb[0].mxu0
    %5846 = vmatprep.mubr.f32.mxu0 0.0
    %5847 = vmatmul.mubr.f32.gmra.mrb[0].mxu0 %v5753
    %v5848 = vpop.f32.mrb[0].mxu0
    %v5849 = vadd.f32 0.0, %v5848
    %v5850 = vpop.f32.mrb[0].mxu0
    %5851 = vmatprep.mubr.f32.mxu0 0.0
    %5852 = vmatmul.mubr.f32.gmra.mrb[0].mxu0 %v5756
    %v5853 = vpop.f32.mrb[0].mxu0
    %v5854 = vadd.f32 0.0, %v5853
    %v5855 = vpop.f32.mrb[0].mxu0
    %5856 = vmatprep.mubr.f32.mxu0 0.0
    %5857 = vmatmul.mubr.f32.gmra.mrb[0].mxu0 %v5759
    %v5858 = vpop.f32.mrb[0].mxu0
    %v5859 = vadd.f32 0.0, %v5858
    %v5860 = vpop.f32.mrb[0].mxu0
    %5861 = vmatprep.mubr.f32.mxu0 0.0
    %5862 = vmatmul.mubr.f32.gmra.mrb[0].mxu0 %v5762
    %v5863 = vpop.f32.mrb[0].mxu0
    %v5864 = vadd.f32 0.0, %v5863
    %v5865 = vpop.f32.mrb[0].mxu0
    %5866 = vmatprep.mubr.f32.mxu0 0.0
    %5867 = vmatmul.mubr.f32.gmra.mrb[0].mxu0 %v5765
    %v5868 = vpop.f32.mrb[0].mxu0
    %v5869 = vadd.f32 0.0, %v5868
    %v5870 = vpop.f32.mrb[0].mxu0
    %5871 = vdwg.mxu0
    %v5872 = vadd.f32 %v5726, %v5834
    %v5873 = vadd.f32 %v5727, %v5839
    %v5874 = vadd.f32 %v5728, %v5844
    %v5875 = vadd.f32 %v5729, %v5849
    %v5876 = vadd.f32 %v5730, %v5854
    %v5877 = vadd.f32 %v5731, %v5859
    %v5878 = vadd.f32 %v5732, %v5864
    %v5879 = vadd.f32 %v5733, %v5869
    %s5880 = scalar_lea.vmem %s5, 576
    %v5881 = vld [vmem:[%s5880] sm:$0xff]
    %v5882 = vld [vmem:[%s5880 + $0x8] sm:$0xff]
    %v5883 = vld [vmem:[%s5880 + $0x10] sm:$0xff]
    %v5884 = vld [vmem:[%s5880 + $0x18] sm:$0xff]
    %v5885 = vld [vmem:[%s5880 + $0x20] sm:$0xff]
    %v5886 = vld [vmem:[%s5880 + $0x28] sm:$0xff]
    %v5887 = vld [vmem:[%s5880 + $0x30] sm:$0xff]
    %v5888 = vld [vmem:[%s5880 + $0x38] sm:$0xff]
    %v5890 = vsel %vm4599, %v5881, 0
    %v5893 = vsel %vm4599, %v5882, 0
    %v5896 = vsel %vm4599, %v5883, 0
    %v5899 = vsel %vm4599, %v5884, 0
    %v5902 = vsel %vm4599, %v5885, 0
    %v5905 = vsel %vm4599, %v5886, 0
    %v5908 = vsel %vm4599, %v5887, 0
    %v5911 = vsel %vm4599, %v5888, 0
    %5913 = vmatprep.subr.mxu0 0.0
    %5914 = vmatpush1.msra.mxu0 %v4415
    %5915 = vmatprep.subr.mxu0 0.0
    %5916 = vmatpush1.msra.mxu0 %v4459
    %5917 = vmatprep.subr.mxu0 0.0
    %5918 = vmatpush1.msra.mxu0 %v4503
    %5919 = vmatprep.subr.mxu0 0.0
    %5920 = vmatpush1.msra.mxu0 %v4547
    %5921 = vmatprep.subr.mxu0 0.0
    %5922 = vmatpush1.msra.mxu0 0.0
    %5923 = vmatprep.subr.mxu0 0.0
    %5924 = vmatpush1.msra.mxu0 0.0
    %5925 = vmatprep.subr.mxu0 0.0
    %5926 = vmatpush1.msra.mxu0 0.0
    %5927 = vmatprep.subr.mxu0 0.0
    %5928 = vmatpush1.msra.mxu0 0.0
    %5929 = vmatprep.subr.mxu0 0.0
    %5930 = vmatpush1.msra.mxu0 0.0
    %5931 = vmatprep.subr.mxu0 0.0
    %5932 = vmatpush1.msra.mxu0 0.0
    %5933 = vmatprep.subr.mxu0 0.0
    %5934 = vmatpush1.msra.mxu0 0.0
    %5935 = vmatprep.subr.mxu0 0.0
    %5936 = vmatpush1.msra.mxu0 0.0
    %5937 = vmatprep.subr.mxu0 0.0
    %5938 = vmatpush1.msra.mxu0 0.0
    %5939 = vmatprep.subr.mxu0 0.0
    %5940 = vmatpush1.msra.mxu0 0.0
    %5941 = vmatprep.subr.mxu0 0.0
    %5942 = vmatpush1.msra.mxu0 0.0
    %5943 = vmatprep.subr.mxu0 0.0
    %5944 = vmatpush1.msra.mxu0 0.0
    %5945 = vmatprep.subr.mxu0 0.0
    %5946 = vmatpush1.msra.mxu0 0.0
    %5947 = vmatprep.subr.mxu0 0.0
    %5948 = vmatpush1.msra.mxu0 0.0
    %5949 = vmatprep.subr.mxu0 0.0
    %5950 = vmatpush1.msra.mxu0 0.0
    %5951 = vmatprep.subr.mxu0 0.0
    %5952 = vmatpush1.msra.mxu0 0.0
    %5953 = vmatprep.subr.mxu0 0.0
    %5954 = vmatpush1.msra.mxu0 0.0
    %5955 = vmatprep.subr.mxu0 0.0
    %5956 = vmatpush1.msra.mxu0 0.0
    %5957 = vmatprep.subr.mxu0 0.0
    %5958 = vmatpush1.msra.mxu0 0.0
    %5959 = vmatprep.subr.mxu0 0.0
    %5960 = vmatpush1.msra.mxu0 0.0
    %5961 = vmatprep.subr.mxu0 0.0
    %5962 = vmatpush1.msra.mxu0 0.0
    %5963 = vmatprep.subr.mxu0 0.0
    %5964 = vmatpush1.msra.mxu0 0.0
    %5965 = vmatprep.subr.mxu0 0.0
    %5966 = vmatpush1.msra.mxu0 0.0
    %5967 = vmatprep.subr.mxu0 0.0
    %5968 = vmatpush1.msra.mxu0 0.0
    %5969 = vmatprep.subr.mxu0 0.0
    %5970 = vmatpush1.msra.mxu0 0.0
    %5971 = vmatprep.subr.mxu0 0.0
    %5972 = vmatpush1.msra.mxu0 0.0
    %5973 = vmatprep.subr.mxu0 0.0
    %5974 = vmatpush1.msra.mxu0 0.0
    %5975 = vmatprep.subr.mxu0 0.0
    %5976 = vmatpush1.msra.mxu0 0.0
    %5977 = vmatprep.mubr.f32.mxu0 0.0
    %5978 = vmatmul.mubr.f32.gmra.mrb[0].mxu0 %v5890
    %v5979 = vpop.f32.mrb[0].mxu0
    %v5980 = vadd.f32 0.0, %v5979
    %v5981 = vpop.f32.mrb[0].mxu0
    %5982 = vmatprep.mubr.f32.mxu0 0.0
    %5983 = vmatmul.mubr.f32.gmra.mrb[0].mxu0 %v5893
    %v5984 = vpop.f32.mrb[0].mxu0
    %v5985 = vadd.f32 0.0, %v5984
    %v5986 = vpop.f32.mrb[0].mxu0
    %5987 = vmatprep.mubr.f32.mxu0 0.0
    %5988 = vmatmul.mubr.f32.gmra.mrb[0].mxu0 %v5896
    %v5989 = vpop.f32.mrb[0].mxu0
    %v5990 = vadd.f32 0.0, %v5989
    %v5991 = vpop.f32.mrb[0].mxu0
    %5992 = vmatprep.mubr.f32.mxu0 0.0
    %5993 = vmatmul.mubr.f32.gmra.mrb[0].mxu0 %v5899
    %v5994 = vpop.f32.mrb[0].mxu0
    %v5995 = vadd.f32 0.0, %v5994
    %v5996 = vpop.f32.mrb[0].mxu0
    %5997 = vmatprep.mubr.f32.mxu0 0.0
    %5998 = vmatmul.mubr.f32.gmra.mrb[0].mxu0 %v5902
    %v5999 = vpop.f32.mrb[0].mxu0
    %v6000 = vadd.f32 0.0, %v5999
    %v6001 = vpop.f32.mrb[0].mxu0
    %6002 = vmatprep.mubr.f32.mxu0 0.0
    %6003 = vmatmul.mubr.f32.gmra.mrb[0].mxu0 %v5905
    %v6004 = vpop.f32.mrb[0].mxu0
    %v6005 = vadd.f32 0.0, %v6004
    %v6006 = vpop.f32.mrb[0].mxu0
    %6007 = vmatprep.mubr.f32.mxu0 0.0
    %6008 = vmatmul.mubr.f32.gmra.mrb[0].mxu0 %v5908
    %v6009 = vpop.f32.mrb[0].mxu0
    %v6010 = vadd.f32 0.0, %v6009
    %v6011 = vpop.f32.mrb[0].mxu0
    %6012 = vmatprep.mubr.f32.mxu0 0.0
    %6013 = vmatmul.mubr.f32.gmra.mrb[0].mxu0 %v5911
    %v6014 = vpop.f32.mrb[0].mxu0
    %v6015 = vadd.f32 0.0, %v6014
    %v6016 = vpop.f32.mrb[0].mxu0
    %6017 = vdwg.mxu0
    %v6018 = vadd.f32 %v5872, %v5980
    %v6019 = vadd.f32 %v5873, %v5985
    %v6020 = vadd.f32 %v5874, %v5990
    %v6021 = vadd.f32 %v5875, %v5995
    %v6022 = vadd.f32 %v5876, %v6000
    %v6023 = vadd.f32 %v5877, %v6005
    %v6024 = vadd.f32 %v5878, %v6010
    %v6025 = vadd.f32 %v5879, %v6015
    %s6026 = scalar_lea.vmem %s5, 640
    %v6027 = vld [vmem:[%s6026] sm:$0xff]
    %v6028 = vld [vmem:[%s6026 + $0x8] sm:$0xff]
    %v6029 = vld [vmem:[%s6026 + $0x10] sm:$0xff]
    %v6030 = vld [vmem:[%s6026 + $0x18] sm:$0xff]
    %v6031 = vld [vmem:[%s6026 + $0x20] sm:$0xff]
    %v6032 = vld [vmem:[%s6026 + $0x28] sm:$0xff]
    %v6033 = vld [vmem:[%s6026 + $0x30] sm:$0xff]
    %v6034 = vld [vmem:[%s6026 + $0x38] sm:$0xff]
    %v6036 = vsel %vm4599, %v6027, 0
    %v6039 = vsel %vm4599, %v6028, 0
    %v6042 = vsel %vm4599, %v6029, 0
    %v6045 = vsel %vm4599, %v6030, 0
    %v6048 = vsel %vm4599, %v6031, 0
    %v6051 = vsel %vm4599, %v6032, 0
    %v6054 = vsel %vm4599, %v6033, 0
    %v6057 = vsel %vm4599, %v6034, 0
    %6059 = vmatprep.subr.mxu0 0.0
    %6060 = vmatpush1.msra.mxu0 %v4416
    %6061 = vmatprep.subr.mxu0 0.0
    %6062 = vmatpush1.msra.mxu0 %v4460
    %6063 = vmatprep.subr.mxu0 0.0
    %6064 = vmatpush1.msra.mxu0 %v4504
    %6065 = vmatprep.subr.mxu0 0.0
    %6066 = vmatpush1.msra.mxu0 %v4548
    %6067 = vmatprep.subr.mxu0 0.0
    %6068 = vmatpush1.msra.mxu0 0.0
    %6069 = vmatprep.subr.mxu0 0.0
    %6070 = vmatpush1.msra.mxu0 0.0
    %6071 = vmatprep.subr.mxu0 0.0
    %6072 = vmatpush1.msra.mxu0 0.0
    %6073 = vmatprep.subr.mxu0 0.0
    %6074 = vmatpush1.msra.mxu0 0.0
    %6075 = vmatprep.subr.mxu0 0.0
    %6076 = vmatpush1.msra.mxu0 0.0
    %6077 = vmatprep.subr.mxu0 0.0
    %6078 = vmatpush1.msra.mxu0 0.0
    %6079 = vmatprep.subr.mxu0 0.0
    %6080 = vmatpush1.msra.mxu0 0.0
    %6081 = vmatprep.subr.mxu0 0.0
    %6082 = vmatpush1.msra.mxu0 0.0
    %6083 = vmatprep.subr.mxu0 0.0
    %6084 = vmatpush1.msra.mxu0 0.0
    %6085 = vmatprep.subr.mxu0 0.0
    %6086 = vmatpush1.msra.mxu0 0.0
    %6087 = vmatprep.subr.mxu0 0.0
    %6088 = vmatpush1.msra.mxu0 0.0
    %6089 = vmatprep.subr.mxu0 0.0
    %6090 = vmatpush1.msra.mxu0 0.0
    %6091 = vmatprep.subr.mxu0 0.0
    %6092 = vmatpush1.msra.mxu0 0.0
    %6093 = vmatprep.subr.mxu0 0.0
    %6094 = vmatpush1.msra.mxu0 0.0
    %6095 = vmatprep.subr.mxu0 0.0
    %6096 = vmatpush1.msra.mxu0 0.0
    %6097 = vmatprep.subr.mxu0 0.0
    %6098 = vmatpush1.msra.mxu0 0.0
    %6099 = vmatprep.subr.mxu0 0.0
    %6100 = vmatpush1.msra.mxu0 0.0
    %6101 = vmatprep.subr.mxu0 0.0
    %6102 = vmatpush1.msra.mxu0 0.0
    %6103 = vmatprep.subr.mxu0 0.0
    %6104 = vmatpush1.msra.mxu0 0.0
    %6105 = vmatprep.subr.mxu0 0.0
    %6106 = vmatpush1.msra.mxu0 0.0
    %6107 = vmatprep.subr.mxu0 0.0
    %6108 = vmatpush1.msra.mxu0 0.0
    %6109 = vmatprep.subr.mxu0 0.0
    %6110 = vmatpush1.msra.mxu0 0.0
    %6111 = vmatprep.subr.mxu0 0.0
    %6112 = vmatpush1.msra.mxu0 0.0
    %6113 = vmatprep.subr.mxu0 0.0
    %6114 = vmatpush1.msra.mxu0 0.0
    %6115 = vmatprep.subr.mxu0 0.0
    %6116 = vmatpush1.msra.mxu0 0.0
    %6117 = vmatprep.subr.mxu0 0.0
    %6118 = vmatpush1.msra.mxu0 0.0
    %6119 = vmatprep.subr.mxu0 0.0
    %6120 = vmatpush1.msra.mxu0 0.0
    %6121 = vmatprep.subr.mxu0 0.0
    %6122 = vmatpush1.msra.mxu0 0.0
    %6123 = vmatprep.mubr.f32.mxu0 0.0
    %6124 = vmatmul.mubr.f32.gmra.mrb[0].mxu0 %v6036
    %v6125 = vpop.f32.mrb[0].mxu0
    %v6126 = vadd.f32 0.0, %v6125
    %v6127 = vpop.f32.mrb[0].mxu0
    %6128 = vmatprep.mubr.f32.mxu0 0.0
    %6129 = vmatmul.mubr.f32.gmra.mrb[0].mxu0 %v6039
    %v6130 = vpop.f32.mrb[0].mxu0
    %v6131 = vadd.f32 0.0, %v6130
    %v6132 = vpop.f32.mrb[0].mxu0
    %6133 = vmatprep.mubr.f32.mxu0 0.0
    %6134 = vmatmul.mubr.f32.gmra.mrb[0].mxu0 %v6042
    %v6135 = vpop.f32.mrb[0].mxu0
    %v6136 = vadd.f32 0.0, %v6135
    %v6137 = vpop.f32.mrb[0].mxu0
    %6138 = vmatprep.mubr.f32.mxu0 0.0
    %6139 = vmatmul.mubr.f32.gmra.mrb[0].mxu0 %v6045
    %v6140 = vpop.f32.mrb[0].mxu0
    %v6141 = vadd.f32 0.0, %v6140
    %v6142 = vpop.f32.mrb[0].mxu0
    %6143 = vmatprep.mubr.f32.mxu0 0.0
    %6144 = vmatmul.mubr.f32.gmra.mrb[0].mxu0 %v6048
    %v6145 = vpop.f32.mrb[0].mxu0
    %v6146 = vadd.f32 0.0, %v6145
    %v6147 = vpop.f32.mrb[0].mxu0
    %6148 = vmatprep.mubr.f32.mxu0 0.0
    %6149 = vmatmul.mubr.f32.gmra.mrb[0].mxu0 %v6051
    %v6150 = vpop.f32.mrb[0].mxu0
    %v6151 = vadd.f32 0.0, %v6150
    %v6152 = vpop.f32.mrb[0].mxu0
    %6153 = vmatprep.mubr.f32.mxu0 0.0
    %6154 = vmatmul.mubr.f32.gmra.mrb[0].mxu0 %v6054
    %v6155 = vpop.f32.mrb[0].mxu0
    %v6156 = vadd.f32 0.0, %v6155
    %v6157 = vpop.f32.mrb[0].mxu0
    %6158 = vmatprep.mubr.f32.mxu0 0.0
    %6159 = vmatmul.mubr.f32.gmra.mrb[0].mxu0 %v6057
    %v6160 = vpop.f32.mrb[0].mxu0
    %v6161 = vadd.f32 0.0, %v6160
    %v6162 = vpop.f32.mrb[0].mxu0
    %6163 = vdwg.mxu0
    %v6164 = vadd.f32 %v6018, %v6126
    %v6165 = vadd.f32 %v6019, %v6131
    %v6166 = vadd.f32 %v6020, %v6136
    %v6167 = vadd.f32 %v6021, %v6141
    %v6168 = vadd.f32 %v6022, %v6146
    %v6169 = vadd.f32 %v6023, %v6151
    %v6170 = vadd.f32 %v6024, %v6156
    %v6171 = vadd.f32 %v6025, %v6161
    %s6172 = scalar_lea.vmem %s5, 704
    %v6173 = vld [vmem:[%s6172] sm:$0xff]
    %v6174 = vld [vmem:[%s6172 + $0x8] sm:$0xff]
    %v6175 = vld [vmem:[%s6172 + $0x10] sm:$0xff]
    %v6176 = vld [vmem:[%s6172 + $0x18] sm:$0xff]
    %v6177 = vld [vmem:[%s6172 + $0x20] sm:$0xff]
    %v6178 = vld [vmem:[%s6172 + $0x28] sm:$0xff]
    %v6179 = vld [vmem:[%s6172 + $0x30] sm:$0xff]
    %v6180 = vld [vmem:[%s6172 + $0x38] sm:$0xff]
    %v6182 = vsel %vm4599, %v6173, 0
    %v6185 = vsel %vm4599, %v6174, 0
    %v6188 = vsel %vm4599, %v6175, 0
    %v6191 = vsel %vm4599, %v6176, 0
    %v6194 = vsel %vm4599, %v6177, 0
    %v6197 = vsel %vm4599, %v6178, 0
    %v6200 = vsel %vm4599, %v6179, 0
    %v6203 = vsel %vm4599, %v6180, 0
    %6205 = vmatprep.subr.mxu0 0.0
    %6206 = vmatpush1.msra.mxu0 %v4417
    %6207 = vmatprep.subr.mxu0 0.0
    %6208 = vmatpush1.msra.mxu0 %v4461
    %6209 = vmatprep.subr.mxu0 0.0
    %6210 = vmatpush1.msra.mxu0 %v4505
    %6211 = vmatprep.subr.mxu0 0.0
    %6212 = vmatpush1.msra.mxu0 %v4549
    %6213 = vmatprep.subr.mxu0 0.0
    %6214 = vmatpush1.msra.mxu0 0.0
    %6215 = vmatprep.subr.mxu0 0.0
    %6216 = vmatpush1.msra.mxu0 0.0
    %6217 = vmatprep.subr.mxu0 0.0
    %6218 = vmatpush1.msra.mxu0 0.0
    %6219 = vmatprep.subr.mxu0 0.0
    %6220 = vmatpush1.msra.mxu0 0.0
    %6221 = vmatprep.subr.mxu0 0.0
    %6222 = vmatpush1.msra.mxu0 0.0
    %6223 = vmatprep.subr.mxu0 0.0
    %6224 = vmatpush1.msra.mxu0 0.0
    %6225 = vmatprep.subr.mxu0 0.0
    %6226 = vmatpush1.msra.mxu0 0.0
    %6227 = vmatprep.subr.mxu0 0.0
    %6228 = vmatpush1.msra.mxu0 0.0
    %6229 = vmatprep.subr.mxu0 0.0
    %6230 = vmatpush1.msra.mxu0 0.0
    %6231 = vmatprep.subr.mxu0 0.0
    %6232 = vmatpush1.msra.mxu0 0.0
    %6233 = vmatprep.subr.mxu0 0.0
    %6234 = vmatpush1.msra.mxu0 0.0
    %6235 = vmatprep.subr.mxu0 0.0
    %6236 = vmatpush1.msra.mxu0 0.0
    %6237 = vmatprep.subr.mxu0 0.0
    %6238 = vmatpush1.msra.mxu0 0.0
    %6239 = vmatprep.subr.mxu0 0.0
    %6240 = vmatpush1.msra.mxu0 0.0
    %6241 = vmatprep.subr.mxu0 0.0
    %6242 = vmatpush1.msra.mxu0 0.0
    %6243 = vmatprep.subr.mxu0 0.0
    %6244 = vmatpush1.msra.mxu0 0.0
    %6245 = vmatprep.subr.mxu0 0.0
    %6246 = vmatpush1.msra.mxu0 0.0
    %6247 = vmatprep.subr.mxu0 0.0
    %6248 = vmatpush1.msra.mxu0 0.0
    %6249 = vmatprep.subr.mxu0 0.0
    %6250 = vmatpush1.msra.mxu0 0.0
    %6251 = vmatprep.subr.mxu0 0.0
    %6252 = vmatpush1.msra.mxu0 0.0
    %6253 = vmatprep.subr.mxu0 0.0
    %6254 = vmatpush1.msra.mxu0 0.0
    %6255 = vmatprep.subr.mxu0 0.0
    %6256 = vmatpush1.msra.mxu0 0.0
    %6257 = vmatprep.subr.mxu0 0.0
    %6258 = vmatpush1.msra.mxu0 0.0
    %6259 = vmatprep.subr.mxu0 0.0
    %6260 = vmatpush1.msra.mxu0 0.0
    %6261 = vmatprep.subr.mxu0 0.0
    %6262 = vmatpush1.msra.mxu0 0.0
    %6263 = vmatprep.subr.mxu0 0.0
    %6264 = vmatpush1.msra.mxu0 0.0
    %6265 = vmatprep.subr.mxu0 0.0
    %6266 = vmatpush1.msra.mxu0 0.0
    %6267 = vmatprep.subr.mxu0 0.0
    %6268 = vmatpush1.msra.mxu0 0.0
    %6269 = vmatprep.mubr.f32.mxu0 0.0
    %6270 = vmatmul.mubr.f32.gmra.mrb[0].mxu0 %v6182
    %v6271 = vpop.f32.mrb[0].mxu0
    %v6272 = vadd.f32 0.0, %v6271
    %v6273 = vpop.f32.mrb[0].mxu0
    %6274 = vmatprep.mubr.f32.mxu0 0.0
    %6275 = vmatmul.mubr.f32.gmra.mrb[0].mxu0 %v6185
    %v6276 = vpop.f32.mrb[0].mxu0
    %v6277 = vadd.f32 0.0, %v6276
    %v6278 = vpop.f32.mrb[0].mxu0
    %6279 = vmatprep.mubr.f32.mxu0 0.0
    %6280 = vmatmul.mubr.f32.gmra.mrb[0].mxu0 %v6188
    %v6281 = vpop.f32.mrb[0].mxu0
    %v6282 = vadd.f32 0.0, %v6281
    %v6283 = vpop.f32.mrb[0].mxu0
    %6284 = vmatprep.mubr.f32.mxu0 0.0
    %6285 = vmatmul.mubr.f32.gmra.mrb[0].mxu0 %v6191
    %v6286 = vpop.f32.mrb[0].mxu0
    %v6287 = vadd.f32 0.0, %v6286
    %v6288 = vpop.f32.mrb[0].mxu0
    %6289 = vmatprep.mubr.f32.mxu0 0.0
    %6290 = vmatmul.mubr.f32.gmra.mrb[0].mxu0 %v6194
    %v6291 = vpop.f32.mrb[0].mxu0
    %v6292 = vadd.f32 0.0, %v6291
    %v6293 = vpop.f32.mrb[0].mxu0
    %6294 = vmatprep.mubr.f32.mxu0 0.0
    %6295 = vmatmul.mubr.f32.gmra.mrb[0].mxu0 %v6197
    %v6296 = vpop.f32.mrb[0].mxu0
    %v6297 = vadd.f32 0.0, %v6296
    %v6298 = vpop.f32.mrb[0].mxu0
    %6299 = vmatprep.mubr.f32.mxu0 0.0
    %6300 = vmatmul.mubr.f32.gmra.mrb[0].mxu0 %v6200
    %v6301 = vpop.f32.mrb[0].mxu0
    %v6302 = vadd.f32 0.0, %v6301
    %v6303 = vpop.f32.mrb[0].mxu0
    %6304 = vmatprep.mubr.f32.mxu0 0.0
    %6305 = vmatmul.mubr.f32.gmra.mrb[0].mxu0 %v6203
    %v6306 = vpop.f32.mrb[0].mxu0
    %v6307 = vadd.f32 0.0, %v6306
    %v6308 = vpop.f32.mrb[0].mxu0
    %6309 = vdwg.mxu0
    %v6310 = vadd.f32 %v6164, %v6272
    %v6311 = vadd.f32 %v6165, %v6277
    %v6312 = vadd.f32 %v6166, %v6282
    %v6313 = vadd.f32 %v6167, %v6287
    %v6314 = vadd.f32 %v6168, %v6292
    %v6315 = vadd.f32 %v6169, %v6297
    %v6316 = vadd.f32 %v6170, %v6302
    %v6317 = vadd.f32 %v6171, %v6307
    %s6318 = scalar_lea.vmem %s5, 768
    %v6319 = vld [vmem:[%s6318] sm:$0xff]
    %v6320 = vld [vmem:[%s6318 + $0x8] sm:$0xff]
    %v6321 = vld [vmem:[%s6318 + $0x10] sm:$0xff]
    %v6322 = vld [vmem:[%s6318 + $0x18] sm:$0xff]
    %v6323 = vld [vmem:[%s6318 + $0x20] sm:$0xff]
    %v6324 = vld [vmem:[%s6318 + $0x28] sm:$0xff]
    %v6325 = vld [vmem:[%s6318 + $0x30] sm:$0xff]
    %v6326 = vld [vmem:[%s6318 + $0x38] sm:$0xff]
    %v6328 = vsel %vm4599, %v6319, 0
    %v6331 = vsel %vm4599, %v6320, 0
    %v6334 = vsel %vm4599, %v6321, 0
    %v6337 = vsel %vm4599, %v6322, 0
    %v6340 = vsel %vm4599, %v6323, 0
    %v6343 = vsel %vm4599, %v6324, 0
    %v6346 = vsel %vm4599, %v6325, 0
    %v6349 = vsel %vm4599, %v6326, 0
    %6351 = vmatprep.subr.mxu0 0.0
    %6352 = vmatpush1.msra.mxu0 %v4418
    %6353 = vmatprep.subr.mxu0 0.0
    %6354 = vmatpush1.msra.mxu0 %v4462
    %6355 = vmatprep.subr.mxu0 0.0
    %6356 = vmatpush1.msra.mxu0 %v4506
    %6357 = vmatprep.subr.mxu0 0.0
    %6358 = vmatpush1.msra.mxu0 %v4550
    %6359 = vmatprep.subr.mxu0 0.0
    %6360 = vmatpush1.msra.mxu0 0.0
    %6361 = vmatprep.subr.mxu0 0.0
    %6362 = vmatpush1.msra.mxu0 0.0
    %6363 = vmatprep.subr.mxu0 0.0
    %6364 = vmatpush1.msra.mxu0 0.0
    %6365 = vmatprep.subr.mxu0 0.0
    %6366 = vmatpush1.msra.mxu0 0.0
    %6367 = vmatprep.subr.mxu0 0.0
    %6368 = vmatpush1.msra.mxu0 0.0
    %6369 = vmatprep.subr.mxu0 0.0
    %6370 = vmatpush1.msra.mxu0 0.0
    %6371 = vmatprep.subr.mxu0 0.0
    %6372 = vmatpush1.msra.mxu0 0.0
    %6373 = vmatprep.subr.mxu0 0.0
    %6374 = vmatpush1.msra.mxu0 0.0
    %6375 = vmatprep.subr.mxu0 0.0
    %6376 = vmatpush1.msra.mxu0 0.0
    %6377 = vmatprep.subr.mxu0 0.0
    %6378 = vmatpush1.msra.mxu0 0.0
    %6379 = vmatprep.subr.mxu0 0.0
    %6380 = vmatpush1.msra.mxu0 0.0
    %6381 = vmatprep.subr.mxu0 0.0
    %6382 = vmatpush1.msra.mxu0 0.0
    %6383 = vmatprep.subr.mxu0 0.0
    %6384 = vmatpush1.msra.mxu0 0.0
    %6385 = vmatprep.subr.mxu0 0.0
    %6386 = vmatpush1.msra.mxu0 0.0
    %6387 = vmatprep.subr.mxu0 0.0
    %6388 = vmatpush1.msra.mxu0 0.0
    %6389 = vmatprep.subr.mxu0 0.0
    %6390 = vmatpush1.msra.mxu0 0.0
    %6391 = vmatprep.subr.mxu0 0.0
    %6392 = vmatpush1.msra.mxu0 0.0
    %6393 = vmatprep.subr.mxu0 0.0
    %6394 = vmatpush1.msra.mxu0 0.0
    %6395 = vmatprep.subr.mxu0 0.0
    %6396 = vmatpush1.msra.mxu0 0.0
    %6397 = vmatprep.subr.mxu0 0.0
    %6398 = vmatpush1.msra.mxu0 0.0
    %6399 = vmatprep.subr.mxu0 0.0
    %6400 = vmatpush1.msra.mxu0 0.0
    %6401 = vmatprep.subr.mxu0 0.0
    %6402 = vmatpush1.msra.mxu0 0.0
    %6403 = vmatprep.subr.mxu0 0.0
    %6404 = vmatpush1.msra.mxu0 0.0
    %6405 = vmatprep.subr.mxu0 0.0
    %6406 = vmatpush1.msra.mxu0 0.0
    %6407 = vmatprep.subr.mxu0 0.0
    %6408 = vmatpush1.msra.mxu0 0.0
    %6409 = vmatprep.subr.mxu0 0.0
    %6410 = vmatpush1.msra.mxu0 0.0
    %6411 = vmatprep.subr.mxu0 0.0
    %6412 = vmatpush1.msra.mxu0 0.0
    %6413 = vmatprep.subr.mxu0 0.0
    %6414 = vmatpush1.msra.mxu0 0.0
    %6415 = vmatprep.mubr.f32.mxu0 0.0
    %6416 = vmatmul.mubr.f32.gmra.mrb[0].mxu0 %v6328
    %v6417 = vpop.f32.mrb[0].mxu0
    %v6418 = vadd.f32 0.0, %v6417
    %v6419 = vpop.f32.mrb[0].mxu0
    %6420 = vmatprep.mubr.f32.mxu0 0.0
    %6421 = vmatmul.mubr.f32.gmra.mrb[0].mxu0 %v6331
    %v6422 = vpop.f32.mrb[0].mxu0
    %v6423 = vadd.f32 0.0, %v6422
    %v6424 = vpop.f32.mrb[0].mxu0
    %6425 = vmatprep.mubr.f32.mxu0 0.0
    %6426 = vmatmul.mubr.f32.gmra.mrb[0].mxu0 %v6334
    %v6427 = vpop.f32.mrb[0].mxu0
    %v6428 = vadd.f32 0.0, %v6427
    %v6429 = vpop.f32.mrb[0].mxu0
    %6430 = vmatprep.mubr.f32.mxu0 0.0
    %6431 = vmatmul.mubr.f32.gmra.mrb[0].mxu0 %v6337
    %v6432 = vpop.f32.mrb[0].mxu0
    %v6433 = vadd.f32 0.0, %v6432
    %v6434 = vpop.f32.mrb[0].mxu0
    %6435 = vmatprep.mubr.f32.mxu0 0.0
    %6436 = vmatmul.mubr.f32.gmra.mrb[0].mxu0 %v6340
    %v6437 = vpop.f32.mrb[0].mxu0
    %v6438 = vadd.f32 0.0, %v6437
    %v6439 = vpop.f32.mrb[0].mxu0
    %6440 = vmatprep.mubr.f32.mxu0 0.0
    %6441 = vmatmul.mubr.f32.gmra.mrb[0].mxu0 %v6343
    %v6442 = vpop.f32.mrb[0].mxu0
    %v6443 = vadd.f32 0.0, %v6442
    %v6444 = vpop.f32.mrb[0].mxu0
    %6445 = vmatprep.mubr.f32.mxu0 0.0
    %6446 = vmatmul.mubr.f32.gmra.mrb[0].mxu0 %v6346
    %v6447 = vpop.f32.mrb[0].mxu0
    %v6448 = vadd.f32 0.0, %v6447
    %v6449 = vpop.f32.mrb[0].mxu0
    %6450 = vmatprep.mubr.f32.mxu0 0.0
    %6451 = vmatmul.mubr.f32.gmra.mrb[0].mxu0 %v6349
    %v6452 = vpop.f32.mrb[0].mxu0
    %v6453 = vadd.f32 0.0, %v6452
    %v6454 = vpop.f32.mrb[0].mxu0
    %6455 = vdwg.mxu0
    %v6456 = vadd.f32 %v6310, %v6418
    %v6457 = vadd.f32 %v6311, %v6423
    %v6458 = vadd.f32 %v6312, %v6428
    %v6459 = vadd.f32 %v6313, %v6433
    %v6460 = vadd.f32 %v6314, %v6438
    %v6461 = vadd.f32 %v6315, %v6443
    %v6462 = vadd.f32 %v6316, %v6448
    %v6463 = vadd.f32 %v6317, %v6453
    %s6464 = scalar_lea.vmem %s5, 832
    %v6465 = vld [vmem:[%s6464] sm:$0xff]
    %v6466 = vld [vmem:[%s6464 + $0x8] sm:$0xff]
    %v6467 = vld [vmem:[%s6464 + $0x10] sm:$0xff]
    %v6468 = vld [vmem:[%s6464 + $0x18] sm:$0xff]
    %v6469 = vld [vmem:[%s6464 + $0x20] sm:$0xff]
    %v6470 = vld [vmem:[%s6464 + $0x28] sm:$0xff]
    %v6471 = vld [vmem:[%s6464 + $0x30] sm:$0xff]
    %v6472 = vld [vmem:[%s6464 + $0x38] sm:$0xff]
    %v6474 = vsel %vm4599, %v6465, 0
    %v6477 = vsel %vm4599, %v6466, 0
    %v6480 = vsel %vm4599, %v6467, 0
    %v6483 = vsel %vm4599, %v6468, 0
    %v6486 = vsel %vm4599, %v6469, 0
    %v6489 = vsel %vm4599, %v6470, 0
    %v6492 = vsel %vm4599, %v6471, 0
    %v6495 = vsel %vm4599, %v6472, 0
    %6497 = vmatprep.subr.mxu0 0.0
    %6498 = vmatpush1.msra.mxu0 %v4419
    %6499 = vmatprep.subr.mxu0 0.0
    %6500 = vmatpush1.msra.mxu0 %v4463
    %6501 = vmatprep.subr.mxu0 0.0
    %6502 = vmatpush1.msra.mxu0 %v4507
    %6503 = vmatprep.subr.mxu0 0.0
    %6504 = vmatpush1.msra.mxu0 %v4551
    %6505 = vmatprep.subr.mxu0 0.0
    %6506 = vmatpush1.msra.mxu0 0.0
    %6507 = vmatprep.subr.mxu0 0.0
    %6508 = vmatpush1.msra.mxu0 0.0
    %6509 = vmatprep.subr.mxu0 0.0
    %6510 = vmatpush1.msra.mxu0 0.0
    %6511 = vmatprep.subr.mxu0 0.0
    %6512 = vmatpush1.msra.mxu0 0.0
    %6513 = vmatprep.subr.mxu0 0.0
    %6514 = vmatpush1.msra.mxu0 0.0
    %6515 = vmatprep.subr.mxu0 0.0
    %6516 = vmatpush1.msra.mxu0 0.0
    %6517 = vmatprep.subr.mxu0 0.0
    %6518 = vmatpush1.msra.mxu0 0.0
    %6519 = vmatprep.subr.mxu0 0.0
    %6520 = vmatpush1.msra.mxu0 0.0
    %6521 = vmatprep.subr.mxu0 0.0
    %6522 = vmatpush1.msra.mxu0 0.0
    %6523 = vmatprep.subr.mxu0 0.0
    %6524 = vmatpush1.msra.mxu0 0.0
    %6525 = vmatprep.subr.mxu0 0.0
    %6526 = vmatpush1.msra.mxu0 0.0
    %6527 = vmatprep.subr.mxu0 0.0
    %6528 = vmatpush1.msra.mxu0 0.0
    %6529 = vmatprep.subr.mxu0 0.0
    %6530 = vmatpush1.msra.mxu0 0.0
    %6531 = vmatprep.subr.mxu0 0.0
    %6532 = vmatpush1.msra.mxu0 0.0
    %6533 = vmatprep.subr.mxu0 0.0
    %6534 = vmatpush1.msra.mxu0 0.0
    %6535 = vmatprep.subr.mxu0 0.0
    %6536 = vmatpush1.msra.mxu0 0.0
    %6537 = vmatprep.subr.mxu0 0.0
    %6538 = vmatpush1.msra.mxu0 0.0
    %6539 = vmatprep.subr.mxu0 0.0
    %6540 = vmatpush1.msra.mxu0 0.0
    %6541 = vmatprep.subr.mxu0 0.0
    %6542 = vmatpush1.msra.mxu0 0.0
    %6543 = vmatprep.subr.mxu0 0.0
    %6544 = vmatpush1.msra.mxu0 0.0
    %6545 = vmatprep.subr.mxu0 0.0
    %6546 = vmatpush1.msra.mxu0 0.0
    %6547 = vmatprep.subr.mxu0 0.0
    %6548 = vmatpush1.msra.mxu0 0.0
    %6549 = vmatprep.subr.mxu0 0.0
    %6550 = vmatpush1.msra.mxu0 0.0
    %6551 = vmatprep.subr.mxu0 0.0
    %6552 = vmatpush1.msra.mxu0 0.0
    %6553 = vmatprep.subr.mxu0 0.0
    %6554 = vmatpush1.msra.mxu0 0.0
    %6555 = vmatprep.subr.mxu0 0.0
    %6556 = vmatpush1.msra.mxu0 0.0
    %6557 = vmatprep.subr.mxu0 0.0
    %6558 = vmatpush1.msra.mxu0 0.0
    %6559 = vmatprep.subr.mxu0 0.0
    %6560 = vmatpush1.msra.mxu0 0.0
    %6561 = vmatprep.mubr.f32.mxu0 0.0
    %6562 = vmatmul.mubr.f32.gmra.mrb[0].mxu0 %v6474
    %v6563 = vpop.f32.mrb[0].mxu0
    %v6564 = vadd.f32 0.0, %v6563
    %v6565 = vpop.f32.mrb[0].mxu0
    %6566 = vmatprep.mubr.f32.mxu0 0.0
    %6567 = vmatmul.mubr.f32.gmra.mrb[0].mxu0 %v6477
    %v6568 = vpop.f32.mrb[0].mxu0
    %v6569 = vadd.f32 0.0, %v6568
    %v6570 = vpop.f32.mrb[0].mxu0
    %6571 = vmatprep.mubr.f32.mxu0 0.0
    %6572 = vmatmul.mubr.f32.gmra.mrb[0].mxu0 %v6480
    %v6573 = vpop.f32.mrb[0].mxu0
    %v6574 = vadd.f32 0.0, %v6573
    %v6575 = vpop.f32.mrb[0].mxu0
    %6576 = vmatprep.mubr.f32.mxu0 0.0
    %6577 = vmatmul.mubr.f32.gmra.mrb[0].mxu0 %v6483
    %v6578 = vpop.f32.mrb[0].mxu0
    %v6579 = vadd.f32 0.0, %v6578
    %v6580 = vpop.f32.mrb[0].mxu0
    %6581 = vmatprep.mubr.f32.mxu0 0.0
    %6582 = vmatmul.mubr.f32.gmra.mrb[0].mxu0 %v6486
    %v6583 = vpop.f32.mrb[0].mxu0
    %v6584 = vadd.f32 0.0, %v6583
    %v6585 = vpop.f32.mrb[0].mxu0
    %6586 = vmatprep.mubr.f32.mxu0 0.0
    %6587 = vmatmul.mubr.f32.gmra.mrb[0].mxu0 %v6489
    %v6588 = vpop.f32.mrb[0].mxu0
    %v6589 = vadd.f32 0.0, %v6588
    %v6590 = vpop.f32.mrb[0].mxu0
    %6591 = vmatprep.mubr.f32.mxu0 0.0
    %6592 = vmatmul.mubr.f32.gmra.mrb[0].mxu0 %v6492
    %v6593 = vpop.f32.mrb[0].mxu0
    %v6594 = vadd.f32 0.0, %v6593
    %v6595 = vpop.f32.mrb[0].mxu0
    %6596 = vmatprep.mubr.f32.mxu0 0.0
    %6597 = vmatmul.mubr.f32.gmra.mrb[0].mxu0 %v6495
    %v6598 = vpop.f32.mrb[0].mxu0
    %v6599 = vadd.f32 0.0, %v6598
    %v6600 = vpop.f32.mrb[0].mxu0
    %6601 = vdwg.mxu0
    %v6602 = vadd.f32 %v6456, %v6564
    %v6603 = vadd.f32 %v6457, %v6569
    %v6604 = vadd.f32 %v6458, %v6574
    %v6605 = vadd.f32 %v6459, %v6579
    %v6606 = vadd.f32 %v6460, %v6584
    %v6607 = vadd.f32 %v6461, %v6589
    %v6608 = vadd.f32 %v6462, %v6594
    %v6609 = vadd.f32 %v6463, %v6599
    %s6610 = scalar_lea.vmem %s5, 896
    %v6611 = vld [vmem:[%s6610] sm:$0xff]
    %v6612 = vld [vmem:[%s6610 + $0x8] sm:$0xff]
    %v6613 = vld [vmem:[%s6610 + $0x10] sm:$0xff]
    %v6614 = vld [vmem:[%s6610 + $0x18] sm:$0xff]
    %v6615 = vld [vmem:[%s6610 + $0x20] sm:$0xff]
    %v6616 = vld [vmem:[%s6610 + $0x28] sm:$0xff]
    %v6617 = vld [vmem:[%s6610 + $0x30] sm:$0xff]
    %v6618 = vld [vmem:[%s6610 + $0x38] sm:$0xff]
    %v6620 = vsel %vm4599, %v6611, 0
    %v6623 = vsel %vm4599, %v6612, 0
    %v6626 = vsel %vm4599, %v6613, 0
    %v6629 = vsel %vm4599, %v6614, 0
    %v6632 = vsel %vm4599, %v6615, 0
    %v6635 = vsel %vm4599, %v6616, 0
    %v6638 = vsel %vm4599, %v6617, 0
    %v6641 = vsel %vm4599, %v6618, 0
    %6643 = vmatprep.subr.mxu0 0.0
    %6644 = vmatpush1.msra.mxu0 %v4420
    %6645 = vmatprep.subr.mxu0 0.0
    %6646 = vmatpush1.msra.mxu0 %v4464
    %6647 = vmatprep.subr.mxu0 0.0
    %6648 = vmatpush1.msra.mxu0 %v4508
    %6649 = vmatprep.subr.mxu0 0.0
    %6650 = vmatpush1.msra.mxu0 %v4552
    %6651 = vmatprep.subr.mxu0 0.0
    %6652 = vmatpush1.msra.mxu0 0.0
    %6653 = vmatprep.subr.mxu0 0.0
    %6654 = vmatpush1.msra.mxu0 0.0
    %6655 = vmatprep.subr.mxu0 0.0
    %6656 = vmatpush1.msra.mxu0 0.0
    %6657 = vmatprep.subr.mxu0 0.0
    %6658 = vmatpush1.msra.mxu0 0.0
    %6659 = vmatprep.subr.mxu0 0.0
    %6660 = vmatpush1.msra.mxu0 0.0
    %6661 = vmatprep.subr.mxu0 0.0
    %6662 = vmatpush1.msra.mxu0 0.0
    %6663 = vmatprep.subr.mxu0 0.0
    %6664 = vmatpush1.msra.mxu0 0.0
    %6665 = vmatprep.subr.mxu0 0.0
    %6666 = vmatpush1.msra.mxu0 0.0
    %6667 = vmatprep.subr.mxu0 0.0
    %6668 = vmatpush1.msra.mxu0 0.0
    %6669 = vmatprep.subr.mxu0 0.0
    %6670 = vmatpush1.msra.mxu0 0.0
    %6671 = vmatprep.subr.mxu0 0.0
    %6672 = vmatpush1.msra.mxu0 0.0
    %6673 = vmatprep.subr.mxu0 0.0
    %6674 = vmatpush1.msra.mxu0 0.0
    %6675 = vmatprep.subr.mxu0 0.0
    %6676 = vmatpush1.msra.mxu0 0.0
    %6677 = vmatprep.subr.mxu0 0.0
    %6678 = vmatpush1.msra.mxu0 0.0
    %6679 = vmatprep.subr.mxu0 0.0
    %6680 = vmatpush1.msra.mxu0 0.0
    %6681 = vmatprep.subr.mxu0 0.0
    %6682 = vmatpush1.msra.mxu0 0.0
    %6683 = vmatprep.subr.mxu0 0.0
    %6684 = vmatpush1.msra.mxu0 0.0
    %6685 = vmatprep.subr.mxu0 0.0
    %6686 = vmatpush1.msra.mxu0 0.0
    %6687 = vmatprep.subr.mxu0 0.0
    %6688 = vmatpush1.msra.mxu0 0.0
    %6689 = vmatprep.subr.mxu0 0.0
    %6690 = vmatpush1.msra.mxu0 0.0
    %6691 = vmatprep.subr.mxu0 0.0
    %6692 = vmatpush1.msra.mxu0 0.0
    %6693 = vmatprep.subr.mxu0 0.0
    %6694 = vmatpush1.msra.mxu0 0.0
    %6695 = vmatprep.subr.mxu0 0.0
    %6696 = vmatpush1.msra.mxu0 0.0
    %6697 = vmatprep.subr.mxu0 0.0
    %6698 = vmatpush1.msra.mxu0 0.0
    %6699 = vmatprep.subr.mxu0 0.0
    %6700 = vmatpush1.msra.mxu0 0.0
    %6701 = vmatprep.subr.mxu0 0.0
    %6702 = vmatpush1.msra.mxu0 0.0
    %6703 = vmatprep.subr.mxu0 0.0
    %6704 = vmatpush1.msra.mxu0 0.0
    %6705 = vmatprep.subr.mxu0 0.0
    %6706 = vmatpush1.msra.mxu0 0.0
    %6707 = vmatprep.mubr.f32.mxu0 0.0
    %6708 = vmatmul.mubr.f32.gmra.mrb[0].mxu0 %v6620
    %v6709 = vpop.f32.mrb[0].mxu0
    %v6710 = vadd.f32 0.0, %v6709
    %v6711 = vpop.f32.mrb[0].mxu0
    %6712 = vmatprep.mubr.f32.mxu0 0.0
    %6713 = vmatmul.mubr.f32.gmra.mrb[0].mxu0 %v6623
    %v6714 = vpop.f32.mrb[0].mxu0
    %v6715 = vadd.f32 0.0, %v6714
    %v6716 = vpop.f32.mrb[0].mxu0
    %6717 = vmatprep.mubr.f32.mxu0 0.0
    %6718 = vmatmul.mubr.f32.gmra.mrb[0].mxu0 %v6626
    %v6719 = vpop.f32.mrb[0].mxu0
    %v6720 = vadd.f32 0.0, %v6719
    %v6721 = vpop.f32.mrb[0].mxu0
    %6722 = vmatprep.mubr.f32.mxu0 0.0
    %6723 = vmatmul.mubr.f32.gmra.mrb[0].mxu0 %v6629
    %v6724 = vpop.f32.mrb[0].mxu0
    %v6725 = vadd.f32 0.0, %v6724
    %v6726 = vpop.f32.mrb[0].mxu0
    %6727 = vmatprep.mubr.f32.mxu0 0.0
    %6728 = vmatmul.mubr.f32.gmra.mrb[0].mxu0 %v6632
    %v6729 = vpop.f32.mrb[0].mxu0
    %v6730 = vadd.f32 0.0, %v6729
    %v6731 = vpop.f32.mrb[0].mxu0
    %6732 = vmatprep.mubr.f32.mxu0 0.0
    %6733 = vmatmul.mubr.f32.gmra.mrb[0].mxu0 %v6635
    %v6734 = vpop.f32.mrb[0].mxu0
    %v6735 = vadd.f32 0.0, %v6734
    %v6736 = vpop.f32.mrb[0].mxu0
    %6737 = vmatprep.mubr.f32.mxu0 0.0
    %6738 = vmatmul.mubr.f32.gmra.mrb[0].mxu0 %v6638
    %v6739 = vpop.f32.mrb[0].mxu0
    %v6740 = vadd.f32 0.0, %v6739
    %v6741 = vpop.f32.mrb[0].mxu0
    %6742 = vmatprep.mubr.f32.mxu0 0.0
    %6743 = vmatmul.mubr.f32.gmra.mrb[0].mxu0 %v6641
    %v6744 = vpop.f32.mrb[0].mxu0
    %v6745 = vadd.f32 0.0, %v6744
    %v6746 = vpop.f32.mrb[0].mxu0
    %6747 = vdwg.mxu0
    %v6748 = vadd.f32 %v6602, %v6710
    %v6749 = vadd.f32 %v6603, %v6715
    %v6750 = vadd.f32 %v6604, %v6720
    %v6751 = vadd.f32 %v6605, %v6725
    %v6752 = vadd.f32 %v6606, %v6730
    %v6753 = vadd.f32 %v6607, %v6735
    %v6754 = vadd.f32 %v6608, %v6740
    %v6755 = vadd.f32 %v6609, %v6745
    %s6756 = scalar_lea.vmem %s5, 960
    %v6757 = vld [vmem:[%s6756] sm:$0xff]
    %v6758 = vld [vmem:[%s6756 + $0x8] sm:$0xff]
    %v6759 = vld [vmem:[%s6756 + $0x10] sm:$0xff]
    %v6760 = vld [vmem:[%s6756 + $0x18] sm:$0xff]
    %v6761 = vld [vmem:[%s6756 + $0x20] sm:$0xff]
    %v6762 = vld [vmem:[%s6756 + $0x28] sm:$0xff]
    %v6763 = vld [vmem:[%s6756 + $0x30] sm:$0xff]
    %v6764 = vld [vmem:[%s6756 + $0x38] sm:$0xff]
    %v6766 = vsel %vm4599, %v6757, 0
    %v6769 = vsel %vm4599, %v6758, 0
    %v6772 = vsel %vm4599, %v6759, 0
    %v6775 = vsel %vm4599, %v6760, 0
    %v6778 = vsel %vm4599, %v6761, 0
    %v6781 = vsel %vm4599, %v6762, 0
    %v6784 = vsel %vm4599, %v6763, 0
    %v6787 = vsel %vm4599, %v6764, 0
    %6789 = vmatprep.subr.mxu0 0.0
    %6790 = vmatpush1.msra.mxu0 %v4421
    %6791 = vmatprep.subr.mxu0 0.0
    %6792 = vmatpush1.msra.mxu0 %v4465
    %6793 = vmatprep.subr.mxu0 0.0
    %6794 = vmatpush1.msra.mxu0 %v4509
    %6795 = vmatprep.subr.mxu0 0.0
    %6796 = vmatpush1.msra.mxu0 %v4553
    %6797 = vmatprep.subr.mxu0 0.0
    %6798 = vmatpush1.msra.mxu0 0.0
    %6799 = vmatprep.subr.mxu0 0.0
    %6800 = vmatpush1.msra.mxu0 0.0
    %6801 = vmatprep.subr.mxu0 0.0
    %6802 = vmatpush1.msra.mxu0 0.0
    %6803 = vmatprep.subr.mxu0 0.0
    %6804 = vmatpush1.msra.mxu0 0.0
    %6805 = vmatprep.subr.mxu0 0.0
    %6806 = vmatpush1.msra.mxu0 0.0
    %6807 = vmatprep.subr.mxu0 0.0
    %6808 = vmatpush1.msra.mxu0 0.0
    %6809 = vmatprep.subr.mxu0 0.0
    %6810 = vmatpush1.msra.mxu0 0.0
    %6811 = vmatprep.subr.mxu0 0.0
    %6812 = vmatpush1.msra.mxu0 0.0
    %6813 = vmatprep.subr.mxu0 0.0
    %6814 = vmatpush1.msra.mxu0 0.0
    %6815 = vmatprep.subr.mxu0 0.0
    %6816 = vmatpush1.msra.mxu0 0.0
    %6817 = vmatprep.subr.mxu0 0.0
    %6818 = vmatpush1.msra.mxu0 0.0
    %6819 = vmatprep.subr.mxu0 0.0
    %6820 = vmatpush1.msra.mxu0 0.0
    %6821 = vmatprep.subr.mxu0 0.0
    %6822 = vmatpush1.msra.mxu0 0.0
    %6823 = vmatprep.subr.mxu0 0.0
    %6824 = vmatpush1.msra.mxu0 0.0
    %6825 = vmatprep.subr.mxu0 0.0
    %6826 = vmatpush1.msra.mxu0 0.0
    %6827 = vmatprep.subr.mxu0 0.0
    %6828 = vmatpush1.msra.mxu0 0.0
    %6829 = vmatprep.subr.mxu0 0.0
    %6830 = vmatpush1.msra.mxu0 0.0
    %6831 = vmatprep.subr.mxu0 0.0
    %6832 = vmatpush1.msra.mxu0 0.0
    %6833 = vmatprep.subr.mxu0 0.0
    %6834 = vmatpush1.msra.mxu0 0.0
    %6835 = vmatprep.subr.mxu0 0.0
    %6836 = vmatpush1.msra.mxu0 0.0
    %6837 = vmatprep.subr.mxu0 0.0
    %6838 = vmatpush1.msra.mxu0 0.0
    %6839 = vmatprep.subr.mxu0 0.0
    %6840 = vmatpush1.msra.mxu0 0.0
    %6841 = vmatprep.subr.mxu0 0.0
    %6842 = vmatpush1.msra.mxu0 0.0
    %6843 = vmatprep.subr.mxu0 0.0
    %6844 = vmatpush1.msra.mxu0 0.0
    %6845 = vmatprep.subr.mxu0 0.0
    %6846 = vmatpush1.msra.mxu0 0.0
    %6847 = vmatprep.subr.mxu0 0.0
    %6848 = vmatpush1.msra.mxu0 0.0
    %6849 = vmatprep.subr.mxu0 0.0
    %6850 = vmatpush1.msra.mxu0 0.0
    %6851 = vmatprep.subr.mxu0 0.0
    %6852 = vmatpush1.msra.mxu0 0.0
    %6853 = vmatprep.mubr.f32.mxu0 0.0
    %6854 = vmatmul.mubr.f32.gmra.mrb[0].mxu0 %v6766
    %v6855 = vpop.f32.mrb[0].mxu0
    %v6856 = vadd.f32 0.0, %v6855
    %v6857 = vpop.f32.mrb[0].mxu0
    %6858 = vmatprep.mubr.f32.mxu0 0.0
    %6859 = vmatmul.mubr.f32.gmra.mrb[0].mxu0 %v6769
    %v6860 = vpop.f32.mrb[0].mxu0
    %v6861 = vadd.f32 0.0, %v6860
    %v6862 = vpop.f32.mrb[0].mxu0
    %6863 = vmatprep.mubr.f32.mxu0 0.0
    %6864 = vmatmul.mubr.f32.gmra.mrb[0].mxu0 %v6772
    %v6865 = vpop.f32.mrb[0].mxu0
    %v6866 = vadd.f32 0.0, %v6865
    %v6867 = vpop.f32.mrb[0].mxu0
    %6868 = vmatprep.mubr.f32.mxu0 0.0
    %6869 = vmatmul.mubr.f32.gmra.mrb[0].mxu0 %v6775
    %v6870 = vpop.f32.mrb[0].mxu0
    %v6871 = vadd.f32 0.0, %v6870
    %v6872 = vpop.f32.mrb[0].mxu0
    %6873 = vmatprep.mubr.f32.mxu0 0.0
    %6874 = vmatmul.mubr.f32.gmra.mrb[0].mxu0 %v6778
    %v6875 = vpop.f32.mrb[0].mxu0
    %v6876 = vadd.f32 0.0, %v6875
    %v6877 = vpop.f32.mrb[0].mxu0
    %6878 = vmatprep.mubr.f32.mxu0 0.0
    %6879 = vmatmul.mubr.f32.gmra.mrb[0].mxu0 %v6781
    %v6880 = vpop.f32.mrb[0].mxu0
    %v6881 = vadd.f32 0.0, %v6880
    %v6882 = vpop.f32.mrb[0].mxu0
    %6883 = vmatprep.mubr.f32.mxu0 0.0
    %6884 = vmatmul.mubr.f32.gmra.mrb[0].mxu0 %v6784
    %v6885 = vpop.f32.mrb[0].mxu0
    %v6886 = vadd.f32 0.0, %v6885
    %v6887 = vpop.f32.mrb[0].mxu0
    %6888 = vmatprep.mubr.f32.mxu0 0.0
    %6889 = vmatmul.mubr.f32.gmra.mrb[0].mxu0 %v6787
    %v6890 = vpop.f32.mrb[0].mxu0
    %v6891 = vadd.f32 0.0, %v6890
    %v6892 = vpop.f32.mrb[0].mxu0
    %6893 = vdwg.mxu0
    %v6894 = vadd.f32 %v6748, %v6856
    %v6895 = vadd.f32 %v6749, %v6861
    %v6896 = vadd.f32 %v6750, %v6866
    %v6897 = vadd.f32 %v6751, %v6871
    %v6898 = vadd.f32 %v6752, %v6876
    %v6899 = vadd.f32 %v6753, %v6881
    %v6900 = vadd.f32 %v6754, %v6886
    %v6901 = vadd.f32 %v6755, %v6891
    %s6902 = scalar_lea.vmem %s5, 1024
    %v6903 = vld [vmem:[%s6902] sm:$0xff]
    %v6904 = vld [vmem:[%s6902 + $0x8] sm:$0xff]
    %v6905 = vld [vmem:[%s6902 + $0x10] sm:$0xff]
    %v6906 = vld [vmem:[%s6902 + $0x18] sm:$0xff]
    %v6907 = vld [vmem:[%s6902 + $0x20] sm:$0xff]
    %v6908 = vld [vmem:[%s6902 + $0x28] sm:$0xff]
    %v6909 = vld [vmem:[%s6902 + $0x30] sm:$0xff]
    %v6910 = vld [vmem:[%s6902 + $0x38] sm:$0xff]
    %v6912 = vsel %vm4599, %v6903, 0
    %v6915 = vsel %vm4599, %v6904, 0
    %v6918 = vsel %vm4599, %v6905, 0
    %v6921 = vsel %vm4599, %v6906, 0
    %v6924 = vsel %vm4599, %v6907, 0
    %v6927 = vsel %vm4599, %v6908, 0
    %v6930 = vsel %vm4599, %v6909, 0
    %v6933 = vsel %vm4599, %v6910, 0
    %6935 = vmatprep.subr.mxu0 0.0
    %6936 = vmatpush1.msra.mxu0 %v4422
    %6937 = vmatprep.subr.mxu0 0.0
    %6938 = vmatpush1.msra.mxu0 %v4466
    %6939 = vmatprep.subr.mxu0 0.0
    %6940 = vmatpush1.msra.mxu0 %v4510
    %6941 = vmatprep.subr.mxu0 0.0
    %6942 = vmatpush1.msra.mxu0 %v4554
    %6943 = vmatprep.subr.mxu0 0.0
    %6944 = vmatpush1.msra.mxu0 0.0
    %6945 = vmatprep.subr.mxu0 0.0
    %6946 = vmatpush1.msra.mxu0 0.0
    %6947 = vmatprep.subr.mxu0 0.0
    %6948 = vmatpush1.msra.mxu0 0.0
    %6949 = vmatprep.subr.mxu0 0.0
    %6950 = vmatpush1.msra.mxu0 0.0
    %6951 = vmatprep.subr.mxu0 0.0
    %6952 = vmatpush1.msra.mxu0 0.0
    %6953 = vmatprep.subr.mxu0 0.0
    %6954 = vmatpush1.msra.mxu0 0.0
    %6955 = vmatprep.subr.mxu0 0.0
    %6956 = vmatpush1.msra.mxu0 0.0
    %6957 = vmatprep.subr.mxu0 0.0
    %6958 = vmatpush1.msra.mxu0 0.0
    %6959 = vmatprep.subr.mxu0 0.0
    %6960 = vmatpush1.msra.mxu0 0.0
    %6961 = vmatprep.subr.mxu0 0.0
    %6962 = vmatpush1.msra.mxu0 0.0
    %6963 = vmatprep.subr.mxu0 0.0
    %6964 = vmatpush1.msra.mxu0 0.0
    %6965 = vmatprep.subr.mxu0 0.0
    %6966 = vmatpush1.msra.mxu0 0.0
    %6967 = vmatprep.subr.mxu0 0.0
    %6968 = vmatpush1.msra.mxu0 0.0
    %6969 = vmatprep.subr.mxu0 0.0
    %6970 = vmatpush1.msra.mxu0 0.0
    %6971 = vmatprep.subr.mxu0 0.0
    %6972 = vmatpush1.msra.mxu0 0.0
    %6973 = vmatprep.subr.mxu0 0.0
    %6974 = vmatpush1.msra.mxu0 0.0
    %6975 = vmatprep.subr.mxu0 0.0
    %6976 = vmatpush1.msra.mxu0 0.0
    %6977 = vmatprep.subr.mxu0 0.0
    %6978 = vmatpush1.msra.mxu0 0.0
    %6979 = vmatprep.subr.mxu0 0.0
    %6980 = vmatpush1.msra.mxu0 0.0
    %6981 = vmatprep.subr.mxu0 0.0
    %6982 = vmatpush1.msra.mxu0 0.0
    %6983 = vmatprep.subr.mxu0 0.0
    %6984 = vmatpush1.msra.mxu0 0.0
    %6985 = vmatprep.subr.mxu0 0.0
    %6986 = vmatpush1.msra.mxu0 0.0
    %6987 = vmatprep.subr.mxu0 0.0
    %6988 = vmatpush1.msra.mxu0 0.0
    %6989 = vmatprep.subr.mxu0 0.0
    %6990 = vmatpush1.msra.mxu0 0.0
    %6991 = vmatprep.subr.mxu0 0.0
    %6992 = vmatpush1.msra.mxu0 0.0
    %6993 = vmatprep.subr.mxu0 0.0
    %6994 = vmatpush1.msra.mxu0 0.0
    %6995 = vmatprep.subr.mxu0 0.0
    %6996 = vmatpush1.msra.mxu0 0.0
    %6997 = vmatprep.subr.mxu0 0.0
    %6998 = vmatpush1.msra.mxu0 0.0
    %6999 = vmatprep.mubr.f32.mxu0 0.0
    %7000 = vmatmul.mubr.f32.gmra.mrb[0].mxu0 %v6912
    %v7001 = vpop.f32.mrb[0].mxu0
    %v7002 = vadd.f32 0.0, %v7001
    %v7003 = vpop.f32.mrb[0].mxu0
    %7004 = vmatprep.mubr.f32.mxu0 0.0
    %7005 = vmatmul.mubr.f32.gmra.mrb[0].mxu0 %v6915
    %v7006 = vpop.f32.mrb[0].mxu0
    %v7007 = vadd.f32 0.0, %v7006
    %v7008 = vpop.f32.mrb[0].mxu0
    %7009 = vmatprep.mubr.f32.mxu0 0.0
    %7010 = vmatmul.mubr.f32.gmra.mrb[0].mxu0 %v6918
    %v7011 = vpop.f32.mrb[0].mxu0
    %v7012 = vadd.f32 0.0, %v7011
    %v7013 = vpop.f32.mrb[0].mxu0
    %7014 = vmatprep.mubr.f32.mxu0 0.0
    %7015 = vmatmul.mubr.f32.gmra.mrb[0].mxu0 %v6921
    %v7016 = vpop.f32.mrb[0].mxu0
    %v7017 = vadd.f32 0.0, %v7016
    %v7018 = vpop.f32.mrb[0].mxu0
    %7019 = vmatprep.mubr.f32.mxu0 0.0
    %7020 = vmatmul.mubr.f32.gmra.mrb[0].mxu0 %v6924
    %v7021 = vpop.f32.mrb[0].mxu0
    %v7022 = vadd.f32 0.0, %v7021
    %v7023 = vpop.f32.mrb[0].mxu0
    %7024 = vmatprep.mubr.f32.mxu0 0.0
    %7025 = vmatmul.mubr.f32.gmra.mrb[0].mxu0 %v6927
    %v7026 = vpop.f32.mrb[0].mxu0
    %v7027 = vadd.f32 0.0, %v7026
    %v7028 = vpop.f32.mrb[0].mxu0
    %7029 = vmatprep.mubr.f32.mxu0 0.0
    %7030 = vmatmul.mubr.f32.gmra.mrb[0].mxu0 %v6930
    %v7031 = vpop.f32.mrb[0].mxu0
    %v7032 = vadd.f32 0.0, %v7031
    %v7033 = vpop.f32.mrb[0].mxu0
    %7034 = vmatprep.mubr.f32.mxu0 0.0
    %7035 = vmatmul.mubr.f32.gmra.mrb[0].mxu0 %v6933
    %v7036 = vpop.f32.mrb[0].mxu0
    %v7037 = vadd.f32 0.0, %v7036
    %v7038 = vpop.f32.mrb[0].mxu0
    %7039 = vdwg.mxu0
    %v7040 = vadd.f32 %v6894, %v7002
    %v7041 = vadd.f32 %v6895, %v7007
    %v7042 = vadd.f32 %v6896, %v7012
    %v7043 = vadd.f32 %v6897, %v7017
    %v7044 = vadd.f32 %v6898, %v7022
    %v7045 = vadd.f32 %v6899, %v7027
    %v7046 = vadd.f32 %v6900, %v7032
    %v7047 = vadd.f32 %v6901, %v7037
    %s7048 = scalar_lea.vmem %s5, 1088
    %v7049 = vld [vmem:[%s7048] sm:$0xff]
    %v7050 = vld [vmem:[%s7048 + $0x8] sm:$0xff]
    %v7051 = vld [vmem:[%s7048 + $0x10] sm:$0xff]
    %v7052 = vld [vmem:[%s7048 + $0x18] sm:$0xff]
    %v7053 = vld [vmem:[%s7048 + $0x20] sm:$0xff]
    %v7054 = vld [vmem:[%s7048 + $0x28] sm:$0xff]
    %v7055 = vld [vmem:[%s7048 + $0x30] sm:$0xff]
    %v7056 = vld [vmem:[%s7048 + $0x38] sm:$0xff]
    %v7058 = vsel %vm4599, %v7049, 0
    %v7061 = vsel %vm4599, %v7050, 0
    %v7064 = vsel %vm4599, %v7051, 0
    %v7067 = vsel %vm4599, %v7052, 0
    %v7070 = vsel %vm4599, %v7053, 0
    %v7073 = vsel %vm4599, %v7054, 0
    %v7076 = vsel %vm4599, %v7055, 0
    %v7079 = vsel %vm4599, %v7056, 0
    %7081 = vmatprep.subr.mxu0 0.0
    %7082 = vmatpush1.msra.mxu0 %v4423
    %7083 = vmatprep.subr.mxu0 0.0
    %7084 = vmatpush1.msra.mxu0 %v4467
    %7085 = vmatprep.subr.mxu0 0.0
    %7086 = vmatpush1.msra.mxu0 %v4511
    %7087 = vmatprep.subr.mxu0 0.0
    %7088 = vmatpush1.msra.mxu0 %v4555
    %7089 = vmatprep.subr.mxu0 0.0
    %7090 = vmatpush1.msra.mxu0 0.0
    %7091 = vmatprep.subr.mxu0 0.0
    %7092 = vmatpush1.msra.mxu0 0.0
    %7093 = vmatprep.subr.mxu0 0.0
    %7094 = vmatpush1.msra.mxu0 0.0
    %7095 = vmatprep.subr.mxu0 0.0
    %7096 = vmatpush1.msra.mxu0 0.0
    %7097 = vmatprep.subr.mxu0 0.0
    %7098 = vmatpush1.msra.mxu0 0.0
    %7099 = vmatprep.subr.mxu0 0.0
    %7100 = vmatpush1.msra.mxu0 0.0
    %7101 = vmatprep.subr.mxu0 0.0
    %7102 = vmatpush1.msra.mxu0 0.0
    %7103 = vmatprep.subr.mxu0 0.0
    %7104 = vmatpush1.msra.mxu0 0.0
    %7105 = vmatprep.subr.mxu0 0.0
    %7106 = vmatpush1.msra.mxu0 0.0
    %7107 = vmatprep.subr.mxu0 0.0
    %7108 = vmatpush1.msra.mxu0 0.0
    %7109 = vmatprep.subr.mxu0 0.0
    %7110 = vmatpush1.msra.mxu0 0.0
    %7111 = vmatprep.subr.mxu0 0.0
    %7112 = vmatpush1.msra.mxu0 0.0
    %7113 = vmatprep.subr.mxu0 0.0
    %7114 = vmatpush1.msra.mxu0 0.0
    %7115 = vmatprep.subr.mxu0 0.0
    %7116 = vmatpush1.msra.mxu0 0.0
    %7117 = vmatprep.subr.mxu0 0.0
    %7118 = vmatpush1.msra.mxu0 0.0
    %7119 = vmatprep.subr.mxu0 0.0
    %7120 = vmatpush1.msra.mxu0 0.0
    %7121 = vmatprep.subr.mxu0 0.0
    %7122 = vmatpush1.msra.mxu0 0.0
    %7123 = vmatprep.subr.mxu0 0.0
    %7124 = vmatpush1.msra.mxu0 0.0
    %7125 = vmatprep.subr.mxu0 0.0
    %7126 = vmatpush1.msra.mxu0 0.0
    %7127 = vmatprep.subr.mxu0 0.0
    %7128 = vmatpush1.msra.mxu0 0.0
    %7129 = vmatprep.subr.mxu0 0.0
    %7130 = vmatpush1.msra.mxu0 0.0
    %7131 = vmatprep.subr.mxu0 0.0
    %7132 = vmatpush1.msra.mxu0 0.0
    %7133 = vmatprep.subr.mxu0 0.0
    %7134 = vmatpush1.msra.mxu0 0.0
    %7135 = vmatprep.subr.mxu0 0.0
    %7136 = vmatpush1.msra.mxu0 0.0
    %7137 = vmatprep.subr.mxu0 0.0
    %7138 = vmatpush1.msra.mxu0 0.0
    %7139 = vmatprep.subr.mxu0 0.0
    %7140 = vmatpush1.msra.mxu0 0.0
    %7141 = vmatprep.subr.mxu0 0.0
    %7142 = vmatpush1.msra.mxu0 0.0
    %7143 = vmatprep.subr.mxu0 0.0
    %7144 = vmatpush1.msra.mxu0 0.0
    %7145 = vmatprep.mubr.f32.mxu0 0.0
    %7146 = vmatmul.mubr.f32.gmra.mrb[0].mxu0 %v7058
    %v7147 = vpop.f32.mrb[0].mxu0
    %v7148 = vadd.f32 0.0, %v7147
    %v7149 = vpop.f32.mrb[0].mxu0
    %7150 = vmatprep.mubr.f32.mxu0 0.0
    %7151 = vmatmul.mubr.f32.gmra.mrb[0].mxu0 %v7061
    %v7152 = vpop.f32.mrb[0].mxu0
    %v7153 = vadd.f32 0.0, %v7152
    %v7154 = vpop.f32.mrb[0].mxu0
    %7155 = vmatprep.mubr.f32.mxu0 0.0
    %7156 = vmatmul.mubr.f32.gmra.mrb[0].mxu0 %v7064
    %v7157 = vpop.f32.mrb[0].mxu0
    %v7158 = vadd.f32 0.0, %v7157
    %v7159 = vpop.f32.mrb[0].mxu0
    %7160 = vmatprep.mubr.f32.mxu0 0.0
    %7161 = vmatmul.mubr.f32.gmra.mrb[0].mxu0 %v7067
    %v7162 = vpop.f32.mrb[0].mxu0
    %v7163 = vadd.f32 0.0, %v7162
    %v7164 = vpop.f32.mrb[0].mxu0
    %7165 = vmatprep.mubr.f32.mxu0 0.0
    %7166 = vmatmul.mubr.f32.gmra.mrb[0].mxu0 %v7070
    %v7167 = vpop.f32.mrb[0].mxu0
    %v7168 = vadd.f32 0.0, %v7167
    %v7169 = vpop.f32.mrb[0].mxu0
    %7170 = vmatprep.mubr.f32.mxu0 0.0
    %7171 = vmatmul.mubr.f32.gmra.mrb[0].mxu0 %v7073
    %v7172 = vpop.f32.mrb[0].mxu0
    %v7173 = vadd.f32 0.0, %v7172
    %v7174 = vpop.f32.mrb[0].mxu0
    %7175 = vmatprep.mubr.f32.mxu0 0.0
    %7176 = vmatmul.mubr.f32.gmra.mrb[0].mxu0 %v7076
    %v7177 = vpop.f32.mrb[0].mxu0
    %v7178 = vadd.f32 0.0, %v7177
    %v7179 = vpop.f32.mrb[0].mxu0
    %7180 = vmatprep.mubr.f32.mxu0 0.0
    %7181 = vmatmul.mubr.f32.gmra.mrb[0].mxu0 %v7079
    %v7182 = vpop.f32.mrb[0].mxu0
    %v7183 = vadd.f32 0.0, %v7182
    %v7184 = vpop.f32.mrb[0].mxu0
    %7185 = vdwg.mxu0
    %v7186 = vadd.f32 %v7040, %v7148
    %v7187 = vadd.f32 %v7041, %v7153
    %v7188 = vadd.f32 %v7042, %v7158
    %v7189 = vadd.f32 %v7043, %v7163
    %v7190 = vadd.f32 %v7044, %v7168
    %v7191 = vadd.f32 %v7045, %v7173
    %v7192 = vadd.f32 %v7046, %v7178
    %v7193 = vadd.f32 %v7047, %v7183
    %s7194 = scalar_lea.vmem %s5, 1152
    %v7195 = vld [vmem:[%s7194] sm:$0xff]
    %v7196 = vld [vmem:[%s7194 + $0x8] sm:$0xff]
    %v7197 = vld [vmem:[%s7194 + $0x10] sm:$0xff]
    %v7198 = vld [vmem:[%s7194 + $0x18] sm:$0xff]
    %v7199 = vld [vmem:[%s7194 + $0x20] sm:$0xff]
    %v7200 = vld [vmem:[%s7194 + $0x28] sm:$0xff]
    %v7201 = vld [vmem:[%s7194 + $0x30] sm:$0xff]
    %v7202 = vld [vmem:[%s7194 + $0x38] sm:$0xff]
    %v7204 = vsel %vm4599, %v7195, 0
    %v7207 = vsel %vm4599, %v7196, 0
    %v7210 = vsel %vm4599, %v7197, 0
    %v7213 = vsel %vm4599, %v7198, 0
    %v7216 = vsel %vm4599, %v7199, 0
    %v7219 = vsel %vm4599, %v7200, 0
    %v7222 = vsel %vm4599, %v7201, 0
    %v7225 = vsel %vm4599, %v7202, 0
    %7227 = vmatprep.subr.mxu0 0.0
    %7228 = vmatpush1.msra.mxu0 %v4424
    %7229 = vmatprep.subr.mxu0 0.0
    %7230 = vmatpush1.msra.mxu0 %v4468
    %7231 = vmatprep.subr.mxu0 0.0
    %7232 = vmatpush1.msra.mxu0 %v4512
    %7233 = vmatprep.subr.mxu0 0.0
    %7234 = vmatpush1.msra.mxu0 %v4556
    %7235 = vmatprep.subr.mxu0 0.0
    %7236 = vmatpush1.msra.mxu0 0.0
    %7237 = vmatprep.subr.mxu0 0.0
    %7238 = vmatpush1.msra.mxu0 0.0
    %7239 = vmatprep.subr.mxu0 0.0
    %7240 = vmatpush1.msra.mxu0 0.0
    %7241 = vmatprep.subr.mxu0 0.0
    %7242 = vmatpush1.msra.mxu0 0.0
    %7243 = vmatprep.subr.mxu0 0.0
    %7244 = vmatpush1.msra.mxu0 0.0
    %7245 = vmatprep.subr.mxu0 0.0
    %7246 = vmatpush1.msra.mxu0 0.0
    %7247 = vmatprep.subr.mxu0 0.0
    %7248 = vmatpush1.msra.mxu0 0.0
    %7249 = vmatprep.subr.mxu0 0.0
    %7250 = vmatpush1.msra.mxu0 0.0
    %7251 = vmatprep.subr.mxu0 0.0
    %7252 = vmatpush1.msra.mxu0 0.0
    %7253 = vmatprep.subr.mxu0 0.0
    %7254 = vmatpush1.msra.mxu0 0.0
    %7255 = vmatprep.subr.mxu0 0.0
    %7256 = vmatpush1.msra.mxu0 0.0
    %7257 = vmatprep.subr.mxu0 0.0
    %7258 = vmatpush1.msra.mxu0 0.0
    %7259 = vmatprep.subr.mxu0 0.0
    %7260 = vmatpush1.msra.mxu0 0.0
    %7261 = vmatprep.subr.mxu0 0.0
    %7262 = vmatpush1.msra.mxu0 0.0
    %7263 = vmatprep.subr.mxu0 0.0
    %7264 = vmatpush1.msra.mxu0 0.0
    %7265 = vmatprep.subr.mxu0 0.0
    %7266 = vmatpush1.msra.mxu0 0.0
    %7267 = vmatprep.subr.mxu0 0.0
    %7268 = vmatpush1.msra.mxu0 0.0
    %7269 = vmatprep.subr.mxu0 0.0
    %7270 = vmatpush1.msra.mxu0 0.0
    %7271 = vmatprep.subr.mxu0 0.0
    %7272 = vmatpush1.msra.mxu0 0.0
    %7273 = vmatprep.subr.mxu0 0.0
    %7274 = vmatpush1.msra.mxu0 0.0
    %7275 = vmatprep.subr.mxu0 0.0
    %7276 = vmatpush1.msra.mxu0 0.0
    %7277 = vmatprep.subr.mxu0 0.0
    %7278 = vmatpush1.msra.mxu0 0.0
    %7279 = vmatprep.subr.mxu0 0.0
    %7280 = vmatpush1.msra.mxu0 0.0
    %7281 = vmatprep.subr.mxu0 0.0
    %7282 = vmatpush1.msra.mxu0 0.0
    %7283 = vmatprep.subr.mxu0 0.0
    %7284 = vmatpush1.msra.mxu0 0.0
    %7285 = vmatprep.subr.mxu0 0.0
    %7286 = vmatpush1.msra.mxu0 0.0
    %7287 = vmatprep.subr.mxu0 0.0
    %7288 = vmatpush1.msra.mxu0 0.0
    %7289 = vmatprep.subr.mxu0 0.0
    %7290 = vmatpush1.msra.mxu0 0.0
    %7291 = vmatprep.mubr.f32.mxu0 0.0
    %7292 = vmatmul.mubr.f32.gmra.mrb[0].mxu0 %v7204
    %v7293 = vpop.f32.mrb[0].mxu0
    %v7294 = vadd.f32 0.0, %v7293
    %v7295 = vpop.f32.mrb[0].mxu0
    %7296 = vmatprep.mubr.f32.mxu0 0.0
    %7297 = vmatmul.mubr.f32.gmra.mrb[0].mxu0 %v7207
    %v7298 = vpop.f32.mrb[0].mxu0
    %v7299 = vadd.f32 0.0, %v7298
    %v7300 = vpop.f32.mrb[0].mxu0
    %7301 = vmatprep.mubr.f32.mxu0 0.0
    %7302 = vmatmul.mubr.f32.gmra.mrb[0].mxu0 %v7210
    %v7303 = vpop.f32.mrb[0].mxu0
    %v7304 = vadd.f32 0.0, %v7303
    %v7305 = vpop.f32.mrb[0].mxu0
    %7306 = vmatprep.mubr.f32.mxu0 0.0
    %7307 = vmatmul.mubr.f32.gmra.mrb[0].mxu0 %v7213
    %v7308 = vpop.f32.mrb[0].mxu0
    %v7309 = vadd.f32 0.0, %v7308
    %v7310 = vpop.f32.mrb[0].mxu0
    %7311 = vmatprep.mubr.f32.mxu0 0.0
    %7312 = vmatmul.mubr.f32.gmra.mrb[0].mxu0 %v7216
    %v7313 = vpop.f32.mrb[0].mxu0
    %v7314 = vadd.f32 0.0, %v7313
    %v7315 = vpop.f32.mrb[0].mxu0
    %7316 = vmatprep.mubr.f32.mxu0 0.0
    %7317 = vmatmul.mubr.f32.gmra.mrb[0].mxu0 %v7219
    %v7318 = vpop.f32.mrb[0].mxu0
    %v7319 = vadd.f32 0.0, %v7318
    %v7320 = vpop.f32.mrb[0].mxu0
    %7321 = vmatprep.mubr.f32.mxu0 0.0
    %7322 = vmatmul.mubr.f32.gmra.mrb[0].mxu0 %v7222
    %v7323 = vpop.f32.mrb[0].mxu0
    %v7324 = vadd.f32 0.0, %v7323
    %v7325 = vpop.f32.mrb[0].mxu0
    %7326 = vmatprep.mubr.f32.mxu0 0.0
    %7327 = vmatmul.mubr.f32.gmra.mrb[0].mxu0 %v7225
    %v7328 = vpop.f32.mrb[0].mxu0
    %v7329 = vadd.f32 0.0, %v7328
    %v7330 = vpop.f32.mrb[0].mxu0
    %7331 = vdwg.mxu0
    %v7332 = vadd.f32 %v7186, %v7294
    %v7333 = vadd.f32 %v7187, %v7299
    %v7334 = vadd.f32 %v7188, %v7304
    %v7335 = vadd.f32 %v7189, %v7309
    %v7336 = vadd.f32 %v7190, %v7314
    %v7337 = vadd.f32 %v7191, %v7319
    %v7338 = vadd.f32 %v7192, %v7324
    %v7339 = vadd.f32 %v7193, %v7329
    %s7340 = scalar_lea.vmem %s5, 1216
    %v7341 = vld [vmem:[%s7340] sm:$0xff]
    %v7342 = vld [vmem:[%s7340 + $0x8] sm:$0xff]
    %v7343 = vld [vmem:[%s7340 + $0x10] sm:$0xff]
    %v7344 = vld [vmem:[%s7340 + $0x18] sm:$0xff]
    %v7345 = vld [vmem:[%s7340 + $0x20] sm:$0xff]
    %v7346 = vld [vmem:[%s7340 + $0x28] sm:$0xff]
    %v7347 = vld [vmem:[%s7340 + $0x30] sm:$0xff]
    %v7348 = vld [vmem:[%s7340 + $0x38] sm:$0xff]
    %v7350 = vsel %vm4599, %v7341, 0
    %v7353 = vsel %vm4599, %v7342, 0
    %v7356 = vsel %vm4599, %v7343, 0
    %v7359 = vsel %vm4599, %v7344, 0
    %v7362 = vsel %vm4599, %v7345, 0
    %v7365 = vsel %vm4599, %v7346, 0
    %v7368 = vsel %vm4599, %v7347, 0
    %v7371 = vsel %vm4599, %v7348, 0
    %7373 = vmatprep.subr.mxu0 0.0
    %7374 = vmatpush1.msra.mxu0 %v4425
    %7375 = vmatprep.subr.mxu0 0.0
    %7376 = vmatpush1.msra.mxu0 %v4469
    %7377 = vmatprep.subr.mxu0 0.0
    %7378 = vmatpush1.msra.mxu0 %v4513
    %7379 = vmatprep.subr.mxu0 0.0
    %7380 = vmatpush1.msra.mxu0 %v4557
    %7381 = vmatprep.subr.mxu0 0.0
    %7382 = vmatpush1.msra.mxu0 0.0
    %7383 = vmatprep.subr.mxu0 0.0
    %7384 = vmatpush1.msra.mxu0 0.0
    %7385 = vmatprep.subr.mxu0 0.0
    %7386 = vmatpush1.msra.mxu0 0.0
    %7387 = vmatprep.subr.mxu0 0.0
    %7388 = vmatpush1.msra.mxu0 0.0
    %7389 = vmatprep.subr.mxu0 0.0
    %7390 = vmatpush1.msra.mxu0 0.0
    %7391 = vmatprep.subr.mxu0 0.0
    %7392 = vmatpush1.msra.mxu0 0.0
    %7393 = vmatprep.subr.mxu0 0.0
    %7394 = vmatpush1.msra.mxu0 0.0
    %7395 = vmatprep.subr.mxu0 0.0
    %7396 = vmatpush1.msra.mxu0 0.0
    %7397 = vmatprep.subr.mxu0 0.0
    %7398 = vmatpush1.msra.mxu0 0.0
    %7399 = vmatprep.subr.mxu0 0.0
    %7400 = vmatpush1.msra.mxu0 0.0
    %7401 = vmatprep.subr.mxu0 0.0
    %7402 = vmatpush1.msra.mxu0 0.0
    %7403 = vmatprep.subr.mxu0 0.0
    %7404 = vmatpush1.msra.mxu0 0.0
    %7405 = vmatprep.subr.mxu0 0.0
    %7406 = vmatpush1.msra.mxu0 0.0
    %7407 = vmatprep.subr.mxu0 0.0
    %7408 = vmatpush1.msra.mxu0 0.0
    %7409 = vmatprep.subr.mxu0 0.0
    %7410 = vmatpush1.msra.mxu0 0.0
    %7411 = vmatprep.subr.mxu0 0.0
    %7412 = vmatpush1.msra.mxu0 0.0
    %7413 = vmatprep.subr.mxu0 0.0
    %7414 = vmatpush1.msra.mxu0 0.0
    %7415 = vmatprep.subr.mxu0 0.0
    %7416 = vmatpush1.msra.mxu0 0.0
    %7417 = vmatprep.subr.mxu0 0.0
    %7418 = vmatpush1.msra.mxu0 0.0
    %7419 = vmatprep.subr.mxu0 0.0
    %7420 = vmatpush1.msra.mxu0 0.0
    %7421 = vmatprep.subr.mxu0 0.0
    %7422 = vmatpush1.msra.mxu0 0.0
    %7423 = vmatprep.subr.mxu0 0.0
    %7424 = vmatpush1.msra.mxu0 0.0
    %7425 = vmatprep.subr.mxu0 0.0
    %7426 = vmatpush1.msra.mxu0 0.0
    %7427 = vmatprep.subr.mxu0 0.0
    %7428 = vmatpush1.msra.mxu0 0.0
    %7429 = vmatprep.subr.mxu0 0.0
    %7430 = vmatpush1.msra.mxu0 0.0
    %7431 = vmatprep.subr.mxu0 0.0
    %7432 = vmatpush1.msra.mxu0 0.0
    %7433 = vmatprep.subr.mxu0 0.0
    %7434 = vmatpush1.msra.mxu0 0.0
    %7435 = vmatprep.subr.mxu0 0.0
    %7436 = vmatpush1.msra.mxu0 0.0
    %7437 = vmatprep.mubr.f32.mxu0 0.0
    %7438 = vmatmul.mubr.f32.gmra.mrb[0].mxu0 %v7350
    %v7439 = vpop.f32.mrb[0].mxu0
    %v7440 = vadd.f32 0.0, %v7439
    %v7441 = vpop.f32.mrb[0].mxu0
    %7442 = vmatprep.mubr.f32.mxu0 0.0
    %7443 = vmatmul.mubr.f32.gmra.mrb[0].mxu0 %v7353
    %v7444 = vpop.f32.mrb[0].mxu0
    %v7445 = vadd.f32 0.0, %v7444
    %v7446 = vpop.f32.mrb[0].mxu0
    %7447 = vmatprep.mubr.f32.mxu0 0.0
    %7448 = vmatmul.mubr.f32.gmra.mrb[0].mxu0 %v7356
    %v7449 = vpop.f32.mrb[0].mxu0
    %v7450 = vadd.f32 0.0, %v7449
    %v7451 = vpop.f32.mrb[0].mxu0
    %7452 = vmatprep.mubr.f32.mxu0 0.0
    %7453 = vmatmul.mubr.f32.gmra.mrb[0].mxu0 %v7359
    %v7454 = vpop.f32.mrb[0].mxu0
    %v7455 = vadd.f32 0.0, %v7454
    %v7456 = vpop.f32.mrb[0].mxu0
    %7457 = vmatprep.mubr.f32.mxu0 0.0
    %7458 = vmatmul.mubr.f32.gmra.mrb[0].mxu0 %v7362
    %v7459 = vpop.f32.mrb[0].mxu0
    %v7460 = vadd.f32 0.0, %v7459
    %v7461 = vpop.f32.mrb[0].mxu0
    %7462 = vmatprep.mubr.f32.mxu0 0.0
    %7463 = vmatmul.mubr.f32.gmra.mrb[0].mxu0 %v7365
    %v7464 = vpop.f32.mrb[0].mxu0
    %v7465 = vadd.f32 0.0, %v7464
    %v7466 = vpop.f32.mrb[0].mxu0
    %7467 = vmatprep.mubr.f32.mxu0 0.0
    %7468 = vmatmul.mubr.f32.gmra.mrb[0].mxu0 %v7368
    %v7469 = vpop.f32.mrb[0].mxu0
    %v7470 = vadd.f32 0.0, %v7469
    %v7471 = vpop.f32.mrb[0].mxu0
    %7472 = vmatprep.mubr.f32.mxu0 0.0
    %7473 = vmatmul.mubr.f32.gmra.mrb[0].mxu0 %v7371
    %v7474 = vpop.f32.mrb[0].mxu0
    %v7475 = vadd.f32 0.0, %v7474
    %v7476 = vpop.f32.mrb[0].mxu0
    %7477 = vdwg.mxu0
    %v7478 = vadd.f32 %v7332, %v7440
    %v7479 = vadd.f32 %v7333, %v7445
    %v7480 = vadd.f32 %v7334, %v7450
    %v7481 = vadd.f32 %v7335, %v7455
    %v7482 = vadd.f32 %v7336, %v7460
    %v7483 = vadd.f32 %v7337, %v7465
    %v7484 = vadd.f32 %v7338, %v7470
    %v7485 = vadd.f32 %v7339, %v7475
    %s7486 = scalar_lea.vmem %s5, 1280
    %v7487 = vld [vmem:[%s7486] sm:$0xff]
    %v7488 = vld [vmem:[%s7486 + $0x8] sm:$0xff]
    %v7489 = vld [vmem:[%s7486 + $0x10] sm:$0xff]
    %v7490 = vld [vmem:[%s7486 + $0x18] sm:$0xff]
    %v7491 = vld [vmem:[%s7486 + $0x20] sm:$0xff]
    %v7492 = vld [vmem:[%s7486 + $0x28] sm:$0xff]
    %v7493 = vld [vmem:[%s7486 + $0x30] sm:$0xff]
    %v7494 = vld [vmem:[%s7486 + $0x38] sm:$0xff]
    %v7496 = vsel %vm4599, %v7487, 0
    %v7499 = vsel %vm4599, %v7488, 0
    %v7502 = vsel %vm4599, %v7489, 0
    %v7505 = vsel %vm4599, %v7490, 0
    %v7508 = vsel %vm4599, %v7491, 0
    %v7511 = vsel %vm4599, %v7492, 0
    %v7514 = vsel %vm4599, %v7493, 0
    %v7517 = vsel %vm4599, %v7494, 0
    %7519 = vmatprep.subr.mxu0 0.0
    %7520 = vmatpush1.msra.mxu0 %v4426
    %7521 = vmatprep.subr.mxu0 0.0
    %7522 = vmatpush1.msra.mxu0 %v4470
    %7523 = vmatprep.subr.mxu0 0.0
    %7524 = vmatpush1.msra.mxu0 %v4514
    %7525 = vmatprep.subr.mxu0 0.0
    %7526 = vmatpush1.msra.mxu0 %v4558
    %7527 = vmatprep.subr.mxu0 0.0
    %7528 = vmatpush1.msra.mxu0 0.0
    %7529 = vmatprep.subr.mxu0 0.0
    %7530 = vmatpush1.msra.mxu0 0.0
    %7531 = vmatprep.subr.mxu0 0.0
    %7532 = vmatpush1.msra.mxu0 0.0
    %7533 = vmatprep.subr.mxu0 0.0
    %7534 = vmatpush1.msra.mxu0 0.0
    %7535 = vmatprep.subr.mxu0 0.0
    %7536 = vmatpush1.msra.mxu0 0.0
    %7537 = vmatprep.subr.mxu0 0.0
    %7538 = vmatpush1.msra.mxu0 0.0
    %7539 = vmatprep.subr.mxu0 0.0
    %7540 = vmatpush1.msra.mxu0 0.0
    %7541 = vmatprep.subr.mxu0 0.0
    %7542 = vmatpush1.msra.mxu0 0.0
    %7543 = vmatprep.subr.mxu0 0.0
    %7544 = vmatpush1.msra.mxu0 0.0
    %7545 = vmatprep.subr.mxu0 0.0
    %7546 = vmatpush1.msra.mxu0 0.0
    %7547 = vmatprep.subr.mxu0 0.0
    %7548 = vmatpush1.msra.mxu0 0.0
    %7549 = vmatprep.subr.mxu0 0.0
    %7550 = vmatpush1.msra.mxu0 0.0
    %7551 = vmatprep.subr.mxu0 0.0
    %7552 = vmatpush1.msra.mxu0 0.0
    %7553 = vmatprep.subr.mxu0 0.0
    %7554 = vmatpush1.msra.mxu0 0.0
    %7555 = vmatprep.subr.mxu0 0.0
    %7556 = vmatpush1.msra.mxu0 0.0
    %7557 = vmatprep.subr.mxu0 0.0
    %7558 = vmatpush1.msra.mxu0 0.0
    %7559 = vmatprep.subr.mxu0 0.0
    %7560 = vmatpush1.msra.mxu0 0.0
    %7561 = vmatprep.subr.mxu0 0.0
    %7562 = vmatpush1.msra.mxu0 0.0
    %7563 = vmatprep.subr.mxu0 0.0
    %7564 = vmatpush1.msra.mxu0 0.0
    %7565 = vmatprep.subr.mxu0 0.0
    %7566 = vmatpush1.msra.mxu0 0.0
    %7567 = vmatprep.subr.mxu0 0.0
    %7568 = vmatpush1.msra.mxu0 0.0
    %7569 = vmatprep.subr.mxu0 0.0
    %7570 = vmatpush1.msra.mxu0 0.0
    %7571 = vmatprep.subr.mxu0 0.0
    %7572 = vmatpush1.msra.mxu0 0.0
    %7573 = vmatprep.subr.mxu0 0.0
    %7574 = vmatpush1.msra.mxu0 0.0
    %7575 = vmatprep.subr.mxu0 0.0
    %7576 = vmatpush1.msra.mxu0 0.0
    %7577 = vmatprep.subr.mxu0 0.0
    %7578 = vmatpush1.msra.mxu0 0.0
    %7579 = vmatprep.subr.mxu0 0.0
    %7580 = vmatpush1.msra.mxu0 0.0
    %7581 = vmatprep.subr.mxu0 0.0
    %7582 = vmatpush1.msra.mxu0 0.0
    %7583 = vmatprep.mubr.f32.mxu0 0.0
    %7584 = vmatmul.mubr.f32.gmra.mrb[0].mxu0 %v7496
    %v7585 = vpop.f32.mrb[0].mxu0
    %v7586 = vadd.f32 0.0, %v7585
    %v7587 = vpop.f32.mrb[0].mxu0
    %7588 = vmatprep.mubr.f32.mxu0 0.0
    %7589 = vmatmul.mubr.f32.gmra.mrb[0].mxu0 %v7499
    %v7590 = vpop.f32.mrb[0].mxu0
    %v7591 = vadd.f32 0.0, %v7590
    %v7592 = vpop.f32.mrb[0].mxu0
    %7593 = vmatprep.mubr.f32.mxu0 0.0
    %7594 = vmatmul.mubr.f32.gmra.mrb[0].mxu0 %v7502
    %v7595 = vpop.f32.mrb[0].mxu0
    %v7596 = vadd.f32 0.0, %v7595
    %v7597 = vpop.f32.mrb[0].mxu0
    %7598 = vmatprep.mubr.f32.mxu0 0.0
    %7599 = vmatmul.mubr.f32.gmra.mrb[0].mxu0 %v7505
    %v7600 = vpop.f32.mrb[0].mxu0
    %v7601 = vadd.f32 0.0, %v7600
    %v7602 = vpop.f32.mrb[0].mxu0
    %7603 = vmatprep.mubr.f32.mxu0 0.0
    %7604 = vmatmul.mubr.f32.gmra.mrb[0].mxu0 %v7508
    %v7605 = vpop.f32.mrb[0].mxu0
    %v7606 = vadd.f32 0.0, %v7605
    %v7607 = vpop.f32.mrb[0].mxu0
    %7608 = vmatprep.mubr.f32.mxu0 0.0
    %7609 = vmatmul.mubr.f32.gmra.mrb[0].mxu0 %v7511
    %v7610 = vpop.f32.mrb[0].mxu0
    %v7611 = vadd.f32 0.0, %v7610
    %v7612 = vpop.f32.mrb[0].mxu0
    %7613 = vmatprep.mubr.f32.mxu0 0.0
    %7614 = vmatmul.mubr.f32.gmra.mrb[0].mxu0 %v7514
    %v7615 = vpop.f32.mrb[0].mxu0
    %v7616 = vadd.f32 0.0, %v7615
    %v7617 = vpop.f32.mrb[0].mxu0
    %7618 = vmatprep.mubr.f32.mxu0 0.0
    %7619 = vmatmul.mubr.f32.gmra.mrb[0].mxu0 %v7517
    %v7620 = vpop.f32.mrb[0].mxu0
    %v7621 = vadd.f32 0.0, %v7620
    %v7622 = vpop.f32.mrb[0].mxu0
    %7623 = vdwg.mxu0
    %v7624 = vadd.f32 %v7478, %v7586
    %v7625 = vadd.f32 %v7479, %v7591
    %v7626 = vadd.f32 %v7480, %v7596
    %v7627 = vadd.f32 %v7481, %v7601
    %v7628 = vadd.f32 %v7482, %v7606
    %v7629 = vadd.f32 %v7483, %v7611
    %v7630 = vadd.f32 %v7484, %v7616
    %v7631 = vadd.f32 %v7485, %v7621
    %s7632 = scalar_lea.vmem %s5, 1344
    %v7633 = vld [vmem:[%s7632] sm:$0xff]
    %v7634 = vld [vmem:[%s7632 + $0x8] sm:$0xff]
    %v7635 = vld [vmem:[%s7632 + $0x10] sm:$0xff]
    %v7636 = vld [vmem:[%s7632 + $0x18] sm:$0xff]
    %v7637 = vld [vmem:[%s7632 + $0x20] sm:$0xff]
    %v7638 = vld [vmem:[%s7632 + $0x28] sm:$0xff]
    %v7639 = vld [vmem:[%s7632 + $0x30] sm:$0xff]
    %v7640 = vld [vmem:[%s7632 + $0x38] sm:$0xff]
    %v7642 = vsel %vm4599, %v7633, 0
    %v7645 = vsel %vm4599, %v7634, 0
    %v7648 = vsel %vm4599, %v7635, 0
    %v7651 = vsel %vm4599, %v7636, 0
    %v7654 = vsel %vm4599, %v7637, 0
    %v7657 = vsel %vm4599, %v7638, 0
    %v7660 = vsel %vm4599, %v7639, 0
    %v7663 = vsel %vm4599, %v7640, 0
    %7665 = vmatprep.subr.mxu0 0.0
    %7666 = vmatpush1.msra.mxu0 %v4427
    %7667 = vmatprep.subr.mxu0 0.0
    %7668 = vmatpush1.msra.mxu0 %v4471
    %7669 = vmatprep.subr.mxu0 0.0
    %7670 = vmatpush1.msra.mxu0 %v4515
    %7671 = vmatprep.subr.mxu0 0.0
    %7672 = vmatpush1.msra.mxu0 %v4559
    %7673 = vmatprep.subr.mxu0 0.0
    %7674 = vmatpush1.msra.mxu0 0.0
    %7675 = vmatprep.subr.mxu0 0.0
    %7676 = vmatpush1.msra.mxu0 0.0
    %7677 = vmatprep.subr.mxu0 0.0
    %7678 = vmatpush1.msra.mxu0 0.0
    %7679 = vmatprep.subr.mxu0 0.0
    %7680 = vmatpush1.msra.mxu0 0.0
    %7681 = vmatprep.subr.mxu0 0.0
    %7682 = vmatpush1.msra.mxu0 0.0
    %7683 = vmatprep.subr.mxu0 0.0
    %7684 = vmatpush1.msra.mxu0 0.0
    %7685 = vmatprep.subr.mxu0 0.0
    %7686 = vmatpush1.msra.mxu0 0.0
    %7687 = vmatprep.subr.mxu0 0.0
    %7688 = vmatpush1.msra.mxu0 0.0
    %7689 = vmatprep.subr.mxu0 0.0
    %7690 = vmatpush1.msra.mxu0 0.0
    %7691 = vmatprep.subr.mxu0 0.0
    %7692 = vmatpush1.msra.mxu0 0.0
    %7693 = vmatprep.subr.mxu0 0.0
    %7694 = vmatpush1.msra.mxu0 0.0
    %7695 = vmatprep.subr.mxu0 0.0
    %7696 = vmatpush1.msra.mxu0 0.0
    %7697 = vmatprep.subr.mxu0 0.0
    %7698 = vmatpush1.msra.mxu0 0.0
    %7699 = vmatprep.subr.mxu0 0.0
    %7700 = vmatpush1.msra.mxu0 0.0
    %7701 = vmatprep.subr.mxu0 0.0
    %7702 = vmatpush1.msra.mxu0 0.0
    %7703 = vmatprep.subr.mxu0 0.0
    %7704 = vmatpush1.msra.mxu0 0.0
    %7705 = vmatprep.subr.mxu0 0.0
    %7706 = vmatpush1.msra.mxu0 0.0
    %7707 = vmatprep.subr.mxu0 0.0
    %7708 = vmatpush1.msra.mxu0 0.0
    %7709 = vmatprep.subr.mxu0 0.0
    %7710 = vmatpush1.msra.mxu0 0.0
    %7711 = vmatprep.subr.mxu0 0.0
    %7712 = vmatpush1.msra.mxu0 0.0
    %7713 = vmatprep.subr.mxu0 0.0
    %7714 = vmatpush1.msra.mxu0 0.0
    %7715 = vmatprep.subr.mxu0 0.0
    %7716 = vmatpush1.msra.mxu0 0.0
    %7717 = vmatprep.subr.mxu0 0.0
    %7718 = vmatpush1.msra.mxu0 0.0
    %7719 = vmatprep.subr.mxu0 0.0
    %7720 = vmatpush1.msra.mxu0 0.0
    %7721 = vmatprep.subr.mxu0 0.0
    %7722 = vmatpush1.msra.mxu0 0.0
    %7723 = vmatprep.subr.mxu0 0.0
    %7724 = vmatpush1.msra.mxu0 0.0
    %7725 = vmatprep.subr.mxu0 0.0
    %7726 = vmatpush1.msra.mxu0 0.0
    %7727 = vmatprep.subr.mxu0 0.0
    %7728 = vmatpush1.msra.mxu0 0.0
    %7729 = vmatprep.mubr.f32.mxu0 0.0
    %7730 = vmatmul.mubr.f32.gmra.mrb[0].mxu0 %v7642
    %v7731 = vpop.f32.mrb[0].mxu0
    %v7732 = vadd.f32 0.0, %v7731
    %v7733 = vpop.f32.mrb[0].mxu0
    %7734 = vmatprep.mubr.f32.mxu0 0.0
    %7735 = vmatmul.mubr.f32.gmra.mrb[0].mxu0 %v7645
    %v7736 = vpop.f32.mrb[0].mxu0
    %v7737 = vadd.f32 0.0, %v7736
    %v7738 = vpop.f32.mrb[0].mxu0
    %7739 = vmatprep.mubr.f32.mxu0 0.0
    %7740 = vmatmul.mubr.f32.gmra.mrb[0].mxu0 %v7648
    %v7741 = vpop.f32.mrb[0].mxu0
    %v7742 = vadd.f32 0.0, %v7741
    %v7743 = vpop.f32.mrb[0].mxu0
    %7744 = vmatprep.mubr.f32.mxu0 0.0
    %7745 = vmatmul.mubr.f32.gmra.mrb[0].mxu0 %v7651
    %v7746 = vpop.f32.mrb[0].mxu0
    %v7747 = vadd.f32 0.0, %v7746
    %v7748 = vpop.f32.mrb[0].mxu0
    %7749 = vmatprep.mubr.f32.mxu0 0.0
    %7750 = vmatmul.mubr.f32.gmra.mrb[0].mxu0 %v7654
    %v7751 = vpop.f32.mrb[0].mxu0
    %v7752 = vadd.f32 0.0, %v7751
    %v7753 = vpop.f32.mrb[0].mxu0
    %7754 = vmatprep.mubr.f32.mxu0 0.0
    %7755 = vmatmul.mubr.f32.gmra.mrb[0].mxu0 %v7657
    %v7756 = vpop.f32.mrb[0].mxu0
    %v7757 = vadd.f32 0.0, %v7756
    %v7758 = vpop.f32.mrb[0].mxu0
    %7759 = vmatprep.mubr.f32.mxu0 0.0
    %7760 = vmatmul.mubr.f32.gmra.mrb[0].mxu0 %v7660
    %v7761 = vpop.f32.mrb[0].mxu0
    %v7762 = vadd.f32 0.0, %v7761
    %v7763 = vpop.f32.mrb[0].mxu0
    %7764 = vmatprep.mubr.f32.mxu0 0.0
    %7765 = vmatmul.mubr.f32.gmra.mrb[0].mxu0 %v7663
    %v7766 = vpop.f32.mrb[0].mxu0
    %v7767 = vadd.f32 0.0, %v7766
    %v7768 = vpop.f32.mrb[0].mxu0
    %7769 = vdwg.mxu0
    %v7770 = vadd.f32 %v7624, %v7732
    %v7771 = vadd.f32 %v7625, %v7737
    %v7772 = vadd.f32 %v7626, %v7742
    %v7773 = vadd.f32 %v7627, %v7747
    %v7774 = vadd.f32 %v7628, %v7752
    %v7775 = vadd.f32 %v7629, %v7757
    %v7776 = vadd.f32 %v7630, %v7762
    %v7777 = vadd.f32 %v7631, %v7767
    %s7778 = scalar_lea.vmem %s5, 1408
    %v7779 = vld [vmem:[%s7778] sm:$0xff]
    %v7780 = vld [vmem:[%s7778 + $0x8] sm:$0xff]
    %v7781 = vld [vmem:[%s7778 + $0x10] sm:$0xff]
    %v7782 = vld [vmem:[%s7778 + $0x18] sm:$0xff]
    %v7783 = vld [vmem:[%s7778 + $0x20] sm:$0xff]
    %v7784 = vld [vmem:[%s7778 + $0x28] sm:$0xff]
    %v7785 = vld [vmem:[%s7778 + $0x30] sm:$0xff]
    %v7786 = vld [vmem:[%s7778 + $0x38] sm:$0xff]
    %v7788 = vsel %vm4599, %v7779, 0
    %v7791 = vsel %vm4599, %v7780, 0
    %v7794 = vsel %vm4599, %v7781, 0
    %v7797 = vsel %vm4599, %v7782, 0
    %v7800 = vsel %vm4599, %v7783, 0
    %v7803 = vsel %vm4599, %v7784, 0
    %v7806 = vsel %vm4599, %v7785, 0
    %v7809 = vsel %vm4599, %v7786, 0
    %7811 = vmatprep.subr.mxu0 0.0
    %7812 = vmatpush1.msra.mxu0 %v4428
    %7813 = vmatprep.subr.mxu0 0.0
    %7814 = vmatpush1.msra.mxu0 %v4472
    %7815 = vmatprep.subr.mxu0 0.0
    %7816 = vmatpush1.msra.mxu0 %v4516
    %7817 = vmatprep.subr.mxu0 0.0
    %7818 = vmatpush1.msra.mxu0 %v4560
    %7819 = vmatprep.subr.mxu0 0.0
    %7820 = vmatpush1.msra.mxu0 0.0
    %7821 = vmatprep.subr.mxu0 0.0
    %7822 = vmatpush1.msra.mxu0 0.0
    %7823 = vmatprep.subr.mxu0 0.0
    %7824 = vmatpush1.msra.mxu0 0.0
    %7825 = vmatprep.subr.mxu0 0.0
    %7826 = vmatpush1.msra.mxu0 0.0
    %7827 = vmatprep.subr.mxu0 0.0
    %7828 = vmatpush1.msra.mxu0 0.0
    %7829 = vmatprep.subr.mxu0 0.0
    %7830 = vmatpush1.msra.mxu0 0.0
    %7831 = vmatprep.subr.mxu0 0.0
    %7832 = vmatpush1.msra.mxu0 0.0
    %7833 = vmatprep.subr.mxu0 0.0
    %7834 = vmatpush1.msra.mxu0 0.0
    %7835 = vmatprep.subr.mxu0 0.0
    %7836 = vmatpush1.msra.mxu0 0.0
    %7837 = vmatprep.subr.mxu0 0.0
    %7838 = vmatpush1.msra.mxu0 0.0
    %7839 = vmatprep.subr.mxu0 0.0
    %7840 = vmatpush1.msra.mxu0 0.0
    %7841 = vmatprep.subr.mxu0 0.0
    %7842 = vmatpush1.msra.mxu0 0.0
    %7843 = vmatprep.subr.mxu0 0.0
    %7844 = vmatpush1.msra.mxu0 0.0
    %7845 = vmatprep.subr.mxu0 0.0
    %7846 = vmatpush1.msra.mxu0 0.0
    %7847 = vmatprep.subr.mxu0 0.0
    %7848 = vmatpush1.msra.mxu0 0.0
    %7849 = vmatprep.subr.mxu0 0.0
    %7850 = vmatpush1.msra.mxu0 0.0
    %7851 = vmatprep.subr.mxu0 0.0
    %7852 = vmatpush1.msra.mxu0 0.0
    %7853 = vmatprep.subr.mxu0 0.0
    %7854 = vmatpush1.msra.mxu0 0.0
    %7855 = vmatprep.subr.mxu0 0.0
    %7856 = vmatpush1.msra.mxu0 0.0
    %7857 = vmatprep.subr.mxu0 0.0
    %7858 = vmatpush1.msra.mxu0 0.0
    %7859 = vmatprep.subr.mxu0 0.0
    %7860 = vmatpush1.msra.mxu0 0.0
    %7861 = vmatprep.subr.mxu0 0.0
    %7862 = vmatpush1.msra.mxu0 0.0
    %7863 = vmatprep.subr.mxu0 0.0
    %7864 = vmatpush1.msra.mxu0 0.0
    %7865 = vmatprep.subr.mxu0 0.0
    %7866 = vmatpush1.msra.mxu0 0.0
    %7867 = vmatprep.subr.mxu0 0.0
    %7868 = vmatpush1.msra.mxu0 0.0
    %7869 = vmatprep.subr.mxu0 0.0
    %7870 = vmatpush1.msra.mxu0 0.0
    %7871 = vmatprep.subr.mxu0 0.0
    %7872 = vmatpush1.msra.mxu0 0.0
    %7873 = vmatprep.subr.mxu0 0.0
    %7874 = vmatpush1.msra.mxu0 0.0
    %7875 = vmatprep.mubr.f32.mxu0 0.0
    %7876 = vmatmul.mubr.f32.gmra.mrb[0].mxu0 %v7788
    %v7877 = vpop.f32.mrb[0].mxu0
    %v7878 = vadd.f32 0.0, %v7877
    %v7879 = vpop.f32.mrb[0].mxu0
    %7880 = vmatprep.mubr.f32.mxu0 0.0
    %7881 = vmatmul.mubr.f32.gmra.mrb[0].mxu0 %v7791
    %v7882 = vpop.f32.mrb[0].mxu0
    %v7883 = vadd.f32 0.0, %v7882
    %v7884 = vpop.f32.mrb[0].mxu0
    %7885 = vmatprep.mubr.f32.mxu0 0.0
    %7886 = vmatmul.mubr.f32.gmra.mrb[0].mxu0 %v7794
    %v7887 = vpop.f32.mrb[0].mxu0
    %v7888 = vadd.f32 0.0, %v7887
    %v7889 = vpop.f32.mrb[0].mxu0
    %7890 = vmatprep.mubr.f32.mxu0 0.0
    %7891 = vmatmul.mubr.f32.gmra.mrb[0].mxu0 %v7797
    %v7892 = vpop.f32.mrb[0].mxu0
    %v7893 = vadd.f32 0.0, %v7892
    %v7894 = vpop.f32.mrb[0].mxu0
    %7895 = vmatprep.mubr.f32.mxu0 0.0
    %7896 = vmatmul.mubr.f32.gmra.mrb[0].mxu0 %v7800
    %v7897 = vpop.f32.mrb[0].mxu0
    %v7898 = vadd.f32 0.0, %v7897
    %v7899 = vpop.f32.mrb[0].mxu0
    %7900 = vmatprep.mubr.f32.mxu0 0.0
    %7901 = vmatmul.mubr.f32.gmra.mrb[0].mxu0 %v7803
    %v7902 = vpop.f32.mrb[0].mxu0
    %v7903 = vadd.f32 0.0, %v7902
    %v7904 = vpop.f32.mrb[0].mxu0
    %7905 = vmatprep.mubr.f32.mxu0 0.0
    %7906 = vmatmul.mubr.f32.gmra.mrb[0].mxu0 %v7806
    %v7907 = vpop.f32.mrb[0].mxu0
    %v7908 = vadd.f32 0.0, %v7907
    %v7909 = vpop.f32.mrb[0].mxu0
    %7910 = vmatprep.mubr.f32.mxu0 0.0
    %7911 = vmatmul.mubr.f32.gmra.mrb[0].mxu0 %v7809
    %v7912 = vpop.f32.mrb[0].mxu0
    %v7913 = vadd.f32 0.0, %v7912
    %v7914 = vpop.f32.mrb[0].mxu0
    %7915 = vdwg.mxu0
    %v7916 = vadd.f32 %v7770, %v7878
    %v7917 = vadd.f32 %v7771, %v7883
    %v7918 = vadd.f32 %v7772, %v7888
    %v7919 = vadd.f32 %v7773, %v7893
    %v7920 = vadd.f32 %v7774, %v7898
    %v7921 = vadd.f32 %v7775, %v7903
    %v7922 = vadd.f32 %v7776, %v7908
    %v7923 = vadd.f32 %v7777, %v7913
    %s7924 = scalar_lea.vmem %s5, 1472
    %v7925 = vld [vmem:[%s7924] sm:$0xff]
    %v7926 = vld [vmem:[%s7924 + $0x8] sm:$0xff]
    %v7927 = vld [vmem:[%s7924 + $0x10] sm:$0xff]
    %v7928 = vld [vmem:[%s7924 + $0x18] sm:$0xff]
    %v7929 = vld [vmem:[%s7924 + $0x20] sm:$0xff]
    %v7930 = vld [vmem:[%s7924 + $0x28] sm:$0xff]
    %v7931 = vld [vmem:[%s7924 + $0x30] sm:$0xff]
    %v7932 = vld [vmem:[%s7924 + $0x38] sm:$0xff]
    %v7934 = vsel %vm4599, %v7925, 0
    %v7937 = vsel %vm4599, %v7926, 0
    %v7940 = vsel %vm4599, %v7927, 0
    %v7943 = vsel %vm4599, %v7928, 0
    %v7946 = vsel %vm4599, %v7929, 0
    %v7949 = vsel %vm4599, %v7930, 0
    %v7952 = vsel %vm4599, %v7931, 0
    %v7955 = vsel %vm4599, %v7932, 0
    %7957 = vmatprep.subr.mxu0 0.0
    %7958 = vmatpush1.msra.mxu0 %v4429
    %7959 = vmatprep.subr.mxu0 0.0
    %7960 = vmatpush1.msra.mxu0 %v4473
    %7961 = vmatprep.subr.mxu0 0.0
    %7962 = vmatpush1.msra.mxu0 %v4517
    %7963 = vmatprep.subr.mxu0 0.0
    %7964 = vmatpush1.msra.mxu0 %v4561
    %7965 = vmatprep.subr.mxu0 0.0
    %7966 = vmatpush1.msra.mxu0 0.0
    %7967 = vmatprep.subr.mxu0 0.0
    %7968 = vmatpush1.msra.mxu0 0.0
    %7969 = vmatprep.subr.mxu0 0.0
    %7970 = vmatpush1.msra.mxu0 0.0
    %7971 = vmatprep.subr.mxu0 0.0
    %7972 = vmatpush1.msra.mxu0 0.0
    %7973 = vmatprep.subr.mxu0 0.0
    %7974 = vmatpush1.msra.mxu0 0.0
    %7975 = vmatprep.subr.mxu0 0.0
    %7976 = vmatpush1.msra.mxu0 0.0
    %7977 = vmatprep.subr.mxu0 0.0
    %7978 = vmatpush1.msra.mxu0 0.0
    %7979 = vmatprep.subr.mxu0 0.0
    %7980 = vmatpush1.msra.mxu0 0.0
    %7981 = vmatprep.subr.mxu0 0.0
    %7982 = vmatpush1.msra.mxu0 0.0
    %7983 = vmatprep.subr.mxu0 0.0
    %7984 = vmatpush1.msra.mxu0 0.0
    %7985 = vmatprep.subr.mxu0 0.0
    %7986 = vmatpush1.msra.mxu0 0.0
    %7987 = vmatprep.subr.mxu0 0.0
    %7988 = vmatpush1.msra.mxu0 0.0
    %7989 = vmatprep.subr.mxu0 0.0
    %7990 = vmatpush1.msra.mxu0 0.0
    %7991 = vmatprep.subr.mxu0 0.0
    %7992 = vmatpush1.msra.mxu0 0.0
    %7993 = vmatprep.subr.mxu0 0.0
    %7994 = vmatpush1.msra.mxu0 0.0
    %7995 = vmatprep.subr.mxu0 0.0
    %7996 = vmatpush1.msra.mxu0 0.0
    %7997 = vmatprep.subr.mxu0 0.0
    %7998 = vmatpush1.msra.mxu0 0.0
    %7999 = vmatprep.subr.mxu0 0.0
    %8000 = vmatpush1.msra.mxu0 0.0
    %8001 = vmatprep.subr.mxu0 0.0
    %8002 = vmatpush1.msra.mxu0 0.0
    %8003 = vmatprep.subr.mxu0 0.0
    %8004 = vmatpush1.msra.mxu0 0.0
    %8005 = vmatprep.subr.mxu0 0.0
    %8006 = vmatpush1.msra.mxu0 0.0
    %8007 = vmatprep.subr.mxu0 0.0
    %8008 = vmatpush1.msra.mxu0 0.0
    %8009 = vmatprep.subr.mxu0 0.0
    %8010 = vmatpush1.msra.mxu0 0.0
    %8011 = vmatprep.subr.mxu0 0.0
    %8012 = vmatpush1.msra.mxu0 0.0
    %8013 = vmatprep.subr.mxu0 0.0
    %8014 = vmatpush1.msra.mxu0 0.0
    %8015 = vmatprep.subr.mxu0 0.0
    %8016 = vmatpush1.msra.mxu0 0.0
    %8017 = vmatprep.subr.mxu0 0.0
    %8018 = vmatpush1.msra.mxu0 0.0
    %8019 = vmatprep.subr.mxu0 0.0
    %8020 = vmatpush1.msra.mxu0 0.0
    %8021 = vmatprep.mubr.f32.mxu0 0.0
    %8022 = vmatmul.mubr.f32.gmra.mrb[0].mxu0 %v7934
    %v8023 = vpop.f32.mrb[0].mxu0
    %v8024 = vadd.f32 0.0, %v8023
    %v8025 = vpop.f32.mrb[0].mxu0
    %8026 = vmatprep.mubr.f32.mxu0 0.0
    %8027 = vmatmul.mubr.f32.gmra.mrb[0].mxu0 %v7937
    %v8028 = vpop.f32.mrb[0].mxu0
    %v8029 = vadd.f32 0.0, %v8028
    %v8030 = vpop.f32.mrb[0].mxu0
    %8031 = vmatprep.mubr.f32.mxu0 0.0
    %8032 = vmatmul.mubr.f32.gmra.mrb[0].mxu0 %v7940
    %v8033 = vpop.f32.mrb[0].mxu0
    %v8034 = vadd.f32 0.0, %v8033
    %v8035 = vpop.f32.mrb[0].mxu0
    %8036 = vmatprep.mubr.f32.mxu0 0.0
    %8037 = vmatmul.mubr.f32.gmra.mrb[0].mxu0 %v7943
    %v8038 = vpop.f32.mrb[0].mxu0
    %v8039 = vadd.f32 0.0, %v8038
    %v8040 = vpop.f32.mrb[0].mxu0
    %8041 = vmatprep.mubr.f32.mxu0 0.0
    %8042 = vmatmul.mubr.f32.gmra.mrb[0].mxu0 %v7946
    %v8043 = vpop.f32.mrb[0].mxu0
    %v8044 = vadd.f32 0.0, %v8043
    %v8045 = vpop.f32.mrb[0].mxu0
    %8046 = vmatprep.mubr.f32.mxu0 0.0
    %8047 = vmatmul.mubr.f32.gmra.mrb[0].mxu0 %v7949
    %v8048 = vpop.f32.mrb[0].mxu0
    %v8049 = vadd.f32 0.0, %v8048
    %v8050 = vpop.f32.mrb[0].mxu0
    %8051 = vmatprep.mubr.f32.mxu0 0.0
    %8052 = vmatmul.mubr.f32.gmra.mrb[0].mxu0 %v7952
    %v8053 = vpop.f32.mrb[0].mxu0
    %v8054 = vadd.f32 0.0, %v8053
    %v8055 = vpop.f32.mrb[0].mxu0
    %8056 = vmatprep.mubr.f32.mxu0 0.0
    %8057 = vmatmul.mubr.f32.gmra.mrb[0].mxu0 %v7955
    %v8058 = vpop.f32.mrb[0].mxu0
    %v8059 = vadd.f32 0.0, %v8058
    %v8060 = vpop.f32.mrb[0].mxu0
    %8061 = vdwg.mxu0
    %v8062 = vadd.f32 %v7916, %v8024
    %v8063 = vadd.f32 %v7917, %v8029
    %v8064 = vadd.f32 %v7918, %v8034
    %v8065 = vadd.f32 %v7919, %v8039
    %v8066 = vadd.f32 %v7920, %v8044
    %v8067 = vadd.f32 %v7921, %v8049
    %v8068 = vadd.f32 %v7922, %v8054
    %v8069 = vadd.f32 %v7923, %v8059
    %s8070 = scalar_lea.vmem %s5, 1536
    %v8071 = vld [vmem:[%s8070] sm:$0xff]
    %v8072 = vld [vmem:[%s8070 + $0x8] sm:$0xff]
    %v8073 = vld [vmem:[%s8070 + $0x10] sm:$0xff]
    %v8074 = vld [vmem:[%s8070 + $0x18] sm:$0xff]
    %v8075 = vld [vmem:[%s8070 + $0x20] sm:$0xff]
    %v8076 = vld [vmem:[%s8070 + $0x28] sm:$0xff]
    %v8077 = vld [vmem:[%s8070 + $0x30] sm:$0xff]
    %v8078 = vld [vmem:[%s8070 + $0x38] sm:$0xff]
    %v8080 = vsel %vm4599, %v8071, 0
    %v8083 = vsel %vm4599, %v8072, 0
    %v8086 = vsel %vm4599, %v8073, 0
    %v8089 = vsel %vm4599, %v8074, 0
    %v8092 = vsel %vm4599, %v8075, 0
    %v8095 = vsel %vm4599, %v8076, 0
    %v8098 = vsel %vm4599, %v8077, 0
    %v8101 = vsel %vm4599, %v8078, 0
    %8103 = vmatprep.subr.mxu0 0.0
    %8104 = vmatpush1.msra.mxu0 %v4430
    %8105 = vmatprep.subr.mxu0 0.0
    %8106 = vmatpush1.msra.mxu0 %v4474
    %8107 = vmatprep.subr.mxu0 0.0
    %8108 = vmatpush1.msra.mxu0 %v4518
    %8109 = vmatprep.subr.mxu0 0.0
    %8110 = vmatpush1.msra.mxu0 %v4562
    %8111 = vmatprep.subr.mxu0 0.0
    %8112 = vmatpush1.msra.mxu0 0.0
    %8113 = vmatprep.subr.mxu0 0.0
    %8114 = vmatpush1.msra.mxu0 0.0
    %8115 = vmatprep.subr.mxu0 0.0
    %8116 = vmatpush1.msra.mxu0 0.0
    %8117 = vmatprep.subr.mxu0 0.0
    %8118 = vmatpush1.msra.mxu0 0.0
    %8119 = vmatprep.subr.mxu0 0.0
    %8120 = vmatpush1.msra.mxu0 0.0
    %8121 = vmatprep.subr.mxu0 0.0
    %8122 = vmatpush1.msra.mxu0 0.0
    %8123 = vmatprep.subr.mxu0 0.0
    %8124 = vmatpush1.msra.mxu0 0.0
    %8125 = vmatprep.subr.mxu0 0.0
    %8126 = vmatpush1.msra.mxu0 0.0
    %8127 = vmatprep.subr.mxu0 0.0
    %8128 = vmatpush1.msra.mxu0 0.0
    %8129 = vmatprep.subr.mxu0 0.0
    %8130 = vmatpush1.msra.mxu0 0.0
    %8131 = vmatprep.subr.mxu0 0.0
    %8132 = vmatpush1.msra.mxu0 0.0
    %8133 = vmatprep.subr.mxu0 0.0
    %8134 = vmatpush1.msra.mxu0 0.0
    %8135 = vmatprep.subr.mxu0 0.0
    %8136 = vmatpush1.msra.mxu0 0.0
    %8137 = vmatprep.subr.mxu0 0.0
    %8138 = vmatpush1.msra.mxu0 0.0
    %8139 = vmatprep.subr.mxu0 0.0
    %8140 = vmatpush1.msra.mxu0 0.0
    %8141 = vmatprep.subr.mxu0 0.0
    %8142 = vmatpush1.msra.mxu0 0.0
    %8143 = vmatprep.subr.mxu0 0.0
    %8144 = vmatpush1.msra.mxu0 0.0
    %8145 = vmatprep.subr.mxu0 0.0
    %8146 = vmatpush1.msra.mxu0 0.0
    %8147 = vmatprep.subr.mxu0 0.0
    %8148 = vmatpush1.msra.mxu0 0.0
    %8149 = vmatprep.subr.mxu0 0.0
    %8150 = vmatpush1.msra.mxu0 0.0
    %8151 = vmatprep.subr.mxu0 0.0
    %8152 = vmatpush1.msra.mxu0 0.0
    %8153 = vmatprep.subr.mxu0 0.0
    %8154 = vmatpush1.msra.mxu0 0.0
    %8155 = vmatprep.subr.mxu0 0.0
    %8156 = vmatpush1.msra.mxu0 0.0
    %8157 = vmatprep.subr.mxu0 0.0
    %8158 = vmatpush1.msra.mxu0 0.0
    %8159 = vmatprep.subr.mxu0 0.0
    %8160 = vmatpush1.msra.mxu0 0.0
    %8161 = vmatprep.subr.mxu0 0.0
    %8162 = vmatpush1.msra.mxu0 0.0
    %8163 = vmatprep.subr.mxu0 0.0
    %8164 = vmatpush1.msra.mxu0 0.0
    %8165 = vmatprep.subr.mxu0 0.0
    %8166 = vmatpush1.msra.mxu0 0.0
    %8167 = vmatprep.mubr.f32.mxu0 0.0
    %8168 = vmatmul.mubr.f32.gmra.mrb[0].mxu0 %v8080
    %v8169 = vpop.f32.mrb[0].mxu0
    %v8170 = vadd.f32 0.0, %v8169
    %v8171 = vpop.f32.mrb[0].mxu0
    %8172 = vmatprep.mubr.f32.mxu0 0.0
    %8173 = vmatmul.mubr.f32.gmra.mrb[0].mxu0 %v8083
    %v8174 = vpop.f32.mrb[0].mxu0
    %v8175 = vadd.f32 0.0, %v8174
    %v8176 = vpop.f32.mrb[0].mxu0
    %8177 = vmatprep.mubr.f32.mxu0 0.0
    %8178 = vmatmul.mubr.f32.gmra.mrb[0].mxu0 %v8086
    %v8179 = vpop.f32.mrb[0].mxu0
    %v8180 = vadd.f32 0.0, %v8179
    %v8181 = vpop.f32.mrb[0].mxu0
    %8182 = vmatprep.mubr.f32.mxu0 0.0
    %8183 = vmatmul.mubr.f32.gmra.mrb[0].mxu0 %v8089
    %v8184 = vpop.f32.mrb[0].mxu0
    %v8185 = vadd.f32 0.0, %v8184
    %v8186 = vpop.f32.mrb[0].mxu0
    %8187 = vmatprep.mubr.f32.mxu0 0.0
    %8188 = vmatmul.mubr.f32.gmra.mrb[0].mxu0 %v8092
    %v8189 = vpop.f32.mrb[0].mxu0
    %v8190 = vadd.f32 0.0, %v8189
    %v8191 = vpop.f32.mrb[0].mxu0
    %8192 = vmatprep.mubr.f32.mxu0 0.0
    %8193 = vmatmul.mubr.f32.gmra.mrb[0].mxu0 %v8095
    %v8194 = vpop.f32.mrb[0].mxu0
    %v8195 = vadd.f32 0.0, %v8194
    %v8196 = vpop.f32.mrb[0].mxu0
    %8197 = vmatprep.mubr.f32.mxu0 0.0
    %8198 = vmatmul.mubr.f32.gmra.mrb[0].mxu0 %v8098
    %v8199 = vpop.f32.mrb[0].mxu0
    %v8200 = vadd.f32 0.0, %v8199
    %v8201 = vpop.f32.mrb[0].mxu0
    %8202 = vmatprep.mubr.f32.mxu0 0.0
    %8203 = vmatmul.mubr.f32.gmra.mrb[0].mxu0 %v8101
    %v8204 = vpop.f32.mrb[0].mxu0
    %v8205 = vadd.f32 0.0, %v8204
    %v8206 = vpop.f32.mrb[0].mxu0
    %8207 = vdwg.mxu0
    %v8208 = vadd.f32 %v8062, %v8170
    %v8209 = vadd.f32 %v8063, %v8175
    %v8210 = vadd.f32 %v8064, %v8180
    %v8211 = vadd.f32 %v8065, %v8185
    %v8212 = vadd.f32 %v8066, %v8190
    %v8213 = vadd.f32 %v8067, %v8195
    %v8214 = vadd.f32 %v8068, %v8200
    %v8215 = vadd.f32 %v8069, %v8205
    %s8216 = scalar_lea.vmem %s5, 1600
    %v8217 = vld [vmem:[%s8216] sm:$0xff]
    %v8218 = vld [vmem:[%s8216 + $0x8] sm:$0xff]
    %v8219 = vld [vmem:[%s8216 + $0x10] sm:$0xff]
    %v8220 = vld [vmem:[%s8216 + $0x18] sm:$0xff]
    %v8221 = vld [vmem:[%s8216 + $0x20] sm:$0xff]
    %v8222 = vld [vmem:[%s8216 + $0x28] sm:$0xff]
    %v8223 = vld [vmem:[%s8216 + $0x30] sm:$0xff]
    %v8224 = vld [vmem:[%s8216 + $0x38] sm:$0xff]
    %v8226 = vsel %vm4599, %v8217, 0
    %v8229 = vsel %vm4599, %v8218, 0
    %v8232 = vsel %vm4599, %v8219, 0
    %v8235 = vsel %vm4599, %v8220, 0
    %v8238 = vsel %vm4599, %v8221, 0
    %v8241 = vsel %vm4599, %v8222, 0
    %v8244 = vsel %vm4599, %v8223, 0
    %v8247 = vsel %vm4599, %v8224, 0
    %8249 = vmatprep.subr.mxu0 0.0
    %8250 = vmatpush1.msra.mxu0 %v4431
    %8251 = vmatprep.subr.mxu0 0.0
    %8252 = vmatpush1.msra.mxu0 %v4475
    %8253 = vmatprep.subr.mxu0 0.0
    %8254 = vmatpush1.msra.mxu0 %v4519
    %8255 = vmatprep.subr.mxu0 0.0
    %8256 = vmatpush1.msra.mxu0 %v4563
    %8257 = vmatprep.subr.mxu0 0.0
    %8258 = vmatpush1.msra.mxu0 0.0
    %8259 = vmatprep.subr.mxu0 0.0
    %8260 = vmatpush1.msra.mxu0 0.0
    %8261 = vmatprep.subr.mxu0 0.0
    %8262 = vmatpush1.msra.mxu0 0.0
    %8263 = vmatprep.subr.mxu0 0.0
    %8264 = vmatpush1.msra.mxu0 0.0
    %8265 = vmatprep.subr.mxu0 0.0
    %8266 = vmatpush1.msra.mxu0 0.0
    %8267 = vmatprep.subr.mxu0 0.0
    %8268 = vmatpush1.msra.mxu0 0.0
    %8269 = vmatprep.subr.mxu0 0.0
    %8270 = vmatpush1.msra.mxu0 0.0
    %8271 = vmatprep.subr.mxu0 0.0
    %8272 = vmatpush1.msra.mxu0 0.0
    %8273 = vmatprep.subr.mxu0 0.0
    %8274 = vmatpush1.msra.mxu0 0.0
    %8275 = vmatprep.subr.mxu0 0.0
    %8276 = vmatpush1.msra.mxu0 0.0
    %8277 = vmatprep.subr.mxu0 0.0
    %8278 = vmatpush1.msra.mxu0 0.0
    %8279 = vmatprep.subr.mxu0 0.0
    %8280 = vmatpush1.msra.mxu0 0.0
    %8281 = vmatprep.subr.mxu0 0.0
    %8282 = vmatpush1.msra.mxu0 0.0
    %8283 = vmatprep.subr.mxu0 0.0
    %8284 = vmatpush1.msra.mxu0 0.0
    %8285 = vmatprep.subr.mxu0 0.0
    %8286 = vmatpush1.msra.mxu0 0.0
    %8287 = vmatprep.subr.mxu0 0.0
    %8288 = vmatpush1.msra.mxu0 0.0
    %8289 = vmatprep.subr.mxu0 0.0
    %8290 = vmatpush1.msra.mxu0 0.0
    %8291 = vmatprep.subr.mxu0 0.0
    %8292 = vmatpush1.msra.mxu0 0.0
    %8293 = vmatprep.subr.mxu0 0.0
    %8294 = vmatpush1.msra.mxu0 0.0
    %8295 = vmatprep.subr.mxu0 0.0
    %8296 = vmatpush1.msra.mxu0 0.0
    %8297 = vmatprep.subr.mxu0 0.0
    %8298 = vmatpush1.msra.mxu0 0.0
    %8299 = vmatprep.subr.mxu0 0.0
    %8300 = vmatpush1.msra.mxu0 0.0
    %8301 = vmatprep.subr.mxu0 0.0
    %8302 = vmatpush1.msra.mxu0 0.0
    %8303 = vmatprep.subr.mxu0 0.0
    %8304 = vmatpush1.msra.mxu0 0.0
    %8305 = vmatprep.subr.mxu0 0.0
    %8306 = vmatpush1.msra.mxu0 0.0
    %8307 = vmatprep.subr.mxu0 0.0
    %8308 = vmatpush1.msra.mxu0 0.0
    %8309 = vmatprep.subr.mxu0 0.0
    %8310 = vmatpush1.msra.mxu0 0.0
    %8311 = vmatprep.subr.mxu0 0.0
    %8312 = vmatpush1.msra.mxu0 0.0
    %8313 = vmatprep.mubr.f32.mxu0 0.0
    %8314 = vmatmul.mubr.f32.gmra.mrb[0].mxu0 %v8226
    %v8315 = vpop.f32.mrb[0].mxu0
    %v8316 = vadd.f32 0.0, %v8315
    %v8317 = vpop.f32.mrb[0].mxu0
    %8318 = vmatprep.mubr.f32.mxu0 0.0
    %8319 = vmatmul.mubr.f32.gmra.mrb[0].mxu0 %v8229
    %v8320 = vpop.f32.mrb[0].mxu0
    %v8321 = vadd.f32 0.0, %v8320
    %v8322 = vpop.f32.mrb[0].mxu0
    %8323 = vmatprep.mubr.f32.mxu0 0.0
    %8324 = vmatmul.mubr.f32.gmra.mrb[0].mxu0 %v8232
    %v8325 = vpop.f32.mrb[0].mxu0
    %v8326 = vadd.f32 0.0, %v8325
    %v8327 = vpop.f32.mrb[0].mxu0
    %8328 = vmatprep.mubr.f32.mxu0 0.0
    %8329 = vmatmul.mubr.f32.gmra.mrb[0].mxu0 %v8235
    %v8330 = vpop.f32.mrb[0].mxu0
    %v8331 = vadd.f32 0.0, %v8330
    %v8332 = vpop.f32.mrb[0].mxu0
    %8333 = vmatprep.mubr.f32.mxu0 0.0
    %8334 = vmatmul.mubr.f32.gmra.mrb[0].mxu0 %v8238
    %v8335 = vpop.f32.mrb[0].mxu0
    %v8336 = vadd.f32 0.0, %v8335
    %v8337 = vpop.f32.mrb[0].mxu0
    %8338 = vmatprep.mubr.f32.mxu0 0.0
    %8339 = vmatmul.mubr.f32.gmra.mrb[0].mxu0 %v8241
    %v8340 = vpop.f32.mrb[0].mxu0
    %v8341 = vadd.f32 0.0, %v8340
    %v8342 = vpop.f32.mrb[0].mxu0
    %8343 = vmatprep.mubr.f32.mxu0 0.0
    %8344 = vmatmul.mubr.f32.gmra.mrb[0].mxu0 %v8244
    %v8345 = vpop.f32.mrb[0].mxu0
    %v8346 = vadd.f32 0.0, %v8345
    %v8347 = vpop.f32.mrb[0].mxu0
    %8348 = vmatprep.mubr.f32.mxu0 0.0
    %8349 = vmatmul.mubr.f32.gmra.mrb[0].mxu0 %v8247
    %v8350 = vpop.f32.mrb[0].mxu0
    %v8351 = vadd.f32 0.0, %v8350
    %v8352 = vpop.f32.mrb[0].mxu0
    %8353 = vdwg.mxu0
    %v8354 = vadd.f32 %v8208, %v8316
    %v8355 = vadd.f32 %v8209, %v8321
    %v8356 = vadd.f32 %v8210, %v8326
    %v8357 = vadd.f32 %v8211, %v8331
    %v8358 = vadd.f32 %v8212, %v8336
    %v8359 = vadd.f32 %v8213, %v8341
    %v8360 = vadd.f32 %v8214, %v8346
    %v8361 = vadd.f32 %v8215, %v8351
    %s8362 = scalar_lea.vmem %s5, 1664
    %v8363 = vld [vmem:[%s8362] sm:$0xff]
    %v8364 = vld [vmem:[%s8362 + $0x8] sm:$0xff]
    %v8365 = vld [vmem:[%s8362 + $0x10] sm:$0xff]
    %v8366 = vld [vmem:[%s8362 + $0x18] sm:$0xff]
    %v8367 = vld [vmem:[%s8362 + $0x20] sm:$0xff]
    %v8368 = vld [vmem:[%s8362 + $0x28] sm:$0xff]
    %v8369 = vld [vmem:[%s8362 + $0x30] sm:$0xff]
    %v8370 = vld [vmem:[%s8362 + $0x38] sm:$0xff]
    %v8372 = vsel %vm4599, %v8363, 0
    %v8375 = vsel %vm4599, %v8364, 0
    %v8378 = vsel %vm4599, %v8365, 0
    %v8381 = vsel %vm4599, %v8366, 0
    %v8384 = vsel %vm4599, %v8367, 0
    %v8387 = vsel %vm4599, %v8368, 0
    %v8390 = vsel %vm4599, %v8369, 0
    %v8393 = vsel %vm4599, %v8370, 0
    %8395 = vmatprep.subr.mxu0 0.0
    %8396 = vmatpush1.msra.mxu0 %v4432
    %8397 = vmatprep.subr.mxu0 0.0
    %8398 = vmatpush1.msra.mxu0 %v4476
    %8399 = vmatprep.subr.mxu0 0.0
    %8400 = vmatpush1.msra.mxu0 %v4520
    %8401 = vmatprep.subr.mxu0 0.0
    %8402 = vmatpush1.msra.mxu0 %v4564
    %8403 = vmatprep.subr.mxu0 0.0
    %8404 = vmatpush1.msra.mxu0 0.0
    %8405 = vmatprep.subr.mxu0 0.0
    %8406 = vmatpush1.msra.mxu0 0.0
    %8407 = vmatprep.subr.mxu0 0.0
    %8408 = vmatpush1.msra.mxu0 0.0
    %8409 = vmatprep.subr.mxu0 0.0
    %8410 = vmatpush1.msra.mxu0 0.0
    %8411 = vmatprep.subr.mxu0 0.0
    %8412 = vmatpush1.msra.mxu0 0.0
    %8413 = vmatprep.subr.mxu0 0.0
    %8414 = vmatpush1.msra.mxu0 0.0
    %8415 = vmatprep.subr.mxu0 0.0
    %8416 = vmatpush1.msra.mxu0 0.0
    %8417 = vmatprep.subr.mxu0 0.0
    %8418 = vmatpush1.msra.mxu0 0.0
    %8419 = vmatprep.subr.mxu0 0.0
    %8420 = vmatpush1.msra.mxu0 0.0
    %8421 = vmatprep.subr.mxu0 0.0
    %8422 = vmatpush1.msra.mxu0 0.0
    %8423 = vmatprep.subr.mxu0 0.0
    %8424 = vmatpush1.msra.mxu0 0.0
    %8425 = vmatprep.subr.mxu0 0.0
    %8426 = vmatpush1.msra.mxu0 0.0
    %8427 = vmatprep.subr.mxu0 0.0
    %8428 = vmatpush1.msra.mxu0 0.0
    %8429 = vmatprep.subr.mxu0 0.0
    %8430 = vmatpush1.msra.mxu0 0.0
    %8431 = vmatprep.subr.mxu0 0.0
    %8432 = vmatpush1.msra.mxu0 0.0
    %8433 = vmatprep.subr.mxu0 0.0
    %8434 = vmatpush1.msra.mxu0 0.0
    %8435 = vmatprep.subr.mxu0 0.0
    %8436 = vmatpush1.msra.mxu0 0.0
    %8437 = vmatprep.subr.mxu0 0.0
    %8438 = vmatpush1.msra.mxu0 0.0
    %8439 = vmatprep.subr.mxu0 0.0
    %8440 = vmatpush1.msra.mxu0 0.0
    %8441 = vmatprep.subr.mxu0 0.0
    %8442 = vmatpush1.msra.mxu0 0.0
    %8443 = vmatprep.subr.mxu0 0.0
    %8444 = vmatpush1.msra.mxu0 0.0
    %8445 = vmatprep.subr.mxu0 0.0
    %8446 = vmatpush1.msra.mxu0 0.0
    %8447 = vmatprep.subr.mxu0 0.0
    %8448 = vmatpush1.msra.mxu0 0.0
    %8449 = vmatprep.subr.mxu0 0.0
    %8450 = vmatpush1.msra.mxu0 0.0
    %8451 = vmatprep.subr.mxu0 0.0
    %8452 = vmatpush1.msra.mxu0 0.0
    %8453 = vmatprep.subr.mxu0 0.0
    %8454 = vmatpush1.msra.mxu0 0.0
    %8455 = vmatprep.subr.mxu0 0.0
    %8456 = vmatpush1.msra.mxu0 0.0
    %8457 = vmatprep.subr.mxu0 0.0
    %8458 = vmatpush1.msra.mxu0 0.0
    %8459 = vmatprep.mubr.f32.mxu0 0.0
    %8460 = vmatmul.mubr.f32.gmra.mrb[0].mxu0 %v8372
    %v8461 = vpop.f32.mrb[0].mxu0
    %v8462 = vadd.f32 0.0, %v8461
    %v8463 = vpop.f32.mrb[0].mxu0
    %8464 = vmatprep.mubr.f32.mxu0 0.0
    %8465 = vmatmul.mubr.f32.gmra.mrb[0].mxu0 %v8375
    %v8466 = vpop.f32.mrb[0].mxu0
    %v8467 = vadd.f32 0.0, %v8466
    %v8468 = vpop.f32.mrb[0].mxu0
    %8469 = vmatprep.mubr.f32.mxu0 0.0
    %8470 = vmatmul.mubr.f32.gmra.mrb[0].mxu0 %v8378
    %v8471 = vpop.f32.mrb[0].mxu0
    %v8472 = vadd.f32 0.0, %v8471
    %v8473 = vpop.f32.mrb[0].mxu0
    %8474 = vmatprep.mubr.f32.mxu0 0.0
    %8475 = vmatmul.mubr.f32.gmra.mrb[0].mxu0 %v8381
    %v8476 = vpop.f32.mrb[0].mxu0
    %v8477 = vadd.f32 0.0, %v8476
    %v8478 = vpop.f32.mrb[0].mxu0
    %8479 = vmatprep.mubr.f32.mxu0 0.0
    %8480 = vmatmul.mubr.f32.gmra.mrb[0].mxu0 %v8384
    %v8481 = vpop.f32.mrb[0].mxu0
    %v8482 = vadd.f32 0.0, %v8481
    %v8483 = vpop.f32.mrb[0].mxu0
    %8484 = vmatprep.mubr.f32.mxu0 0.0
    %8485 = vmatmul.mubr.f32.gmra.mrb[0].mxu0 %v8387
    %v8486 = vpop.f32.mrb[0].mxu0
    %v8487 = vadd.f32 0.0, %v8486
    %v8488 = vpop.f32.mrb[0].mxu0
    %8489 = vmatprep.mubr.f32.mxu0 0.0
    %8490 = vmatmul.mubr.f32.gmra.mrb[0].mxu0 %v8390
    %v8491 = vpop.f32.mrb[0].mxu0
    %v8492 = vadd.f32 0.0, %v8491
    %v8493 = vpop.f32.mrb[0].mxu0
    %8494 = vmatprep.mubr.f32.mxu0 0.0
    %8495 = vmatmul.mubr.f32.gmra.mrb[0].mxu0 %v8393
    %v8496 = vpop.f32.mrb[0].mxu0
    %v8497 = vadd.f32 0.0, %v8496
    %v8498 = vpop.f32.mrb[0].mxu0
    %8499 = vdwg.mxu0
    %v8500 = vadd.f32 %v8354, %v8462
    %v8501 = vadd.f32 %v8355, %v8467
    %v8502 = vadd.f32 %v8356, %v8472
    %v8503 = vadd.f32 %v8357, %v8477
    %v8504 = vadd.f32 %v8358, %v8482
    %v8505 = vadd.f32 %v8359, %v8487
    %v8506 = vadd.f32 %v8360, %v8492
    %v8507 = vadd.f32 %v8361, %v8497
    %s8508 = scalar_lea.vmem %s5, 1728
    %v8509 = vld [vmem:[%s8508] sm:$0xff]
    %v8510 = vld [vmem:[%s8508 + $0x8] sm:$0xff]
    %v8511 = vld [vmem:[%s8508 + $0x10] sm:$0xff]
    %v8512 = vld [vmem:[%s8508 + $0x18] sm:$0xff]
    %v8513 = vld [vmem:[%s8508 + $0x20] sm:$0xff]
    %v8514 = vld [vmem:[%s8508 + $0x28] sm:$0xff]
    %v8515 = vld [vmem:[%s8508 + $0x30] sm:$0xff]
    %v8516 = vld [vmem:[%s8508 + $0x38] sm:$0xff]
    %v8518 = vsel %vm4599, %v8509, 0
    %v8521 = vsel %vm4599, %v8510, 0
    %v8524 = vsel %vm4599, %v8511, 0
    %v8527 = vsel %vm4599, %v8512, 0
    %v8530 = vsel %vm4599, %v8513, 0
    %v8533 = vsel %vm4599, %v8514, 0
    %v8536 = vsel %vm4599, %v8515, 0
    %v8539 = vsel %vm4599, %v8516, 0
    %8541 = vmatprep.subr.mxu0 0.0
    %8542 = vmatpush1.msra.mxu0 %v4433
    %8543 = vmatprep.subr.mxu0 0.0
    %8544 = vmatpush1.msra.mxu0 %v4477
    %8545 = vmatprep.subr.mxu0 0.0
    %8546 = vmatpush1.msra.mxu0 %v4521
    %8547 = vmatprep.subr.mxu0 0.0
    %8548 = vmatpush1.msra.mxu0 %v4565
    %8549 = vmatprep.subr.mxu0 0.0
    %8550 = vmatpush1.msra.mxu0 0.0
    %8551 = vmatprep.subr.mxu0 0.0
    %8552 = vmatpush1.msra.mxu0 0.0
    %8553 = vmatprep.subr.mxu0 0.0
    %8554 = vmatpush1.msra.mxu0 0.0
    %8555 = vmatprep.subr.mxu0 0.0
    %8556 = vmatpush1.msra.mxu0 0.0
    %8557 = vmatprep.subr.mxu0 0.0
    %8558 = vmatpush1.msra.mxu0 0.0
    %8559 = vmatprep.subr.mxu0 0.0
    %8560 = vmatpush1.msra.mxu0 0.0
    %8561 = vmatprep.subr.mxu0 0.0
    %8562 = vmatpush1.msra.mxu0 0.0
    %8563 = vmatprep.subr.mxu0 0.0
    %8564 = vmatpush1.msra.mxu0 0.0
    %8565 = vmatprep.subr.mxu0 0.0
    %8566 = vmatpush1.msra.mxu0 0.0
    %8567 = vmatprep.subr.mxu0 0.0
    %8568 = vmatpush1.msra.mxu0 0.0
    %8569 = vmatprep.subr.mxu0 0.0
    %8570 = vmatpush1.msra.mxu0 0.0
    %8571 = vmatprep.subr.mxu0 0.0
    %8572 = vmatpush1.msra.mxu0 0.0
    %8573 = vmatprep.subr.mxu0 0.0
    %8574 = vmatpush1.msra.mxu0 0.0
    %8575 = vmatprep.subr.mxu0 0.0
    %8576 = vmatpush1.msra.mxu0 0.0
    %8577 = vmatprep.subr.mxu0 0.0
    %8578 = vmatpush1.msra.mxu0 0.0
    %8579 = vmatprep.subr.mxu0 0.0
    %8580 = vmatpush1.msra.mxu0 0.0
    %8581 = vmatprep.subr.mxu0 0.0
    %8582 = vmatpush1.msra.mxu0 0.0
    %8583 = vmatprep.subr.mxu0 0.0
    %8584 = vmatpush1.msra.mxu0 0.0
    %8585 = vmatprep.subr.mxu0 0.0
    %8586 = vmatpush1.msra.mxu0 0.0
    %8587 = vmatprep.subr.mxu0 0.0
    %8588 = vmatpush1.msra.mxu0 0.0
    %8589 = vmatprep.subr.mxu0 0.0
    %8590 = vmatpush1.msra.mxu0 0.0
    %8591 = vmatprep.subr.mxu0 0.0
    %8592 = vmatpush1.msra.mxu0 0.0
    %8593 = vmatprep.subr.mxu0 0.0
    %8594 = vmatpush1.msra.mxu0 0.0
    %8595 = vmatprep.subr.mxu0 0.0
    %8596 = vmatpush1.msra.mxu0 0.0
    %8597 = vmatprep.subr.mxu0 0.0
    %8598 = vmatpush1.msra.mxu0 0.0
    %8599 = vmatprep.subr.mxu0 0.0
    %8600 = vmatpush1.msra.mxu0 0.0
    %8601 = vmatprep.subr.mxu0 0.0
    %8602 = vmatpush1.msra.mxu0 0.0
    %8603 = vmatprep.subr.mxu0 0.0
    %8604 = vmatpush1.msra.mxu0 0.0
    %8605 = vmatprep.mubr.f32.mxu0 0.0
    %8606 = vmatmul.mubr.f32.gmra.mrb[0].mxu0 %v8518
    %v8607 = vpop.f32.mrb[0].mxu0
    %v8608 = vadd.f32 0.0, %v8607
    %v8609 = vpop.f32.mrb[0].mxu0
    %8610 = vmatprep.mubr.f32.mxu0 0.0
    %8611 = vmatmul.mubr.f32.gmra.mrb[0].mxu0 %v8521
    %v8612 = vpop.f32.mrb[0].mxu0
    %v8613 = vadd.f32 0.0, %v8612
    %v8614 = vpop.f32.mrb[0].mxu0
    %8615 = vmatprep.mubr.f32.mxu0 0.0
    %8616 = vmatmul.mubr.f32.gmra.mrb[0].mxu0 %v8524
    %v8617 = vpop.f32.mrb[0].mxu0
    %v8618 = vadd.f32 0.0, %v8617
    %v8619 = vpop.f32.mrb[0].mxu0
    %8620 = vmatprep.mubr.f32.mxu0 0.0
    %8621 = vmatmul.mubr.f32.gmra.mrb[0].mxu0 %v8527
    %v8622 = vpop.f32.mrb[0].mxu0
    %v8623 = vadd.f32 0.0, %v8622
    %v8624 = vpop.f32.mrb[0].mxu0
    %8625 = vmatprep.mubr.f32.mxu0 0.0
    %8626 = vmatmul.mubr.f32.gmra.mrb[0].mxu0 %v8530
    %v8627 = vpop.f32.mrb[0].mxu0
    %v8628 = vadd.f32 0.0, %v8627
    %v8629 = vpop.f32.mrb[0].mxu0
    %8630 = vmatprep.mubr.f32.mxu0 0.0
    %8631 = vmatmul.mubr.f32.gmra.mrb[0].mxu0 %v8533
    %v8632 = vpop.f32.mrb[0].mxu0
    %v8633 = vadd.f32 0.0, %v8632
    %v8634 = vpop.f32.mrb[0].mxu0
    %8635 = vmatprep.mubr.f32.mxu0 0.0
    %8636 = vmatmul.mubr.f32.gmra.mrb[0].mxu0 %v8536
    %v8637 = vpop.f32.mrb[0].mxu0
    %v8638 = vadd.f32 0.0, %v8637
    %v8639 = vpop.f32.mrb[0].mxu0
    %8640 = vmatprep.mubr.f32.mxu0 0.0
    %8641 = vmatmul.mubr.f32.gmra.mrb[0].mxu0 %v8539
    %v8642 = vpop.f32.mrb[0].mxu0
    %v8643 = vadd.f32 0.0, %v8642
    %v8644 = vpop.f32.mrb[0].mxu0
    %8645 = vdwg.mxu0
    %v8646 = vadd.f32 %v8500, %v8608
    %v8647 = vadd.f32 %v8501, %v8613
    %v8648 = vadd.f32 %v8502, %v8618
    %v8649 = vadd.f32 %v8503, %v8623
    %v8650 = vadd.f32 %v8504, %v8628
    %v8651 = vadd.f32 %v8505, %v8633
    %v8652 = vadd.f32 %v8506, %v8638
    %v8653 = vadd.f32 %v8507, %v8643
    %s8654 = scalar_lea.vmem %s5, 1792
    %v8655 = vld [vmem:[%s8654] sm:$0xff]
    %v8656 = vld [vmem:[%s8654 + $0x8] sm:$0xff]
    %v8657 = vld [vmem:[%s8654 + $0x10] sm:$0xff]
    %v8658 = vld [vmem:[%s8654 + $0x18] sm:$0xff]
    %v8659 = vld [vmem:[%s8654 + $0x20] sm:$0xff]
    %v8660 = vld [vmem:[%s8654 + $0x28] sm:$0xff]
    %v8661 = vld [vmem:[%s8654 + $0x30] sm:$0xff]
    %v8662 = vld [vmem:[%s8654 + $0x38] sm:$0xff]
    %v8664 = vsel %vm4599, %v8655, 0
    %v8667 = vsel %vm4599, %v8656, 0
    %v8670 = vsel %vm4599, %v8657, 0
    %v8673 = vsel %vm4599, %v8658, 0
    %v8676 = vsel %vm4599, %v8659, 0
    %v8679 = vsel %vm4599, %v8660, 0
    %v8682 = vsel %vm4599, %v8661, 0
    %v8685 = vsel %vm4599, %v8662, 0
    %8687 = vmatprep.subr.mxu0 0.0
    %8688 = vmatpush1.msra.mxu0 %v4434
    %8689 = vmatprep.subr.mxu0 0.0
    %8690 = vmatpush1.msra.mxu0 %v4478
    %8691 = vmatprep.subr.mxu0 0.0
    %8692 = vmatpush1.msra.mxu0 %v4522
    %8693 = vmatprep.subr.mxu0 0.0
    %8694 = vmatpush1.msra.mxu0 %v4566
    %8695 = vmatprep.subr.mxu0 0.0
    %8696 = vmatpush1.msra.mxu0 0.0
    %8697 = vmatprep.subr.mxu0 0.0
    %8698 = vmatpush1.msra.mxu0 0.0
    %8699 = vmatprep.subr.mxu0 0.0
    %8700 = vmatpush1.msra.mxu0 0.0
    %8701 = vmatprep.subr.mxu0 0.0
    %8702 = vmatpush1.msra.mxu0 0.0
    %8703 = vmatprep.subr.mxu0 0.0
    %8704 = vmatpush1.msra.mxu0 0.0
    %8705 = vmatprep.subr.mxu0 0.0
    %8706 = vmatpush1.msra.mxu0 0.0
    %8707 = vmatprep.subr.mxu0 0.0
    %8708 = vmatpush1.msra.mxu0 0.0
    %8709 = vmatprep.subr.mxu0 0.0
    %8710 = vmatpush1.msra.mxu0 0.0
    %8711 = vmatprep.subr.mxu0 0.0
    %8712 = vmatpush1.msra.mxu0 0.0
    %8713 = vmatprep.subr.mxu0 0.0
    %8714 = vmatpush1.msra.mxu0 0.0
    %8715 = vmatprep.subr.mxu0 0.0
    %8716 = vmatpush1.msra.mxu0 0.0
    %8717 = vmatprep.subr.mxu0 0.0
    %8718 = vmatpush1.msra.mxu0 0.0
    %8719 = vmatprep.subr.mxu0 0.0
    %8720 = vmatpush1.msra.mxu0 0.0
    %8721 = vmatprep.subr.mxu0 0.0
    %8722 = vmatpush1.msra.mxu0 0.0
    %8723 = vmatprep.subr.mxu0 0.0
    %8724 = vmatpush1.msra.mxu0 0.0
    %8725 = vmatprep.subr.mxu0 0.0
    %8726 = vmatpush1.msra.mxu0 0.0
    %8727 = vmatprep.subr.mxu0 0.0
    %8728 = vmatpush1.msra.mxu0 0.0
    %8729 = vmatprep.subr.mxu0 0.0
    %8730 = vmatpush1.msra.mxu0 0.0
    %8731 = vmatprep.subr.mxu0 0.0
    %8732 = vmatpush1.msra.mxu0 0.0
    %8733 = vmatprep.subr.mxu0 0.0
    %8734 = vmatpush1.msra.mxu0 0.0
    %8735 = vmatprep.subr.mxu0 0.0
    %8736 = vmatpush1.msra.mxu0 0.0
    %8737 = vmatprep.subr.mxu0 0.0
    %8738 = vmatpush1.msra.mxu0 0.0
    %8739 = vmatprep.subr.mxu0 0.0
    %8740 = vmatpush1.msra.mxu0 0.0
    %8741 = vmatprep.subr.mxu0 0.0
    %8742 = vmatpush1.msra.mxu0 0.0
    %8743 = vmatprep.subr.mxu0 0.0
    %8744 = vmatpush1.msra.mxu0 0.0
    %8745 = vmatprep.subr.mxu0 0.0
    %8746 = vmatpush1.msra.mxu0 0.0
    %8747 = vmatprep.subr.mxu0 0.0
    %8748 = vmatpush1.msra.mxu0 0.0
    %8749 = vmatprep.subr.mxu0 0.0
    %8750 = vmatpush1.msra.mxu0 0.0
    %8751 = vmatprep.mubr.f32.mxu0 0.0
    %8752 = vmatmul.mubr.f32.gmra.mrb[0].mxu0 %v8664
    %v8753 = vpop.f32.mrb[0].mxu0
    %v8754 = vadd.f32 0.0, %v8753
    %v8755 = vpop.f32.mrb[0].mxu0
    %8756 = vmatprep.mubr.f32.mxu0 0.0
    %8757 = vmatmul.mubr.f32.gmra.mrb[0].mxu0 %v8667
    %v8758 = vpop.f32.mrb[0].mxu0
    %v8759 = vadd.f32 0.0, %v8758
    %v8760 = vpop.f32.mrb[0].mxu0
    %8761 = vmatprep.mubr.f32.mxu0 0.0
    %8762 = vmatmul.mubr.f32.gmra.mrb[0].mxu0 %v8670
    %v8763 = vpop.f32.mrb[0].mxu0
    %v8764 = vadd.f32 0.0, %v8763
    %v8765 = vpop.f32.mrb[0].mxu0
    %8766 = vmatprep.mubr.f32.mxu0 0.0
    %8767 = vmatmul.mubr.f32.gmra.mrb[0].mxu0 %v8673
    %v8768 = vpop.f32.mrb[0].mxu0
    %v8769 = vadd.f32 0.0, %v8768
    %v8770 = vpop.f32.mrb[0].mxu0
    %8771 = vmatprep.mubr.f32.mxu0 0.0
    %8772 = vmatmul.mubr.f32.gmra.mrb[0].mxu0 %v8676
    %v8773 = vpop.f32.mrb[0].mxu0
    %v8774 = vadd.f32 0.0, %v8773
    %v8775 = vpop.f32.mrb[0].mxu0
    %8776 = vmatprep.mubr.f32.mxu0 0.0
    %8777 = vmatmul.mubr.f32.gmra.mrb[0].mxu0 %v8679
    %v8778 = vpop.f32.mrb[0].mxu0
    %v8779 = vadd.f32 0.0, %v8778
    %v8780 = vpop.f32.mrb[0].mxu0
    %8781 = vmatprep.mubr.f32.mxu0 0.0
    %8782 = vmatmul.mubr.f32.gmra.mrb[0].mxu0 %v8682
    %v8783 = vpop.f32.mrb[0].mxu0
    %v8784 = vadd.f32 0.0, %v8783
    %v8785 = vpop.f32.mrb[0].mxu0
    %8786 = vmatprep.mubr.f32.mxu0 0.0
    %8787 = vmatmul.mubr.f32.gmra.mrb[0].mxu0 %v8685
    %v8788 = vpop.f32.mrb[0].mxu0
    %v8789 = vadd.f32 0.0, %v8788
    %v8790 = vpop.f32.mrb[0].mxu0
    %8791 = vdwg.mxu0
    %v8792 = vadd.f32 %v8646, %v8754
    %v8793 = vadd.f32 %v8647, %v8759
    %v8794 = vadd.f32 %v8648, %v8764
    %v8795 = vadd.f32 %v8649, %v8769
    %v8796 = vadd.f32 %v8650, %v8774
    %v8797 = vadd.f32 %v8651, %v8779
    %v8798 = vadd.f32 %v8652, %v8784
    %v8799 = vadd.f32 %v8653, %v8789
    %s8800 = scalar_lea.vmem %s5, 1856
    %v8801 = vld [vmem:[%s8800] sm:$0xff]
    %v8802 = vld [vmem:[%s8800 + $0x8] sm:$0xff]
    %v8803 = vld [vmem:[%s8800 + $0x10] sm:$0xff]
    %v8804 = vld [vmem:[%s8800 + $0x18] sm:$0xff]
    %v8805 = vld [vmem:[%s8800 + $0x20] sm:$0xff]
    %v8806 = vld [vmem:[%s8800 + $0x28] sm:$0xff]
    %v8807 = vld [vmem:[%s8800 + $0x30] sm:$0xff]
    %v8808 = vld [vmem:[%s8800 + $0x38] sm:$0xff]
    %v8810 = vsel %vm4599, %v8801, 0
    %v8813 = vsel %vm4599, %v8802, 0
    %v8816 = vsel %vm4599, %v8803, 0
    %v8819 = vsel %vm4599, %v8804, 0
    %v8822 = vsel %vm4599, %v8805, 0
    %v8825 = vsel %vm4599, %v8806, 0
    %v8828 = vsel %vm4599, %v8807, 0
    %v8831 = vsel %vm4599, %v8808, 0
    %8833 = vmatprep.subr.mxu0 0.0
    %8834 = vmatpush1.msra.mxu0 %v4435
    %8835 = vmatprep.subr.mxu0 0.0
    %8836 = vmatpush1.msra.mxu0 %v4479
    %8837 = vmatprep.subr.mxu0 0.0
    %8838 = vmatpush1.msra.mxu0 %v4523
    %8839 = vmatprep.subr.mxu0 0.0
    %8840 = vmatpush1.msra.mxu0 %v4567
    %8841 = vmatprep.subr.mxu0 0.0
    %8842 = vmatpush1.msra.mxu0 0.0
    %8843 = vmatprep.subr.mxu0 0.0
    %8844 = vmatpush1.msra.mxu0 0.0
    %8845 = vmatprep.subr.mxu0 0.0
    %8846 = vmatpush1.msra.mxu0 0.0
    %8847 = vmatprep.subr.mxu0 0.0
    %8848 = vmatpush1.msra.mxu0 0.0
    %8849 = vmatprep.subr.mxu0 0.0
    %8850 = vmatpush1.msra.mxu0 0.0
    %8851 = vmatprep.subr.mxu0 0.0
    %8852 = vmatpush1.msra.mxu0 0.0
    %8853 = vmatprep.subr.mxu0 0.0
    %8854 = vmatpush1.msra.mxu0 0.0
    %8855 = vmatprep.subr.mxu0 0.0
    %8856 = vmatpush1.msra.mxu0 0.0
    %8857 = vmatprep.subr.mxu0 0.0
    %8858 = vmatpush1.msra.mxu0 0.0
    %8859 = vmatprep.subr.mxu0 0.0
    %8860 = vmatpush1.msra.mxu0 0.0
    %8861 = vmatprep.subr.mxu0 0.0
    %8862 = vmatpush1.msra.mxu0 0.0
    %8863 = vmatprep.subr.mxu0 0.0
    %8864 = vmatpush1.msra.mxu0 0.0
    %8865 = vmatprep.subr.mxu0 0.0
    %8866 = vmatpush1.msra.mxu0 0.0
    %8867 = vmatprep.subr.mxu0 0.0
    %8868 = vmatpush1.msra.mxu0 0.0
    %8869 = vmatprep.subr.mxu0 0.0
    %8870 = vmatpush1.msra.mxu0 0.0
    %8871 = vmatprep.subr.mxu0 0.0
    %8872 = vmatpush1.msra.mxu0 0.0
    %8873 = vmatprep.subr.mxu0 0.0
    %8874 = vmatpush1.msra.mxu0 0.0
    %8875 = vmatprep.subr.mxu0 0.0
    %8876 = vmatpush1.msra.mxu0 0.0
    %8877 = vmatprep.subr.mxu0 0.0
    %8878 = vmatpush1.msra.mxu0 0.0
    %8879 = vmatprep.subr.mxu0 0.0
    %8880 = vmatpush1.msra.mxu0 0.0
    %8881 = vmatprep.subr.mxu0 0.0
    %8882 = vmatpush1.msra.mxu0 0.0
    %8883 = vmatprep.subr.mxu0 0.0
    %8884 = vmatpush1.msra.mxu0 0.0
    %8885 = vmatprep.subr.mxu0 0.0
    %8886 = vmatpush1.msra.mxu0 0.0
    %8887 = vmatprep.subr.mxu0 0.0
    %8888 = vmatpush1.msra.mxu0 0.0
    %8889 = vmatprep.subr.mxu0 0.0
    %8890 = vmatpush1.msra.mxu0 0.0
    %8891 = vmatprep.subr.mxu0 0.0
    %8892 = vmatpush1.msra.mxu0 0.0
    %8893 = vmatprep.subr.mxu0 0.0
    %8894 = vmatpush1.msra.mxu0 0.0
    %8895 = vmatprep.subr.mxu0 0.0
    %8896 = vmatpush1.msra.mxu0 0.0
    %8897 = vmatprep.mubr.f32.mxu0 0.0
    %8898 = vmatmul.mubr.f32.gmra.mrb[0].mxu0 %v8810
    %v8899 = vpop.f32.mrb[0].mxu0
    %v8900 = vadd.f32 0.0, %v8899
    %v8901 = vpop.f32.mrb[0].mxu0
    %8902 = vmatprep.mubr.f32.mxu0 0.0
    %8903 = vmatmul.mubr.f32.gmra.mrb[0].mxu0 %v8813
    %v8904 = vpop.f32.mrb[0].mxu0
    %v8905 = vadd.f32 0.0, %v8904
    %v8906 = vpop.f32.mrb[0].mxu0
    %8907 = vmatprep.mubr.f32.mxu0 0.0
    %8908 = vmatmul.mubr.f32.gmra.mrb[0].mxu0 %v8816
    %v8909 = vpop.f32.mrb[0].mxu0
    %v8910 = vadd.f32 0.0, %v8909
    %v8911 = vpop.f32.mrb[0].mxu0
    %8912 = vmatprep.mubr.f32.mxu0 0.0
    %8913 = vmatmul.mubr.f32.gmra.mrb[0].mxu0 %v8819
    %v8914 = vpop.f32.mrb[0].mxu0
    %v8915 = vadd.f32 0.0, %v8914
    %v8916 = vpop.f32.mrb[0].mxu0
    %8917 = vmatprep.mubr.f32.mxu0 0.0
    %8918 = vmatmul.mubr.f32.gmra.mrb[0].mxu0 %v8822
    %v8919 = vpop.f32.mrb[0].mxu0
    %v8920 = vadd.f32 0.0, %v8919
    %v8921 = vpop.f32.mrb[0].mxu0
    %8922 = vmatprep.mubr.f32.mxu0 0.0
    %8923 = vmatmul.mubr.f32.gmra.mrb[0].mxu0 %v8825
    %v8924 = vpop.f32.mrb[0].mxu0
    %v8925 = vadd.f32 0.0, %v8924
    %v8926 = vpop.f32.mrb[0].mxu0
    %8927 = vmatprep.mubr.f32.mxu0 0.0
    %8928 = vmatmul.mubr.f32.gmra.mrb[0].mxu0 %v8828
    %v8929 = vpop.f32.mrb[0].mxu0
    %v8930 = vadd.f32 0.0, %v8929
    %v8931 = vpop.f32.mrb[0].mxu0
    %8932 = vmatprep.mubr.f32.mxu0 0.0
    %8933 = vmatmul.mubr.f32.gmra.mrb[0].mxu0 %v8831
    %v8934 = vpop.f32.mrb[0].mxu0
    %v8935 = vadd.f32 0.0, %v8934
    %v8936 = vpop.f32.mrb[0].mxu0
    %8937 = vdwg.mxu0
    %v8938 = vadd.f32 %v8792, %v8900
    %v8939 = vadd.f32 %v8793, %v8905
    %v8940 = vadd.f32 %v8794, %v8910
    %v8941 = vadd.f32 %v8795, %v8915
    %v8942 = vadd.f32 %v8796, %v8920
    %v8943 = vadd.f32 %v8797, %v8925
    %v8944 = vadd.f32 %v8798, %v8930
    %v8945 = vadd.f32 %v8799, %v8935
    %s8946 = scalar_lea.vmem %s5, 1920
    %v8947 = vld [vmem:[%s8946] sm:$0xff]
    %v8948 = vld [vmem:[%s8946 + $0x8] sm:$0xff]
    %v8949 = vld [vmem:[%s8946 + $0x10] sm:$0xff]
    %v8950 = vld [vmem:[%s8946 + $0x18] sm:$0xff]
    %v8951 = vld [vmem:[%s8946 + $0x20] sm:$0xff]
    %v8952 = vld [vmem:[%s8946 + $0x28] sm:$0xff]
    %v8953 = vld [vmem:[%s8946 + $0x30] sm:$0xff]
    %v8954 = vld [vmem:[%s8946 + $0x38] sm:$0xff]
    %v8956 = vsel %vm4599, %v8947, 0
    %v8959 = vsel %vm4599, %v8948, 0
    %v8962 = vsel %vm4599, %v8949, 0
    %v8965 = vsel %vm4599, %v8950, 0
    %v8968 = vsel %vm4599, %v8951, 0
    %v8971 = vsel %vm4599, %v8952, 0
    %v8974 = vsel %vm4599, %v8953, 0
    %v8977 = vsel %vm4599, %v8954, 0
    %8979 = vmatprep.subr.mxu0 0.0
    %8980 = vmatpush1.msra.mxu0 %v4436
    %8981 = vmatprep.subr.mxu0 0.0
    %8982 = vmatpush1.msra.mxu0 %v4480
    %8983 = vmatprep.subr.mxu0 0.0
    %8984 = vmatpush1.msra.mxu0 %v4524
    %8985 = vmatprep.subr.mxu0 0.0
    %8986 = vmatpush1.msra.mxu0 %v4568
    %8987 = vmatprep.subr.mxu0 0.0
    %8988 = vmatpush1.msra.mxu0 0.0
    %8989 = vmatprep.subr.mxu0 0.0
    %8990 = vmatpush1.msra.mxu0 0.0
    %8991 = vmatprep.subr.mxu0 0.0
    %8992 = vmatpush1.msra.mxu0 0.0
    %8993 = vmatprep.subr.mxu0 0.0
    %8994 = vmatpush1.msra.mxu0 0.0
    %8995 = vmatprep.subr.mxu0 0.0
    %8996 = vmatpush1.msra.mxu0 0.0
    %8997 = vmatprep.subr.mxu0 0.0
    %8998 = vmatpush1.msra.mxu0 0.0
    %8999 = vmatprep.subr.mxu0 0.0
    %9000 = vmatpush1.msra.mxu0 0.0
    %9001 = vmatprep.subr.mxu0 0.0
    %9002 = vmatpush1.msra.mxu0 0.0
    %9003 = vmatprep.subr.mxu0 0.0
    %9004 = vmatpush1.msra.mxu0 0.0
    %9005 = vmatprep.subr.mxu0 0.0
    %9006 = vmatpush1.msra.mxu0 0.0
    %9007 = vmatprep.subr.mxu0 0.0
    %9008 = vmatpush1.msra.mxu0 0.0
    %9009 = vmatprep.subr.mxu0 0.0
    %9010 = vmatpush1.msra.mxu0 0.0
    %9011 = vmatprep.subr.mxu0 0.0
    %9012 = vmatpush1.msra.mxu0 0.0
    %9013 = vmatprep.subr.mxu0 0.0
    %9014 = vmatpush1.msra.mxu0 0.0
    %9015 = vmatprep.subr.mxu0 0.0
    %9016 = vmatpush1.msra.mxu0 0.0
    %9017 = vmatprep.subr.mxu0 0.0
    %9018 = vmatpush1.msra.mxu0 0.0
    %9019 = vmatprep.subr.mxu0 0.0
    %9020 = vmatpush1.msra.mxu0 0.0
    %9021 = vmatprep.subr.mxu0 0.0
    %9022 = vmatpush1.msra.mxu0 0.0
    %9023 = vmatprep.subr.mxu0 0.0
    %9024 = vmatpush1.msra.mxu0 0.0
    %9025 = vmatprep.subr.mxu0 0.0
    %9026 = vmatpush1.msra.mxu0 0.0
    %9027 = vmatprep.subr.mxu0 0.0
    %9028 = vmatpush1.msra.mxu0 0.0
    %9029 = vmatprep.subr.mxu0 0.0
    %9030 = vmatpush1.msra.mxu0 0.0
    %9031 = vmatprep.subr.mxu0 0.0
    %9032 = vmatpush1.msra.mxu0 0.0
    %9033 = vmatprep.subr.mxu0 0.0
    %9034 = vmatpush1.msra.mxu0 0.0
    %9035 = vmatprep.subr.mxu0 0.0
    %9036 = vmatpush1.msra.mxu0 0.0
    %9037 = vmatprep.subr.mxu0 0.0
    %9038 = vmatpush1.msra.mxu0 0.0
    %9039 = vmatprep.subr.mxu0 0.0
    %9040 = vmatpush1.msra.mxu0 0.0
    %9041 = vmatprep.subr.mxu0 0.0
    %9042 = vmatpush1.msra.mxu0 0.0
    %9043 = vmatprep.mubr.f32.mxu0 0.0
    %9044 = vmatmul.mubr.f32.gmra.mrb[0].mxu0 %v8956
    %v9045 = vpop.f32.mrb[0].mxu0
    %v9046 = vadd.f32 0.0, %v9045
    %v9047 = vpop.f32.mrb[0].mxu0
    %9048 = vmatprep.mubr.f32.mxu0 0.0
    %9049 = vmatmul.mubr.f32.gmra.mrb[0].mxu0 %v8959
    %v9050 = vpop.f32.mrb[0].mxu0
    %v9051 = vadd.f32 0.0, %v9050
    %v9052 = vpop.f32.mrb[0].mxu0
    %9053 = vmatprep.mubr.f32.mxu0 0.0
    %9054 = vmatmul.mubr.f32.gmra.mrb[0].mxu0 %v8962
    %v9055 = vpop.f32.mrb[0].mxu0
    %v9056 = vadd.f32 0.0, %v9055
    %v9057 = vpop.f32.mrb[0].mxu0
    %9058 = vmatprep.mubr.f32.mxu0 0.0
    %9059 = vmatmul.mubr.f32.gmra.mrb[0].mxu0 %v8965
    %v9060 = vpop.f32.mrb[0].mxu0
    %v9061 = vadd.f32 0.0, %v9060
    %v9062 = vpop.f32.mrb[0].mxu0
    %9063 = vmatprep.mubr.f32.mxu0 0.0
    %9064 = vmatmul.mubr.f32.gmra.mrb[0].mxu0 %v8968
    %v9065 = vpop.f32.mrb[0].mxu0
    %v9066 = vadd.f32 0.0, %v9065
    %v9067 = vpop.f32.mrb[0].mxu0
    %9068 = vmatprep.mubr.f32.mxu0 0.0
    %9069 = vmatmul.mubr.f32.gmra.mrb[0].mxu0 %v8971
    %v9070 = vpop.f32.mrb[0].mxu0
    %v9071 = vadd.f32 0.0, %v9070
    %v9072 = vpop.f32.mrb[0].mxu0
    %9073 = vmatprep.mubr.f32.mxu0 0.0
    %9074 = vmatmul.mubr.f32.gmra.mrb[0].mxu0 %v8974
    %v9075 = vpop.f32.mrb[0].mxu0
    %v9076 = vadd.f32 0.0, %v9075
    %v9077 = vpop.f32.mrb[0].mxu0
    %9078 = vmatprep.mubr.f32.mxu0 0.0
    %9079 = vmatmul.mubr.f32.gmra.mrb[0].mxu0 %v8977
    %v9080 = vpop.f32.mrb[0].mxu0
    %v9081 = vadd.f32 0.0, %v9080
    %v9082 = vpop.f32.mrb[0].mxu0
    %9083 = vdwg.mxu0
    %v9084 = vadd.f32 %v8938, %v9046
    %v9085 = vadd.f32 %v8939, %v9051
    %v9086 = vadd.f32 %v8940, %v9056
    %v9087 = vadd.f32 %v8941, %v9061
    %v9088 = vadd.f32 %v8942, %v9066
    %v9089 = vadd.f32 %v8943, %v9071
    %v9090 = vadd.f32 %v8944, %v9076
    %v9091 = vadd.f32 %v8945, %v9081
    %s9092 = scalar_lea.vmem %s5, 1984
    %v9093 = vld [vmem:[%s9092] sm:$0xff]
    %v9094 = vld [vmem:[%s9092 + $0x8] sm:$0xff]
    %v9095 = vld [vmem:[%s9092 + $0x10] sm:$0xff]
    %v9096 = vld [vmem:[%s9092 + $0x18] sm:$0xff]
    %v9097 = vld [vmem:[%s9092 + $0x20] sm:$0xff]
    %v9098 = vld [vmem:[%s9092 + $0x28] sm:$0xff]
    %v9099 = vld [vmem:[%s9092 + $0x30] sm:$0xff]
    %v9100 = vld [vmem:[%s9092 + $0x38] sm:$0xff]
    %v9102 = vsel %vm4599, %v9093, 0
    %v9105 = vsel %vm4599, %v9094, 0
    %v9108 = vsel %vm4599, %v9095, 0
    %v9111 = vsel %vm4599, %v9096, 0
    %v9114 = vsel %vm4599, %v9097, 0
    %v9117 = vsel %vm4599, %v9098, 0
    %v9120 = vsel %vm4599, %v9099, 0
    %v9123 = vsel %vm4599, %v9100, 0
    %9125 = vmatprep.subr.mxu0 0.0
    %9126 = vmatpush1.msra.mxu0 %v4437
    %9127 = vmatprep.subr.mxu0 0.0
    %9128 = vmatpush1.msra.mxu0 %v4481
    %9129 = vmatprep.subr.mxu0 0.0
    %9130 = vmatpush1.msra.mxu0 %v4525
    %9131 = vmatprep.subr.mxu0 0.0
    %9132 = vmatpush1.msra.mxu0 %v4569
    %9133 = vmatprep.subr.mxu0 0.0
    %9134 = vmatpush1.msra.mxu0 0.0
    %9135 = vmatprep.subr.mxu0 0.0
    %9136 = vmatpush1.msra.mxu0 0.0
    %9137 = vmatprep.subr.mxu0 0.0
    %9138 = vmatpush1.msra.mxu0 0.0
    %9139 = vmatprep.subr.mxu0 0.0
    %9140 = vmatpush1.msra.mxu0 0.0
    %9141 = vmatprep.subr.mxu0 0.0
    %9142 = vmatpush1.msra.mxu0 0.0
    %9143 = vmatprep.subr.mxu0 0.0
    %9144 = vmatpush1.msra.mxu0 0.0
    %9145 = vmatprep.subr.mxu0 0.0
    %9146 = vmatpush1.msra.mxu0 0.0
    %9147 = vmatprep.subr.mxu0 0.0
    %9148 = vmatpush1.msra.mxu0 0.0
    %9149 = vmatprep.subr.mxu0 0.0
    %9150 = vmatpush1.msra.mxu0 0.0
    %9151 = vmatprep.subr.mxu0 0.0
    %9152 = vmatpush1.msra.mxu0 0.0
    %9153 = vmatprep.subr.mxu0 0.0
    %9154 = vmatpush1.msra.mxu0 0.0
    %9155 = vmatprep.subr.mxu0 0.0
    %9156 = vmatpush1.msra.mxu0 0.0
    %9157 = vmatprep.subr.mxu0 0.0
    %9158 = vmatpush1.msra.mxu0 0.0
    %9159 = vmatprep.subr.mxu0 0.0
    %9160 = vmatpush1.msra.mxu0 0.0
    %9161 = vmatprep.subr.mxu0 0.0
    %9162 = vmatpush1.msra.mxu0 0.0
    %9163 = vmatprep.subr.mxu0 0.0
    %9164 = vmatpush1.msra.mxu0 0.0
    %9165 = vmatprep.subr.mxu0 0.0
    %9166 = vmatpush1.msra.mxu0 0.0
    %9167 = vmatprep.subr.mxu0 0.0
    %9168 = vmatpush1.msra.mxu0 0.0
    %9169 = vmatprep.subr.mxu0 0.0
    %9170 = vmatpush1.msra.mxu0 0.0
    %9171 = vmatprep.subr.mxu0 0.0
    %9172 = vmatpush1.msra.mxu0 0.0
    %9173 = vmatprep.subr.mxu0 0.0
    %9174 = vmatpush1.msra.mxu0 0.0
    %9175 = vmatprep.subr.mxu0 0.0
    %9176 = vmatpush1.msra.mxu0 0.0
    %9177 = vmatprep.subr.mxu0 0.0
    %9178 = vmatpush1.msra.mxu0 0.0
    %9179 = vmatprep.subr.mxu0 0.0
    %9180 = vmatpush1.msra.mxu0 0.0
    %9181 = vmatprep.subr.mxu0 0.0
    %9182 = vmatpush1.msra.mxu0 0.0
    %9183 = vmatprep.subr.mxu0 0.0
    %9184 = vmatpush1.msra.mxu0 0.0
    %9185 = vmatprep.subr.mxu0 0.0
    %9186 = vmatpush1.msra.mxu0 0.0
    %9187 = vmatprep.subr.mxu0 0.0
    %9188 = vmatpush1.msra.mxu0 0.0
    %9189 = vmatprep.mubr.f32.mxu0 0.0
    %9190 = vmatmul.mubr.f32.gmra.mrb[0].mxu0 %v9102
    %v9191 = vpop.f32.mrb[0].mxu0
    %v9192 = vadd.f32 0.0, %v9191
    %v9193 = vpop.f32.mrb[0].mxu0
    %9194 = vmatprep.mubr.f32.mxu0 0.0
    %9195 = vmatmul.mubr.f32.gmra.mrb[0].mxu0 %v9105
    %v9196 = vpop.f32.mrb[0].mxu0
    %v9197 = vadd.f32 0.0, %v9196
    %v9198 = vpop.f32.mrb[0].mxu0
    %9199 = vmatprep.mubr.f32.mxu0 0.0
    %9200 = vmatmul.mubr.f32.gmra.mrb[0].mxu0 %v9108
    %v9201 = vpop.f32.mrb[0].mxu0
    %v9202 = vadd.f32 0.0, %v9201
    %v9203 = vpop.f32.mrb[0].mxu0
    %9204 = vmatprep.mubr.f32.mxu0 0.0
    %9205 = vmatmul.mubr.f32.gmra.mrb[0].mxu0 %v9111
    %v9206 = vpop.f32.mrb[0].mxu0
    %v9207 = vadd.f32 0.0, %v9206
    %v9208 = vpop.f32.mrb[0].mxu0
    %9209 = vmatprep.mubr.f32.mxu0 0.0
    %9210 = vmatmul.mubr.f32.gmra.mrb[0].mxu0 %v9114
    %v9211 = vpop.f32.mrb[0].mxu0
    %v9212 = vadd.f32 0.0, %v9211
    %v9213 = vpop.f32.mrb[0].mxu0
    %9214 = vmatprep.mubr.f32.mxu0 0.0
    %9215 = vmatmul.mubr.f32.gmra.mrb[0].mxu0 %v9117
    %v9216 = vpop.f32.mrb[0].mxu0
    %v9217 = vadd.f32 0.0, %v9216
    %v9218 = vpop.f32.mrb[0].mxu0
    %9219 = vmatprep.mubr.f32.mxu0 0.0
    %9220 = vmatmul.mubr.f32.gmra.mrb[0].mxu0 %v9120
    %v9221 = vpop.f32.mrb[0].mxu0
    %v9222 = vadd.f32 0.0, %v9221
    %v9223 = vpop.f32.mrb[0].mxu0
    %9224 = vmatprep.mubr.f32.mxu0 0.0
    %9225 = vmatmul.mubr.f32.gmra.mrb[0].mxu0 %v9123
    %v9226 = vpop.f32.mrb[0].mxu0
    %v9227 = vadd.f32 0.0, %v9226
    %v9228 = vpop.f32.mrb[0].mxu0
    %9229 = vdwg.mxu0
    %v9230 = vadd.f32 %v9084, %v9192
    %v9231 = vadd.f32 %v9085, %v9197
    %v9232 = vadd.f32 %v9086, %v9202
    %v9233 = vadd.f32 %v9087, %v9207
    %v9234 = vadd.f32 %v9088, %v9212
    %v9235 = vadd.f32 %v9089, %v9217
    %v9236 = vadd.f32 %v9090, %v9222
    %v9237 = vadd.f32 %v9091, %v9227
    %s9238 = scalar_lea.vmem %s5, 2048
    %v9239 = vld [vmem:[%s9238] sm:$0xff]
    %v9240 = vld [vmem:[%s9238 + $0x8] sm:$0xff]
    %v9241 = vld [vmem:[%s9238 + $0x10] sm:$0xff]
    %v9242 = vld [vmem:[%s9238 + $0x18] sm:$0xff]
    %v9243 = vld [vmem:[%s9238 + $0x20] sm:$0xff]
    %v9244 = vld [vmem:[%s9238 + $0x28] sm:$0xff]
    %v9245 = vld [vmem:[%s9238 + $0x30] sm:$0xff]
    %v9246 = vld [vmem:[%s9238 + $0x38] sm:$0xff]
    %v9248 = vsel %vm4599, %v9239, 0
    %v9251 = vsel %vm4599, %v9240, 0
    %v9254 = vsel %vm4599, %v9241, 0
    %v9257 = vsel %vm4599, %v9242, 0
    %v9260 = vsel %vm4599, %v9243, 0
    %v9263 = vsel %vm4599, %v9244, 0
    %v9266 = vsel %vm4599, %v9245, 0
    %v9269 = vsel %vm4599, %v9246, 0
    %9271 = vmatprep.subr.mxu0 0.0
    %9272 = vmatpush1.msra.mxu0 %v4438
    %9273 = vmatprep.subr.mxu0 0.0
    %9274 = vmatpush1.msra.mxu0 %v4482
    %9275 = vmatprep.subr.mxu0 0.0
    %9276 = vmatpush1.msra.mxu0 %v4526
    %9277 = vmatprep.subr.mxu0 0.0
    %9278 = vmatpush1.msra.mxu0 %v4570
    %9279 = vmatprep.subr.mxu0 0.0
    %9280 = vmatpush1.msra.mxu0 0.0
    %9281 = vmatprep.subr.mxu0 0.0
    %9282 = vmatpush1.msra.mxu0 0.0
    %9283 = vmatprep.subr.mxu0 0.0
    %9284 = vmatpush1.msra.mxu0 0.0
    %9285 = vmatprep.subr.mxu0 0.0
    %9286 = vmatpush1.msra.mxu0 0.0
    %9287 = vmatprep.subr.mxu0 0.0
    %9288 = vmatpush1.msra.mxu0 0.0
    %9289 = vmatprep.subr.mxu0 0.0
    %9290 = vmatpush1.msra.mxu0 0.0
    %9291 = vmatprep.subr.mxu0 0.0
    %9292 = vmatpush1.msra.mxu0 0.0
    %9293 = vmatprep.subr.mxu0 0.0
    %9294 = vmatpush1.msra.mxu0 0.0
    %9295 = vmatprep.subr.mxu0 0.0
    %9296 = vmatpush1.msra.mxu0 0.0
    %9297 = vmatprep.subr.mxu0 0.0
    %9298 = vmatpush1.msra.mxu0 0.0
    %9299 = vmatprep.subr.mxu0 0.0
    %9300 = vmatpush1.msra.mxu0 0.0
    %9301 = vmatprep.subr.mxu0 0.0
    %9302 = vmatpush1.msra.mxu0 0.0
    %9303 = vmatprep.subr.mxu0 0.0
    %9304 = vmatpush1.msra.mxu0 0.0
    %9305 = vmatprep.subr.mxu0 0.0
    %9306 = vmatpush1.msra.mxu0 0.0
    %9307 = vmatprep.subr.mxu0 0.0
    %9308 = vmatpush1.msra.mxu0 0.0
    %9309 = vmatprep.subr.mxu0 0.0
    %9310 = vmatpush1.msra.mxu0 0.0
    %9311 = vmatprep.subr.mxu0 0.0
    %9312 = vmatpush1.msra.mxu0 0.0
    %9313 = vmatprep.subr.mxu0 0.0
    %9314 = vmatpush1.msra.mxu0 0.0
    %9315 = vmatprep.subr.mxu0 0.0
    %9316 = vmatpush1.msra.mxu0 0.0
    %9317 = vmatprep.subr.mxu0 0.0
    %9318 = vmatpush1.msra.mxu0 0.0
    %9319 = vmatprep.subr.mxu0 0.0
    %9320 = vmatpush1.msra.mxu0 0.0
    %9321 = vmatprep.subr.mxu0 0.0
    %9322 = vmatpush1.msra.mxu0 0.0
    %9323 = vmatprep.subr.mxu0 0.0
    %9324 = vmatpush1.msra.mxu0 0.0
    %9325 = vmatprep.subr.mxu0 0.0
    %9326 = vmatpush1.msra.mxu0 0.0
    %9327 = vmatprep.subr.mxu0 0.0
    %9328 = vmatpush1.msra.mxu0 0.0
    %9329 = vmatprep.subr.mxu0 0.0
    %9330 = vmatpush1.msra.mxu0 0.0
    %9331 = vmatprep.subr.mxu0 0.0
    %9332 = vmatpush1.msra.mxu0 0.0
    %9333 = vmatprep.subr.mxu0 0.0
    %9334 = vmatpush1.msra.mxu0 0.0
    %9335 = vmatprep.mubr.f32.mxu0 0.0
    %9336 = vmatmul.mubr.f32.gmra.mrb[0].mxu0 %v9248
    %v9337 = vpop.f32.mrb[0].mxu0
    %v9338 = vadd.f32 0.0, %v9337
    %v9339 = vpop.f32.mrb[0].mxu0
    %9340 = vmatprep.mubr.f32.mxu0 0.0
    %9341 = vmatmul.mubr.f32.gmra.mrb[0].mxu0 %v9251
    %v9342 = vpop.f32.mrb[0].mxu0
    %v9343 = vadd.f32 0.0, %v9342
    %v9344 = vpop.f32.mrb[0].mxu0
    %9345 = vmatprep.mubr.f32.mxu0 0.0
    %9346 = vmatmul.mubr.f32.gmra.mrb[0].mxu0 %v9254
    %v9347 = vpop.f32.mrb[0].mxu0
    %v9348 = vadd.f32 0.0, %v9347
    %v9349 = vpop.f32.mrb[0].mxu0
    %9350 = vmatprep.mubr.f32.mxu0 0.0
    %9351 = vmatmul.mubr.f32.gmra.mrb[0].mxu0 %v9257
    %v9352 = vpop.f32.mrb[0].mxu0
    %v9353 = vadd.f32 0.0, %v9352
    %v9354 = vpop.f32.mrb[0].mxu0
    %9355 = vmatprep.mubr.f32.mxu0 0.0
    %9356 = vmatmul.mubr.f32.gmra.mrb[0].mxu0 %v9260
    %v9357 = vpop.f32.mrb[0].mxu0
    %v9358 = vadd.f32 0.0, %v9357
    %v9359 = vpop.f32.mrb[0].mxu0
    %9360 = vmatprep.mubr.f32.mxu0 0.0
    %9361 = vmatmul.mubr.f32.gmra.mrb[0].mxu0 %v9263
    %v9362 = vpop.f32.mrb[0].mxu0
    %v9363 = vadd.f32 0.0, %v9362
    %v9364 = vpop.f32.mrb[0].mxu0
    %9365 = vmatprep.mubr.f32.mxu0 0.0
    %9366 = vmatmul.mubr.f32.gmra.mrb[0].mxu0 %v9266
    %v9367 = vpop.f32.mrb[0].mxu0
    %v9368 = vadd.f32 0.0, %v9367
    %v9369 = vpop.f32.mrb[0].mxu0
    %9370 = vmatprep.mubr.f32.mxu0 0.0
    %9371 = vmatmul.mubr.f32.gmra.mrb[0].mxu0 %v9269
    %v9372 = vpop.f32.mrb[0].mxu0
    %v9373 = vadd.f32 0.0, %v9372
    %v9374 = vpop.f32.mrb[0].mxu0
    %9375 = vdwg.mxu0
    %v9376 = vadd.f32 %v9230, %v9338
    %v9377 = vadd.f32 %v9231, %v9343
    %v9378 = vadd.f32 %v9232, %v9348
    %v9379 = vadd.f32 %v9233, %v9353
    %v9380 = vadd.f32 %v9234, %v9358
    %v9381 = vadd.f32 %v9235, %v9363
    %v9382 = vadd.f32 %v9236, %v9368
    %v9383 = vadd.f32 %v9237, %v9373
    %s9384 = scalar_lea.vmem %s5, 2112
    %v9385 = vld [vmem:[%s9384] sm:$0xff]
    %v9386 = vld [vmem:[%s9384 + $0x8] sm:$0xff]
    %v9387 = vld [vmem:[%s9384 + $0x10] sm:$0xff]
    %v9388 = vld [vmem:[%s9384 + $0x18] sm:$0xff]
    %v9389 = vld [vmem:[%s9384 + $0x20] sm:$0xff]
    %v9390 = vld [vmem:[%s9384 + $0x28] sm:$0xff]
    %v9391 = vld [vmem:[%s9384 + $0x30] sm:$0xff]
    %v9392 = vld [vmem:[%s9384 + $0x38] sm:$0xff]
    %v9394 = vsel %vm4599, %v9385, 0
    %v9397 = vsel %vm4599, %v9386, 0
    %v9400 = vsel %vm4599, %v9387, 0
    %v9403 = vsel %vm4599, %v9388, 0
    %v9406 = vsel %vm4599, %v9389, 0
    %v9409 = vsel %vm4599, %v9390, 0
    %v9412 = vsel %vm4599, %v9391, 0
    %v9415 = vsel %vm4599, %v9392, 0
    %9417 = vmatprep.subr.mxu0 0.0
    %9418 = vmatpush1.msra.mxu0 %v4439
    %9419 = vmatprep.subr.mxu0 0.0
    %9420 = vmatpush1.msra.mxu0 %v4483
    %9421 = vmatprep.subr.mxu0 0.0
    %9422 = vmatpush1.msra.mxu0 %v4527
    %9423 = vmatprep.subr.mxu0 0.0
    %9424 = vmatpush1.msra.mxu0 %v4571
    %9425 = vmatprep.subr.mxu0 0.0
    %9426 = vmatpush1.msra.mxu0 0.0
    %9427 = vmatprep.subr.mxu0 0.0
    %9428 = vmatpush1.msra.mxu0 0.0
    %9429 = vmatprep.subr.mxu0 0.0
    %9430 = vmatpush1.msra.mxu0 0.0
    %9431 = vmatprep.subr.mxu0 0.0
    %9432 = vmatpush1.msra.mxu0 0.0
    %9433 = vmatprep.subr.mxu0 0.0
    %9434 = vmatpush1.msra.mxu0 0.0
    %9435 = vmatprep.subr.mxu0 0.0
    %9436 = vmatpush1.msra.mxu0 0.0
    %9437 = vmatprep.subr.mxu0 0.0
    %9438 = vmatpush1.msra.mxu0 0.0
    %9439 = vmatprep.subr.mxu0 0.0
    %9440 = vmatpush1.msra.mxu0 0.0
    %9441 = vmatprep.subr.mxu0 0.0
    %9442 = vmatpush1.msra.mxu0 0.0
    %9443 = vmatprep.subr.mxu0 0.0
    %9444 = vmatpush1.msra.mxu0 0.0
    %9445 = vmatprep.subr.mxu0 0.0
    %9446 = vmatpush1.msra.mxu0 0.0
    %9447 = vmatprep.subr.mxu0 0.0
    %9448 = vmatpush1.msra.mxu0 0.0
    %9449 = vmatprep.subr.mxu0 0.0
    %9450 = vmatpush1.msra.mxu0 0.0
    %9451 = vmatprep.subr.mxu0 0.0
    %9452 = vmatpush1.msra.mxu0 0.0
    %9453 = vmatprep.subr.mxu0 0.0
    %9454 = vmatpush1.msra.mxu0 0.0
    %9455 = vmatprep.subr.mxu0 0.0
    %9456 = vmatpush1.msra.mxu0 0.0
    %9457 = vmatprep.subr.mxu0 0.0
    %9458 = vmatpush1.msra.mxu0 0.0
    %9459 = vmatprep.subr.mxu0 0.0
    %9460 = vmatpush1.msra.mxu0 0.0
    %9461 = vmatprep.subr.mxu0 0.0
    %9462 = vmatpush1.msra.mxu0 0.0
    %9463 = vmatprep.subr.mxu0 0.0
    %9464 = vmatpush1.msra.mxu0 0.0
    %9465 = vmatprep.subr.mxu0 0.0
    %9466 = vmatpush1.msra.mxu0 0.0
    %9467 = vmatprep.subr.mxu0 0.0
    %9468 = vmatpush1.msra.mxu0 0.0
    %9469 = vmatprep.subr.mxu0 0.0
    %9470 = vmatpush1.msra.mxu0 0.0
    %9471 = vmatprep.subr.mxu0 0.0
    %9472 = vmatpush1.msra.mxu0 0.0
    %9473 = vmatprep.subr.mxu0 0.0
    %9474 = vmatpush1.msra.mxu0 0.0
    %9475 = vmatprep.subr.mxu0 0.0
    %9476 = vmatpush1.msra.mxu0 0.0
    %9477 = vmatprep.subr.mxu0 0.0
    %9478 = vmatpush1.msra.mxu0 0.0
    %9479 = vmatprep.subr.mxu0 0.0
    %9480 = vmatpush1.msra.mxu0 0.0
    %9481 = vmatprep.mubr.f32.mxu0 0.0
    %9482 = vmatmul.mubr.f32.gmra.mrb[0].mxu0 %v9394
    %v9483 = vpop.f32.mrb[0].mxu0
    %v9484 = vadd.f32 0.0, %v9483
    %v9485 = vpop.f32.mrb[0].mxu0
    %9486 = vmatprep.mubr.f32.mxu0 0.0
    %9487 = vmatmul.mubr.f32.gmra.mrb[0].mxu0 %v9397
    %v9488 = vpop.f32.mrb[0].mxu0
    %v9489 = vadd.f32 0.0, %v9488
    %v9490 = vpop.f32.mrb[0].mxu0
    %9491 = vmatprep.mubr.f32.mxu0 0.0
    %9492 = vmatmul.mubr.f32.gmra.mrb[0].mxu0 %v9400
    %v9493 = vpop.f32.mrb[0].mxu0
    %v9494 = vadd.f32 0.0, %v9493
    %v9495 = vpop.f32.mrb[0].mxu0
    %9496 = vmatprep.mubr.f32.mxu0 0.0
    %9497 = vmatmul.mubr.f32.gmra.mrb[0].mxu0 %v9403
    %v9498 = vpop.f32.mrb[0].mxu0
    %v9499 = vadd.f32 0.0, %v9498
    %v9500 = vpop.f32.mrb[0].mxu0
    %9501 = vmatprep.mubr.f32.mxu0 0.0
    %9502 = vmatmul.mubr.f32.gmra.mrb[0].mxu0 %v9406
    %v9503 = vpop.f32.mrb[0].mxu0
    %v9504 = vadd.f32 0.0, %v9503
    %v9505 = vpop.f32.mrb[0].mxu0
    %9506 = vmatprep.mubr.f32.mxu0 0.0
    %9507 = vmatmul.mubr.f32.gmra.mrb[0].mxu0 %v9409
    %v9508 = vpop.f32.mrb[0].mxu0
    %v9509 = vadd.f32 0.0, %v9508
    %v9510 = vpop.f32.mrb[0].mxu0
    %9511 = vmatprep.mubr.f32.mxu0 0.0
    %9512 = vmatmul.mubr.f32.gmra.mrb[0].mxu0 %v9412
    %v9513 = vpop.f32.mrb[0].mxu0
    %v9514 = vadd.f32 0.0, %v9513
    %v9515 = vpop.f32.mrb[0].mxu0
    %9516 = vmatprep.mubr.f32.mxu0 0.0
    %9517 = vmatmul.mubr.f32.gmra.mrb[0].mxu0 %v9415
    %v9518 = vpop.f32.mrb[0].mxu0
    %v9519 = vadd.f32 0.0, %v9518
    %v9520 = vpop.f32.mrb[0].mxu0
    %9521 = vdwg.mxu0
    %v9522 = vadd.f32 %v9376, %v9484
    %v9523 = vadd.f32 %v9377, %v9489
    %v9524 = vadd.f32 %v9378, %v9494
    %v9525 = vadd.f32 %v9379, %v9499
    %v9526 = vadd.f32 %v9380, %v9504
    %v9527 = vadd.f32 %v9381, %v9509
    %v9528 = vadd.f32 %v9382, %v9514
    %v9529 = vadd.f32 %v9383, %v9519
    %s9530 = scalar_lea.vmem %s5, 2176
    %v9531 = vld [vmem:[%s9530] sm:$0xff]
    %v9532 = vld [vmem:[%s9530 + $0x8] sm:$0xff]
    %v9533 = vld [vmem:[%s9530 + $0x10] sm:$0xff]
    %v9534 = vld [vmem:[%s9530 + $0x18] sm:$0xff]
    %v9535 = vld [vmem:[%s9530 + $0x20] sm:$0xff]
    %v9536 = vld [vmem:[%s9530 + $0x28] sm:$0xff]
    %v9537 = vld [vmem:[%s9530 + $0x30] sm:$0xff]
    %v9538 = vld [vmem:[%s9530 + $0x38] sm:$0xff]
    %v9540 = vsel %vm4599, %v9531, 0
    %v9543 = vsel %vm4599, %v9532, 0
    %v9546 = vsel %vm4599, %v9533, 0
    %v9549 = vsel %vm4599, %v9534, 0
    %v9552 = vsel %vm4599, %v9535, 0
    %v9555 = vsel %vm4599, %v9536, 0
    %v9558 = vsel %vm4599, %v9537, 0
    %v9561 = vsel %vm4599, %v9538, 0
    %9563 = vmatprep.subr.mxu0 0.0
    %9564 = vmatpush1.msra.mxu0 %v4440
    %9565 = vmatprep.subr.mxu0 0.0
    %9566 = vmatpush1.msra.mxu0 %v4484
    %9567 = vmatprep.subr.mxu0 0.0
    %9568 = vmatpush1.msra.mxu0 %v4528
    %9569 = vmatprep.subr.mxu0 0.0
    %9570 = vmatpush1.msra.mxu0 %v4572
    %9571 = vmatprep.subr.mxu0 0.0
    %9572 = vmatpush1.msra.mxu0 0.0
    %9573 = vmatprep.subr.mxu0 0.0
    %9574 = vmatpush1.msra.mxu0 0.0
    %9575 = vmatprep.subr.mxu0 0.0
    %9576 = vmatpush1.msra.mxu0 0.0
    %9577 = vmatprep.subr.mxu0 0.0
    %9578 = vmatpush1.msra.mxu0 0.0
    %9579 = vmatprep.subr.mxu0 0.0
    %9580 = vmatpush1.msra.mxu0 0.0
    %9581 = vmatprep.subr.mxu0 0.0
    %9582 = vmatpush1.msra.mxu0 0.0
    %9583 = vmatprep.subr.mxu0 0.0
    %9584 = vmatpush1.msra.mxu0 0.0
    %9585 = vmatprep.subr.mxu0 0.0
    %9586 = vmatpush1.msra.mxu0 0.0
    %9587 = vmatprep.subr.mxu0 0.0
    %9588 = vmatpush1.msra.mxu0 0.0
    %9589 = vmatprep.subr.mxu0 0.0
    %9590 = vmatpush1.msra.mxu0 0.0
    %9591 = vmatprep.subr.mxu0 0.0
    %9592 = vmatpush1.msra.mxu0 0.0
    %9593 = vmatprep.subr.mxu0 0.0
    %9594 = vmatpush1.msra.mxu0 0.0
    %9595 = vmatprep.subr.mxu0 0.0
    %9596 = vmatpush1.msra.mxu0 0.0
    %9597 = vmatprep.subr.mxu0 0.0
    %9598 = vmatpush1.msra.mxu0 0.0
    %9599 = vmatprep.subr.mxu0 0.0
    %9600 = vmatpush1.msra.mxu0 0.0
    %9601 = vmatprep.subr.mxu0 0.0
    %9602 = vmatpush1.msra.mxu0 0.0
    %9603 = vmatprep.subr.mxu0 0.0
    %9604 = vmatpush1.msra.mxu0 0.0
    %9605 = vmatprep.subr.mxu0 0.0
    %9606 = vmatpush1.msra.mxu0 0.0
    %9607 = vmatprep.subr.mxu0 0.0
    %9608 = vmatpush1.msra.mxu0 0.0
    %9609 = vmatprep.subr.mxu0 0.0
    %9610 = vmatpush1.msra.mxu0 0.0
    %9611 = vmatprep.subr.mxu0 0.0
    %9612 = vmatpush1.msra.mxu0 0.0
    %9613 = vmatprep.subr.mxu0 0.0
    %9614 = vmatpush1.msra.mxu0 0.0
    %9615 = vmatprep.subr.mxu0 0.0
    %9616 = vmatpush1.msra.mxu0 0.0
    %9617 = vmatprep.subr.mxu0 0.0
    %9618 = vmatpush1.msra.mxu0 0.0
    %9619 = vmatprep.subr.mxu0 0.0
    %9620 = vmatpush1.msra.mxu0 0.0
    %9621 = vmatprep.subr.mxu0 0.0
    %9622 = vmatpush1.msra.mxu0 0.0
    %9623 = vmatprep.subr.mxu0 0.0
    %9624 = vmatpush1.msra.mxu0 0.0
    %9625 = vmatprep.subr.mxu0 0.0
    %9626 = vmatpush1.msra.mxu0 0.0
    %9627 = vmatprep.mubr.f32.mxu0 0.0
    %9628 = vmatmul.mubr.f32.gmra.mrb[0].mxu0 %v9540
    %v9629 = vpop.f32.mrb[0].mxu0
    %v9630 = vadd.f32 0.0, %v9629
    %v9631 = vpop.f32.mrb[0].mxu0
    %9632 = vmatprep.mubr.f32.mxu0 0.0
    %9633 = vmatmul.mubr.f32.gmra.mrb[0].mxu0 %v9543
    %v9634 = vpop.f32.mrb[0].mxu0
    %v9635 = vadd.f32 0.0, %v9634
    %v9636 = vpop.f32.mrb[0].mxu0
    %9637 = vmatprep.mubr.f32.mxu0 0.0
    %9638 = vmatmul.mubr.f32.gmra.mrb[0].mxu0 %v9546
    %v9639 = vpop.f32.mrb[0].mxu0
    %v9640 = vadd.f32 0.0, %v9639
    %v9641 = vpop.f32.mrb[0].mxu0
    %9642 = vmatprep.mubr.f32.mxu0 0.0
    %9643 = vmatmul.mubr.f32.gmra.mrb[0].mxu0 %v9549
    %v9644 = vpop.f32.mrb[0].mxu0
    %v9645 = vadd.f32 0.0, %v9644
    %v9646 = vpop.f32.mrb[0].mxu0
    %9647 = vmatprep.mubr.f32.mxu0 0.0
    %9648 = vmatmul.mubr.f32.gmra.mrb[0].mxu0 %v9552
    %v9649 = vpop.f32.mrb[0].mxu0
    %v9650 = vadd.f32 0.0, %v9649
    %v9651 = vpop.f32.mrb[0].mxu0
    %9652 = vmatprep.mubr.f32.mxu0 0.0
    %9653 = vmatmul.mubr.f32.gmra.mrb[0].mxu0 %v9555
    %v9654 = vpop.f32.mrb[0].mxu0
    %v9655 = vadd.f32 0.0, %v9654
    %v9656 = vpop.f32.mrb[0].mxu0
    %9657 = vmatprep.mubr.f32.mxu0 0.0
    %9658 = vmatmul.mubr.f32.gmra.mrb[0].mxu0 %v9558
    %v9659 = vpop.f32.mrb[0].mxu0
    %v9660 = vadd.f32 0.0, %v9659
    %v9661 = vpop.f32.mrb[0].mxu0
    %9662 = vmatprep.mubr.f32.mxu0 0.0
    %9663 = vmatmul.mubr.f32.gmra.mrb[0].mxu0 %v9561
    %v9664 = vpop.f32.mrb[0].mxu0
    %v9665 = vadd.f32 0.0, %v9664
    %v9666 = vpop.f32.mrb[0].mxu0
    %9667 = vdwg.mxu0
    %v9668 = vadd.f32 %v9522, %v9630
    %v9669 = vadd.f32 %v9523, %v9635
    %v9670 = vadd.f32 %v9524, %v9640
    %v9671 = vadd.f32 %v9525, %v9645
    %v9672 = vadd.f32 %v9526, %v9650
    %v9673 = vadd.f32 %v9527, %v9655
    %v9674 = vadd.f32 %v9528, %v9660
    %v9675 = vadd.f32 %v9529, %v9665
    %s9676 = scalar_lea.vmem %s5, 2240
    %v9677 = vld [vmem:[%s9676] sm:$0xff]
    %v9678 = vld [vmem:[%s9676 + $0x8] sm:$0xff]
    %v9679 = vld [vmem:[%s9676 + $0x10] sm:$0xff]
    %v9680 = vld [vmem:[%s9676 + $0x18] sm:$0xff]
    %v9681 = vld [vmem:[%s9676 + $0x20] sm:$0xff]
    %v9682 = vld [vmem:[%s9676 + $0x28] sm:$0xff]
    %v9683 = vld [vmem:[%s9676 + $0x30] sm:$0xff]
    %v9684 = vld [vmem:[%s9676 + $0x38] sm:$0xff]
    %v9686 = vsel %vm4599, %v9677, 0
    %v9689 = vsel %vm4599, %v9678, 0
    %v9692 = vsel %vm4599, %v9679, 0
    %v9695 = vsel %vm4599, %v9680, 0
    %v9698 = vsel %vm4599, %v9681, 0
    %v9701 = vsel %vm4599, %v9682, 0
    %v9704 = vsel %vm4599, %v9683, 0
    %v9707 = vsel %vm4599, %v9684, 0
    %9709 = vmatprep.subr.mxu0 0.0
    %9710 = vmatpush1.msra.mxu0 %v4441
    %9711 = vmatprep.subr.mxu0 0.0
    %9712 = vmatpush1.msra.mxu0 %v4485
    %9713 = vmatprep.subr.mxu0 0.0
    %9714 = vmatpush1.msra.mxu0 %v4529
    %9715 = vmatprep.subr.mxu0 0.0
    %9716 = vmatpush1.msra.mxu0 %v4573
    %9717 = vmatprep.subr.mxu0 0.0
    %9718 = vmatpush1.msra.mxu0 0.0
    %9719 = vmatprep.subr.mxu0 0.0
    %9720 = vmatpush1.msra.mxu0 0.0
    %9721 = vmatprep.subr.mxu0 0.0
    %9722 = vmatpush1.msra.mxu0 0.0
    %9723 = vmatprep.subr.mxu0 0.0
    %9724 = vmatpush1.msra.mxu0 0.0
    %9725 = vmatprep.subr.mxu0 0.0
    %9726 = vmatpush1.msra.mxu0 0.0
    %9727 = vmatprep.subr.mxu0 0.0
    %9728 = vmatpush1.msra.mxu0 0.0
    %9729 = vmatprep.subr.mxu0 0.0
    %9730 = vmatpush1.msra.mxu0 0.0
    %9731 = vmatprep.subr.mxu0 0.0
    %9732 = vmatpush1.msra.mxu0 0.0
    %9733 = vmatprep.subr.mxu0 0.0
    %9734 = vmatpush1.msra.mxu0 0.0
    %9735 = vmatprep.subr.mxu0 0.0
    %9736 = vmatpush1.msra.mxu0 0.0
    %9737 = vmatprep.subr.mxu0 0.0
    %9738 = vmatpush1.msra.mxu0 0.0
    %9739 = vmatprep.subr.mxu0 0.0
    %9740 = vmatpush1.msra.mxu0 0.0
    %9741 = vmatprep.subr.mxu0 0.0
    %9742 = vmatpush1.msra.mxu0 0.0
    %9743 = vmatprep.subr.mxu0 0.0
    %9744 = vmatpush1.msra.mxu0 0.0
    %9745 = vmatprep.subr.mxu0 0.0
    %9746 = vmatpush1.msra.mxu0 0.0
    %9747 = vmatprep.subr.mxu0 0.0
    %9748 = vmatpush1.msra.mxu0 0.0
    %9749 = vmatprep.subr.mxu0 0.0
    %9750 = vmatpush1.msra.mxu0 0.0
    %9751 = vmatprep.subr.mxu0 0.0
    %9752 = vmatpush1.msra.mxu0 0.0
    %9753 = vmatprep.subr.mxu0 0.0
    %9754 = vmatpush1.msra.mxu0 0.0
    %9755 = vmatprep.subr.mxu0 0.0
    %9756 = vmatpush1.msra.mxu0 0.0
    %9757 = vmatprep.subr.mxu0 0.0
    %9758 = vmatpush1.msra.mxu0 0.0
    %9759 = vmatprep.subr.mxu0 0.0
    %9760 = vmatpush1.msra.mxu0 0.0
    %9761 = vmatprep.subr.mxu0 0.0
    %9762 = vmatpush1.msra.mxu0 0.0
    %9763 = vmatprep.subr.mxu0 0.0
    %9764 = vmatpush1.msra.mxu0 0.0
    %9765 = vmatprep.subr.mxu0 0.0
    %9766 = vmatpush1.msra.mxu0 0.0
    %9767 = vmatprep.subr.mxu0 0.0
    %9768 = vmatpush1.msra.mxu0 0.0
    %9769 = vmatprep.subr.mxu0 0.0
    %9770 = vmatpush1.msra.mxu0 0.0
    %9771 = vmatprep.subr.mxu0 0.0
    %9772 = vmatpush1.msra.mxu0 0.0
    %9773 = vmatprep.mubr.f32.mxu0 0.0
    %9774 = vmatmul.mubr.f32.gmra.mrb[0].mxu0 %v9686
    %v9775 = vpop.f32.mrb[0].mxu0
    %v9776 = vadd.f32 0.0, %v9775
    %v9777 = vpop.f32.mrb[0].mxu0
    %9778 = vmatprep.mubr.f32.mxu0 0.0
    %9779 = vmatmul.mubr.f32.gmra.mrb[0].mxu0 %v9689
    %v9780 = vpop.f32.mrb[0].mxu0
    %v9781 = vadd.f32 0.0, %v9780
    %v9782 = vpop.f32.mrb[0].mxu0
    %9783 = vmatprep.mubr.f32.mxu0 0.0
    %9784 = vmatmul.mubr.f32.gmra.mrb[0].mxu0 %v9692
    %v9785 = vpop.f32.mrb[0].mxu0
    %v9786 = vadd.f32 0.0, %v9785
    %v9787 = vpop.f32.mrb[0].mxu0
    %9788 = vmatprep.mubr.f32.mxu0 0.0
    %9789 = vmatmul.mubr.f32.gmra.mrb[0].mxu0 %v9695
    %v9790 = vpop.f32.mrb[0].mxu0
    %v9791 = vadd.f32 0.0, %v9790
    %v9792 = vpop.f32.mrb[0].mxu0
    %9793 = vmatprep.mubr.f32.mxu0 0.0
    %9794 = vmatmul.mubr.f32.gmra.mrb[0].mxu0 %v9698
    %v9795 = vpop.f32.mrb[0].mxu0
    %v9796 = vadd.f32 0.0, %v9795
    %v9797 = vpop.f32.mrb[0].mxu0
    %9798 = vmatprep.mubr.f32.mxu0 0.0
    %9799 = vmatmul.mubr.f32.gmra.mrb[0].mxu0 %v9701
    %v9800 = vpop.f32.mrb[0].mxu0
    %v9801 = vadd.f32 0.0, %v9800
    %v9802 = vpop.f32.mrb[0].mxu0
    %9803 = vmatprep.mubr.f32.mxu0 0.0
    %9804 = vmatmul.mubr.f32.gmra.mrb[0].mxu0 %v9704
    %v9805 = vpop.f32.mrb[0].mxu0
    %v9806 = vadd.f32 0.0, %v9805
    %v9807 = vpop.f32.mrb[0].mxu0
    %9808 = vmatprep.mubr.f32.mxu0 0.0
    %9809 = vmatmul.mubr.f32.gmra.mrb[0].mxu0 %v9707
    %v9810 = vpop.f32.mrb[0].mxu0
    %v9811 = vadd.f32 0.0, %v9810
    %v9812 = vpop.f32.mrb[0].mxu0
    %9813 = vdwg.mxu0
    %v9814 = vadd.f32 %v9668, %v9776
    %v9815 = vadd.f32 %v9669, %v9781
    %v9816 = vadd.f32 %v9670, %v9786
    %v9817 = vadd.f32 %v9671, %v9791
    %v9818 = vadd.f32 %v9672, %v9796
    %v9819 = vadd.f32 %v9673, %v9801
    %v9820 = vadd.f32 %v9674, %v9806
    %v9821 = vadd.f32 %v9675, %v9811
    %s9822 = scalar_lea.vmem %s5, 2304
    %v9823 = vld [vmem:[%s9822] sm:$0xff]
    %v9824 = vld [vmem:[%s9822 + $0x8] sm:$0xff]
    %v9825 = vld [vmem:[%s9822 + $0x10] sm:$0xff]
    %v9826 = vld [vmem:[%s9822 + $0x18] sm:$0xff]
    %v9827 = vld [vmem:[%s9822 + $0x20] sm:$0xff]
    %v9828 = vld [vmem:[%s9822 + $0x28] sm:$0xff]
    %v9829 = vld [vmem:[%s9822 + $0x30] sm:$0xff]
    %v9830 = vld [vmem:[%s9822 + $0x38] sm:$0xff]
    %v9832 = vsel %vm4599, %v9823, 0
    %v9835 = vsel %vm4599, %v9824, 0
    %v9838 = vsel %vm4599, %v9825, 0
    %v9841 = vsel %vm4599, %v9826, 0
    %v9844 = vsel %vm4599, %v9827, 0
    %v9847 = vsel %vm4599, %v9828, 0
    %v9850 = vsel %vm4599, %v9829, 0
    %v9853 = vsel %vm4599, %v9830, 0
    %9855 = vmatprep.subr.mxu0 0.0
    %9856 = vmatpush1.msra.mxu0 %v4442
    %9857 = vmatprep.subr.mxu0 0.0
    %9858 = vmatpush1.msra.mxu0 %v4486
    %9859 = vmatprep.subr.mxu0 0.0
    %9860 = vmatpush1.msra.mxu0 %v4530
    %9861 = vmatprep.subr.mxu0 0.0
    %9862 = vmatpush1.msra.mxu0 %v4574
    %9863 = vmatprep.subr.mxu0 0.0
    %9864 = vmatpush1.msra.mxu0 0.0
    %9865 = vmatprep.subr.mxu0 0.0
    %9866 = vmatpush1.msra.mxu0 0.0
    %9867 = vmatprep.subr.mxu0 0.0
    %9868 = vmatpush1.msra.mxu0 0.0
    %9869 = vmatprep.subr.mxu0 0.0
    %9870 = vmatpush1.msra.mxu0 0.0
    %9871 = vmatprep.subr.mxu0 0.0
    %9872 = vmatpush1.msra.mxu0 0.0
    %9873 = vmatprep.subr.mxu0 0.0
    %9874 = vmatpush1.msra.mxu0 0.0
    %9875 = vmatprep.subr.mxu0 0.0
    %9876 = vmatpush1.msra.mxu0 0.0
    %9877 = vmatprep.subr.mxu0 0.0
    %9878 = vmatpush1.msra.mxu0 0.0
    %9879 = vmatprep.subr.mxu0 0.0
    %9880 = vmatpush1.msra.mxu0 0.0
    %9881 = vmatprep.subr.mxu0 0.0
    %9882 = vmatpush1.msra.mxu0 0.0
    %9883 = vmatprep.subr.mxu0 0.0
    %9884 = vmatpush1.msra.mxu0 0.0
    %9885 = vmatprep.subr.mxu0 0.0
    %9886 = vmatpush1.msra.mxu0 0.0
    %9887 = vmatprep.subr.mxu0 0.0
    %9888 = vmatpush1.msra.mxu0 0.0
    %9889 = vmatprep.subr.mxu0 0.0
    %9890 = vmatpush1.msra.mxu0 0.0
    %9891 = vmatprep.subr.mxu0 0.0
    %9892 = vmatpush1.msra.mxu0 0.0
    %9893 = vmatprep.subr.mxu0 0.0
    %9894 = vmatpush1.msra.mxu0 0.0
    %9895 = vmatprep.subr.mxu0 0.0
    %9896 = vmatpush1.msra.mxu0 0.0
    %9897 = vmatprep.subr.mxu0 0.0
    %9898 = vmatpush1.msra.mxu0 0.0
    %9899 = vmatprep.subr.mxu0 0.0
    %9900 = vmatpush1.msra.mxu0 0.0
    %9901 = vmatprep.subr.mxu0 0.0
    %9902 = vmatpush1.msra.mxu0 0.0
    %9903 = vmatprep.subr.mxu0 0.0
    %9904 = vmatpush1.msra.mxu0 0.0
    %9905 = vmatprep.subr.mxu0 0.0
    %9906 = vmatpush1.msra.mxu0 0.0
    %9907 = vmatprep.subr.mxu0 0.0
    %9908 = vmatpush1.msra.mxu0 0.0
    %9909 = vmatprep.subr.mxu0 0.0
    %9910 = vmatpush1.msra.mxu0 0.0
    %9911 = vmatprep.subr.mxu0 0.0
    %9912 = vmatpush1.msra.mxu0 0.0
    %9913 = vmatprep.subr.mxu0 0.0
    %9914 = vmatpush1.msra.mxu0 0.0
    %9915 = vmatprep.subr.mxu0 0.0
    %9916 = vmatpush1.msra.mxu0 0.0
    %9917 = vmatprep.subr.mxu0 0.0
    %9918 = vmatpush1.msra.mxu0 0.0
    %9919 = vmatprep.mubr.f32.mxu0 0.0
    %9920 = vmatmul.mubr.f32.gmra.mrb[0].mxu0 %v9832
    %v9921 = vpop.f32.mrb[0].mxu0
    %v9922 = vadd.f32 0.0, %v9921
    %v9923 = vpop.f32.mrb[0].mxu0
    %9924 = vmatprep.mubr.f32.mxu0 0.0
    %9925 = vmatmul.mubr.f32.gmra.mrb[0].mxu0 %v9835
    %v9926 = vpop.f32.mrb[0].mxu0
    %v9927 = vadd.f32 0.0, %v9926
    %v9928 = vpop.f32.mrb[0].mxu0
    %9929 = vmatprep.mubr.f32.mxu0 0.0
    %9930 = vmatmul.mubr.f32.gmra.mrb[0].mxu0 %v9838
    %v9931 = vpop.f32.mrb[0].mxu0
    %v9932 = vadd.f32 0.0, %v9931
    %v9933 = vpop.f32.mrb[0].mxu0
    %9934 = vmatprep.mubr.f32.mxu0 0.0
    %9935 = vmatmul.mubr.f32.gmra.mrb[0].mxu0 %v9841
    %v9936 = vpop.f32.mrb[0].mxu0
    %v9937 = vadd.f32 0.0, %v9936
    %v9938 = vpop.f32.mrb[0].mxu0
    %9939 = vmatprep.mubr.f32.mxu0 0.0
    %9940 = vmatmul.mubr.f32.gmra.mrb[0].mxu0 %v9844
    %v9941 = vpop.f32.mrb[0].mxu0
    %v9942 = vadd.f32 0.0, %v9941
    %v9943 = vpop.f32.mrb[0].mxu0
    %9944 = vmatprep.mubr.f32.mxu0 0.0
    %9945 = vmatmul.mubr.f32.gmra.mrb[0].mxu0 %v9847
    %v9946 = vpop.f32.mrb[0].mxu0
    %v9947 = vadd.f32 0.0, %v9946
    %v9948 = vpop.f32.mrb[0].mxu0
    %9949 = vmatprep.mubr.f32.mxu0 0.0
    %9950 = vmatmul.mubr.f32.gmra.mrb[0].mxu0 %v9850
    %v9951 = vpop.f32.mrb[0].mxu0
    %v9952 = vadd.f32 0.0, %v9951
    %v9953 = vpop.f32.mrb[0].mxu0
    %9954 = vmatprep.mubr.f32.mxu0 0.0
    %9955 = vmatmul.mubr.f32.gmra.mrb[0].mxu0 %v9853
    %v9956 = vpop.f32.mrb[0].mxu0
    %v9957 = vadd.f32 0.0, %v9956
    %v9958 = vpop.f32.mrb[0].mxu0
    %9959 = vdwg.mxu0
    %v9960 = vadd.f32 %v9814, %v9922
    %v9961 = vadd.f32 %v9815, %v9927
    %v9962 = vadd.f32 %v9816, %v9932
    %v9963 = vadd.f32 %v9817, %v9937
    %v9964 = vadd.f32 %v9818, %v9942
    %v9965 = vadd.f32 %v9819, %v9947
    %v9966 = vadd.f32 %v9820, %v9952
    %v9967 = vadd.f32 %v9821, %v9957
    %s9968 = scalar_lea.vmem %s5, 2368
    %v9969 = vld [vmem:[%s9968] sm:$0xff]
    %v9970 = vld [vmem:[%s9968 + $0x8] sm:$0xff]
    %v9971 = vld [vmem:[%s9968 + $0x10] sm:$0xff]
    %v9972 = vld [vmem:[%s9968 + $0x18] sm:$0xff]
    %v9973 = vld [vmem:[%s9968 + $0x20] sm:$0xff]
    %v9974 = vld [vmem:[%s9968 + $0x28] sm:$0xff]
    %v9975 = vld [vmem:[%s9968 + $0x30] sm:$0xff]
    %v9976 = vld [vmem:[%s9968 + $0x38] sm:$0xff]
    %v9978 = vsel %vm4599, %v9969, 0
    %v9981 = vsel %vm4599, %v9970, 0
    %v9984 = vsel %vm4599, %v9971, 0
    %v9987 = vsel %vm4599, %v9972, 0
    %v9990 = vsel %vm4599, %v9973, 0
    %v9993 = vsel %vm4599, %v9974, 0
    %v9996 = vsel %vm4599, %v9975, 0
    %v9999 = vsel %vm4599, %v9976, 0
    %10001 = vmatprep.subr.mxu0 0.0
    %10002 = vmatpush1.msra.mxu0 %v4443
    %10003 = vmatprep.subr.mxu0 0.0
    %10004 = vmatpush1.msra.mxu0 %v4487
    %10005 = vmatprep.subr.mxu0 0.0
    %10006 = vmatpush1.msra.mxu0 %v4531
    %10007 = vmatprep.subr.mxu0 0.0
    %10008 = vmatpush1.msra.mxu0 %v4575
    %10009 = vmatprep.subr.mxu0 0.0
    %10010 = vmatpush1.msra.mxu0 0.0
    %10011 = vmatprep.subr.mxu0 0.0
    %10012 = vmatpush1.msra.mxu0 0.0
    %10013 = vmatprep.subr.mxu0 0.0
    %10014 = vmatpush1.msra.mxu0 0.0
    %10015 = vmatprep.subr.mxu0 0.0
    %10016 = vmatpush1.msra.mxu0 0.0
    %10017 = vmatprep.subr.mxu0 0.0
    %10018 = vmatpush1.msra.mxu0 0.0
    %10019 = vmatprep.subr.mxu0 0.0
    %10020 = vmatpush1.msra.mxu0 0.0
    %10021 = vmatprep.subr.mxu0 0.0
    %10022 = vmatpush1.msra.mxu0 0.0
    %10023 = vmatprep.subr.mxu0 0.0
    %10024 = vmatpush1.msra.mxu0 0.0
    %10025 = vmatprep.subr.mxu0 0.0
    %10026 = vmatpush1.msra.mxu0 0.0
    %10027 = vmatprep.subr.mxu0 0.0
    %10028 = vmatpush1.msra.mxu0 0.0
    %10029 = vmatprep.subr.mxu0 0.0
    %10030 = vmatpush1.msra.mxu0 0.0
    %10031 = vmatprep.subr.mxu0 0.0
    %10032 = vmatpush1.msra.mxu0 0.0
    %10033 = vmatprep.subr.mxu0 0.0
    %10034 = vmatpush1.msra.mxu0 0.0
    %10035 = vmatprep.subr.mxu0 0.0
    %10036 = vmatpush1.msra.mxu0 0.0
    %10037 = vmatprep.subr.mxu0 0.0
    %10038 = vmatpush1.msra.mxu0 0.0
    %10039 = vmatprep.subr.mxu0 0.0
    %10040 = vmatpush1.msra.mxu0 0.0
    %10041 = vmatprep.subr.mxu0 0.0
    %10042 = vmatpush1.msra.mxu0 0.0
    %10043 = vmatprep.subr.mxu0 0.0
    %10044 = vmatpush1.msra.mxu0 0.0
    %10045 = vmatprep.subr.mxu0 0.0
    %10046 = vmatpush1.msra.mxu0 0.0
    %10047 = vmatprep.subr.mxu0 0.0
    %10048 = vmatpush1.msra.mxu0 0.0
    %10049 = vmatprep.subr.mxu0 0.0
    %10050 = vmatpush1.msra.mxu0 0.0
    %10051 = vmatprep.subr.mxu0 0.0
    %10052 = vmatpush1.msra.mxu0 0.0
    %10053 = vmatprep.subr.mxu0 0.0
    %10054 = vmatpush1.msra.mxu0 0.0
    %10055 = vmatprep.subr.mxu0 0.0
    %10056 = vmatpush1.msra.mxu0 0.0
    %10057 = vmatprep.subr.mxu0 0.0
    %10058 = vmatpush1.msra.mxu0 0.0
    %10059 = vmatprep.subr.mxu0 0.0
    %10060 = vmatpush1.msra.mxu0 0.0
    %10061 = vmatprep.subr.mxu0 0.0
    %10062 = vmatpush1.msra.mxu0 0.0
    %10063 = vmatprep.subr.mxu0 0.0
    %10064 = vmatpush1.msra.mxu0 0.0
    %10065 = vmatprep.mubr.f32.mxu0 0.0
    %10066 = vmatmul.mubr.f32.gmra.mrb[0].mxu0 %v9978
    %v10067 = vpop.f32.mrb[0].mxu0
    %v10068 = vadd.f32 0.0, %v10067
    %v10069 = vpop.f32.mrb[0].mxu0
    %10070 = vmatprep.mubr.f32.mxu0 0.0
    %10071 = vmatmul.mubr.f32.gmra.mrb[0].mxu0 %v9981
    %v10072 = vpop.f32.mrb[0].mxu0
    %v10073 = vadd.f32 0.0, %v10072
    %v10074 = vpop.f32.mrb[0].mxu0
    %10075 = vmatprep.mubr.f32.mxu0 0.0
    %10076 = vmatmul.mubr.f32.gmra.mrb[0].mxu0 %v9984
    %v10077 = vpop.f32.mrb[0].mxu0
    %v10078 = vadd.f32 0.0, %v10077
    %v10079 = vpop.f32.mrb[0].mxu0
    %10080 = vmatprep.mubr.f32.mxu0 0.0
    %10081 = vmatmul.mubr.f32.gmra.mrb[0].mxu0 %v9987
    %v10082 = vpop.f32.mrb[0].mxu0
    %v10083 = vadd.f32 0.0, %v10082
    %v10084 = vpop.f32.mrb[0].mxu0
    %10085 = vmatprep.mubr.f32.mxu0 0.0
    %10086 = vmatmul.mubr.f32.gmra.mrb[0].mxu0 %v9990
    %v10087 = vpop.f32.mrb[0].mxu0
    %v10088 = vadd.f32 0.0, %v10087
    %v10089 = vpop.f32.mrb[0].mxu0
    %10090 = vmatprep.mubr.f32.mxu0 0.0
    %10091 = vmatmul.mubr.f32.gmra.mrb[0].mxu0 %v9993
    %v10092 = vpop.f32.mrb[0].mxu0
    %v10093 = vadd.f32 0.0, %v10092
    %v10094 = vpop.f32.mrb[0].mxu0
    %10095 = vmatprep.mubr.f32.mxu0 0.0
    %10096 = vmatmul.mubr.f32.gmra.mrb[0].mxu0 %v9996
    %v10097 = vpop.f32.mrb[0].mxu0
    %v10098 = vadd.f32 0.0, %v10097
    %v10099 = vpop.f32.mrb[0].mxu0
    %10100 = vmatprep.mubr.f32.mxu0 0.0
    %10101 = vmatmul.mubr.f32.gmra.mrb[0].mxu0 %v9999
    %v10102 = vpop.f32.mrb[0].mxu0
    %v10103 = vadd.f32 0.0, %v10102
    %v10104 = vpop.f32.mrb[0].mxu0
    %10105 = vdwg.mxu0
    %v10106 = vadd.f32 %v9960, %v10068
    %v10107 = vadd.f32 %v9961, %v10073
    %v10108 = vadd.f32 %v9962, %v10078
    %v10109 = vadd.f32 %v9963, %v10083
    %v10110 = vadd.f32 %v9964, %v10088
    %v10111 = vadd.f32 %v9965, %v10093
    %v10112 = vadd.f32 %v9966, %v10098
    %v10113 = vadd.f32 %v9967, %v10103
    %s10114 = scalar_lea.vmem %s5, 2432
    %v10115 = vld [vmem:[%s10114] sm:$0xff]
    %v10116 = vld [vmem:[%s10114 + $0x8] sm:$0xff]
    %v10117 = vld [vmem:[%s10114 + $0x10] sm:$0xff]
    %v10118 = vld [vmem:[%s10114 + $0x18] sm:$0xff]
    %v10119 = vld [vmem:[%s10114 + $0x20] sm:$0xff]
    %v10120 = vld [vmem:[%s10114 + $0x28] sm:$0xff]
    %v10121 = vld [vmem:[%s10114 + $0x30] sm:$0xff]
    %v10122 = vld [vmem:[%s10114 + $0x38] sm:$0xff]
    %v10124 = vsel %vm4599, %v10115, 0
    %v10127 = vsel %vm4599, %v10116, 0
    %v10130 = vsel %vm4599, %v10117, 0
    %v10133 = vsel %vm4599, %v10118, 0
    %v10136 = vsel %vm4599, %v10119, 0
    %v10139 = vsel %vm4599, %v10120, 0
    %v10142 = vsel %vm4599, %v10121, 0
    %v10145 = vsel %vm4599, %v10122, 0
    %10147 = vmatprep.subr.mxu0 0.0
    %10148 = vmatpush1.msra.mxu0 %v4444
    %10149 = vmatprep.subr.mxu0 0.0
    %10150 = vmatpush1.msra.mxu0 %v4488
    %10151 = vmatprep.subr.mxu0 0.0
    %10152 = vmatpush1.msra.mxu0 %v4532
    %10153 = vmatprep.subr.mxu0 0.0
    %10154 = vmatpush1.msra.mxu0 %v4576
    %10155 = vmatprep.subr.mxu0 0.0
    %10156 = vmatpush1.msra.mxu0 0.0
    %10157 = vmatprep.subr.mxu0 0.0
    %10158 = vmatpush1.msra.mxu0 0.0
    %10159 = vmatprep.subr.mxu0 0.0
    %10160 = vmatpush1.msra.mxu0 0.0
    %10161 = vmatprep.subr.mxu0 0.0
    %10162 = vmatpush1.msra.mxu0 0.0
    %10163 = vmatprep.subr.mxu0 0.0
    %10164 = vmatpush1.msra.mxu0 0.0
    %10165 = vmatprep.subr.mxu0 0.0
    %10166 = vmatpush1.msra.mxu0 0.0
    %10167 = vmatprep.subr.mxu0 0.0
    %10168 = vmatpush1.msra.mxu0 0.0
    %10169 = vmatprep.subr.mxu0 0.0
    %10170 = vmatpush1.msra.mxu0 0.0
    %10171 = vmatprep.subr.mxu0 0.0
    %10172 = vmatpush1.msra.mxu0 0.0
    %10173 = vmatprep.subr.mxu0 0.0
    %10174 = vmatpush1.msra.mxu0 0.0
    %10175 = vmatprep.subr.mxu0 0.0
    %10176 = vmatpush1.msra.mxu0 0.0
    %10177 = vmatprep.subr.mxu0 0.0
    %10178 = vmatpush1.msra.mxu0 0.0
    %10179 = vmatprep.subr.mxu0 0.0
    %10180 = vmatpush1.msra.mxu0 0.0
    %10181 = vmatprep.subr.mxu0 0.0
    %10182 = vmatpush1.msra.mxu0 0.0
    %10183 = vmatprep.subr.mxu0 0.0
    %10184 = vmatpush1.msra.mxu0 0.0
    %10185 = vmatprep.subr.mxu0 0.0
    %10186 = vmatpush1.msra.mxu0 0.0
    %10187 = vmatprep.subr.mxu0 0.0
    %10188 = vmatpush1.msra.mxu0 0.0
    %10189 = vmatprep.subr.mxu0 0.0
    %10190 = vmatpush1.msra.mxu0 0.0
    %10191 = vmatprep.subr.mxu0 0.0
    %10192 = vmatpush1.msra.mxu0 0.0
    %10193 = vmatprep.subr.mxu0 0.0
    %10194 = vmatpush1.msra.mxu0 0.0
    %10195 = vmatprep.subr.mxu0 0.0
    %10196 = vmatpush1.msra.mxu0 0.0
    %10197 = vmatprep.subr.mxu0 0.0
    %10198 = vmatpush1.msra.mxu0 0.0
    %10199 = vmatprep.subr.mxu0 0.0
    %10200 = vmatpush1.msra.mxu0 0.0
    %10201 = vmatprep.subr.mxu0 0.0
    %10202 = vmatpush1.msra.mxu0 0.0
    %10203 = vmatprep.subr.mxu0 0.0
    %10204 = vmatpush1.msra.mxu0 0.0
    %10205 = vmatprep.subr.mxu0 0.0
    %10206 = vmatpush1.msra.mxu0 0.0
    %10207 = vmatprep.subr.mxu0 0.0
    %10208 = vmatpush1.msra.mxu0 0.0
    %10209 = vmatprep.subr.mxu0 0.0
    %10210 = vmatpush1.msra.mxu0 0.0
    %10211 = vmatprep.mubr.f32.mxu0 0.0
    %10212 = vmatmul.mubr.f32.gmra.mrb[0].mxu0 %v10124
    %v10213 = vpop.f32.mrb[0].mxu0
    %v10214 = vadd.f32 0.0, %v10213
    %v10215 = vpop.f32.mrb[0].mxu0
    %10216 = vmatprep.mubr.f32.mxu0 0.0
    %10217 = vmatmul.mubr.f32.gmra.mrb[0].mxu0 %v10127
    %v10218 = vpop.f32.mrb[0].mxu0
    %v10219 = vadd.f32 0.0, %v10218
    %v10220 = vpop.f32.mrb[0].mxu0
    %10221 = vmatprep.mubr.f32.mxu0 0.0
    %10222 = vmatmul.mubr.f32.gmra.mrb[0].mxu0 %v10130
    %v10223 = vpop.f32.mrb[0].mxu0
    %v10224 = vadd.f32 0.0, %v10223
    %v10225 = vpop.f32.mrb[0].mxu0
    %10226 = vmatprep.mubr.f32.mxu0 0.0
    %10227 = vmatmul.mubr.f32.gmra.mrb[0].mxu0 %v10133
    %v10228 = vpop.f32.mrb[0].mxu0
    %v10229 = vadd.f32 0.0, %v10228
    %v10230 = vpop.f32.mrb[0].mxu0
    %10231 = vmatprep.mubr.f32.mxu0 0.0
    %10232 = vmatmul.mubr.f32.gmra.mrb[0].mxu0 %v10136
    %v10233 = vpop.f32.mrb[0].mxu0
    %v10234 = vadd.f32 0.0, %v10233
    %v10235 = vpop.f32.mrb[0].mxu0
    %10236 = vmatprep.mubr.f32.mxu0 0.0
    %10237 = vmatmul.mubr.f32.gmra.mrb[0].mxu0 %v10139
    %v10238 = vpop.f32.mrb[0].mxu0
    %v10239 = vadd.f32 0.0, %v10238
    %v10240 = vpop.f32.mrb[0].mxu0
    %10241 = vmatprep.mubr.f32.mxu0 0.0
    %10242 = vmatmul.mubr.f32.gmra.mrb[0].mxu0 %v10142
    %v10243 = vpop.f32.mrb[0].mxu0
    %v10244 = vadd.f32 0.0, %v10243
    %v10245 = vpop.f32.mrb[0].mxu0
    %10246 = vmatprep.mubr.f32.mxu0 0.0
    %10247 = vmatmul.mubr.f32.gmra.mrb[0].mxu0 %v10145
    %v10248 = vpop.f32.mrb[0].mxu0
    %v10249 = vadd.f32 0.0, %v10248
    %v10250 = vpop.f32.mrb[0].mxu0
    %10251 = vdwg.mxu0
    %v10252 = vadd.f32 %v10106, %v10214
    %v10253 = vadd.f32 %v10107, %v10219
    %v10254 = vadd.f32 %v10108, %v10224
    %v10255 = vadd.f32 %v10109, %v10229
    %v10256 = vadd.f32 %v10110, %v10234
    %v10257 = vadd.f32 %v10111, %v10239
    %v10258 = vadd.f32 %v10112, %v10244
    %v10259 = vadd.f32 %v10113, %v10249
    %s10260 = scalar_lea.vmem %s5, 2496
    %v10261 = vld [vmem:[%s10260] sm:$0xff]
    %v10262 = vld [vmem:[%s10260 + $0x8] sm:$0xff]
    %v10263 = vld [vmem:[%s10260 + $0x10] sm:$0xff]
    %v10264 = vld [vmem:[%s10260 + $0x18] sm:$0xff]
    %v10265 = vld [vmem:[%s10260 + $0x20] sm:$0xff]
    %v10266 = vld [vmem:[%s10260 + $0x28] sm:$0xff]
    %v10267 = vld [vmem:[%s10260 + $0x30] sm:$0xff]
    %v10268 = vld [vmem:[%s10260 + $0x38] sm:$0xff]
    %v10270 = vsel %vm4599, %v10261, 0
    %v10273 = vsel %vm4599, %v10262, 0
    %v10276 = vsel %vm4599, %v10263, 0
    %v10279 = vsel %vm4599, %v10264, 0
    %v10282 = vsel %vm4599, %v10265, 0
    %v10285 = vsel %vm4599, %v10266, 0
    %v10288 = vsel %vm4599, %v10267, 0
    %v10291 = vsel %vm4599, %v10268, 0
    %10293 = vmatprep.subr.mxu0 0.0
    %10294 = vmatpush1.msra.mxu0 %v4445
    %10295 = vmatprep.subr.mxu0 0.0
    %10296 = vmatpush1.msra.mxu0 %v4489
    %10297 = vmatprep.subr.mxu0 0.0
    %10298 = vmatpush1.msra.mxu0 %v4533
    %10299 = vmatprep.subr.mxu0 0.0
    %10300 = vmatpush1.msra.mxu0 %v4577
    %10301 = vmatprep.subr.mxu0 0.0
    %10302 = vmatpush1.msra.mxu0 0.0
    %10303 = vmatprep.subr.mxu0 0.0
    %10304 = vmatpush1.msra.mxu0 0.0
    %10305 = vmatprep.subr.mxu0 0.0
    %10306 = vmatpush1.msra.mxu0 0.0
    %10307 = vmatprep.subr.mxu0 0.0
    %10308 = vmatpush1.msra.mxu0 0.0
    %10309 = vmatprep.subr.mxu0 0.0
    %10310 = vmatpush1.msra.mxu0 0.0
    %10311 = vmatprep.subr.mxu0 0.0
    %10312 = vmatpush1.msra.mxu0 0.0
    %10313 = vmatprep.subr.mxu0 0.0
    %10314 = vmatpush1.msra.mxu0 0.0
    %10315 = vmatprep.subr.mxu0 0.0
    %10316 = vmatpush1.msra.mxu0 0.0
    %10317 = vmatprep.subr.mxu0 0.0
    %10318 = vmatpush1.msra.mxu0 0.0
    %10319 = vmatprep.subr.mxu0 0.0
    %10320 = vmatpush1.msra.mxu0 0.0
    %10321 = vmatprep.subr.mxu0 0.0
    %10322 = vmatpush1.msra.mxu0 0.0
    %10323 = vmatprep.subr.mxu0 0.0
    %10324 = vmatpush1.msra.mxu0 0.0
    %10325 = vmatprep.subr.mxu0 0.0
    %10326 = vmatpush1.msra.mxu0 0.0
    %10327 = vmatprep.subr.mxu0 0.0
    %10328 = vmatpush1.msra.mxu0 0.0
    %10329 = vmatprep.subr.mxu0 0.0
    %10330 = vmatpush1.msra.mxu0 0.0
    %10331 = vmatprep.subr.mxu0 0.0
    %10332 = vmatpush1.msra.mxu0 0.0
    %10333 = vmatprep.subr.mxu0 0.0
    %10334 = vmatpush1.msra.mxu0 0.0
    %10335 = vmatprep.subr.mxu0 0.0
    %10336 = vmatpush1.msra.mxu0 0.0
    %10337 = vmatprep.subr.mxu0 0.0
    %10338 = vmatpush1.msra.mxu0 0.0
    %10339 = vmatprep.subr.mxu0 0.0
    %10340 = vmatpush1.msra.mxu0 0.0
    %10341 = vmatprep.subr.mxu0 0.0
    %10342 = vmatpush1.msra.mxu0 0.0
    %10343 = vmatprep.subr.mxu0 0.0
    %10344 = vmatpush1.msra.mxu0 0.0
    %10345 = vmatprep.subr.mxu0 0.0
    %10346 = vmatpush1.msra.mxu0 0.0
    %10347 = vmatprep.subr.mxu0 0.0
    %10348 = vmatpush1.msra.mxu0 0.0
    %10349 = vmatprep.subr.mxu0 0.0
    %10350 = vmatpush1.msra.mxu0 0.0
    %10351 = vmatprep.subr.mxu0 0.0
    %10352 = vmatpush1.msra.mxu0 0.0
    %10353 = vmatprep.subr.mxu0 0.0
    %10354 = vmatpush1.msra.mxu0 0.0
    %10355 = vmatprep.subr.mxu0 0.0
    %10356 = vmatpush1.msra.mxu0 0.0
    %10357 = vmatprep.mubr.f32.mxu0 0.0
    %10358 = vmatmul.mubr.f32.gmra.mrb[0].mxu0 %v10270
    %v10359 = vpop.f32.mrb[0].mxu0
    %v10360 = vadd.f32 0.0, %v10359
    %v10361 = vpop.f32.mrb[0].mxu0
    %10362 = vmatprep.mubr.f32.mxu0 0.0
    %10363 = vmatmul.mubr.f32.gmra.mrb[0].mxu0 %v10273
    %v10364 = vpop.f32.mrb[0].mxu0
    %v10365 = vadd.f32 0.0, %v10364
    %v10366 = vpop.f32.mrb[0].mxu0
    %10367 = vmatprep.mubr.f32.mxu0 0.0
    %10368 = vmatmul.mubr.f32.gmra.mrb[0].mxu0 %v10276
    %v10369 = vpop.f32.mrb[0].mxu0
    %v10370 = vadd.f32 0.0, %v10369
    %v10371 = vpop.f32.mrb[0].mxu0
    %10372 = vmatprep.mubr.f32.mxu0 0.0
    %10373 = vmatmul.mubr.f32.gmra.mrb[0].mxu0 %v10279
    %v10374 = vpop.f32.mrb[0].mxu0
    %v10375 = vadd.f32 0.0, %v10374
    %v10376 = vpop.f32.mrb[0].mxu0
    %10377 = vmatprep.mubr.f32.mxu0 0.0
    %10378 = vmatmul.mubr.f32.gmra.mrb[0].mxu0 %v10282
    %v10379 = vpop.f32.mrb[0].mxu0
    %v10380 = vadd.f32 0.0, %v10379
    %v10381 = vpop.f32.mrb[0].mxu0
    %10382 = vmatprep.mubr.f32.mxu0 0.0
    %10383 = vmatmul.mubr.f32.gmra.mrb[0].mxu0 %v10285
    %v10384 = vpop.f32.mrb[0].mxu0
    %v10385 = vadd.f32 0.0, %v10384
    %v10386 = vpop.f32.mrb[0].mxu0
    %10387 = vmatprep.mubr.f32.mxu0 0.0
    %10388 = vmatmul.mubr.f32.gmra.mrb[0].mxu0 %v10288
    %v10389 = vpop.f32.mrb[0].mxu0
    %v10390 = vadd.f32 0.0, %v10389
    %v10391 = vpop.f32.mrb[0].mxu0
    %10392 = vmatprep.mubr.f32.mxu0 0.0
    %10393 = vmatmul.mubr.f32.gmra.mrb[0].mxu0 %v10291
    %v10394 = vpop.f32.mrb[0].mxu0
    %v10395 = vadd.f32 0.0, %v10394
    %v10396 = vpop.f32.mrb[0].mxu0
    %10397 = vdwg.mxu0
    %v10398 = vadd.f32 %v10252, %v10360
    %v10399 = vadd.f32 %v10253, %v10365
    %v10400 = vadd.f32 %v10254, %v10370
    %v10401 = vadd.f32 %v10255, %v10375
    %v10402 = vadd.f32 %v10256, %v10380
    %v10403 = vadd.f32 %v10257, %v10385
    %v10404 = vadd.f32 %v10258, %v10390
    %v10405 = vadd.f32 %v10259, %v10395
    %s10406 = scalar_lea.vmem %s5, 2560
    %v10407 = vld [vmem:[%s10406] sm:$0xff]
    %v10408 = vld [vmem:[%s10406 + $0x8] sm:$0xff]
    %v10409 = vld [vmem:[%s10406 + $0x10] sm:$0xff]
    %v10410 = vld [vmem:[%s10406 + $0x18] sm:$0xff]
    %v10411 = vld [vmem:[%s10406 + $0x20] sm:$0xff]
    %v10412 = vld [vmem:[%s10406 + $0x28] sm:$0xff]
    %v10413 = vld [vmem:[%s10406 + $0x30] sm:$0xff]
    %v10414 = vld [vmem:[%s10406 + $0x38] sm:$0xff]
    %v10416 = vsel %vm4599, %v10407, 0
    %v10419 = vsel %vm4599, %v10408, 0
    %v10422 = vsel %vm4599, %v10409, 0
    %v10425 = vsel %vm4599, %v10410, 0
    %v10428 = vsel %vm4599, %v10411, 0
    %v10431 = vsel %vm4599, %v10412, 0
    %v10434 = vsel %vm4599, %v10413, 0
    %v10437 = vsel %vm4599, %v10414, 0
    %10439 = vmatprep.subr.mxu0 0.0
    %10440 = vmatpush1.msra.mxu0 %v4446
    %10441 = vmatprep.subr.mxu0 0.0
    %10442 = vmatpush1.msra.mxu0 %v4490
    %10443 = vmatprep.subr.mxu0 0.0
    %10444 = vmatpush1.msra.mxu0 %v4534
    %10445 = vmatprep.subr.mxu0 0.0
    %10446 = vmatpush1.msra.mxu0 %v4578
    %10447 = vmatprep.subr.mxu0 0.0
    %10448 = vmatpush1.msra.mxu0 0.0
    %10449 = vmatprep.subr.mxu0 0.0
    %10450 = vmatpush1.msra.mxu0 0.0
    %10451 = vmatprep.subr.mxu0 0.0
    %10452 = vmatpush1.msra.mxu0 0.0
    %10453 = vmatprep.subr.mxu0 0.0
    %10454 = vmatpush1.msra.mxu0 0.0
    %10455 = vmatprep.subr.mxu0 0.0
    %10456 = vmatpush1.msra.mxu0 0.0
    %10457 = vmatprep.subr.mxu0 0.0
    %10458 = vmatpush1.msra.mxu0 0.0
    %10459 = vmatprep.subr.mxu0 0.0
    %10460 = vmatpush1.msra.mxu0 0.0
    %10461 = vmatprep.subr.mxu0 0.0
    %10462 = vmatpush1.msra.mxu0 0.0
    %10463 = vmatprep.subr.mxu0 0.0
    %10464 = vmatpush1.msra.mxu0 0.0
    %10465 = vmatprep.subr.mxu0 0.0
    %10466 = vmatpush1.msra.mxu0 0.0
    %10467 = vmatprep.subr.mxu0 0.0
    %10468 = vmatpush1.msra.mxu0 0.0
    %10469 = vmatprep.subr.mxu0 0.0
    %10470 = vmatpush1.msra.mxu0 0.0
    %10471 = vmatprep.subr.mxu0 0.0
    %10472 = vmatpush1.msra.mxu0 0.0
    %10473 = vmatprep.subr.mxu0 0.0
    %10474 = vmatpush1.msra.mxu0 0.0
    %10475 = vmatprep.subr.mxu0 0.0
    %10476 = vmatpush1.msra.mxu0 0.0
    %10477 = vmatprep.subr.mxu0 0.0
    %10478 = vmatpush1.msra.mxu0 0.0
    %10479 = vmatprep.subr.mxu0 0.0
    %10480 = vmatpush1.msra.mxu0 0.0
    %10481 = vmatprep.subr.mxu0 0.0
    %10482 = vmatpush1.msra.mxu0 0.0
    %10483 = vmatprep.subr.mxu0 0.0
    %10484 = vmatpush1.msra.mxu0 0.0
    %10485 = vmatprep.subr.mxu0 0.0
    %10486 = vmatpush1.msra.mxu0 0.0
    %10487 = vmatprep.subr.mxu0 0.0
    %10488 = vmatpush1.msra.mxu0 0.0
    %10489 = vmatprep.subr.mxu0 0.0
    %10490 = vmatpush1.msra.mxu0 0.0
    %10491 = vmatprep.subr.mxu0 0.0
    %10492 = vmatpush1.msra.mxu0 0.0
    %10493 = vmatprep.subr.mxu0 0.0
    %10494 = vmatpush1.msra.mxu0 0.0
    %10495 = vmatprep.subr.mxu0 0.0
    %10496 = vmatpush1.msra.mxu0 0.0
    %10497 = vmatprep.subr.mxu0 0.0
    %10498 = vmatpush1.msra.mxu0 0.0
    %10499 = vmatprep.subr.mxu0 0.0
    %10500 = vmatpush1.msra.mxu0 0.0
    %10501 = vmatprep.subr.mxu0 0.0
    %10502 = vmatpush1.msra.mxu0 0.0
    %10503 = vmatprep.mubr.f32.mxu0 0.0
    %10504 = vmatmul.mubr.f32.gmra.mrb[0].mxu0 %v10416
    %v10505 = vpop.f32.mrb[0].mxu0
    %v10506 = vadd.f32 0.0, %v10505
    %v10507 = vpop.f32.mrb[0].mxu0
    %10508 = vmatprep.mubr.f32.mxu0 0.0
    %10509 = vmatmul.mubr.f32.gmra.mrb[0].mxu0 %v10419
    %v10510 = vpop.f32.mrb[0].mxu0
    %v10511 = vadd.f32 0.0, %v10510
    %v10512 = vpop.f32.mrb[0].mxu0
    %10513 = vmatprep.mubr.f32.mxu0 0.0
    %10514 = vmatmul.mubr.f32.gmra.mrb[0].mxu0 %v10422
    %v10515 = vpop.f32.mrb[0].mxu0
    %v10516 = vadd.f32 0.0, %v10515
    %v10517 = vpop.f32.mrb[0].mxu0
    %10518 = vmatprep.mubr.f32.mxu0 0.0
    %10519 = vmatmul.mubr.f32.gmra.mrb[0].mxu0 %v10425
    %v10520 = vpop.f32.mrb[0].mxu0
    %v10521 = vadd.f32 0.0, %v10520
    %v10522 = vpop.f32.mrb[0].mxu0
    %10523 = vmatprep.mubr.f32.mxu0 0.0
    %10524 = vmatmul.mubr.f32.gmra.mrb[0].mxu0 %v10428
    %v10525 = vpop.f32.mrb[0].mxu0
    %v10526 = vadd.f32 0.0, %v10525
    %v10527 = vpop.f32.mrb[0].mxu0
    %10528 = vmatprep.mubr.f32.mxu0 0.0
    %10529 = vmatmul.mubr.f32.gmra.mrb[0].mxu0 %v10431
    %v10530 = vpop.f32.mrb[0].mxu0
    %v10531 = vadd.f32 0.0, %v10530
    %v10532 = vpop.f32.mrb[0].mxu0
    %10533 = vmatprep.mubr.f32.mxu0 0.0
    %10534 = vmatmul.mubr.f32.gmra.mrb[0].mxu0 %v10434
    %v10535 = vpop.f32.mrb[0].mxu0
    %v10536 = vadd.f32 0.0, %v10535
    %v10537 = vpop.f32.mrb[0].mxu0
    %10538 = vmatprep.mubr.f32.mxu0 0.0
    %10539 = vmatmul.mubr.f32.gmra.mrb[0].mxu0 %v10437
    %v10540 = vpop.f32.mrb[0].mxu0
    %v10541 = vadd.f32 0.0, %v10540
    %v10542 = vpop.f32.mrb[0].mxu0
    %10543 = vdwg.mxu0
    %v10544 = vadd.f32 %v10398, %v10506
    %v10545 = vadd.f32 %v10399, %v10511
    %v10546 = vadd.f32 %v10400, %v10516
    %v10547 = vadd.f32 %v10401, %v10521
    %v10548 = vadd.f32 %v10402, %v10526
    %v10549 = vadd.f32 %v10403, %v10531
    %v10550 = vadd.f32 %v10404, %v10536
    %v10551 = vadd.f32 %v10405, %v10541
    %s10552 = scalar_lea.vmem %s5, 2624
    %v10553 = vld [vmem:[%s10552] sm:$0xff]
    %v10554 = vld [vmem:[%s10552 + $0x8] sm:$0xff]
    %v10555 = vld [vmem:[%s10552 + $0x10] sm:$0xff]
    %v10556 = vld [vmem:[%s10552 + $0x18] sm:$0xff]
    %v10557 = vld [vmem:[%s10552 + $0x20] sm:$0xff]
    %v10558 = vld [vmem:[%s10552 + $0x28] sm:$0xff]
    %v10559 = vld [vmem:[%s10552 + $0x30] sm:$0xff]
    %v10560 = vld [vmem:[%s10552 + $0x38] sm:$0xff]
    %v10562 = vsel %vm4599, %v10553, 0
    %v10565 = vsel %vm4599, %v10554, 0
    %v10568 = vsel %vm4599, %v10555, 0
    %v10571 = vsel %vm4599, %v10556, 0
    %v10574 = vsel %vm4599, %v10557, 0
    %v10577 = vsel %vm4599, %v10558, 0
    %v10580 = vsel %vm4599, %v10559, 0
    %v10583 = vsel %vm4599, %v10560, 0
    %10585 = vmatprep.subr.mxu0 0.0
    %10586 = vmatpush1.msra.mxu0 %v4447
    %10587 = vmatprep.subr.mxu0 0.0
    %10588 = vmatpush1.msra.mxu0 %v4491
    %10589 = vmatprep.subr.mxu0 0.0
    %10590 = vmatpush1.msra.mxu0 %v4535
    %10591 = vmatprep.subr.mxu0 0.0
    %10592 = vmatpush1.msra.mxu0 %v4579
    %10593 = vmatprep.subr.mxu0 0.0
    %10594 = vmatpush1.msra.mxu0 0.0
    %10595 = vmatprep.subr.mxu0 0.0
    %10596 = vmatpush1.msra.mxu0 0.0
    %10597 = vmatprep.subr.mxu0 0.0
    %10598 = vmatpush1.msra.mxu0 0.0
    %10599 = vmatprep.subr.mxu0 0.0
    %10600 = vmatpush1.msra.mxu0 0.0
    %10601 = vmatprep.subr.mxu0 0.0
    %10602 = vmatpush1.msra.mxu0 0.0
    %10603 = vmatprep.subr.mxu0 0.0
    %10604 = vmatpush1.msra.mxu0 0.0
    %10605 = vmatprep.subr.mxu0 0.0
    %10606 = vmatpush1.msra.mxu0 0.0
    %10607 = vmatprep.subr.mxu0 0.0
    %10608 = vmatpush1.msra.mxu0 0.0
    %10609 = vmatprep.subr.mxu0 0.0
    %10610 = vmatpush1.msra.mxu0 0.0
    %10611 = vmatprep.subr.mxu0 0.0
    %10612 = vmatpush1.msra.mxu0 0.0
    %10613 = vmatprep.subr.mxu0 0.0
    %10614 = vmatpush1.msra.mxu0 0.0
    %10615 = vmatprep.subr.mxu0 0.0
    %10616 = vmatpush1.msra.mxu0 0.0
    %10617 = vmatprep.subr.mxu0 0.0
    %10618 = vmatpush1.msra.mxu0 0.0
    %10619 = vmatprep.subr.mxu0 0.0
    %10620 = vmatpush1.msra.mxu0 0.0
    %10621 = vmatprep.subr.mxu0 0.0
    %10622 = vmatpush1.msra.mxu0 0.0
    %10623 = vmatprep.subr.mxu0 0.0
    %10624 = vmatpush1.msra.mxu0 0.0
    %10625 = vmatprep.subr.mxu0 0.0
    %10626 = vmatpush1.msra.mxu0 0.0
    %10627 = vmatprep.subr.mxu0 0.0
    %10628 = vmatpush1.msra.mxu0 0.0
    %10629 = vmatprep.subr.mxu0 0.0
    %10630 = vmatpush1.msra.mxu0 0.0
    %10631 = vmatprep.subr.mxu0 0.0
    %10632 = vmatpush1.msra.mxu0 0.0
    %10633 = vmatprep.subr.mxu0 0.0
    %10634 = vmatpush1.msra.mxu0 0.0
    %10635 = vmatprep.subr.mxu0 0.0
    %10636 = vmatpush1.msra.mxu0 0.0
    %10637 = vmatprep.subr.mxu0 0.0
    %10638 = vmatpush1.msra.mxu0 0.0
    %10639 = vmatprep.subr.mxu0 0.0
    %10640 = vmatpush1.msra.mxu0 0.0
    %10641 = vmatprep.subr.mxu0 0.0
    %10642 = vmatpush1.msra.mxu0 0.0
    %10643 = vmatprep.subr.mxu0 0.0
    %10644 = vmatpush1.msra.mxu0 0.0
    %10645 = vmatprep.subr.mxu0 0.0
    %10646 = vmatpush1.msra.mxu0 0.0
    %10647 = vmatprep.subr.mxu0 0.0
    %10648 = vmatpush1.msra.mxu0 0.0
    %10649 = vmatprep.mubr.f32.mxu0 0.0
    %10650 = vmatmul.mubr.f32.gmra.mrb[0].mxu0 %v10562
    %v10651 = vpop.f32.mrb[0].mxu0
    %v10652 = vadd.f32 0.0, %v10651
    %v10653 = vpop.f32.mrb[0].mxu0
    %10654 = vmatprep.mubr.f32.mxu0 0.0
    %10655 = vmatmul.mubr.f32.gmra.mrb[0].mxu0 %v10565
    %v10656 = vpop.f32.mrb[0].mxu0
    %v10657 = vadd.f32 0.0, %v10656
    %v10658 = vpop.f32.mrb[0].mxu0
    %10659 = vmatprep.mubr.f32.mxu0 0.0
    %10660 = vmatmul.mubr.f32.gmra.mrb[0].mxu0 %v10568
    %v10661 = vpop.f32.mrb[0].mxu0
    %v10662 = vadd.f32 0.0, %v10661
    %v10663 = vpop.f32.mrb[0].mxu0
    %10664 = vmatprep.mubr.f32.mxu0 0.0
    %10665 = vmatmul.mubr.f32.gmra.mrb[0].mxu0 %v10571
    %v10666 = vpop.f32.mrb[0].mxu0
    %v10667 = vadd.f32 0.0, %v10666
    %v10668 = vpop.f32.mrb[0].mxu0
    %10669 = vmatprep.mubr.f32.mxu0 0.0
    %10670 = vmatmul.mubr.f32.gmra.mrb[0].mxu0 %v10574
    %v10671 = vpop.f32.mrb[0].mxu0
    %v10672 = vadd.f32 0.0, %v10671
    %v10673 = vpop.f32.mrb[0].mxu0
    %10674 = vmatprep.mubr.f32.mxu0 0.0
    %10675 = vmatmul.mubr.f32.gmra.mrb[0].mxu0 %v10577
    %v10676 = vpop.f32.mrb[0].mxu0
    %v10677 = vadd.f32 0.0, %v10676
    %v10678 = vpop.f32.mrb[0].mxu0
    %10679 = vmatprep.mubr.f32.mxu0 0.0
    %10680 = vmatmul.mubr.f32.gmra.mrb[0].mxu0 %v10580
    %v10681 = vpop.f32.mrb[0].mxu0
    %v10682 = vadd.f32 0.0, %v10681
    %v10683 = vpop.f32.mrb[0].mxu0
    %10684 = vmatprep.mubr.f32.mxu0 0.0
    %10685 = vmatmul.mubr.f32.gmra.mrb[0].mxu0 %v10583
    %v10686 = vpop.f32.mrb[0].mxu0
    %v10687 = vadd.f32 0.0, %v10686
    %v10688 = vpop.f32.mrb[0].mxu0
    %10689 = vdwg.mxu0
    %v10690 = vadd.f32 %v10544, %v10652
    %v10691 = vadd.f32 %v10545, %v10657
    %v10692 = vadd.f32 %v10546, %v10662
    %v10693 = vadd.f32 %v10547, %v10667
    %v10694 = vadd.f32 %v10548, %v10672
    %v10695 = vadd.f32 %v10549, %v10677
    %v10696 = vadd.f32 %v10550, %v10682
    %v10697 = vadd.f32 %v10551, %v10687
    %s10698 = scalar_lea.vmem %s5, 2688
    %v10699 = vld [vmem:[%s10698] sm:$0xff]
    %v10700 = vld [vmem:[%s10698 + $0x8] sm:$0xff]
    %v10701 = vld [vmem:[%s10698 + $0x10] sm:$0xff]
    %v10702 = vld [vmem:[%s10698 + $0x18] sm:$0xff]
    %v10703 = vld [vmem:[%s10698 + $0x20] sm:$0xff]
    %v10704 = vld [vmem:[%s10698 + $0x28] sm:$0xff]
    %v10705 = vld [vmem:[%s10698 + $0x30] sm:$0xff]
    %v10706 = vld [vmem:[%s10698 + $0x38] sm:$0xff]
    %v10708 = vsel %vm4599, %v10699, 0
    %v10711 = vsel %vm4599, %v10700, 0
    %v10714 = vsel %vm4599, %v10701, 0
    %v10717 = vsel %vm4599, %v10702, 0
    %v10720 = vsel %vm4599, %v10703, 0
    %v10723 = vsel %vm4599, %v10704, 0
    %v10726 = vsel %vm4599, %v10705, 0
    %v10729 = vsel %vm4599, %v10706, 0
    %10731 = vmatprep.subr.mxu0 0.0
    %10732 = vmatpush1.msra.mxu0 %v4448
    %10733 = vmatprep.subr.mxu0 0.0
    %10734 = vmatpush1.msra.mxu0 %v4492
    %10735 = vmatprep.subr.mxu0 0.0
    %10736 = vmatpush1.msra.mxu0 %v4536
    %10737 = vmatprep.subr.mxu0 0.0
    %10738 = vmatpush1.msra.mxu0 %v4580
    %10739 = vmatprep.subr.mxu0 0.0
    %10740 = vmatpush1.msra.mxu0 0.0
    %10741 = vmatprep.subr.mxu0 0.0
    %10742 = vmatpush1.msra.mxu0 0.0
    %10743 = vmatprep.subr.mxu0 0.0
    %10744 = vmatpush1.msra.mxu0 0.0
    %10745 = vmatprep.subr.mxu0 0.0
    %10746 = vmatpush1.msra.mxu0 0.0
    %10747 = vmatprep.subr.mxu0 0.0
    %10748 = vmatpush1.msra.mxu0 0.0
    %10749 = vmatprep.subr.mxu0 0.0
    %10750 = vmatpush1.msra.mxu0 0.0
    %10751 = vmatprep.subr.mxu0 0.0
    %10752 = vmatpush1.msra.mxu0 0.0
    %10753 = vmatprep.subr.mxu0 0.0
    %10754 = vmatpush1.msra.mxu0 0.0
    %10755 = vmatprep.subr.mxu0 0.0
    %10756 = vmatpush1.msra.mxu0 0.0
    %10757 = vmatprep.subr.mxu0 0.0
    %10758 = vmatpush1.msra.mxu0 0.0
    %10759 = vmatprep.subr.mxu0 0.0
    %10760 = vmatpush1.msra.mxu0 0.0
    %10761 = vmatprep.subr.mxu0 0.0
    %10762 = vmatpush1.msra.mxu0 0.0
    %10763 = vmatprep.subr.mxu0 0.0
    %10764 = vmatpush1.msra.mxu0 0.0
    %10765 = vmatprep.subr.mxu0 0.0
    %10766 = vmatpush1.msra.mxu0 0.0
    %10767 = vmatprep.subr.mxu0 0.0
    %10768 = vmatpush1.msra.mxu0 0.0
    %10769 = vmatprep.subr.mxu0 0.0
    %10770 = vmatpush1.msra.mxu0 0.0
    %10771 = vmatprep.subr.mxu0 0.0
    %10772 = vmatpush1.msra.mxu0 0.0
    %10773 = vmatprep.subr.mxu0 0.0
    %10774 = vmatpush1.msra.mxu0 0.0
    %10775 = vmatprep.subr.mxu0 0.0
    %10776 = vmatpush1.msra.mxu0 0.0
    %10777 = vmatprep.subr.mxu0 0.0
    %10778 = vmatpush1.msra.mxu0 0.0
    %10779 = vmatprep.subr.mxu0 0.0
    %10780 = vmatpush1.msra.mxu0 0.0
    %10781 = vmatprep.subr.mxu0 0.0
    %10782 = vmatpush1.msra.mxu0 0.0
    %10783 = vmatprep.subr.mxu0 0.0
    %10784 = vmatpush1.msra.mxu0 0.0
    %10785 = vmatprep.subr.mxu0 0.0
    %10786 = vmatpush1.msra.mxu0 0.0
    %10787 = vmatprep.subr.mxu0 0.0
    %10788 = vmatpush1.msra.mxu0 0.0
    %10789 = vmatprep.subr.mxu0 0.0
    %10790 = vmatpush1.msra.mxu0 0.0
    %10791 = vmatprep.subr.mxu0 0.0
    %10792 = vmatpush1.msra.mxu0 0.0
    %10793 = vmatprep.subr.mxu0 0.0
    %10794 = vmatpush1.msra.mxu0 0.0
    %10795 = vmatprep.mubr.f32.mxu0 0.0
    %10796 = vmatmul.mubr.f32.gmra.mrb[0].mxu0 %v10708
    %v10797 = vpop.f32.mrb[0].mxu0
    %v10798 = vadd.f32 0.0, %v10797
    %v10799 = vpop.f32.mrb[0].mxu0
    %10800 = vmatprep.mubr.f32.mxu0 0.0
    %10801 = vmatmul.mubr.f32.gmra.mrb[0].mxu0 %v10711
    %v10802 = vpop.f32.mrb[0].mxu0
    %v10803 = vadd.f32 0.0, %v10802
    %v10804 = vpop.f32.mrb[0].mxu0
    %10805 = vmatprep.mubr.f32.mxu0 0.0
    %10806 = vmatmul.mubr.f32.gmra.mrb[0].mxu0 %v10714
    %v10807 = vpop.f32.mrb[0].mxu0
    %v10808 = vadd.f32 0.0, %v10807
    %v10809 = vpop.f32.mrb[0].mxu0
    %10810 = vmatprep.mubr.f32.mxu0 0.0
    %10811 = vmatmul.mubr.f32.gmra.mrb[0].mxu0 %v10717
    %v10812 = vpop.f32.mrb[0].mxu0
    %v10813 = vadd.f32 0.0, %v10812
    %v10814 = vpop.f32.mrb[0].mxu0
    %10815 = vmatprep.mubr.f32.mxu0 0.0
    %10816 = vmatmul.mubr.f32.gmra.mrb[0].mxu0 %v10720
    %v10817 = vpop.f32.mrb[0].mxu0
    %v10818 = vadd.f32 0.0, %v10817
    %v10819 = vpop.f32.mrb[0].mxu0
    %10820 = vmatprep.mubr.f32.mxu0 0.0
    %10821 = vmatmul.mubr.f32.gmra.mrb[0].mxu0 %v10723
    %v10822 = vpop.f32.mrb[0].mxu0
    %v10823 = vadd.f32 0.0, %v10822
    %v10824 = vpop.f32.mrb[0].mxu0
    %10825 = vmatprep.mubr.f32.mxu0 0.0
    %10826 = vmatmul.mubr.f32.gmra.mrb[0].mxu0 %v10726
    %v10827 = vpop.f32.mrb[0].mxu0
    %v10828 = vadd.f32 0.0, %v10827
    %v10829 = vpop.f32.mrb[0].mxu0
    %10830 = vmatprep.mubr.f32.mxu0 0.0
    %10831 = vmatmul.mubr.f32.gmra.mrb[0].mxu0 %v10729
    %v10832 = vpop.f32.mrb[0].mxu0
    %v10833 = vadd.f32 0.0, %v10832
    %v10834 = vpop.f32.mrb[0].mxu0
    %10835 = vdwg.mxu0
    %v10836 = vadd.f32 %v10690, %v10798
    %v10837 = vadd.f32 %v10691, %v10803
    %v10838 = vadd.f32 %v10692, %v10808
    %v10839 = vadd.f32 %v10693, %v10813
    %v10840 = vadd.f32 %v10694, %v10818
    %v10841 = vadd.f32 %v10695, %v10823
    %v10842 = vadd.f32 %v10696, %v10828
    %v10843 = vadd.f32 %v10697, %v10833
    %s10844 = scalar_lea.vmem %s5, 2752
    %v10845 = vld [vmem:[%s10844] sm:$0xff]
    %v10846 = vld [vmem:[%s10844 + $0x8] sm:$0xff]
    %v10847 = vld [vmem:[%s10844 + $0x10] sm:$0xff]
    %v10848 = vld [vmem:[%s10844 + $0x18] sm:$0xff]
    %v10849 = vld [vmem:[%s10844 + $0x20] sm:$0xff]
    %v10850 = vld [vmem:[%s10844 + $0x28] sm:$0xff]
    %v10851 = vld [vmem:[%s10844 + $0x30] sm:$0xff]
    %v10852 = vld [vmem:[%s10844 + $0x38] sm:$0xff]
    %v10854 = vsel %vm4599, %v10845, 0
    %v10857 = vsel %vm4599, %v10846, 0
    %v10860 = vsel %vm4599, %v10847, 0
    %v10863 = vsel %vm4599, %v10848, 0
    %v10866 = vsel %vm4599, %v10849, 0
    %v10869 = vsel %vm4599, %v10850, 0
    %v10872 = vsel %vm4599, %v10851, 0
    %v10875 = vsel %vm4599, %v10852, 0
    %10877 = vmatprep.subr.mxu0 0.0
    %10878 = vmatpush1.msra.mxu0 %v4449
    %10879 = vmatprep.subr.mxu0 0.0
    %10880 = vmatpush1.msra.mxu0 %v4493
    %10881 = vmatprep.subr.mxu0 0.0
    %10882 = vmatpush1.msra.mxu0 %v4537
    %10883 = vmatprep.subr.mxu0 0.0
    %10884 = vmatpush1.msra.mxu0 %v4581
    %10885 = vmatprep.subr.mxu0 0.0
    %10886 = vmatpush1.msra.mxu0 0.0
    %10887 = vmatprep.subr.mxu0 0.0
    %10888 = vmatpush1.msra.mxu0 0.0
    %10889 = vmatprep.subr.mxu0 0.0
    %10890 = vmatpush1.msra.mxu0 0.0
    %10891 = vmatprep.subr.mxu0 0.0
    %10892 = vmatpush1.msra.mxu0 0.0
    %10893 = vmatprep.subr.mxu0 0.0
    %10894 = vmatpush1.msra.mxu0 0.0
    %10895 = vmatprep.subr.mxu0 0.0
    %10896 = vmatpush1.msra.mxu0 0.0
    %10897 = vmatprep.subr.mxu0 0.0
    %10898 = vmatpush1.msra.mxu0 0.0
    %10899 = vmatprep.subr.mxu0 0.0
    %10900 = vmatpush1.msra.mxu0 0.0
    %10901 = vmatprep.subr.mxu0 0.0
    %10902 = vmatpush1.msra.mxu0 0.0
    %10903 = vmatprep.subr.mxu0 0.0
    %10904 = vmatpush1.msra.mxu0 0.0
    %10905 = vmatprep.subr.mxu0 0.0
    %10906 = vmatpush1.msra.mxu0 0.0
    %10907 = vmatprep.subr.mxu0 0.0
    %10908 = vmatpush1.msra.mxu0 0.0
    %10909 = vmatprep.subr.mxu0 0.0
    %10910 = vmatpush1.msra.mxu0 0.0
    %10911 = vmatprep.subr.mxu0 0.0
    %10912 = vmatpush1.msra.mxu0 0.0
    %10913 = vmatprep.subr.mxu0 0.0
    %10914 = vmatpush1.msra.mxu0 0.0
    %10915 = vmatprep.subr.mxu0 0.0
    %10916 = vmatpush1.msra.mxu0 0.0
    %10917 = vmatprep.subr.mxu0 0.0
    %10918 = vmatpush1.msra.mxu0 0.0
    %10919 = vmatprep.subr.mxu0 0.0
    %10920 = vmatpush1.msra.mxu0 0.0
    %10921 = vmatprep.subr.mxu0 0.0
    %10922 = vmatpush1.msra.mxu0 0.0
    %10923 = vmatprep.subr.mxu0 0.0
    %10924 = vmatpush1.msra.mxu0 0.0
    %10925 = vmatprep.subr.mxu0 0.0
    %10926 = vmatpush1.msra.mxu0 0.0
    %10927 = vmatprep.subr.mxu0 0.0
    %10928 = vmatpush1.msra.mxu0 0.0
    %10929 = vmatprep.subr.mxu0 0.0
    %10930 = vmatpush1.msra.mxu0 0.0
    %10931 = vmatprep.subr.mxu0 0.0
    %10932 = vmatpush1.msra.mxu0 0.0
    %10933 = vmatprep.subr.mxu0 0.0
    %10934 = vmatpush1.msra.mxu0 0.0
    %10935 = vmatprep.subr.mxu0 0.0
    %10936 = vmatpush1.msra.mxu0 0.0
    %10937 = vmatprep.subr.mxu0 0.0
    %10938 = vmatpush1.msra.mxu0 0.0
    %10939 = vmatprep.subr.mxu0 0.0
    %10940 = vmatpush1.msra.mxu0 0.0
    %10941 = vmatprep.mubr.f32.mxu0 0.0
    %10942 = vmatmul.mubr.f32.gmra.mrb[0].mxu0 %v10854
    %v10943 = vpop.f32.mrb[0].mxu0
    %v10944 = vadd.f32 0.0, %v10943
    %v10945 = vpop.f32.mrb[0].mxu0
    %10946 = vmatprep.mubr.f32.mxu0 0.0
    %10947 = vmatmul.mubr.f32.gmra.mrb[0].mxu0 %v10857
    %v10948 = vpop.f32.mrb[0].mxu0
    %v10949 = vadd.f32 0.0, %v10948
    %v10950 = vpop.f32.mrb[0].mxu0
    %10951 = vmatprep.mubr.f32.mxu0 0.0
    %10952 = vmatmul.mubr.f32.gmra.mrb[0].mxu0 %v10860
    %v10953 = vpop.f32.mrb[0].mxu0
    %v10954 = vadd.f32 0.0, %v10953
    %v10955 = vpop.f32.mrb[0].mxu0
    %10956 = vmatprep.mubr.f32.mxu0 0.0
    %10957 = vmatmul.mubr.f32.gmra.mrb[0].mxu0 %v10863
    %v10958 = vpop.f32.mrb[0].mxu0
    %v10959 = vadd.f32 0.0, %v10958
    %v10960 = vpop.f32.mrb[0].mxu0
    %10961 = vmatprep.mubr.f32.mxu0 0.0
    %10962 = vmatmul.mubr.f32.gmra.mrb[0].mxu0 %v10866
    %v10963 = vpop.f32.mrb[0].mxu0
    %v10964 = vadd.f32 0.0, %v10963
    %v10965 = vpop.f32.mrb[0].mxu0
    %10966 = vmatprep.mubr.f32.mxu0 0.0
    %10967 = vmatmul.mubr.f32.gmra.mrb[0].mxu0 %v10869
    %v10968 = vpop.f32.mrb[0].mxu0
    %v10969 = vadd.f32 0.0, %v10968
    %v10970 = vpop.f32.mrb[0].mxu0
    %10971 = vmatprep.mubr.f32.mxu0 0.0
    %10972 = vmatmul.mubr.f32.gmra.mrb[0].mxu0 %v10872
    %v10973 = vpop.f32.mrb[0].mxu0
    %v10974 = vadd.f32 0.0, %v10973
    %v10975 = vpop.f32.mrb[0].mxu0
    %10976 = vmatprep.mubr.f32.mxu0 0.0
    %10977 = vmatmul.mubr.f32.gmra.mrb[0].mxu0 %v10875
    %v10978 = vpop.f32.mrb[0].mxu0
    %v10979 = vadd.f32 0.0, %v10978
    %v10980 = vpop.f32.mrb[0].mxu0
    %10981 = vdwg.mxu0
    %v10982 = vadd.f32 %v10836, %v10944
    %v10983 = vadd.f32 %v10837, %v10949
    %v10984 = vadd.f32 %v10838, %v10954
    %v10985 = vadd.f32 %v10839, %v10959
    %v10986 = vadd.f32 %v10840, %v10964
    %v10987 = vadd.f32 %v10841, %v10969
    %v10988 = vadd.f32 %v10842, %v10974
    %v10989 = vadd.f32 %v10843, %v10979
    %v10990 = vld [vmem:[%s6] sm:$0xff]
    %v10991 = vld [vmem:[%s6 + $0x8] sm:$0xff]
    %v10992 = vld [vmem:[%s6 + $0x10] sm:$0xff]
    %v10993 = vld [vmem:[%s6 + $0x18] sm:$0xff]
    %v10994 = vld [vmem:[%s6 + $0x20] sm:$0xff]
    %v10995 = vld [vmem:[%s6 + $0x28] sm:$0xff]
    %v10996 = vld [vmem:[%s6 + $0x30] sm:$0xff]
    %v10997 = vld [vmem:[%s6 + $0x38] sm:$0xff]
    %10999 = vset.pattern.permute.xlu0 0
    %11000 = vperm.xlu0 %10999, %v10990
    %v11001 = vpop.permute.xlu0 %11000
    %11004 = vset.pattern.permute.xlu0 0
    %11005 = vperm.xlu0 %11004, %v10991
    %v11006 = vpop.permute.xlu0 %11005
    %11009 = vset.pattern.permute.xlu0 0
    %11010 = vperm.xlu0 %11009, %v10992
    %v11011 = vpop.permute.xlu0 %11010
    %11014 = vset.pattern.permute.xlu0 0
    %11015 = vperm.xlu0 %11014, %v10993
    %v11016 = vpop.permute.xlu0 %11015
    %11019 = vset.pattern.permute.xlu0 0
    %11020 = vperm.xlu0 %11019, %v10994
    %v11021 = vpop.permute.xlu0 %11020
    %11024 = vset.pattern.permute.xlu0 0
    %11025 = vperm.xlu0 %11024, %v10995
    %v11026 = vpop.permute.xlu0 %11025
    %11029 = vset.pattern.permute.xlu0 0
    %11030 = vperm.xlu0 %11029, %v10996
    %v11031 = vpop.permute.xlu0 %11030
    %11034 = vset.pattern.permute.xlu0 0
    %11035 = vperm.xlu0 %11034, %v10997
    %v11036 = vpop.permute.xlu0 %11035
    %v11038 = vadd.f32 %v10982, %v11001
    %v11039 = vadd.f32 %v10983, %v11006
    %v11040 = vadd.f32 %v10984, %v11011
    %v11041 = vadd.f32 %v10985, %v11016
    %v11042 = vadd.f32 %v10986, %v11021
    %v11043 = vadd.f32 %v10987, %v11026
    %v11044 = vadd.f32 %v10988, %v11031
    %v11045 = vadd.f32 %v10989, %v11036
    %v11046 = vmax.f32 %v11038, 0.0
    %v11047 = vmax.f32 %v11039, 0.0
    %v11048 = vmax.f32 %v11040, 0.0
    %v11049 = vmax.f32 %v11041, 0.0
    %v11050 = vmax.f32 %v11042, 0.0
    %v11051 = vmax.f32 %v11043, 0.0
    %v11052 = vmax.f32 %v11044, 0.0
    %v11053 = vmax.f32 %v11045, 0.0
    %v11054 = vld [vmem:[%s7] sm:$0xff]
    %v11055 = vld [vmem:[%s7 + $0x8] sm:$0xff]
    %v11056 = vld [vmem:[%s7 + $0x10] sm:$0xff]
    %v11057 = vld [vmem:[%s7 + $0x18] sm:$0xff]
    %v11058 = vld [vmem:[%s7 + $0x20] sm:$0xff]
    %v11059 = vld [vmem:[%s7 + $0x28] sm:$0xff]
    %v11060 = vld [vmem:[%s7 + $0x30] sm:$0x3]
    %v11061 = vld [vmem:[%s8] sm:$0xff]
    %v11062 = vld [vmem:[%s8 + $0x8] sm:$0xff]
    %v11063 = vld [vmem:[%s8 + $0x10] sm:$0xff]
    %v11064 = vld [vmem:[%s8 + $0x18] sm:$0xff]
    %v11065 = vld [vmem:[%s8 + $0x20] sm:$0xff]
    %v11066 = vld [vmem:[%s8 + $0x28] sm:$0xff]
    %v11067 = vld [vmem:[%s8 + $0x30] sm:$0x3]
    %11069 = vset.pattern.permute.xlu0 0
    %11070 = vperm.xlu0 %11069, %v11061
    %v11071 = vpop.permute.xlu0 %11070
    %11074 = vset.pattern.permute.xlu0 0
    %11075 = vperm.xlu0 %11074, %v11062
    %v11076 = vpop.permute.xlu0 %11075
    %11079 = vset.pattern.permute.xlu0 0
    %11080 = vperm.xlu0 %11079, %v11063
    %v11081 = vpop.permute.xlu0 %11080
    %11084 = vset.pattern.permute.xlu0 0
    %11085 = vperm.xlu0 %11084, %v11064
    %v11086 = vpop.permute.xlu0 %11085
    %11089 = vset.pattern.permute.xlu0 0
    %11090 = vperm.xlu0 %11089, %v11065
    %v11091 = vpop.permute.xlu0 %11090
    %11094 = vset.pattern.permute.xlu0 0
    %11095 = vperm.xlu0 %11094, %v11066
    %v11096 = vpop.permute.xlu0 %11095
    %11099 = vset.pattern.permute.xlu0 0
    %11100 = vperm.xlu0 %11099, %v11067
    %v11101 = vpop.permute.xlu0 %11100
    %vm11103 = vcmask 523264
    %v11105 = vsel %vm11103, %v11054, 0
    %v11108 = vsel %vm11103, %v11055, 0
    %v11111 = vsel %vm11103, %v11056, 0
    %v11114 = vsel %vm11103, %v11057, 0
    %v11117 = vsel %vm11103, %v11058, 0
    %v11120 = vsel %vm11103, %v11059, 0
    %v11123 = vsel %vm11103, %v11060, 0
    %11125 = vmatprep.subr.mxu0 0.0
    %11126 = vmatpush1.msra.mxu0 %v11046
    %11127 = vmatprep.subr.mxu0 0.0
    %11128 = vmatpush1.msra.mxu0 %v11047
    %11129 = vmatprep.subr.mxu0 0.0
    %11130 = vmatpush1.msra.mxu0 %v11048
    %11131 = vmatprep.subr.mxu0 0.0
    %11132 = vmatpush1.msra.mxu0 %v11049
    %11133 = vmatprep.subr.mxu0 0.0
    %11134 = vmatpush1.msra.mxu0 %v11050
    %11135 = vmatprep.subr.mxu0 0.0
    %11136 = vmatpush1.msra.mxu0 %v11051
    %11137 = vmatprep.subr.mxu0 0.0
    %11138 = vmatpush1.msra.mxu0 %v11052
    %11139 = vmatprep.subr.mxu0 0.0
    %11140 = vmatpush1.msra.mxu0 %v11053
    %11141 = vmatprep.subr.mxu0 0.0
    %11142 = vmatpush1.msra.mxu0 0.0
    %11143 = vmatprep.subr.mxu0 0.0
    %11144 = vmatpush1.msra.mxu0 0.0
    %11145 = vmatprep.subr.mxu0 0.0
    %11146 = vmatpush1.msra.mxu0 0.0
    %11147 = vmatprep.subr.mxu0 0.0
    %11148 = vmatpush1.msra.mxu0 0.0
    %11149 = vmatprep.subr.mxu0 0.0
    %11150 = vmatpush1.msra.mxu0 0.0
    %11151 = vmatprep.subr.mxu0 0.0
    %11152 = vmatpush1.msra.mxu0 0.0
    %11153 = vmatprep.subr.mxu0 0.0
    %11154 = vmatpush1.msra.mxu0 0.0
    %11155 = vmatprep.subr.mxu0 0.0
    %11156 = vmatpush1.msra.mxu0 0.0
    %11157 = vmatprep.subr.mxu0 0.0
    %11158 = vmatpush1.msra.mxu0 0.0
    %11159 = vmatprep.subr.mxu0 0.0
    %11160 = vmatpush1.msra.mxu0 0.0
    %11161 = vmatprep.subr.mxu0 0.0
    %11162 = vmatpush1.msra.mxu0 0.0
    %11163 = vmatprep.subr.mxu0 0.0
    %11164 = vmatpush1.msra.mxu0 0.0
    %11165 = vmatprep.subr.mxu0 0.0
    %11166 = vmatpush1.msra.mxu0 0.0
    %11167 = vmatprep.subr.mxu0 0.0
    %11168 = vmatpush1.msra.mxu0 0.0
    %11169 = vmatprep.subr.mxu0 0.0
    %11170 = vmatpush1.msra.mxu0 0.0
    %11171 = vmatprep.subr.mxu0 0.0
    %11172 = vmatpush1.msra.mxu0 0.0
    %11173 = vmatprep.subr.mxu0 0.0
    %11174 = vmatpush1.msra.mxu0 0.0
    %11175 = vmatprep.subr.mxu0 0.0
    %11176 = vmatpush1.msra.mxu0 0.0
    %11177 = vmatprep.subr.mxu0 0.0
    %11178 = vmatpush1.msra.mxu0 0.0
    %11179 = vmatprep.subr.mxu0 0.0
    %11180 = vmatpush1.msra.mxu0 0.0
    %11181 = vmatprep.subr.mxu0 0.0
    %11182 = vmatpush1.msra.mxu0 0.0
    %11183 = vmatprep.subr.mxu0 0.0
    %11184 = vmatpush1.msra.mxu0 0.0
    %11185 = vmatprep.subr.mxu0 0.0
    %11186 = vmatpush1.msra.mxu0 0.0
    %11187 = vmatprep.subr.mxu0 0.0
    %11188 = vmatpush1.msra.mxu0 0.0
    %11189 = vmatprep.mubr.f32.mxu0 0.0
    %11190 = vmatmul.mubr.f32.gmra.mrb[0].mxu0 %v11105
    %v11191 = vpop.f32.mrb[0].mxu0
    %v11192 = vadd.f32 %v11071, %v11191
    %v11193 = vpop.f32.mrb[0].mxu0
    %11194 = vmatprep.mubr.f32.mxu0 0.0
    %11195 = vmatmul.mubr.f32.gmra.mrb[0].mxu0 %v11108
    %v11196 = vpop.f32.mrb[0].mxu0
    %v11197 = vadd.f32 %v11076, %v11196
    %v11198 = vpop.f32.mrb[0].mxu0
    %11199 = vmatprep.mubr.f32.mxu0 0.0
    %11200 = vmatmul.mubr.f32.gmra.mrb[0].mxu0 %v11111
    %v11201 = vpop.f32.mrb[0].mxu0
    %v11202 = vadd.f32 %v11081, %v11201
    %v11203 = vpop.f32.mrb[0].mxu0
    %11204 = vmatprep.mubr.f32.mxu0 0.0
    %11205 = vmatmul.mubr.f32.gmra.mrb[0].mxu0 %v11114
    %v11206 = vpop.f32.mrb[0].mxu0
    %v11207 = vadd.f32 %v11086, %v11206
    %v11208 = vpop.f32.mrb[0].mxu0
    %11209 = vmatprep.mubr.f32.mxu0 0.0
    %11210 = vmatmul.mubr.f32.gmra.mrb[0].mxu0 %v11117
    %v11211 = vpop.f32.mrb[0].mxu0
    %v11212 = vadd.f32 %v11091, %v11211
    %v11213 = vpop.f32.mrb[0].mxu0
    %11214 = vmatprep.mubr.f32.mxu0 0.0
    %11215 = vmatmul.mubr.f32.gmra.mrb[0].mxu0 %v11120
    %v11216 = vpop.f32.mrb[0].mxu0
    %v11217 = vadd.f32 %v11096, %v11216
    %v11218 = vpop.f32.mrb[0].mxu0
    %11219 = vmatprep.mubr.f32.mxu0 0.0
    %11220 = vmatmul.mubr.f32.gmra.mrb[0].mxu0 %v11123
    %v11221 = vpop.f32.mrb[0].mxu0
    %v11222 = vadd.f32 %v11101, %v11221
    %v11223 = vpop.f32.mrb[0].mxu0
    %11224 = vdwg.mxu0
    %11225 = vst [vmem:[#allocation2] sm:$0xff] %v11192
    %11226 = vst [vmem:[#allocation2 + $0x8] sm:$0xff] %v11197
    %11227 = vst [vmem:[#allocation2 + $0x10] sm:$0xff] %v11202
    %11228 = vst [vmem:[#allocation2 + $0x18] sm:$0xff] %v11207
    %11229 = vst [vmem:[#allocation2 + $0x20] sm:$0xff] %v11212
    %11230 = vst [vmem:[#allocation2 + $0x28] sm:$0xff] %v11217
    %11231 = vst [vmem:[#allocation2 + $0x30] sm:$0x3] %v11222
    // Predicated region
    $region38: #{tpu_custom_call.1} parent=1 // pred_check
      _
    $region39: #{tpu_custom_call.1} parent=1 // pred_check_branch
      %11233 = sbr.rel (0) target = $region41
    $region40: #{tpu_custom_call.1} parent=1 // pred_region
      %s11235 = ssub.s32 896, 896
      %11236 = vsyncadd [#allocation3], %s11235
      %s11237 = sshll.u32 [#allocation2], 4
      %s11238 = int_to_ptr.vmem [resolvable:$true] %s11237
      %11243 = dma.vmem_to_hbm [thread:$0]  %s11238, 896, %s9, [#allocation3], 128, 128, 8
    $region41: #{tpu_custom_call.1} parent=1 // pred_fallthru
      _
    // Predicated region
    $region42: #{tpu_custom_call.1} parent=1 // pred_check
      _
    $region43: #{tpu_custom_call.1} parent=1 // pred_check_branch
      %11245 = sbr.rel (0) target = $region45
    $region44: #{tpu_custom_call.1} parent=1 // pred_region
      %11246 = dma.done [#allocation3], 896
    $region45: #{tpu_custom_call.1} parent=1 // pred_fallthru
      _
    %11247 = vsyncpa [#allocation3], 1

</llo_original>
